<compile_context>
chip_gen: v7x
topology: tpu7x:2x2x1
jax: 0.10.0
libtpu: 0.0.40
codegen_flags: <defaults>
</compile_context>

<pallas_src>
import numpy as np
import jax
import jax.numpy as jnp
from jax import lax
from jax.experimental import pallas as pl
from jax.experimental.pallas import tpu as pltpu


def _adaptive_bins(in_size, out_size):
    """PyTorch AdaptiveMaxPool bin boundaries."""
    starts = [(j * in_size) // out_size for j in range(out_size)]
    ends = [-(-((j + 1) * in_size) // out_size) for j in range(out_size)]  # ceil
    return starts, ends


def _round_up(x, m):
    return -(-x // m) * m


def make_textcnn_kernel(BN, C, H, W, K1, K2, POOL, DIM):
    """Build the fused kernel + host-precomputed consolidated selection matrices."""
    H1, W1 = H - K1 + 1, W - K1 + 1                              # conv1 output
    PH, PW = (H1 - POOL) // POOL + 1, (W1 - POOL) // POOL + 1    # after MaxPool2d (floor)
    H2, W2 = PH - K2 + 1, PW - K2 + 1                            # conv2 output
    assert H2 >= 1 and W2 >= 1, "example shapes too small for the kernel sizes"

    H1P = _round_up(H1, 8)    # 8-aligned per-channel block in the conv1 slab (14 -> 16)
    PHP = _round_up(PH, 8)    # 8-aligned per-channel block in the pooled slab (7 -> 8)

    starts, ends = _adaptive_bins(W2, DIM)
    NQ = max(e - s for s, e in zip(starts, ends))                # max adaptive-bin width

    # ---- host-precomputed, CONSOLIDATED 0/1 selection matrices ----
    # MaxPool2d columns: all POOL phases side by side -> one matmul, then lane-group max.
    col_sel = np.zeros((W1, POOL * PW), np.float32)
    for q in range(POOL):
        for p in range(PW):
            col_sel[POOL * p + q, q * PW + p] = 1.0
    # MaxPool2d rows: block-diagonal over channels (padded layout), POOL phases stacked
    # along output rows -> one matmul per sample, then 8-aligned sublane-group max.
    row_sel = np.zeros((POOL * C * PHP, C * H1P), np.float32)
    for q in range(POOL):
        for c in range(C):
            for p in range(PH):
                row_sel[q * C * PHP + c * PHP + p, c * H1P + POOL * p + q] = 1.0
    # Adaptive-max bins over W2 -> DIM: all NQ in-bin offsets side by side.
    bin_sel = np.zeros((W2, NQ * DIM), np.float32)
    for q in range(NQ):
        for j in range(DIM):
            bin_sel[min(starts[j] + q, ends[j] - 1), q * DIM + j] = 1.0

    def kernel(w1_ref, b1_ref, w2_ref, b2_ref,                # scalar prefetch (SMEM)
               x_ref, colsel_ref, rowsel_ref, binsel_ref,     # VMEM inputs
               o_ref,                                          # VMEM output (BN, DIM)
               yslab_ref):                                     # VMEM scratch (BN, C*H1P, W1)
        f32 = jnp.float32

        # ---- conv1 (+ folded BN scale): each shifted window loaded ONCE per (ci,dy,dx)
        #      and shared by all C output channels AND all BN samples of the block. ----
        acc1 = [jnp.zeros((BN, H1, W1), f32) for _ in range(C)]
        for ci in range(C):
            for dy in range(K1):
                for dx in range(K1):
                    win = x_ref[:, ci, dy:dy + H1, dx:dx + W1]        # (BN, H1, W1)
                    for co in range(C):
                        wv = w1_ref[((co * C + ci) * K1 + dy) * K1 + dx]
                        acc1[co] = acc1[co] + wv * win

        # BN shift + ReLU, written into the 8-aligned channel-blocked slab scratch.
        # (Zero first so the 2 pad rows per channel stay finite -> 0*pad is exact.)
        yslab_ref[...] = jnp.zeros_like(yslab_ref)
        for co in range(C):
            yslab_ref[:, co * H1P: co * H1P + H1, :] = (
                jnp.maximum(acc1[co] + b1_ref[co], 0.0))

        # ---- MaxPool2d(POOL) ----
        # Column direction: ONE matmul for all samples & channels (leading dims collapse
        # onto sublanes for free since C*H1P is a multiple of 8), then lane-group max.
        lhs = yslab_ref[...].reshape(BN * C * H1P, W1)
        hm_wide = jnp.dot(lhs, colsel_ref[...], preferred_element_type=f32)
        hmax = hm_wide[:, 0:PW]
        for q in range(1, POOL):
            hmax = jnp.maximum(hmax, hm_wide[:, q * PW:(q + 1) * PW])
        # Row direction: ONE matmul per sample with the POOL-stacked selector; the group
        # max slices at C*PHP (multiple of 8) sublane offsets -> zero-cost relayout.
        rowsel = rowsel_ref[...]
        pooled_l = []
        for b in range(BN):
            pr_wide = jnp.dot(rowsel, hmax[b * C * H1P:(b + 1) * C * H1P, :],
                              preferred_element_type=f32)
            pr = pr_wide[0:C * PHP, :]
            for q in range(1, POOL):
                pr = jnp.maximum(pr, pr_wide[q * C * PHP:(q + 1) * C * PHP, :])
            pooled_l.append(pr)
        pooled = jnp.stack(pooled_l, axis=0)          # (BN, C*PHP, PW) — stays on-chip

        # ---- conv2 (+ folded BN) + ReLU, channel-max fused (commutes with max pools) ----
        acc2 = [jnp.zeros((BN, H2, W2), f32) for _ in range(C)]
        for ci in range(C):
            for dy in range(K2):
                for dx in range(K2):
                    win = pooled[:, ci * PHP + dy: ci * PHP + dy + H2, dx:dx + W2]
                    for co in range(C):
                        wv = w2_ref[((co * C + ci) * K2 + dy) * K2 + dx]
                        acc2[co] = acc2[co] + wv * win
        z = jnp.maximum(acc2[0] + b2_ref[0], 0.0)
        for co in range(1, C):
            z = jnp.maximum(z, jnp.maximum(acc2[co] + b2_ref[co], 0.0))   # (BN, H2, W2)

        # ---- AdaptiveMaxPool2d((1, DIM)) + final pool ----
        # H2-max first (commutes with the column gather), then ONE bin matmul for all
        # samples, then the NQ lane-group max; single (BN, DIM) store per grid step.
        zrow = jnp.max(z, axis=1)                                         # (BN, W2)
        zb = jnp.dot(zrow, binsel_ref[...], preferred_element_type=f32)   # (BN, NQ*DIM)
        out = zb[:, 0:DIM]
        for q in range(1, NQ):
            out = jnp.maximum(out, zb[:, q * DIM:(q + 1) * DIM])
        o_ref[...] = out.astype(o_ref.dtype)

    shapes = dict(H1=H1, W1=W1, H1P=H1P, PH=PH, PHP=PHP, PW=PW, H2=H2, W2=W2, NQ=NQ)
    consts = (jnp.asarray(col_sel), jnp.asarray(row_sel), jnp.asarray(bin_sel))
    return kernel, consts, shapes


def textcnn_forward(x, params, kernel_size=(3, 3), pool_size=2, dim=8):
    """Pallas implementation of TextCNN.forward (method='max', eval-mode BN)."""
    N, C, H, W = x.shape
    K1, K2 = kernel_size
    (w1, b1, g1, bt1, m1, v1, w2, b2, g2, bt2, m2, v2) = params
    eps = 1e-5

    # Fold eval-mode BatchNorm into the conv weights (scale) and a per-channel shift.
    s1 = g1 / jnp.sqrt(v1 + eps)
    w1e = (w1 * s1[:, None, None, None]).reshape(-1).astype(jnp.float32)
    b1e = ((b1 - m1) * s1 + bt1).astype(jnp.float32)
    s2 = g2 / jnp.sqrt(v2 + eps)
    w2e = (w2 * s2[:, None, None, None]).reshape(-1).astype(jnp.float32)
    b2e = ((b2 - m2) * s2 + bt2).astype(jnp.float32)

    # Batch a block of BN samples per grid step (review item #1). BN is chosen so the
    # output block's sublane dim is either the full batch or a multiple of 8.
    if N <= 8:
        BN, Np = N, N
    else:
        BN = 8
        Np = _round_up(N, BN)
    x_p = x.astype(jnp.float32)
    if Np != N:
        x_p = jnp.pad(x_p, ((0, Np - N), (0, 0), (0, 0), (0, 0)))   # pad samples, sliced off below

    kernel, (col_sel, row_sel, bin_sel), shp = make_textcnn_kernel(
        BN, C, H, W, K1, K2, pool_size, dim)
    H1P, W1 = shp["H1P"], shp["W1"]

    grid_spec = pltpu.PrefetchScalarGridSpec(
        num_scalar_prefetch=4,                       # w1e, b1e, w2e, b2e -> SMEM
        grid=(Np // BN,),                            # one grid step per BN-sample block
        in_specs=[
            pl.BlockSpec((BN, C, H, W), lambda g, *_: (g, 0, 0, 0)),
            pl.BlockSpec(tuple(col_sel.shape), lambda g, *_: (0, 0)),
            pl.BlockSpec(tuple(row_sel.shape), lambda g, *_: (0, 0)),
            pl.BlockSpec(tuple(bin_sel.shape), lambda g, *_: (0, 0)),
        ],
        out_specs=pl.BlockSpec((BN, dim), lambda g, *_: (g, 0)),
        scratch_shapes=[pltpu.VMEM((BN, C * H1P, W1), jnp.float32)],
    )
    out = pl.pallas_call(
        kernel,
        out_shape=jax.ShapeDtypeStruct((Np, dim), jnp.float32),
        grid_spec=grid_spec,
        compiler_params=pltpu.CompilerParams(
            dimension_semantics=("parallel",),        # shard blocks across v7x's 2 TCs
            vmem_limit_bytes=32 * 1024 * 1024),       # explicit, safe on v5e/v6e/v7x
    )(w1e, b1e, w2e, b2e, x_p, col_sel, row_sel, bin_sel)
    return out[:N]


def textcnn_reference(x, params, kernel_size=(3, 3), pool_size=2, dim=8):
    """Pure-JAX reference mirroring the PyTorch forward (eval-mode BN)."""
    (w1, b1, g1, bt1, m1, v1, w2, b2, g2, bt2, m2, v2) = params
    eps = 1e-5

    def conv(x, w, b):
        y = lax.conv_general_dilated(x, w, (1, 1), 'VALID',
                                     dimension_numbers=('NCHW', 'OIHW', 'NCHW'))
        return y + b[None, :, None, None]

    def bn(x, g, bt, m, v):
        return (x - m[None, :, None, None]) * (
            g[None, :, None, None] / jnp.sqrt(v[None, :, None, None] + eps)
        ) + bt[None, :, None, None]

    def adaptive_max_last(x, out_w):
        Wd = x.shape[-1]
        cols = []
        for j in range(out_w):
            s = (j * Wd) // out_w
            e = ((j + 1) * Wd + out_w - 1) // out_w
            cols.append(x[..., s:e].max(axis=-1))
        return jnp.stack(cols, axis=-1)

    y = jnp.maximum(bn(conv(x, w1, b1), g1, bt1, m1, v1), 0.0)
    N, C, Hh, Ww = y.shape
    p = pool_size
    y = y[:, :, :(Hh // p) * p, :(Ww // p) * p]
    y = y.reshape(N, C, Hh // p, p, Ww // p, p).max(axis=(3, 5))           # MaxPool2d
    y = jnp.maximum(bn(conv(y, w2, b2), g2, bt2, m2, v2), 0.0)
    y = y.max(axis=2)                                                      # adaptive H -> 1
    y = adaptive_max_last(y, dim)                                          # adaptive W -> dim
    y = adaptive_max_last(y, dim)                                          # stage-3 W (identity)
    return y.max(axis=1)                                                   # stage-3 H(=C) -> 1


if __name__ == "__main__":
    N, C, H, W = 2, 4, 16, 16
    kernel_size = (3, 3)
    pool_size = 2
    dim = 8
    f32 = jnp.float32

    key = jax.random.PRNGKey(0)
    keys = jax.random.split(key, 13)
    w1 = 0.2 * jax.random.normal(keys[0], (C, C, kernel_size[0], kernel_size[0]), f32)
    b1 = 0.1 * jax.random.normal(keys[1], (C,), f32)
    g1 = 1.0 + 0.1 * jax.random.normal(keys[2], (C,), f32)
    bt1 = 0.1 * jax.random.normal(keys[3], (C,), f32)
    m1 = 0.05 * jax.random.normal(keys[4], (C,), f32)
    v1 = jax.random.uniform(keys[5], (C,), f32, 0.5, 1.5)
    w2 = 0.2 * jax.random.normal(keys[6], (C, C, kernel_size[1], kernel_size[1]), f32)
    b2 = 0.1 * jax.random.normal(keys[7], (C,), f32)
    g2 = 1.0 + 0.1 * jax.random.normal(keys[8], (C,), f32)
    bt2 = 0.1 * jax.random.normal(keys[9], (C,), f32)
    m2 = 0.05 * jax.random.normal(keys[10], (C,), f32)
    v2 = jax.random.uniform(keys[11], (C,), f32, 0.5, 1.5)
    params = (w1, b1, g1, bt1, m1, v1, w2, b2, g2, bt2, m2, v2)

    x = jax.random.normal(keys[12], (N, C, H, W), f32)

    fwd = jax.jit(lambda xx, pp: textcnn_forward(xx, pp, kernel_size, pool_size, dim))
    out = jax.block_until_ready(fwd(x, params))

    ref = textcnn_reference(x, params, kernel_size, pool_size, dim)
    assert out.shape == (N, dim), out.shape
    if not jnp.allclose(out, ref, atol=1e-3, rtol=1e-3):
        raise AssertionError(f"mismatch: max abs err = {jnp.max(jnp.abs(out - ref))}")
    print("KERNEL_OK")
</pallas_src>

<mosaic_0001>
module attributes {stable_mosaic.version = 11 : i64} {
  func.func @kernel(%arg0: i32, %arg1: memref<144xf32, #tpu.memory_space<smem>>, %arg2: memref<4xf32, #tpu.memory_space<smem>>, %arg3: memref<144xf32, #tpu.memory_space<smem>>, %arg4: memref<4xf32, #tpu.memory_space<smem>>, %arg5: memref<2x4x16x16xf32, #tpu.memory_space<vmem>>, %arg6: memref<14x14xf32, #tpu.memory_space<vmem>>, %arg7: memref<64x64xf32, #tpu.memory_space<vmem>>, %arg8: memref<5x16xf32, #tpu.memory_space<vmem>>, %arg9: memref<2x8xf32, #tpu.memory_space<vmem>>, %arg10: memref<2x64x14xf32, #tpu.memory_space<vmem>>) attributes {dimension_semantics = [#tpu.dimension_semantics<parallel>], iteration_bounds = array<i64: 1>, scalar_prefetch = 4 : i64, scratch_operands = 1 : i64, tpu.core_type = #tpu.core_type<tc>, window_params = [{transform_indices = @transform_0, window_bounds = array<i64: 2, 4, 16, 16>}, {pipeline_mode = #tpu.pipeline_mode<synchronous>, transform_indices = @transform_1, window_bounds = array<i64: 14, 14>}, {pipeline_mode = #tpu.pipeline_mode<synchronous>, transform_indices = @transform_2, window_bounds = array<i64: 64, 64>}, {pipeline_mode = #tpu.pipeline_mode<synchronous>, transform_indices = @transform_3, window_bounds = array<i64: 5, 16>}, {transform_indices = @transform_4, window_bounds = array<i64: 2, 8>}]} {
    %cst = arith.constant 0.000000e+00 : f32
    %0 = vector.broadcast %cst : f32 to vector<2x14x14xf32>
    %cst_0 = arith.constant 0.000000e+00 : f32
    %1 = vector.broadcast %cst_0 : f32 to vector<2x14x14xf32>
    %cst_1 = arith.constant 0.000000e+00 : f32
    %2 = vector.broadcast %cst_1 : f32 to vector<2x14x14xf32>
    %cst_2 = arith.constant 0.000000e+00 : f32
    %3 = vector.broadcast %cst_2 : f32 to vector<2x14x14xf32>
    %c0 = arith.constant 0 : index
    %c0_3 = arith.constant 0 : index
    %c0_4 = arith.constant 0 : index
    %c0_5 = arith.constant 0 : index
    %4 = vector.load %arg5[%c0, %c0_3, %c0_4, %c0_5] : memref<2x4x16x16xf32, #tpu.memory_space<vmem>>, vector<2x1x14x14xf32>
    %5 = vector.shape_cast %4 : vector<2x1x14x14xf32> to vector<2x14x14xf32>
    %c0_6 = arith.constant 0 : index
    %6 = memref.load %arg1[%c0_6] : memref<144xf32, #tpu.memory_space<smem>>
    %7 = vector.broadcast %6 : f32 to vector<2x14x14xf32>
    %8 = arith.mulf %7, %5 : vector<2x14x14xf32>
    %9 = arith.addf %0, %8 : vector<2x14x14xf32>
    %c36 = arith.constant 36 : index
    %10 = memref.load %arg1[%c36] : memref<144xf32, #tpu.memory_space<smem>>
    %11 = vector.broadcast %10 : f32 to vector<2x14x14xf32>
    %12 = arith.mulf %11, %5 : vector<2x14x14xf32>
    %13 = arith.addf %1, %12 : vector<2x14x14xf32>
    %c72 = arith.constant 72 : index
    %14 = memref.load %arg1[%c72] : memref<144xf32, #tpu.memory_space<smem>>
    %15 = vector.broadcast %14 : f32 to vector<2x14x14xf32>
    %16 = arith.mulf %15, %5 : vector<2x14x14xf32>
    %17 = arith.addf %2, %16 : vector<2x14x14xf32>
    %c108 = arith.constant 108 : index
    %18 = memref.load %arg1[%c108] : memref<144xf32, #tpu.memory_space<smem>>
    %19 = vector.broadcast %18 : f32 to vector<2x14x14xf32>
    %20 = arith.mulf %19, %5 : vector<2x14x14xf32>
    %21 = arith.addf %3, %20 : vector<2x14x14xf32>
    %c0_7 = arith.constant 0 : index
    %c0_8 = arith.constant 0 : index
    %c0_9 = arith.constant 0 : index
    %c1 = arith.constant 1 : index
    %22 = vector.load %arg5[%c0_7, %c0_8, %c0_9, %c1] : memref<2x4x16x16xf32, #tpu.memory_space<vmem>>, vector<2x1x14x14xf32>
    %23 = vector.shape_cast %22 : vector<2x1x14x14xf32> to vector<2x14x14xf32>
    %c1_10 = arith.constant 1 : index
    %24 = memref.load %arg1[%c1_10] : memref<144xf32, #tpu.memory_space<smem>>
    %25 = vector.broadcast %24 : f32 to vector<2x14x14xf32>
    %26 = arith.mulf %25, %23 : vector<2x14x14xf32>
    %27 = arith.addf %9, %26 : vector<2x14x14xf32>
    %c37 = arith.constant 37 : index
    %28 = memref.load %arg1[%c37] : memref<144xf32, #tpu.memory_space<smem>>
    %29 = vector.broadcast %28 : f32 to vector<2x14x14xf32>
    %30 = arith.mulf %29, %23 : vector<2x14x14xf32>
    %31 = arith.addf %13, %30 : vector<2x14x14xf32>
    %c73 = arith.constant 73 : index
    %32 = memref.load %arg1[%c73] : memref<144xf32, #tpu.memory_space<smem>>
    %33 = vector.broadcast %32 : f32 to vector<2x14x14xf32>
    %34 = arith.mulf %33, %23 : vector<2x14x14xf32>
    %35 = arith.addf %17, %34 : vector<2x14x14xf32>
    %c109 = arith.constant 109 : index
    %36 = memref.load %arg1[%c109] : memref<144xf32, #tpu.memory_space<smem>>
    %37 = vector.broadcast %36 : f32 to vector<2x14x14xf32>
    %38 = arith.mulf %37, %23 : vector<2x14x14xf32>
    %39 = arith.addf %21, %38 : vector<2x14x14xf32>
    %c0_11 = arith.constant 0 : index
    %c0_12 = arith.constant 0 : index
    %c0_13 = arith.constant 0 : index
    %c2 = arith.constant 2 : index
    %40 = vector.load %arg5[%c0_11, %c0_12, %c0_13, %c2] : memref<2x4x16x16xf32, #tpu.memory_space<vmem>>, vector<2x1x14x14xf32>
    %41 = vector.shape_cast %40 : vector<2x1x14x14xf32> to vector<2x14x14xf32>
    %c2_14 = arith.constant 2 : index
    %42 = memref.load %arg1[%c2_14] : memref<144xf32, #tpu.memory_space<smem>>
    %43 = vector.broadcast %42 : f32 to vector<2x14x14xf32>
    %44 = arith.mulf %43, %41 : vector<2x14x14xf32>
    %45 = arith.addf %27, %44 : vector<2x14x14xf32>
    %c38 = arith.constant 38 : index
    %46 = memref.load %arg1[%c38] : memref<144xf32, #tpu.memory_space<smem>>
    %47 = vector.broadcast %46 : f32 to vector<2x14x14xf32>
    %48 = arith.mulf %47, %41 : vector<2x14x14xf32>
    %49 = arith.addf %31, %48 : vector<2x14x14xf32>
    %c74 = arith.constant 74 : index
    %50 = memref.load %arg1[%c74] : memref<144xf32, #tpu.memory_space<smem>>
    %51 = vector.broadcast %50 : f32 to vector<2x14x14xf32>
    %52 = arith.mulf %51, %41 : vector<2x14x14xf32>
    %53 = arith.addf %35, %52 : vector<2x14x14xf32>
    %c110 = arith.constant 110 : index
    %54 = memref.load %arg1[%c110] : memref<144xf32, #tpu.memory_space<smem>>
    %55 = vector.broadcast %54 : f32 to vector<2x14x14xf32>
    %56 = arith.mulf %55, %41 : vector<2x14x14xf32>
    %57 = arith.addf %39, %56 : vector<2x14x14xf32>
    %c0_15 = arith.constant 0 : index
    %c0_16 = arith.constant 0 : index
    %c1_17 = arith.constant 1 : index
    %c0_18 = arith.constant 0 : index
    %58 = vector.load %arg5[%c0_15, %c0_16, %c1_17, %c0_18] : memref<2x4x16x16xf32, #tpu.memory_space<vmem>>, vector<2x1x14x14xf32>
    %59 = vector.shape_cast %58 : vector<2x1x14x14xf32> to vector<2x14x14xf32>
    %c3 = arith.constant 3 : index
    %60 = memref.load %arg1[%c3] : memref<144xf32, #tpu.memory_space<smem>>
    %61 = vector.broadcast %60 : f32 to vector<2x14x14xf32>
    %62 = arith.mulf %61, %59 : vector<2x14x14xf32>
    %63 = arith.addf %45, %62 : vector<2x14x14xf32>
    %c39 = arith.constant 39 : index
    %64 = memref.load %arg1[%c39] : memref<144xf32, #tpu.memory_space<smem>>
    %65 = vector.broadcast %64 : f32 to vector<2x14x14xf32>
    %66 = arith.mulf %65, %59 : vector<2x14x14xf32>
    %67 = arith.addf %49, %66 : vector<2x14x14xf32>
    %c75 = arith.constant 75 : index
    %68 = memref.load %arg1[%c75] : memref<144xf32, #tpu.memory_space<smem>>
    %69 = vector.broadcast %68 : f32 to vector<2x14x14xf32>
    %70 = arith.mulf %69, %59 : vector<2x14x14xf32>
    %71 = arith.addf %53, %70 : vector<2x14x14xf32>
    %c111 = arith.constant 111 : index
    %72 = memref.load %arg1[%c111] : memref<144xf32, #tpu.memory_space<smem>>
    %73 = vector.broadcast %72 : f32 to vector<2x14x14xf32>
    %74 = arith.mulf %73, %59 : vector<2x14x14xf32>
    %75 = arith.addf %57, %74 : vector<2x14x14xf32>
    %c0_19 = arith.constant 0 : index
    %c0_20 = arith.constant 0 : index
    %c1_21 = arith.constant 1 : index
    %c1_22 = arith.constant 1 : index
    %76 = vector.load %arg5[%c0_19, %c0_20, %c1_21, %c1_22] : memref<2x4x16x16xf32, #tpu.memory_space<vmem>>, vector<2x1x14x14xf32>
    %77 = vector.shape_cast %76 : vector<2x1x14x14xf32> to vector<2x14x14xf32>
    %c4 = arith.constant 4 : index
    %78 = memref.load %arg1[%c4] : memref<144xf32, #tpu.memory_space<smem>>
    %79 = vector.broadcast %78 : f32 to vector<2x14x14xf32>
    %80 = arith.mulf %79, %77 : vector<2x14x14xf32>
    %81 = arith.addf %63, %80 : vector<2x14x14xf32>
    %c40 = arith.constant 40 : index
    %82 = memref.load %arg1[%c40] : memref<144xf32, #tpu.memory_space<smem>>
    %83 = vector.broadcast %82 : f32 to vector<2x14x14xf32>
    %84 = arith.mulf %83, %77 : vector<2x14x14xf32>
    %85 = arith.addf %67, %84 : vector<2x14x14xf32>
    %c76 = arith.constant 76 : index
    %86 = memref.load %arg1[%c76] : memref<144xf32, #tpu.memory_space<smem>>
    %87 = vector.broadcast %86 : f32 to vector<2x14x14xf32>
    %88 = arith.mulf %87, %77 : vector<2x14x14xf32>
    %89 = arith.addf %71, %88 : vector<2x14x14xf32>
    %c112 = arith.constant 112 : index
    %90 = memref.load %arg1[%c112] : memref<144xf32, #tpu.memory_space<smem>>
    %91 = vector.broadcast %90 : f32 to vector<2x14x14xf32>
    %92 = arith.mulf %91, %77 : vector<2x14x14xf32>
    %93 = arith.addf %75, %92 : vector<2x14x14xf32>
    %c0_23 = arith.constant 0 : index
    %c0_24 = arith.constant 0 : index
    %c1_25 = arith.constant 1 : index
    %c2_26 = arith.constant 2 : index
    %94 = vector.load %arg5[%c0_23, %c0_24, %c1_25, %c2_26] : memref<2x4x16x16xf32, #tpu.memory_space<vmem>>, vector<2x1x14x14xf32>
    %95 = vector.shape_cast %94 : vector<2x1x14x14xf32> to vector<2x14x14xf32>
    %c5 = arith.constant 5 : index
    %96 = memref.load %arg1[%c5] : memref<144xf32, #tpu.memory_space<smem>>
    %97 = vector.broadcast %96 : f32 to vector<2x14x14xf32>
    %98 = arith.mulf %97, %95 : vector<2x14x14xf32>
    %99 = arith.addf %81, %98 : vector<2x14x14xf32>
    %c41 = arith.constant 41 : index
    %100 = memref.load %arg1[%c41] : memref<144xf32, #tpu.memory_space<smem>>
    %101 = vector.broadcast %100 : f32 to vector<2x14x14xf32>
    %102 = arith.mulf %101, %95 : vector<2x14x14xf32>
    %103 = arith.addf %85, %102 : vector<2x14x14xf32>
    %c77 = arith.constant 77 : index
    %104 = memref.load %arg1[%c77] : memref<144xf32, #tpu.memory_space<smem>>
    %105 = vector.broadcast %104 : f32 to vector<2x14x14xf32>
    %106 = arith.mulf %105, %95 : vector<2x14x14xf32>
    %107 = arith.addf %89, %106 : vector<2x14x14xf32>
    %c113 = arith.constant 113 : index
    %108 = memref.load %arg1[%c113] : memref<144xf32, #tpu.memory_space<smem>>
    %109 = vector.broadcast %108 : f32 to vector<2x14x14xf32>
    %110 = arith.mulf %109, %95 : vector<2x14x14xf32>
    %111 = arith.addf %93, %110 : vector<2x14x14xf32>
    %c0_27 = arith.constant 0 : index
    %c0_28 = arith.constant 0 : index
    %c2_29 = arith.constant 2 : index
    %c0_30 = arith.constant 0 : index
    %112 = vector.load %arg5[%c0_27, %c0_28, %c2_29, %c0_30] : memref<2x4x16x16xf32, #tpu.memory_space<vmem>>, vector<2x1x14x14xf32>
    %113 = vector.shape_cast %112 : vector<2x1x14x14xf32> to vector<2x14x14xf32>
    %c6 = arith.constant 6 : index
    %114 = memref.load %arg1[%c6] : memref<144xf32, #tpu.memory_space<smem>>
    %115 = vector.broadcast %114 : f32 to vector<2x14x14xf32>
    %116 = arith.mulf %115, %113 : vector<2x14x14xf32>
    %117 = arith.addf %99, %116 : vector<2x14x14xf32>
    %c42 = arith.constant 42 : index
    %118 = memref.load %arg1[%c42] : memref<144xf32, #tpu.memory_space<smem>>
    %119 = vector.broadcast %118 : f32 to vector<2x14x14xf32>
    %120 = arith.mulf %119, %113 : vector<2x14x14xf32>
    %121 = arith.addf %103, %120 : vector<2x14x14xf32>
    %c78 = arith.constant 78 : index
    %122 = memref.load %arg1[%c78] : memref<144xf32, #tpu.memory_space<smem>>
    %123 = vector.broadcast %122 : f32 to vector<2x14x14xf32>
    %124 = arith.mulf %123, %113 : vector<2x14x14xf32>
    %125 = arith.addf %107, %124 : vector<2x14x14xf32>
    %c114 = arith.constant 114 : index
    %126 = memref.load %arg1[%c114] : memref<144xf32, #tpu.memory_space<smem>>
    %127 = vector.broadcast %126 : f32 to vector<2x14x14xf32>
    %128 = arith.mulf %127, %113 : vector<2x14x14xf32>
    %129 = arith.addf %111, %128 : vector<2x14x14xf32>
    %c0_31 = arith.constant 0 : index
    %c0_32 = arith.constant 0 : index
    %c2_33 = arith.constant 2 : index
    %c1_34 = arith.constant 1 : index
    %130 = vector.load %arg5[%c0_31, %c0_32, %c2_33, %c1_34] : memref<2x4x16x16xf32, #tpu.memory_space<vmem>>, vector<2x1x14x14xf32>
    %131 = vector.shape_cast %130 : vector<2x1x14x14xf32> to vector<2x14x14xf32>
    %c7 = arith.constant 7 : index
    %132 = memref.load %arg1[%c7] : memref<144xf32, #tpu.memory_space<smem>>
    %133 = vector.broadcast %132 : f32 to vector<2x14x14xf32>
    %134 = arith.mulf %133, %131 : vector<2x14x14xf32>
    %135 = arith.addf %117, %134 : vector<2x14x14xf32>
    %c43 = arith.constant 43 : index
    %136 = memref.load %arg1[%c43] : memref<144xf32, #tpu.memory_space<smem>>
    %137 = vector.broadcast %136 : f32 to vector<2x14x14xf32>
    %138 = arith.mulf %137, %131 : vector<2x14x14xf32>
    %139 = arith.addf %121, %138 : vector<2x14x14xf32>
    %c79 = arith.constant 79 : index
    %140 = memref.load %arg1[%c79] : memref<144xf32, #tpu.memory_space<smem>>
    %141 = vector.broadcast %140 : f32 to vector<2x14x14xf32>
    %142 = arith.mulf %141, %131 : vector<2x14x14xf32>
    %143 = arith.addf %125, %142 : vector<2x14x14xf32>
    %c115 = arith.constant 115 : index
    %144 = memref.load %arg1[%c115] : memref<144xf32, #tpu.memory_space<smem>>
    %145 = vector.broadcast %144 : f32 to vector<2x14x14xf32>
    %146 = arith.mulf %145, %131 : vector<2x14x14xf32>
    %147 = arith.addf %129, %146 : vector<2x14x14xf32>
    %c0_35 = arith.constant 0 : index
    %c0_36 = arith.constant 0 : index
    %c2_37 = arith.constant 2 : index
    %c2_38 = arith.constant 2 : index
    %148 = vector.load %arg5[%c0_35, %c0_36, %c2_37, %c2_38] : memref<2x4x16x16xf32, #tpu.memory_space<vmem>>, vector<2x1x14x14xf32>
    %149 = vector.shape_cast %148 : vector<2x1x14x14xf32> to vector<2x14x14xf32>
    %c8 = arith.constant 8 : index
    %150 = memref.load %arg1[%c8] : memref<144xf32, #tpu.memory_space<smem>>
    %151 = vector.broadcast %150 : f32 to vector<2x14x14xf32>
    %152 = arith.mulf %151, %149 : vector<2x14x14xf32>
    %153 = arith.addf %135, %152 : vector<2x14x14xf32>
    %c44 = arith.constant 44 : index
    %154 = memref.load %arg1[%c44] : memref<144xf32, #tpu.memory_space<smem>>
    %155 = vector.broadcast %154 : f32 to vector<2x14x14xf32>
    %156 = arith.mulf %155, %149 : vector<2x14x14xf32>
    %157 = arith.addf %139, %156 : vector<2x14x14xf32>
    %c80 = arith.constant 80 : index
    %158 = memref.load %arg1[%c80] : memref<144xf32, #tpu.memory_space<smem>>
    %159 = vector.broadcast %158 : f32 to vector<2x14x14xf32>
    %160 = arith.mulf %159, %149 : vector<2x14x14xf32>
    %161 = arith.addf %143, %160 : vector<2x14x14xf32>
    %c116 = arith.constant 116 : index
    %162 = memref.load %arg1[%c116] : memref<144xf32, #tpu.memory_space<smem>>
    %163 = vector.broadcast %162 : f32 to vector<2x14x14xf32>
    %164 = arith.mulf %163, %149 : vector<2x14x14xf32>
    %165 = arith.addf %147, %164 : vector<2x14x14xf32>
    %c0_39 = arith.constant 0 : index
    %c1_40 = arith.constant 1 : index
    %c0_41 = arith.constant 0 : index
    %c0_42 = arith.constant 0 : index
    %166 = vector.load %arg5[%c0_39, %c1_40, %c0_41, %c0_42] : memref<2x4x16x16xf32, #tpu.memory_space<vmem>>, vector<2x1x14x14xf32>
    %167 = vector.shape_cast %166 : vector<2x1x14x14xf32> to vector<2x14x14xf32>
    %c9 = arith.constant 9 : index
    %168 = memref.load %arg1[%c9] : memref<144xf32, #tpu.memory_space<smem>>
    %169 = vector.broadcast %168 : f32 to vector<2x14x14xf32>
    %170 = arith.mulf %169, %167 : vector<2x14x14xf32>
    %171 = arith.addf %153, %170 : vector<2x14x14xf32>
    %c45 = arith.constant 45 : index
    %172 = memref.load %arg1[%c45] : memref<144xf32, #tpu.memory_space<smem>>
    %173 = vector.broadcast %172 : f32 to vector<2x14x14xf32>
    %174 = arith.mulf %173, %167 : vector<2x14x14xf32>
    %175 = arith.addf %157, %174 : vector<2x14x14xf32>
    %c81 = arith.constant 81 : index
    %176 = memref.load %arg1[%c81] : memref<144xf32, #tpu.memory_space<smem>>
    %177 = vector.broadcast %176 : f32 to vector<2x14x14xf32>
    %178 = arith.mulf %177, %167 : vector<2x14x14xf32>
    %179 = arith.addf %161, %178 : vector<2x14x14xf32>
    %c117 = arith.constant 117 : index
    %180 = memref.load %arg1[%c117] : memref<144xf32, #tpu.memory_space<smem>>
    %181 = vector.broadcast %180 : f32 to vector<2x14x14xf32>
    %182 = arith.mulf %181, %167 : vector<2x14x14xf32>
    %183 = arith.addf %165, %182 : vector<2x14x14xf32>
    %c0_43 = arith.constant 0 : index
    %c1_44 = arith.constant 1 : index
    %c0_45 = arith.constant 0 : index
    %c1_46 = arith.constant 1 : index
    %184 = vector.load %arg5[%c0_43, %c1_44, %c0_45, %c1_46] : memref<2x4x16x16xf32, #tpu.memory_space<vmem>>, vector<2x1x14x14xf32>
    %185 = vector.shape_cast %184 : vector<2x1x14x14xf32> to vector<2x14x14xf32>
    %c10 = arith.constant 10 : index
    %186 = memref.load %arg1[%c10] : memref<144xf32, #tpu.memory_space<smem>>
    %187 = vector.broadcast %186 : f32 to vector<2x14x14xf32>
    %188 = arith.mulf %187, %185 : vector<2x14x14xf32>
    %189 = arith.addf %171, %188 : vector<2x14x14xf32>
    %c46 = arith.constant 46 : index
    %190 = memref.load %arg1[%c46] : memref<144xf32, #tpu.memory_space<smem>>
    %191 = vector.broadcast %190 : f32 to vector<2x14x14xf32>
    %192 = arith.mulf %191, %185 : vector<2x14x14xf32>
    %193 = arith.addf %175, %192 : vector<2x14x14xf32>
    %c82 = arith.constant 82 : index
    %194 = memref.load %arg1[%c82] : memref<144xf32, #tpu.memory_space<smem>>
    %195 = vector.broadcast %194 : f32 to vector<2x14x14xf32>
    %196 = arith.mulf %195, %185 : vector<2x14x14xf32>
    %197 = arith.addf %179, %196 : vector<2x14x14xf32>
    %c118 = arith.constant 118 : index
    %198 = memref.load %arg1[%c118] : memref<144xf32, #tpu.memory_space<smem>>
    %199 = vector.broadcast %198 : f32 to vector<2x14x14xf32>
    %200 = arith.mulf %199, %185 : vector<2x14x14xf32>
    %201 = arith.addf %183, %200 : vector<2x14x14xf32>
    %c0_47 = arith.constant 0 : index
    %c1_48 = arith.constant 1 : index
    %c0_49 = arith.constant 0 : index
    %c2_50 = arith.constant 2 : index
    %202 = vector.load %arg5[%c0_47, %c1_48, %c0_49, %c2_50] : memref<2x4x16x16xf32, #tpu.memory_space<vmem>>, vector<2x1x14x14xf32>
    %203 = vector.shape_cast %202 : vector<2x1x14x14xf32> to vector<2x14x14xf32>
    %c11 = arith.constant 11 : index
    %204 = memref.load %arg1[%c11] : memref<144xf32, #tpu.memory_space<smem>>
    %205 = vector.broadcast %204 : f32 to vector<2x14x14xf32>
    %206 = arith.mulf %205, %203 : vector<2x14x14xf32>
    %207 = arith.addf %189, %206 : vector<2x14x14xf32>
    %c47 = arith.constant 47 : index
    %208 = memref.load %arg1[%c47] : memref<144xf32, #tpu.memory_space<smem>>
    %209 = vector.broadcast %208 : f32 to vector<2x14x14xf32>
    %210 = arith.mulf %209, %203 : vector<2x14x14xf32>
    %211 = arith.addf %193, %210 : vector<2x14x14xf32>
    %c83 = arith.constant 83 : index
    %212 = memref.load %arg1[%c83] : memref<144xf32, #tpu.memory_space<smem>>
    %213 = vector.broadcast %212 : f32 to vector<2x14x14xf32>
    %214 = arith.mulf %213, %203 : vector<2x14x14xf32>
    %215 = arith.addf %197, %214 : vector<2x14x14xf32>
    %c119 = arith.constant 119 : index
    %216 = memref.load %arg1[%c119] : memref<144xf32, #tpu.memory_space<smem>>
    %217 = vector.broadcast %216 : f32 to vector<2x14x14xf32>
    %218 = arith.mulf %217, %203 : vector<2x14x14xf32>
    %219 = arith.addf %201, %218 : vector<2x14x14xf32>
    %c0_51 = arith.constant 0 : index
    %c1_52 = arith.constant 1 : index
    %c1_53 = arith.constant 1 : index
    %c0_54 = arith.constant 0 : index
    %220 = vector.load %arg5[%c0_51, %c1_52, %c1_53, %c0_54] : memref<2x4x16x16xf32, #tpu.memory_space<vmem>>, vector<2x1x14x14xf32>
    %221 = vector.shape_cast %220 : vector<2x1x14x14xf32> to vector<2x14x14xf32>
    %c12 = arith.constant 12 : index
    %222 = memref.load %arg1[%c12] : memref<144xf32, #tpu.memory_space<smem>>
    %223 = vector.broadcast %222 : f32 to vector<2x14x14xf32>
    %224 = arith.mulf %223, %221 : vector<2x14x14xf32>
    %225 = arith.addf %207, %224 : vector<2x14x14xf32>
    %c48 = arith.constant 48 : index
    %226 = memref.load %arg1[%c48] : memref<144xf32, #tpu.memory_space<smem>>
    %227 = vector.broadcast %226 : f32 to vector<2x14x14xf32>
    %228 = arith.mulf %227, %221 : vector<2x14x14xf32>
    %229 = arith.addf %211, %228 : vector<2x14x14xf32>
    %c84 = arith.constant 84 : index
    %230 = memref.load %arg1[%c84] : memref<144xf32, #tpu.memory_space<smem>>
    %231 = vector.broadcast %230 : f32 to vector<2x14x14xf32>
    %232 = arith.mulf %231, %221 : vector<2x14x14xf32>
    %233 = arith.addf %215, %232 : vector<2x14x14xf32>
    %c120 = arith.constant 120 : index
    %234 = memref.load %arg1[%c120] : memref<144xf32, #tpu.memory_space<smem>>
    %235 = vector.broadcast %234 : f32 to vector<2x14x14xf32>
    %236 = arith.mulf %235, %221 : vector<2x14x14xf32>
    %237 = arith.addf %219, %236 : vector<2x14x14xf32>
    %c0_55 = arith.constant 0 : index
    %c1_56 = arith.constant 1 : index
    %c1_57 = arith.constant 1 : index
    %c1_58 = arith.constant 1 : index
    %238 = vector.load %arg5[%c0_55, %c1_56, %c1_57, %c1_58] : memref<2x4x16x16xf32, #tpu.memory_space<vmem>>, vector<2x1x14x14xf32>
    %239 = vector.shape_cast %238 : vector<2x1x14x14xf32> to vector<2x14x14xf32>
    %c13 = arith.constant 13 : index
    %240 = memref.load %arg1[%c13] : memref<144xf32, #tpu.memory_space<smem>>
    %241 = vector.broadcast %240 : f32 to vector<2x14x14xf32>
    %242 = arith.mulf %241, %239 : vector<2x14x14xf32>
    %243 = arith.addf %225, %242 : vector<2x14x14xf32>
    %c49 = arith.constant 49 : index
    %244 = memref.load %arg1[%c49] : memref<144xf32, #tpu.memory_space<smem>>
    %245 = vector.broadcast %244 : f32 to vector<2x14x14xf32>
    %246 = arith.mulf %245, %239 : vector<2x14x14xf32>
    %247 = arith.addf %229, %246 : vector<2x14x14xf32>
    %c85 = arith.constant 85 : index
    %248 = memref.load %arg1[%c85] : memref<144xf32, #tpu.memory_space<smem>>
    %249 = vector.broadcast %248 : f32 to vector<2x14x14xf32>
    %250 = arith.mulf %249, %239 : vector<2x14x14xf32>
    %251 = arith.addf %233, %250 : vector<2x14x14xf32>
    %c121 = arith.constant 121 : index
    %252 = memref.load %arg1[%c121] : memref<144xf32, #tpu.memory_space<smem>>
    %253 = vector.broadcast %252 : f32 to vector<2x14x14xf32>
    %254 = arith.mulf %253, %239 : vector<2x14x14xf32>
    %255 = arith.addf %237, %254 : vector<2x14x14xf32>
    %c0_59 = arith.constant 0 : index
    %c1_60 = arith.constant 1 : index
    %c1_61 = arith.constant 1 : index
    %c2_62 = arith.constant 2 : index
    %256 = vector.load %arg5[%c0_59, %c1_60, %c1_61, %c2_62] : memref<2x4x16x16xf32, #tpu.memory_space<vmem>>, vector<2x1x14x14xf32>
    %257 = vector.shape_cast %256 : vector<2x1x14x14xf32> to vector<2x14x14xf32>
    %c14 = arith.constant 14 : index
    %258 = memref.load %arg1[%c14] : memref<144xf32, #tpu.memory_space<smem>>
    %259 = vector.broadcast %258 : f32 to vector<2x14x14xf32>
    %260 = arith.mulf %259, %257 : vector<2x14x14xf32>
    %261 = arith.addf %243, %260 : vector<2x14x14xf32>
    %c50 = arith.constant 50 : index
    %262 = memref.load %arg1[%c50] : memref<144xf32, #tpu.memory_space<smem>>
    %263 = vector.broadcast %262 : f32 to vector<2x14x14xf32>
    %264 = arith.mulf %263, %257 : vector<2x14x14xf32>
    %265 = arith.addf %247, %264 : vector<2x14x14xf32>
    %c86 = arith.constant 86 : index
    %266 = memref.load %arg1[%c86] : memref<144xf32, #tpu.memory_space<smem>>
    %267 = vector.broadcast %266 : f32 to vector<2x14x14xf32>
    %268 = arith.mulf %267, %257 : vector<2x14x14xf32>
    %269 = arith.addf %251, %268 : vector<2x14x14xf32>
    %c122 = arith.constant 122 : index
    %270 = memref.load %arg1[%c122] : memref<144xf32, #tpu.memory_space<smem>>
    %271 = vector.broadcast %270 : f32 to vector<2x14x14xf32>
    %272 = arith.mulf %271, %257 : vector<2x14x14xf32>
    %273 = arith.addf %255, %272 : vector<2x14x14xf32>
    %c0_63 = arith.constant 0 : index
    %c1_64 = arith.constant 1 : index
    %c2_65 = arith.constant 2 : index
    %c0_66 = arith.constant 0 : index
    %274 = vector.load %arg5[%c0_63, %c1_64, %c2_65, %c0_66] : memref<2x4x16x16xf32, #tpu.memory_space<vmem>>, vector<2x1x14x14xf32>
    %275 = vector.shape_cast %274 : vector<2x1x14x14xf32> to vector<2x14x14xf32>
    %c15 = arith.constant 15 : index
    %276 = memref.load %arg1[%c15] : memref<144xf32, #tpu.memory_space<smem>>
    %277 = vector.broadcast %276 : f32 to vector<2x14x14xf32>
    %278 = arith.mulf %277, %275 : vector<2x14x14xf32>
    %279 = arith.addf %261, %278 : vector<2x14x14xf32>
    %c51 = arith.constant 51 : index
    %280 = memref.load %arg1[%c51] : memref<144xf32, #tpu.memory_space<smem>>
    %281 = vector.broadcast %280 : f32 to vector<2x14x14xf32>
    %282 = arith.mulf %281, %275 : vector<2x14x14xf32>
    %283 = arith.addf %265, %282 : vector<2x14x14xf32>
    %c87 = arith.constant 87 : index
    %284 = memref.load %arg1[%c87] : memref<144xf32, #tpu.memory_space<smem>>
    %285 = vector.broadcast %284 : f32 to vector<2x14x14xf32>
    %286 = arith.mulf %285, %275 : vector<2x14x14xf32>
    %287 = arith.addf %269, %286 : vector<2x14x14xf32>
    %c123 = arith.constant 123 : index
    %288 = memref.load %arg1[%c123] : memref<144xf32, #tpu.memory_space<smem>>
    %289 = vector.broadcast %288 : f32 to vector<2x14x14xf32>
    %290 = arith.mulf %289, %275 : vector<2x14x14xf32>
    %291 = arith.addf %273, %290 : vector<2x14x14xf32>
    %c0_67 = arith.constant 0 : index
    %c1_68 = arith.constant 1 : index
    %c2_69 = arith.constant 2 : index
    %c1_70 = arith.constant 1 : index
    %292 = vector.load %arg5[%c0_67, %c1_68, %c2_69, %c1_70] : memref<2x4x16x16xf32, #tpu.memory_space<vmem>>, vector<2x1x14x14xf32>
    %293 = vector.shape_cast %292 : vector<2x1x14x14xf32> to vector<2x14x14xf32>
    %c16 = arith.constant 16 : index
    %294 = memref.load %arg1[%c16] : memref<144xf32, #tpu.memory_space<smem>>
    %295 = vector.broadcast %294 : f32 to vector<2x14x14xf32>
    %296 = arith.mulf %295, %293 : vector<2x14x14xf32>
    %297 = arith.addf %279, %296 : vector<2x14x14xf32>
    %c52 = arith.constant 52 : index
    %298 = memref.load %arg1[%c52] : memref<144xf32, #tpu.memory_space<smem>>
    %299 = vector.broadcast %298 : f32 to vector<2x14x14xf32>
    %300 = arith.mulf %299, %293 : vector<2x14x14xf32>
    %301 = arith.addf %283, %300 : vector<2x14x14xf32>
    %c88 = arith.constant 88 : index
    %302 = memref.load %arg1[%c88] : memref<144xf32, #tpu.memory_space<smem>>
    %303 = vector.broadcast %302 : f32 to vector<2x14x14xf32>
    %304 = arith.mulf %303, %293 : vector<2x14x14xf32>
    %305 = arith.addf %287, %304 : vector<2x14x14xf32>
    %c124 = arith.constant 124 : index
    %306 = memref.load %arg1[%c124] : memref<144xf32, #tpu.memory_space<smem>>
    %307 = vector.broadcast %306 : f32 to vector<2x14x14xf32>
    %308 = arith.mulf %307, %293 : vector<2x14x14xf32>
    %309 = arith.addf %291, %308 : vector<2x14x14xf32>
    %c0_71 = arith.constant 0 : index
    %c1_72 = arith.constant 1 : index
    %c2_73 = arith.constant 2 : index
    %c2_74 = arith.constant 2 : index
    %310 = vector.load %arg5[%c0_71, %c1_72, %c2_73, %c2_74] : memref<2x4x16x16xf32, #tpu.memory_space<vmem>>, vector<2x1x14x14xf32>
    %311 = vector.shape_cast %310 : vector<2x1x14x14xf32> to vector<2x14x14xf32>
    %c17 = arith.constant 17 : index
    %312 = memref.load %arg1[%c17] : memref<144xf32, #tpu.memory_space<smem>>
    %313 = vector.broadcast %312 : f32 to vector<2x14x14xf32>
    %314 = arith.mulf %313, %311 : vector<2x14x14xf32>
    %315 = arith.addf %297, %314 : vector<2x14x14xf32>
    %c53 = arith.constant 53 : index
    %316 = memref.load %arg1[%c53] : memref<144xf32, #tpu.memory_space<smem>>
    %317 = vector.broadcast %316 : f32 to vector<2x14x14xf32>
    %318 = arith.mulf %317, %311 : vector<2x14x14xf32>
    %319 = arith.addf %301, %318 : vector<2x14x14xf32>
    %c89 = arith.constant 89 : index
    %320 = memref.load %arg1[%c89] : memref<144xf32, #tpu.memory_space<smem>>
    %321 = vector.broadcast %320 : f32 to vector<2x14x14xf32>
    %322 = arith.mulf %321, %311 : vector<2x14x14xf32>
    %323 = arith.addf %305, %322 : vector<2x14x14xf32>
    %c125 = arith.constant 125 : index
    %324 = memref.load %arg1[%c125] : memref<144xf32, #tpu.memory_space<smem>>
    %325 = vector.broadcast %324 : f32 to vector<2x14x14xf32>
    %326 = arith.mulf %325, %311 : vector<2x14x14xf32>
    %327 = arith.addf %309, %326 : vector<2x14x14xf32>
    %c0_75 = arith.constant 0 : index
    %c2_76 = arith.constant 2 : index
    %c0_77 = arith.constant 0 : index
    %c0_78 = arith.constant 0 : index
    %328 = vector.load %arg5[%c0_75, %c2_76, %c0_77, %c0_78] : memref<2x4x16x16xf32, #tpu.memory_space<vmem>>, vector<2x1x14x14xf32>
    %329 = vector.shape_cast %328 : vector<2x1x14x14xf32> to vector<2x14x14xf32>
    %c18 = arith.constant 18 : index
    %330 = memref.load %arg1[%c18] : memref<144xf32, #tpu.memory_space<smem>>
    %331 = vector.broadcast %330 : f32 to vector<2x14x14xf32>
    %332 = arith.mulf %331, %329 : vector<2x14x14xf32>
    %333 = arith.addf %315, %332 : vector<2x14x14xf32>
    %c54 = arith.constant 54 : index
    %334 = memref.load %arg1[%c54] : memref<144xf32, #tpu.memory_space<smem>>
    %335 = vector.broadcast %334 : f32 to vector<2x14x14xf32>
    %336 = arith.mulf %335, %329 : vector<2x14x14xf32>
    %337 = arith.addf %319, %336 : vector<2x14x14xf32>
    %c90 = arith.constant 90 : index
    %338 = memref.load %arg1[%c90] : memref<144xf32, #tpu.memory_space<smem>>
    %339 = vector.broadcast %338 : f32 to vector<2x14x14xf32>
    %340 = arith.mulf %339, %329 : vector<2x14x14xf32>
    %341 = arith.addf %323, %340 : vector<2x14x14xf32>
    %c126 = arith.constant 126 : index
    %342 = memref.load %arg1[%c126] : memref<144xf32, #tpu.memory_space<smem>>
    %343 = vector.broadcast %342 : f32 to vector<2x14x14xf32>
    %344 = arith.mulf %343, %329 : vector<2x14x14xf32>
    %345 = arith.addf %327, %344 : vector<2x14x14xf32>
    %c0_79 = arith.constant 0 : index
    %c2_80 = arith.constant 2 : index
    %c0_81 = arith.constant 0 : index
    %c1_82 = arith.constant 1 : index
    %346 = vector.load %arg5[%c0_79, %c2_80, %c0_81, %c1_82] : memref<2x4x16x16xf32, #tpu.memory_space<vmem>>, vector<2x1x14x14xf32>
    %347 = vector.shape_cast %346 : vector<2x1x14x14xf32> to vector<2x14x14xf32>
    %c19 = arith.constant 19 : index
    %348 = memref.load %arg1[%c19] : memref<144xf32, #tpu.memory_space<smem>>
    %349 = vector.broadcast %348 : f32 to vector<2x14x14xf32>
    %350 = arith.mulf %349, %347 : vector<2x14x14xf32>
    %351 = arith.addf %333, %350 : vector<2x14x14xf32>
    %c55 = arith.constant 55 : index
    %352 = memref.load %arg1[%c55] : memref<144xf32, #tpu.memory_space<smem>>
    %353 = vector.broadcast %352 : f32 to vector<2x14x14xf32>
    %354 = arith.mulf %353, %347 : vector<2x14x14xf32>
    %355 = arith.addf %337, %354 : vector<2x14x14xf32>
    %c91 = arith.constant 91 : index
    %356 = memref.load %arg1[%c91] : memref<144xf32, #tpu.memory_space<smem>>
    %357 = vector.broadcast %356 : f32 to vector<2x14x14xf32>
    %358 = arith.mulf %357, %347 : vector<2x14x14xf32>
    %359 = arith.addf %341, %358 : vector<2x14x14xf32>
    %c127 = arith.constant 127 : index
    %360 = memref.load %arg1[%c127] : memref<144xf32, #tpu.memory_space<smem>>
    %361 = vector.broadcast %360 : f32 to vector<2x14x14xf32>
    %362 = arith.mulf %361, %347 : vector<2x14x14xf32>
    %363 = arith.addf %345, %362 : vector<2x14x14xf32>
    %c0_83 = arith.constant 0 : index
    %c2_84 = arith.constant 2 : index
    %c0_85 = arith.constant 0 : index
    %c2_86 = arith.constant 2 : index
    %364 = vector.load %arg5[%c0_83, %c2_84, %c0_85, %c2_86] : memref<2x4x16x16xf32, #tpu.memory_space<vmem>>, vector<2x1x14x14xf32>
    %365 = vector.shape_cast %364 : vector<2x1x14x14xf32> to vector<2x14x14xf32>
    %c20 = arith.constant 20 : index
    %366 = memref.load %arg1[%c20] : memref<144xf32, #tpu.memory_space<smem>>
    %367 = vector.broadcast %366 : f32 to vector<2x14x14xf32>
    %368 = arith.mulf %367, %365 : vector<2x14x14xf32>
    %369 = arith.addf %351, %368 : vector<2x14x14xf32>
    %c56 = arith.constant 56 : index
    %370 = memref.load %arg1[%c56] : memref<144xf32, #tpu.memory_space<smem>>
    %371 = vector.broadcast %370 : f32 to vector<2x14x14xf32>
    %372 = arith.mulf %371, %365 : vector<2x14x14xf32>
    %373 = arith.addf %355, %372 : vector<2x14x14xf32>
    %c92 = arith.constant 92 : index
    %374 = memref.load %arg1[%c92] : memref<144xf32, #tpu.memory_space<smem>>
    %375 = vector.broadcast %374 : f32 to vector<2x14x14xf32>
    %376 = arith.mulf %375, %365 : vector<2x14x14xf32>
    %377 = arith.addf %359, %376 : vector<2x14x14xf32>
    %c128 = arith.constant 128 : index
    %378 = memref.load %arg1[%c128] : memref<144xf32, #tpu.memory_space<smem>>
    %379 = vector.broadcast %378 : f32 to vector<2x14x14xf32>
    %380 = arith.mulf %379, %365 : vector<2x14x14xf32>
    %381 = arith.addf %363, %380 : vector<2x14x14xf32>
    %c0_87 = arith.constant 0 : index
    %c2_88 = arith.constant 2 : index
    %c1_89 = arith.constant 1 : index
    %c0_90 = arith.constant 0 : index
    %382 = vector.load %arg5[%c0_87, %c2_88, %c1_89, %c0_90] : memref<2x4x16x16xf32, #tpu.memory_space<vmem>>, vector<2x1x14x14xf32>
    %383 = vector.shape_cast %382 : vector<2x1x14x14xf32> to vector<2x14x14xf32>
    %c21 = arith.constant 21 : index
    %384 = memref.load %arg1[%c21] : memref<144xf32, #tpu.memory_space<smem>>
    %385 = vector.broadcast %384 : f32 to vector<2x14x14xf32>
    %386 = arith.mulf %385, %383 : vector<2x14x14xf32>
    %387 = arith.addf %369, %386 : vector<2x14x14xf32>
    %c57 = arith.constant 57 : index
    %388 = memref.load %arg1[%c57] : memref<144xf32, #tpu.memory_space<smem>>
    %389 = vector.broadcast %388 : f32 to vector<2x14x14xf32>
    %390 = arith.mulf %389, %383 : vector<2x14x14xf32>
    %391 = arith.addf %373, %390 : vector<2x14x14xf32>
    %c93 = arith.constant 93 : index
    %392 = memref.load %arg1[%c93] : memref<144xf32, #tpu.memory_space<smem>>
    %393 = vector.broadcast %392 : f32 to vector<2x14x14xf32>
    %394 = arith.mulf %393, %383 : vector<2x14x14xf32>
    %395 = arith.addf %377, %394 : vector<2x14x14xf32>
    %c129 = arith.constant 129 : index
    %396 = memref.load %arg1[%c129] : memref<144xf32, #tpu.memory_space<smem>>
    %397 = vector.broadcast %396 : f32 to vector<2x14x14xf32>
    %398 = arith.mulf %397, %383 : vector<2x14x14xf32>
    %399 = arith.addf %381, %398 : vector<2x14x14xf32>
    %c0_91 = arith.constant 0 : index
    %c2_92 = arith.constant 2 : index
    %c1_93 = arith.constant 1 : index
    %c1_94 = arith.constant 1 : index
    %400 = vector.load %arg5[%c0_91, %c2_92, %c1_93, %c1_94] : memref<2x4x16x16xf32, #tpu.memory_space<vmem>>, vector<2x1x14x14xf32>
    %401 = vector.shape_cast %400 : vector<2x1x14x14xf32> to vector<2x14x14xf32>
    %c22 = arith.constant 22 : index
    %402 = memref.load %arg1[%c22] : memref<144xf32, #tpu.memory_space<smem>>
    %403 = vector.broadcast %402 : f32 to vector<2x14x14xf32>
    %404 = arith.mulf %403, %401 : vector<2x14x14xf32>
    %405 = arith.addf %387, %404 : vector<2x14x14xf32>
    %c58 = arith.constant 58 : index
    %406 = memref.load %arg1[%c58] : memref<144xf32, #tpu.memory_space<smem>>
    %407 = vector.broadcast %406 : f32 to vector<2x14x14xf32>
    %408 = arith.mulf %407, %401 : vector<2x14x14xf32>
    %409 = arith.addf %391, %408 : vector<2x14x14xf32>
    %c94 = arith.constant 94 : index
    %410 = memref.load %arg1[%c94] : memref<144xf32, #tpu.memory_space<smem>>
    %411 = vector.broadcast %410 : f32 to vector<2x14x14xf32>
    %412 = arith.mulf %411, %401 : vector<2x14x14xf32>
    %413 = arith.addf %395, %412 : vector<2x14x14xf32>
    %c130 = arith.constant 130 : index
    %414 = memref.load %arg1[%c130] : memref<144xf32, #tpu.memory_space<smem>>
    %415 = vector.broadcast %414 : f32 to vector<2x14x14xf32>
    %416 = arith.mulf %415, %401 : vector<2x14x14xf32>
    %417 = arith.addf %399, %416 : vector<2x14x14xf32>
    %c0_95 = arith.constant 0 : index
    %c2_96 = arith.constant 2 : index
    %c1_97 = arith.constant 1 : index
    %c2_98 = arith.constant 2 : index
    %418 = vector.load %arg5[%c0_95, %c2_96, %c1_97, %c2_98] : memref<2x4x16x16xf32, #tpu.memory_space<vmem>>, vector<2x1x14x14xf32>
    %419 = vector.shape_cast %418 : vector<2x1x14x14xf32> to vector<2x14x14xf32>
    %c23 = arith.constant 23 : index
    %420 = memref.load %arg1[%c23] : memref<144xf32, #tpu.memory_space<smem>>
    %421 = vector.broadcast %420 : f32 to vector<2x14x14xf32>
    %422 = arith.mulf %421, %419 : vector<2x14x14xf32>
    %423 = arith.addf %405, %422 : vector<2x14x14xf32>
    %c59 = arith.constant 59 : index
    %424 = memref.load %arg1[%c59] : memref<144xf32, #tpu.memory_space<smem>>
    %425 = vector.broadcast %424 : f32 to vector<2x14x14xf32>
    %426 = arith.mulf %425, %419 : vector<2x14x14xf32>
    %427 = arith.addf %409, %426 : vector<2x14x14xf32>
    %c95 = arith.constant 95 : index
    %428 = memref.load %arg1[%c95] : memref<144xf32, #tpu.memory_space<smem>>
    %429 = vector.broadcast %428 : f32 to vector<2x14x14xf32>
    %430 = arith.mulf %429, %419 : vector<2x14x14xf32>
    %431 = arith.addf %413, %430 : vector<2x14x14xf32>
    %c131 = arith.constant 131 : index
    %432 = memref.load %arg1[%c131] : memref<144xf32, #tpu.memory_space<smem>>
    %433 = vector.broadcast %432 : f32 to vector<2x14x14xf32>
    %434 = arith.mulf %433, %419 : vector<2x14x14xf32>
    %435 = arith.addf %417, %434 : vector<2x14x14xf32>
    %c0_99 = arith.constant 0 : index
    %c2_100 = arith.constant 2 : index
    %c2_101 = arith.constant 2 : index
    %c0_102 = arith.constant 0 : index
    %436 = vector.load %arg5[%c0_99, %c2_100, %c2_101, %c0_102] : memref<2x4x16x16xf32, #tpu.memory_space<vmem>>, vector<2x1x14x14xf32>
    %437 = vector.shape_cast %436 : vector<2x1x14x14xf32> to vector<2x14x14xf32>
    %c24 = arith.constant 24 : index
    %438 = memref.load %arg1[%c24] : memref<144xf32, #tpu.memory_space<smem>>
    %439 = vector.broadcast %438 : f32 to vector<2x14x14xf32>
    %440 = arith.mulf %439, %437 : vector<2x14x14xf32>
    %441 = arith.addf %423, %440 : vector<2x14x14xf32>
    %c60 = arith.constant 60 : index
    %442 = memref.load %arg1[%c60] : memref<144xf32, #tpu.memory_space<smem>>
    %443 = vector.broadcast %442 : f32 to vector<2x14x14xf32>
    %444 = arith.mulf %443, %437 : vector<2x14x14xf32>
    %445 = arith.addf %427, %444 : vector<2x14x14xf32>
    %c96 = arith.constant 96 : index
    %446 = memref.load %arg1[%c96] : memref<144xf32, #tpu.memory_space<smem>>
    %447 = vector.broadcast %446 : f32 to vector<2x14x14xf32>
    %448 = arith.mulf %447, %437 : vector<2x14x14xf32>
    %449 = arith.addf %431, %448 : vector<2x14x14xf32>
    %c132 = arith.constant 132 : index
    %450 = memref.load %arg1[%c132] : memref<144xf32, #tpu.memory_space<smem>>
    %451 = vector.broadcast %450 : f32 to vector<2x14x14xf32>
    %452 = arith.mulf %451, %437 : vector<2x14x14xf32>
    %453 = arith.addf %435, %452 : vector<2x14x14xf32>
    %c0_103 = arith.constant 0 : index
    %c2_104 = arith.constant 2 : index
    %c2_105 = arith.constant 2 : index
    %c1_106 = arith.constant 1 : index
    %454 = vector.load %arg5[%c0_103, %c2_104, %c2_105, %c1_106] : memref<2x4x16x16xf32, #tpu.memory_space<vmem>>, vector<2x1x14x14xf32>
    %455 = vector.shape_cast %454 : vector<2x1x14x14xf32> to vector<2x14x14xf32>
    %c25 = arith.constant 25 : index
    %456 = memref.load %arg1[%c25] : memref<144xf32, #tpu.memory_space<smem>>
    %457 = vector.broadcast %456 : f32 to vector<2x14x14xf32>
    %458 = arith.mulf %457, %455 : vector<2x14x14xf32>
    %459 = arith.addf %441, %458 : vector<2x14x14xf32>
    %c61 = arith.constant 61 : index
    %460 = memref.load %arg1[%c61] : memref<144xf32, #tpu.memory_space<smem>>
    %461 = vector.broadcast %460 : f32 to vector<2x14x14xf32>
    %462 = arith.mulf %461, %455 : vector<2x14x14xf32>
    %463 = arith.addf %445, %462 : vector<2x14x14xf32>
    %c97 = arith.constant 97 : index
    %464 = memref.load %arg1[%c97] : memref<144xf32, #tpu.memory_space<smem>>
    %465 = vector.broadcast %464 : f32 to vector<2x14x14xf32>
    %466 = arith.mulf %465, %455 : vector<2x14x14xf32>
    %467 = arith.addf %449, %466 : vector<2x14x14xf32>
    %c133 = arith.constant 133 : index
    %468 = memref.load %arg1[%c133] : memref<144xf32, #tpu.memory_space<smem>>
    %469 = vector.broadcast %468 : f32 to vector<2x14x14xf32>
    %470 = arith.mulf %469, %455 : vector<2x14x14xf32>
    %471 = arith.addf %453, %470 : vector<2x14x14xf32>
    %c0_107 = arith.constant 0 : index
    %c2_108 = arith.constant 2 : index
    %c2_109 = arith.constant 2 : index
    %c2_110 = arith.constant 2 : index
    %472 = vector.load %arg5[%c0_107, %c2_108, %c2_109, %c2_110] : memref<2x4x16x16xf32, #tpu.memory_space<vmem>>, vector<2x1x14x14xf32>
    %473 = vector.shape_cast %472 : vector<2x1x14x14xf32> to vector<2x14x14xf32>
    %c26 = arith.constant 26 : index
    %474 = memref.load %arg1[%c26] : memref<144xf32, #tpu.memory_space<smem>>
    %475 = vector.broadcast %474 : f32 to vector<2x14x14xf32>
    %476 = arith.mulf %475, %473 : vector<2x14x14xf32>
    %477 = arith.addf %459, %476 : vector<2x14x14xf32>
    %c62 = arith.constant 62 : index
    %478 = memref.load %arg1[%c62] : memref<144xf32, #tpu.memory_space<smem>>
    %479 = vector.broadcast %478 : f32 to vector<2x14x14xf32>
    %480 = arith.mulf %479, %473 : vector<2x14x14xf32>
    %481 = arith.addf %463, %480 : vector<2x14x14xf32>
    %c98 = arith.constant 98 : index
    %482 = memref.load %arg1[%c98] : memref<144xf32, #tpu.memory_space<smem>>
    %483 = vector.broadcast %482 : f32 to vector<2x14x14xf32>
    %484 = arith.mulf %483, %473 : vector<2x14x14xf32>
    %485 = arith.addf %467, %484 : vector<2x14x14xf32>
    %c134 = arith.constant 134 : index
    %486 = memref.load %arg1[%c134] : memref<144xf32, #tpu.memory_space<smem>>
    %487 = vector.broadcast %486 : f32 to vector<2x14x14xf32>
    %488 = arith.mulf %487, %473 : vector<2x14x14xf32>
    %489 = arith.addf %471, %488 : vector<2x14x14xf32>
    %c0_111 = arith.constant 0 : index
    %c3_112 = arith.constant 3 : index
    %c0_113 = arith.constant 0 : index
    %c0_114 = arith.constant 0 : index
    %490 = vector.load %arg5[%c0_111, %c3_112, %c0_113, %c0_114] : memref<2x4x16x16xf32, #tpu.memory_space<vmem>>, vector<2x1x14x14xf32>
    %491 = vector.shape_cast %490 : vector<2x1x14x14xf32> to vector<2x14x14xf32>
    %c27 = arith.constant 27 : index
    %492 = memref.load %arg1[%c27] : memref<144xf32, #tpu.memory_space<smem>>
    %493 = vector.broadcast %492 : f32 to vector<2x14x14xf32>
    %494 = arith.mulf %493, %491 : vector<2x14x14xf32>
    %495 = arith.addf %477, %494 : vector<2x14x14xf32>
    %c63 = arith.constant 63 : index
    %496 = memref.load %arg1[%c63] : memref<144xf32, #tpu.memory_space<smem>>
    %497 = vector.broadcast %496 : f32 to vector<2x14x14xf32>
    %498 = arith.mulf %497, %491 : vector<2x14x14xf32>
    %499 = arith.addf %481, %498 : vector<2x14x14xf32>
    %c99 = arith.constant 99 : index
    %500 = memref.load %arg1[%c99] : memref<144xf32, #tpu.memory_space<smem>>
    %501 = vector.broadcast %500 : f32 to vector<2x14x14xf32>
    %502 = arith.mulf %501, %491 : vector<2x14x14xf32>
    %503 = arith.addf %485, %502 : vector<2x14x14xf32>
    %c135 = arith.constant 135 : index
    %504 = memref.load %arg1[%c135] : memref<144xf32, #tpu.memory_space<smem>>
    %505 = vector.broadcast %504 : f32 to vector<2x14x14xf32>
    %506 = arith.mulf %505, %491 : vector<2x14x14xf32>
    %507 = arith.addf %489, %506 : vector<2x14x14xf32>
    %c0_115 = arith.constant 0 : index
    %c3_116 = arith.constant 3 : index
    %c0_117 = arith.constant 0 : index
    %c1_118 = arith.constant 1 : index
    %508 = vector.load %arg5[%c0_115, %c3_116, %c0_117, %c1_118] : memref<2x4x16x16xf32, #tpu.memory_space<vmem>>, vector<2x1x14x14xf32>
    %509 = vector.shape_cast %508 : vector<2x1x14x14xf32> to vector<2x14x14xf32>
    %c28 = arith.constant 28 : index
    %510 = memref.load %arg1[%c28] : memref<144xf32, #tpu.memory_space<smem>>
    %511 = vector.broadcast %510 : f32 to vector<2x14x14xf32>
    %512 = arith.mulf %511, %509 : vector<2x14x14xf32>
    %513 = arith.addf %495, %512 : vector<2x14x14xf32>
    %c64 = arith.constant 64 : index
    %514 = memref.load %arg1[%c64] : memref<144xf32, #tpu.memory_space<smem>>
    %515 = vector.broadcast %514 : f32 to vector<2x14x14xf32>
    %516 = arith.mulf %515, %509 : vector<2x14x14xf32>
    %517 = arith.addf %499, %516 : vector<2x14x14xf32>
    %c100 = arith.constant 100 : index
    %518 = memref.load %arg1[%c100] : memref<144xf32, #tpu.memory_space<smem>>
    %519 = vector.broadcast %518 : f32 to vector<2x14x14xf32>
    %520 = arith.mulf %519, %509 : vector<2x14x14xf32>
    %521 = arith.addf %503, %520 : vector<2x14x14xf32>
    %c136 = arith.constant 136 : index
    %522 = memref.load %arg1[%c136] : memref<144xf32, #tpu.memory_space<smem>>
    %523 = vector.broadcast %522 : f32 to vector<2x14x14xf32>
    %524 = arith.mulf %523, %509 : vector<2x14x14xf32>
    %525 = arith.addf %507, %524 : vector<2x14x14xf32>
    %c0_119 = arith.constant 0 : index
    %c3_120 = arith.constant 3 : index
    %c0_121 = arith.constant 0 : index
    %c2_122 = arith.constant 2 : index
    %526 = vector.load %arg5[%c0_119, %c3_120, %c0_121, %c2_122] : memref<2x4x16x16xf32, #tpu.memory_space<vmem>>, vector<2x1x14x14xf32>
    %527 = vector.shape_cast %526 : vector<2x1x14x14xf32> to vector<2x14x14xf32>
    %c29 = arith.constant 29 : index
    %528 = memref.load %arg1[%c29] : memref<144xf32, #tpu.memory_space<smem>>
    %529 = vector.broadcast %528 : f32 to vector<2x14x14xf32>
    %530 = arith.mulf %529, %527 : vector<2x14x14xf32>
    %531 = arith.addf %513, %530 : vector<2x14x14xf32>
    %c65 = arith.constant 65 : index
    %532 = memref.load %arg1[%c65] : memref<144xf32, #tpu.memory_space<smem>>
    %533 = vector.broadcast %532 : f32 to vector<2x14x14xf32>
    %534 = arith.mulf %533, %527 : vector<2x14x14xf32>
    %535 = arith.addf %517, %534 : vector<2x14x14xf32>
    %c101 = arith.constant 101 : index
    %536 = memref.load %arg1[%c101] : memref<144xf32, #tpu.memory_space<smem>>
    %537 = vector.broadcast %536 : f32 to vector<2x14x14xf32>
    %538 = arith.mulf %537, %527 : vector<2x14x14xf32>
    %539 = arith.addf %521, %538 : vector<2x14x14xf32>
    %c137 = arith.constant 137 : index
    %540 = memref.load %arg1[%c137] : memref<144xf32, #tpu.memory_space<smem>>
    %541 = vector.broadcast %540 : f32 to vector<2x14x14xf32>
    %542 = arith.mulf %541, %527 : vector<2x14x14xf32>
    %543 = arith.addf %525, %542 : vector<2x14x14xf32>
    %c0_123 = arith.constant 0 : index
    %c3_124 = arith.constant 3 : index
    %c1_125 = arith.constant 1 : index
    %c0_126 = arith.constant 0 : index
    %544 = vector.load %arg5[%c0_123, %c3_124, %c1_125, %c0_126] : memref<2x4x16x16xf32, #tpu.memory_space<vmem>>, vector<2x1x14x14xf32>
    %545 = vector.shape_cast %544 : vector<2x1x14x14xf32> to vector<2x14x14xf32>
    %c30 = arith.constant 30 : index
    %546 = memref.load %arg1[%c30] : memref<144xf32, #tpu.memory_space<smem>>
    %547 = vector.broadcast %546 : f32 to vector<2x14x14xf32>
    %548 = arith.mulf %547, %545 : vector<2x14x14xf32>
    %549 = arith.addf %531, %548 : vector<2x14x14xf32>
    %c66 = arith.constant 66 : index
    %550 = memref.load %arg1[%c66] : memref<144xf32, #tpu.memory_space<smem>>
    %551 = vector.broadcast %550 : f32 to vector<2x14x14xf32>
    %552 = arith.mulf %551, %545 : vector<2x14x14xf32>
    %553 = arith.addf %535, %552 : vector<2x14x14xf32>
    %c102 = arith.constant 102 : index
    %554 = memref.load %arg1[%c102] : memref<144xf32, #tpu.memory_space<smem>>
    %555 = vector.broadcast %554 : f32 to vector<2x14x14xf32>
    %556 = arith.mulf %555, %545 : vector<2x14x14xf32>
    %557 = arith.addf %539, %556 : vector<2x14x14xf32>
    %c138 = arith.constant 138 : index
    %558 = memref.load %arg1[%c138] : memref<144xf32, #tpu.memory_space<smem>>
    %559 = vector.broadcast %558 : f32 to vector<2x14x14xf32>
    %560 = arith.mulf %559, %545 : vector<2x14x14xf32>
    %561 = arith.addf %543, %560 : vector<2x14x14xf32>
    %c0_127 = arith.constant 0 : index
    %c3_128 = arith.constant 3 : index
    %c1_129 = arith.constant 1 : index
    %c1_130 = arith.constant 1 : index
    %562 = vector.load %arg5[%c0_127, %c3_128, %c1_129, %c1_130] : memref<2x4x16x16xf32, #tpu.memory_space<vmem>>, vector<2x1x14x14xf32>
    %563 = vector.shape_cast %562 : vector<2x1x14x14xf32> to vector<2x14x14xf32>
    %c31 = arith.constant 31 : index
    %564 = memref.load %arg1[%c31] : memref<144xf32, #tpu.memory_space<smem>>
    %565 = vector.broadcast %564 : f32 to vector<2x14x14xf32>
    %566 = arith.mulf %565, %563 : vector<2x14x14xf32>
    %567 = arith.addf %549, %566 : vector<2x14x14xf32>
    %c67 = arith.constant 67 : index
    %568 = memref.load %arg1[%c67] : memref<144xf32, #tpu.memory_space<smem>>
    %569 = vector.broadcast %568 : f32 to vector<2x14x14xf32>
    %570 = arith.mulf %569, %563 : vector<2x14x14xf32>
    %571 = arith.addf %553, %570 : vector<2x14x14xf32>
    %c103 = arith.constant 103 : index
    %572 = memref.load %arg1[%c103] : memref<144xf32, #tpu.memory_space<smem>>
    %573 = vector.broadcast %572 : f32 to vector<2x14x14xf32>
    %574 = arith.mulf %573, %563 : vector<2x14x14xf32>
    %575 = arith.addf %557, %574 : vector<2x14x14xf32>
    %c139 = arith.constant 139 : index
    %576 = memref.load %arg1[%c139] : memref<144xf32, #tpu.memory_space<smem>>
    %577 = vector.broadcast %576 : f32 to vector<2x14x14xf32>
    %578 = arith.mulf %577, %563 : vector<2x14x14xf32>
    %579 = arith.addf %561, %578 : vector<2x14x14xf32>
    %c0_131 = arith.constant 0 : index
    %c3_132 = arith.constant 3 : index
    %c1_133 = arith.constant 1 : index
    %c2_134 = arith.constant 2 : index
    %580 = vector.load %arg5[%c0_131, %c3_132, %c1_133, %c2_134] : memref<2x4x16x16xf32, #tpu.memory_space<vmem>>, vector<2x1x14x14xf32>
    %581 = vector.shape_cast %580 : vector<2x1x14x14xf32> to vector<2x14x14xf32>
    %c32 = arith.constant 32 : index
    %582 = memref.load %arg1[%c32] : memref<144xf32, #tpu.memory_space<smem>>
    %583 = vector.broadcast %582 : f32 to vector<2x14x14xf32>
    %584 = arith.mulf %583, %581 : vector<2x14x14xf32>
    %585 = arith.addf %567, %584 : vector<2x14x14xf32>
    %c68 = arith.constant 68 : index
    %586 = memref.load %arg1[%c68] : memref<144xf32, #tpu.memory_space<smem>>
    %587 = vector.broadcast %586 : f32 to vector<2x14x14xf32>
    %588 = arith.mulf %587, %581 : vector<2x14x14xf32>
    %589 = arith.addf %571, %588 : vector<2x14x14xf32>
    %c104 = arith.constant 104 : index
    %590 = memref.load %arg1[%c104] : memref<144xf32, #tpu.memory_space<smem>>
    %591 = vector.broadcast %590 : f32 to vector<2x14x14xf32>
    %592 = arith.mulf %591, %581 : vector<2x14x14xf32>
    %593 = arith.addf %575, %592 : vector<2x14x14xf32>
    %c140 = arith.constant 140 : index
    %594 = memref.load %arg1[%c140] : memref<144xf32, #tpu.memory_space<smem>>
    %595 = vector.broadcast %594 : f32 to vector<2x14x14xf32>
    %596 = arith.mulf %595, %581 : vector<2x14x14xf32>
    %597 = arith.addf %579, %596 : vector<2x14x14xf32>
    %c0_135 = arith.constant 0 : index
    %c3_136 = arith.constant 3 : index
    %c2_137 = arith.constant 2 : index
    %c0_138 = arith.constant 0 : index
    %598 = vector.load %arg5[%c0_135, %c3_136, %c2_137, %c0_138] : memref<2x4x16x16xf32, #tpu.memory_space<vmem>>, vector<2x1x14x14xf32>
    %599 = vector.shape_cast %598 : vector<2x1x14x14xf32> to vector<2x14x14xf32>
    %c33 = arith.constant 33 : index
    %600 = memref.load %arg1[%c33] : memref<144xf32, #tpu.memory_space<smem>>
    %601 = vector.broadcast %600 : f32 to vector<2x14x14xf32>
    %602 = arith.mulf %601, %599 : vector<2x14x14xf32>
    %603 = arith.addf %585, %602 : vector<2x14x14xf32>
    %c69 = arith.constant 69 : index
    %604 = memref.load %arg1[%c69] : memref<144xf32, #tpu.memory_space<smem>>
    %605 = vector.broadcast %604 : f32 to vector<2x14x14xf32>
    %606 = arith.mulf %605, %599 : vector<2x14x14xf32>
    %607 = arith.addf %589, %606 : vector<2x14x14xf32>
    %c105 = arith.constant 105 : index
    %608 = memref.load %arg1[%c105] : memref<144xf32, #tpu.memory_space<smem>>
    %609 = vector.broadcast %608 : f32 to vector<2x14x14xf32>
    %610 = arith.mulf %609, %599 : vector<2x14x14xf32>
    %611 = arith.addf %593, %610 : vector<2x14x14xf32>
    %c141 = arith.constant 141 : index
    %612 = memref.load %arg1[%c141] : memref<144xf32, #tpu.memory_space<smem>>
    %613 = vector.broadcast %612 : f32 to vector<2x14x14xf32>
    %614 = arith.mulf %613, %599 : vector<2x14x14xf32>
    %615 = arith.addf %597, %614 : vector<2x14x14xf32>
    %c0_139 = arith.constant 0 : index
    %c3_140 = arith.constant 3 : index
    %c2_141 = arith.constant 2 : index
    %c1_142 = arith.constant 1 : index
    %616 = vector.load %arg5[%c0_139, %c3_140, %c2_141, %c1_142] : memref<2x4x16x16xf32, #tpu.memory_space<vmem>>, vector<2x1x14x14xf32>
    %617 = vector.shape_cast %616 : vector<2x1x14x14xf32> to vector<2x14x14xf32>
    %c34 = arith.constant 34 : index
    %618 = memref.load %arg1[%c34] : memref<144xf32, #tpu.memory_space<smem>>
    %619 = vector.broadcast %618 : f32 to vector<2x14x14xf32>
    %620 = arith.mulf %619, %617 : vector<2x14x14xf32>
    %621 = arith.addf %603, %620 : vector<2x14x14xf32>
    %c70 = arith.constant 70 : index
    %622 = memref.load %arg1[%c70] : memref<144xf32, #tpu.memory_space<smem>>
    %623 = vector.broadcast %622 : f32 to vector<2x14x14xf32>
    %624 = arith.mulf %623, %617 : vector<2x14x14xf32>
    %625 = arith.addf %607, %624 : vector<2x14x14xf32>
    %c106 = arith.constant 106 : index
    %626 = memref.load %arg1[%c106] : memref<144xf32, #tpu.memory_space<smem>>
    %627 = vector.broadcast %626 : f32 to vector<2x14x14xf32>
    %628 = arith.mulf %627, %617 : vector<2x14x14xf32>
    %629 = arith.addf %611, %628 : vector<2x14x14xf32>
    %c142 = arith.constant 142 : index
    %630 = memref.load %arg1[%c142] : memref<144xf32, #tpu.memory_space<smem>>
    %631 = vector.broadcast %630 : f32 to vector<2x14x14xf32>
    %632 = arith.mulf %631, %617 : vector<2x14x14xf32>
    %633 = arith.addf %615, %632 : vector<2x14x14xf32>
    %c0_143 = arith.constant 0 : index
    %c3_144 = arith.constant 3 : index
    %c2_145 = arith.constant 2 : index
    %c2_146 = arith.constant 2 : index
    %634 = vector.load %arg5[%c0_143, %c3_144, %c2_145, %c2_146] : memref<2x4x16x16xf32, #tpu.memory_space<vmem>>, vector<2x1x14x14xf32>
    %635 = vector.shape_cast %634 : vector<2x1x14x14xf32> to vector<2x14x14xf32>
    %c35 = arith.constant 35 : index
    %636 = memref.load %arg1[%c35] : memref<144xf32, #tpu.memory_space<smem>>
    %637 = vector.broadcast %636 : f32 to vector<2x14x14xf32>
    %638 = arith.mulf %637, %635 : vector<2x14x14xf32>
    %639 = arith.addf %621, %638 : vector<2x14x14xf32>
    %c71 = arith.constant 71 : index
    %640 = memref.load %arg1[%c71] : memref<144xf32, #tpu.memory_space<smem>>
    %641 = vector.broadcast %640 : f32 to vector<2x14x14xf32>
    %642 = arith.mulf %641, %635 : vector<2x14x14xf32>
    %643 = arith.addf %625, %642 : vector<2x14x14xf32>
    %c107 = arith.constant 107 : index
    %644 = memref.load %arg1[%c107] : memref<144xf32, #tpu.memory_space<smem>>
    %645 = vector.broadcast %644 : f32 to vector<2x14x14xf32>
    %646 = arith.mulf %645, %635 : vector<2x14x14xf32>
    %647 = arith.addf %629, %646 : vector<2x14x14xf32>
    %c143 = arith.constant 143 : index
    %648 = memref.load %arg1[%c143] : memref<144xf32, #tpu.memory_space<smem>>
    %649 = vector.broadcast %648 : f32 to vector<2x14x14xf32>
    %650 = arith.mulf %649, %635 : vector<2x14x14xf32>
    %651 = arith.addf %633, %650 : vector<2x14x14xf32>
    %cst_147 = arith.constant 0.000000e+00 : f32
    %652 = vector.broadcast %cst_147 : f32 to vector<2x64x14xf32>
    %c0_148 = arith.constant 0 : index
    %c0_149 = arith.constant 0 : index
    %c0_150 = arith.constant 0 : index
    %653 = vector.load %arg10[%c0_148, %c0_149, %c0_150] : memref<2x64x14xf32, #tpu.memory_space<vmem>>, vector<2x64x14xf32>
    tpu.vector_store %arg10[%c0_148, %c0_149, %c0_150], %652 {strides = array<i32>} : memref<2x64x14xf32, #tpu.memory_space<vmem>>, vector<2x64x14xf32>,
    %c0_151 = arith.constant 0 : index
    %654 = memref.load %arg2[%c0_151] : memref<4xf32, #tpu.memory_space<smem>>
    %655 = vector.broadcast %654 : f32 to vector<2x14x14xf32>
    %656 = arith.addf %639, %655 : vector<2x14x14xf32>
    %cst_152 = arith.constant 0.000000e+00 : f32
    %657 = vector.broadcast %cst_152 : f32 to vector<2x14x14xf32>
    %658 = arith.maximumf %656, %657 : vector<2x14x14xf32>
    %c0_153 = arith.constant 0 : index
    %c0_154 = arith.constant 0 : index
    %c0_155 = arith.constant 0 : index
    %659 = vector.load %arg10[%c0_153, %c0_154, %c0_155] : memref<2x64x14xf32, #tpu.memory_space<vmem>>, vector<2x14x14xf32>
    tpu.vector_store %arg10[%c0_153, %c0_154, %c0_155], %658 {strides = array<i32>} : memref<2x64x14xf32, #tpu.memory_space<vmem>>, vector<2x14x14xf32>,
    %c1_156 = arith.constant 1 : index
    %660 = memref.load %arg2[%c1_156] : memref<4xf32, #tpu.memory_space<smem>>
    %661 = vector.broadcast %660 : f32 to vector<2x14x14xf32>
    %662 = arith.addf %643, %661 : vector<2x14x14xf32>
    %cst_157 = arith.constant 0.000000e+00 : f32
    %663 = vector.broadcast %cst_157 : f32 to vector<2x14x14xf32>
    %664 = arith.maximumf %662, %663 : vector<2x14x14xf32>
    %c0_158 = arith.constant 0 : index
    %c16_159 = arith.constant 16 : index
    %c0_160 = arith.constant 0 : index
    %665 = vector.load %arg10[%c0_158, %c16_159, %c0_160] : memref<2x64x14xf32, #tpu.memory_space<vmem>>, vector<2x14x14xf32>
    tpu.vector_store %arg10[%c0_158, %c16_159, %c0_160], %664 {strides = array<i32>} : memref<2x64x14xf32, #tpu.memory_space<vmem>>, vector<2x14x14xf32>,
    %c2_161 = arith.constant 2 : index
    %666 = memref.load %arg2[%c2_161] : memref<4xf32, #tpu.memory_space<smem>>
    %667 = vector.broadcast %666 : f32 to vector<2x14x14xf32>
    %668 = arith.addf %647, %667 : vector<2x14x14xf32>
    %cst_162 = arith.constant 0.000000e+00 : f32
    %669 = vector.broadcast %cst_162 : f32 to vector<2x14x14xf32>
    %670 = arith.maximumf %668, %669 : vector<2x14x14xf32>
    %c0_163 = arith.constant 0 : index
    %c32_164 = arith.constant 32 : index
    %c0_165 = arith.constant 0 : index
    %671 = vector.load %arg10[%c0_163, %c32_164, %c0_165] : memref<2x64x14xf32, #tpu.memory_space<vmem>>, vector<2x14x14xf32>
    tpu.vector_store %arg10[%c0_163, %c32_164, %c0_165], %670 {strides = array<i32>} : memref<2x64x14xf32, #tpu.memory_space<vmem>>, vector<2x14x14xf32>,
    %c3_166 = arith.constant 3 : index
    %672 = memref.load %arg2[%c3_166] : memref<4xf32, #tpu.memory_space<smem>>
    %673 = vector.broadcast %672 : f32 to vector<2x14x14xf32>
    %674 = arith.addf %651, %673 : vector<2x14x14xf32>
    %cst_167 = arith.constant 0.000000e+00 : f32
    %675 = vector.broadcast %cst_167 : f32 to vector<2x14x14xf32>
    %676 = arith.maximumf %674, %675 : vector<2x14x14xf32>
    %c0_168 = arith.constant 0 : index
    %c48_169 = arith.constant 48 : index
    %c0_170 = arith.constant 0 : index
    %677 = vector.load %arg10[%c0_168, %c48_169, %c0_170] : memref<2x64x14xf32, #tpu.memory_space<vmem>>, vector<2x14x14xf32>
    tpu.vector_store %arg10[%c0_168, %c48_169, %c0_170], %676 {strides = array<i32>} : memref<2x64x14xf32, #tpu.memory_space<vmem>>, vector<2x14x14xf32>,
    %c0_171 = arith.constant 0 : index
    %c0_172 = arith.constant 0 : index
    %c0_173 = arith.constant 0 : index
    %678 = vector.load %arg10[%c0_171, %c0_172, %c0_173] : memref<2x64x14xf32, #tpu.memory_space<vmem>>, vector<2x64x14xf32>
    %679 = vector.shape_cast %678 : vector<2x64x14xf32> to vector<128x14xf32>
    %c0_174 = arith.constant 0 : index
    %c0_175 = arith.constant 0 : index
    %680 = vector.load %arg6[%c0_174, %c0_175] : memref<14x14xf32, #tpu.memory_space<vmem>>, vector<14x14xf32>
    %cst_176 = arith.constant dense<0.000000e+00> : vector<128x14xf32>
    %681 = tpu.matmul %679, %680, %cst_176 {dimension_numbers = #tpu.dot_dimension_numbers<[1], [0], [0], [1], [0, 0, 1, 1], [], []>} : vector<128x14xf32>, vector<14x14xf32>, vector<128x14xf32> -> vector<128x14xf32>
    %682 = vector.extract_strided_slice %681 {offsets = [0, 0], sizes = [128, 7], strides = [1, 1]} : vector<128x14xf32> to vector<128x7xf32>
    %683 = vector.extract_strided_slice %681 {offsets = [0, 7], sizes = [128, 7], strides = [1, 1]} : vector<128x14xf32> to vector<128x7xf32>
    %684 = arith.maximumf %682, %683 : vector<128x7xf32>
    %c0_177 = arith.constant 0 : index
    %c0_178 = arith.constant 0 : index
    %685 = vector.load %arg7[%c0_177, %c0_178] : memref<64x64xf32, #tpu.memory_space<vmem>>, vector<64x64xf32>
    %686 = vector.extract_strided_slice %684 {offsets = [0, 0], sizes = [64, 7], strides = [1, 1]} : vector<128x7xf32> to vector<64x7xf32>
    %cst_179 = arith.constant dense<0.000000e+00> : vector<64x7xf32>
    %687 = tpu.matmul %685, %686, %cst_179 {dimension_numbers = #tpu.dot_dimension_numbers<[1], [0], [0], [1], [0, 0, 1, 1], [], []>} : vector<64x64xf32>, vector<64x7xf32>, vector<64x7xf32> -> vector<64x7xf32>
    %688 = vector.extract_strided_slice %687 {offsets = [0, 0], sizes = [32, 7], strides = [1, 1]} : vector<64x7xf32> to vector<32x7xf32>
    %689 = vector.extract_strided_slice %687 {offsets = [32, 0], sizes = [32, 7], strides = [1, 1]} : vector<64x7xf32> to vector<32x7xf32>
    %690 = arith.maximumf %688, %689 : vector<32x7xf32>
    %691 = vector.extract_strided_slice %684 {offsets = [64, 0], sizes = [64, 7], strides = [1, 1]} : vector<128x7xf32> to vector<64x7xf32>
    %cst_180 = arith.constant dense<0.000000e+00> : vector<64x7xf32>
    %692 = tpu.matmul %685, %691, %cst_180 {dimension_numbers = #tpu.dot_dimension_numbers<[1], [0], [0], [1], [0, 0, 1, 1], [], []>} : vector<64x64xf32>, vector<64x7xf32>, vector<64x7xf32> -> vector<64x7xf32>
    %693 = vector.extract_strided_slice %692 {offsets = [0, 0], sizes = [32, 7], strides = [1, 1]} : vector<64x7xf32> to vector<32x7xf32>
    %694 = vector.extract_strided_slice %692 {offsets = [32, 0], sizes = [32, 7], strides = [1, 1]} : vector<64x7xf32> to vector<32x7xf32>
    %695 = arith.maximumf %693, %694 : vector<32x7xf32>
    %696 = vector.shape_cast %690 : vector<32x7xf32> to vector<1x32x7xf32>
    %697 = vector.shape_cast %695 : vector<32x7xf32> to vector<1x32x7xf32>
    %698 = tpu.concatenate %696, %697 in 0 : vector<1x32x7xf32>, vector<1x32x7xf32> -> vector<2x32x7xf32>
    %cst_181 = arith.constant 0.000000e+00 : f32
    %699 = vector.broadcast %cst_181 : f32 to vector<2x5x5xf32>
    %cst_182 = arith.constant 0.000000e+00 : f32
    %700 = vector.broadcast %cst_182 : f32 to vector<2x5x5xf32>
    %cst_183 = arith.constant 0.000000e+00 : f32
    %701 = vector.broadcast %cst_183 : f32 to vector<2x5x5xf32>
    %cst_184 = arith.constant 0.000000e+00 : f32
    %702 = vector.broadcast %cst_184 : f32 to vector<2x5x5xf32>
    %703 = vector.extract_strided_slice %698 {offsets = [0, 0, 0], sizes = [2, 5, 5], strides = [1, 1, 1]} : vector<2x32x7xf32> to vector<2x5x5xf32>
    %c0_185 = arith.constant 0 : index
    %704 = memref.load %arg3[%c0_185] : memref<144xf32, #tpu.memory_space<smem>>
    %705 = vector.broadcast %704 : f32 to vector<2x5x5xf32>
    %706 = arith.mulf %705, %703 : vector<2x5x5xf32>
    %707 = arith.addf %699, %706 : vector<2x5x5xf32>
    %c36_186 = arith.constant 36 : index
    %708 = memref.load %arg3[%c36_186] : memref<144xf32, #tpu.memory_space<smem>>
    %709 = vector.broadcast %708 : f32 to vector<2x5x5xf32>
    %710 = arith.mulf %709, %703 : vector<2x5x5xf32>
    %711 = arith.addf %700, %710 : vector<2x5x5xf32>
    %c72_187 = arith.constant 72 : index
    %712 = memref.load %arg3[%c72_187] : memref<144xf32, #tpu.memory_space<smem>>
    %713 = vector.broadcast %712 : f32 to vector<2x5x5xf32>
    %714 = arith.mulf %713, %703 : vector<2x5x5xf32>
    %715 = arith.addf %701, %714 : vector<2x5x5xf32>
    %c108_188 = arith.constant 108 : index
    %716 = memref.load %arg3[%c108_188] : memref<144xf32, #tpu.memory_space<smem>>
    %717 = vector.broadcast %716 : f32 to vector<2x5x5xf32>
    %718 = arith.mulf %717, %703 : vector<2x5x5xf32>
    %719 = arith.addf %702, %718 : vector<2x5x5xf32>
    %720 = vector.extract_strided_slice %698 {offsets = [0, 0, 1], sizes = [2, 5, 5], strides = [1, 1, 1]} : vector<2x32x7xf32> to vector<2x5x5xf32>
    %c1_189 = arith.constant 1 : index
    %721 = memref.load %arg3[%c1_189] : memref<144xf32, #tpu.memory_space<smem>>
    %722 = vector.broadcast %721 : f32 to vector<2x5x5xf32>
    %723 = arith.mulf %722, %720 : vector<2x5x5xf32>
    %724 = arith.addf %707, %723 : vector<2x5x5xf32>
    %c37_190 = arith.constant 37 : index
    %725 = memref.load %arg3[%c37_190] : memref<144xf32, #tpu.memory_space<smem>>
    %726 = vector.broadcast %725 : f32 to vector<2x5x5xf32>
    %727 = arith.mulf %726, %720 : vector<2x5x5xf32>
    %728 = arith.addf %711, %727 : vector<2x5x5xf32>
    %c73_191 = arith.constant 73 : index
    %729 = memref.load %arg3[%c73_191] : memref<144xf32, #tpu.memory_space<smem>>
    %730 = vector.broadcast %729 : f32 to vector<2x5x5xf32>
    %731 = arith.mulf %730, %720 : vector<2x5x5xf32>
    %732 = arith.addf %715, %731 : vector<2x5x5xf32>
    %c109_192 = arith.constant 109 : index
    %733 = memref.load %arg3[%c109_192] : memref<144xf32, #tpu.memory_space<smem>>
    %734 = vector.broadcast %733 : f32 to vector<2x5x5xf32>
    %735 = arith.mulf %734, %720 : vector<2x5x5xf32>
    %736 = arith.addf %719, %735 : vector<2x5x5xf32>
    %737 = vector.extract_strided_slice %698 {offsets = [0, 0, 2], sizes = [2, 5, 5], strides = [1, 1, 1]} : vector<2x32x7xf32> to vector<2x5x5xf32>
    %c2_193 = arith.constant 2 : index
    %738 = memref.load %arg3[%c2_193] : memref<144xf32, #tpu.memory_space<smem>>
    %739 = vector.broadcast %738 : f32 to vector<2x5x5xf32>
    %740 = arith.mulf %739, %737 : vector<2x5x5xf32>
    %741 = arith.addf %724, %740 : vector<2x5x5xf32>
    %c38_194 = arith.constant 38 : index
    %742 = memref.load %arg3[%c38_194] : memref<144xf32, #tpu.memory_space<smem>>
    %743 = vector.broadcast %742 : f32 to vector<2x5x5xf32>
    %744 = arith.mulf %743, %737 : vector<2x5x5xf32>
    %745 = arith.addf %728, %744 : vector<2x5x5xf32>
    %c74_195 = arith.constant 74 : index
    %746 = memref.load %arg3[%c74_195] : memref<144xf32, #tpu.memory_space<smem>>
    %747 = vector.broadcast %746 : f32 to vector<2x5x5xf32>
    %748 = arith.mulf %747, %737 : vector<2x5x5xf32>
    %749 = arith.addf %732, %748 : vector<2x5x5xf32>
    %c110_196 = arith.constant 110 : index
    %750 = memref.load %arg3[%c110_196] : memref<144xf32, #tpu.memory_space<smem>>
    %751 = vector.broadcast %750 : f32 to vector<2x5x5xf32>
    %752 = arith.mulf %751, %737 : vector<2x5x5xf32>
    %753 = arith.addf %736, %752 : vector<2x5x5xf32>
    %754 = vector.extract_strided_slice %698 {offsets = [0, 1, 0], sizes = [2, 5, 5], strides = [1, 1, 1]} : vector<2x32x7xf32> to vector<2x5x5xf32>
    %c3_197 = arith.constant 3 : index
    %755 = memref.load %arg3[%c3_197] : memref<144xf32, #tpu.memory_space<smem>>
    %756 = vector.broadcast %755 : f32 to vector<2x5x5xf32>
    %757 = arith.mulf %756, %754 : vector<2x5x5xf32>
    %758 = arith.addf %741, %757 : vector<2x5x5xf32>
    %c39_198 = arith.constant 39 : index
    %759 = memref.load %arg3[%c39_198] : memref<144xf32, #tpu.memory_space<smem>>
    %760 = vector.broadcast %759 : f32 to vector<2x5x5xf32>
    %761 = arith.mulf %760, %754 : vector<2x5x5xf32>
    %762 = arith.addf %745, %761 : vector<2x5x5xf32>
    %c75_199 = arith.constant 75 : index
    %763 = memref.load %arg3[%c75_199] : memref<144xf32, #tpu.memory_space<smem>>
    %764 = vector.broadcast %763 : f32 to vector<2x5x5xf32>
    %765 = arith.mulf %764, %754 : vector<2x5x5xf32>
    %766 = arith.addf %749, %765 : vector<2x5x5xf32>
    %c111_200 = arith.constant 111 : index
    %767 = memref.load %arg3[%c111_200] : memref<144xf32, #tpu.memory_space<smem>>
    %768 = vector.broadcast %767 : f32 to vector<2x5x5xf32>
    %769 = arith.mulf %768, %754 : vector<2x5x5xf32>
    %770 = arith.addf %753, %769 : vector<2x5x5xf32>
    %771 = vector.extract_strided_slice %698 {offsets = [0, 1, 1], sizes = [2, 5, 5], strides = [1, 1, 1]} : vector<2x32x7xf32> to vector<2x5x5xf32>
    %c4_201 = arith.constant 4 : index
    %772 = memref.load %arg3[%c4_201] : memref<144xf32, #tpu.memory_space<smem>>
    %773 = vector.broadcast %772 : f32 to vector<2x5x5xf32>
    %774 = arith.mulf %773, %771 : vector<2x5x5xf32>
    %775 = arith.addf %758, %774 : vector<2x5x5xf32>
    %c40_202 = arith.constant 40 : index
    %776 = memref.load %arg3[%c40_202] : memref<144xf32, #tpu.memory_space<smem>>
    %777 = vector.broadcast %776 : f32 to vector<2x5x5xf32>
    %778 = arith.mulf %777, %771 : vector<2x5x5xf32>
    %779 = arith.addf %762, %778 : vector<2x5x5xf32>
    %c76_203 = arith.constant 76 : index
    %780 = memref.load %arg3[%c76_203] : memref<144xf32, #tpu.memory_space<smem>>
    %781 = vector.broadcast %780 : f32 to vector<2x5x5xf32>
    %782 = arith.mulf %781, %771 : vector<2x5x5xf32>
    %783 = arith.addf %766, %782 : vector<2x5x5xf32>
    %c112_204 = arith.constant 112 : index
    %784 = memref.load %arg3[%c112_204] : memref<144xf32, #tpu.memory_space<smem>>
    %785 = vector.broadcast %784 : f32 to vector<2x5x5xf32>
    %786 = arith.mulf %785, %771 : vector<2x5x5xf32>
    %787 = arith.addf %770, %786 : vector<2x5x5xf32>
    %788 = vector.extract_strided_slice %698 {offsets = [0, 1, 2], sizes = [2, 5, 5], strides = [1, 1, 1]} : vector<2x32x7xf32> to vector<2x5x5xf32>
    %c5_205 = arith.constant 5 : index
    %789 = memref.load %arg3[%c5_205] : memref<144xf32, #tpu.memory_space<smem>>
    %790 = vector.broadcast %789 : f32 to vector<2x5x5xf32>
    %791 = arith.mulf %790, %788 : vector<2x5x5xf32>
    %792 = arith.addf %775, %791 : vector<2x5x5xf32>
    %c41_206 = arith.constant 41 : index
    %793 = memref.load %arg3[%c41_206] : memref<144xf32, #tpu.memory_space<smem>>
    %794 = vector.broadcast %793 : f32 to vector<2x5x5xf32>
    %795 = arith.mulf %794, %788 : vector<2x5x5xf32>
    %796 = arith.addf %779, %795 : vector<2x5x5xf32>
    %c77_207 = arith.constant 77 : index
    %797 = memref.load %arg3[%c77_207] : memref<144xf32, #tpu.memory_space<smem>>
    %798 = vector.broadcast %797 : f32 to vector<2x5x5xf32>
    %799 = arith.mulf %798, %788 : vector<2x5x5xf32>
    %800 = arith.addf %783, %799 : vector<2x5x5xf32>
    %c113_208 = arith.constant 113 : index
    %801 = memref.load %arg3[%c113_208] : memref<144xf32, #tpu.memory_space<smem>>
    %802 = vector.broadcast %801 : f32 to vector<2x5x5xf32>
    %803 = arith.mulf %802, %788 : vector<2x5x5xf32>
    %804 = arith.addf %787, %803 : vector<2x5x5xf32>
    %805 = vector.extract_strided_slice %698 {offsets = [0, 2, 0], sizes = [2, 5, 5], strides = [1, 1, 1]} : vector<2x32x7xf32> to vector<2x5x5xf32>
    %c6_209 = arith.constant 6 : index
    %806 = memref.load %arg3[%c6_209] : memref<144xf32, #tpu.memory_space<smem>>
    %807 = vector.broadcast %806 : f32 to vector<2x5x5xf32>
    %808 = arith.mulf %807, %805 : vector<2x5x5xf32>
    %809 = arith.addf %792, %808 : vector<2x5x5xf32>
    %c42_210 = arith.constant 42 : index
    %810 = memref.load %arg3[%c42_210] : memref<144xf32, #tpu.memory_space<smem>>
    %811 = vector.broadcast %810 : f32 to vector<2x5x5xf32>
    %812 = arith.mulf %811, %805 : vector<2x5x5xf32>
    %813 = arith.addf %796, %812 : vector<2x5x5xf32>
    %c78_211 = arith.constant 78 : index
    %814 = memref.load %arg3[%c78_211] : memref<144xf32, #tpu.memory_space<smem>>
    %815 = vector.broadcast %814 : f32 to vector<2x5x5xf32>
    %816 = arith.mulf %815, %805 : vector<2x5x5xf32>
    %817 = arith.addf %800, %816 : vector<2x5x5xf32>
    %c114_212 = arith.constant 114 : index
    %818 = memref.load %arg3[%c114_212] : memref<144xf32, #tpu.memory_space<smem>>
    %819 = vector.broadcast %818 : f32 to vector<2x5x5xf32>
    %820 = arith.mulf %819, %805 : vector<2x5x5xf32>
    %821 = arith.addf %804, %820 : vector<2x5x5xf32>
    %822 = vector.extract_strided_slice %698 {offsets = [0, 2, 1], sizes = [2, 5, 5], strides = [1, 1, 1]} : vector<2x32x7xf32> to vector<2x5x5xf32>
    %c7_213 = arith.constant 7 : index
    %823 = memref.load %arg3[%c7_213] : memref<144xf32, #tpu.memory_space<smem>>
    %824 = vector.broadcast %823 : f32 to vector<2x5x5xf32>
    %825 = arith.mulf %824, %822 : vector<2x5x5xf32>
    %826 = arith.addf %809, %825 : vector<2x5x5xf32>
    %c43_214 = arith.constant 43 : index
    %827 = memref.load %arg3[%c43_214] : memref<144xf32, #tpu.memory_space<smem>>
    %828 = vector.broadcast %827 : f32 to vector<2x5x5xf32>
    %829 = arith.mulf %828, %822 : vector<2x5x5xf32>
    %830 = arith.addf %813, %829 : vector<2x5x5xf32>
    %c79_215 = arith.constant 79 : index
    %831 = memref.load %arg3[%c79_215] : memref<144xf32, #tpu.memory_space<smem>>
    %832 = vector.broadcast %831 : f32 to vector<2x5x5xf32>
    %833 = arith.mulf %832, %822 : vector<2x5x5xf32>
    %834 = arith.addf %817, %833 : vector<2x5x5xf32>
    %c115_216 = arith.constant 115 : index
    %835 = memref.load %arg3[%c115_216] : memref<144xf32, #tpu.memory_space<smem>>
    %836 = vector.broadcast %835 : f32 to vector<2x5x5xf32>
    %837 = arith.mulf %836, %822 : vector<2x5x5xf32>
    %838 = arith.addf %821, %837 : vector<2x5x5xf32>
    %839 = vector.extract_strided_slice %698 {offsets = [0, 2, 2], sizes = [2, 5, 5], strides = [1, 1, 1]} : vector<2x32x7xf32> to vector<2x5x5xf32>
    %c8_217 = arith.constant 8 : index
    %840 = memref.load %arg3[%c8_217] : memref<144xf32, #tpu.memory_space<smem>>
    %841 = vector.broadcast %840 : f32 to vector<2x5x5xf32>
    %842 = arith.mulf %841, %839 : vector<2x5x5xf32>
    %843 = arith.addf %826, %842 : vector<2x5x5xf32>
    %c44_218 = arith.constant 44 : index
    %844 = memref.load %arg3[%c44_218] : memref<144xf32, #tpu.memory_space<smem>>
    %845 = vector.broadcast %844 : f32 to vector<2x5x5xf32>
    %846 = arith.mulf %845, %839 : vector<2x5x5xf32>
    %847 = arith.addf %830, %846 : vector<2x5x5xf32>
    %c80_219 = arith.constant 80 : index
    %848 = memref.load %arg3[%c80_219] : memref<144xf32, #tpu.memory_space<smem>>
    %849 = vector.broadcast %848 : f32 to vector<2x5x5xf32>
    %850 = arith.mulf %849, %839 : vector<2x5x5xf32>
    %851 = arith.addf %834, %850 : vector<2x5x5xf32>
    %c116_220 = arith.constant 116 : index
    %852 = memref.load %arg3[%c116_220] : memref<144xf32, #tpu.memory_space<smem>>
    %853 = vector.broadcast %852 : f32 to vector<2x5x5xf32>
    %854 = arith.mulf %853, %839 : vector<2x5x5xf32>
    %855 = arith.addf %838, %854 : vector<2x5x5xf32>
    %856 = vector.extract_strided_slice %698 {offsets = [0, 8, 0], sizes = [2, 5, 5], strides = [1, 1, 1]} : vector<2x32x7xf32> to vector<2x5x5xf32>
    %c9_221 = arith.constant 9 : index
    %857 = memref.load %arg3[%c9_221] : memref<144xf32, #tpu.memory_space<smem>>
    %858 = vector.broadcast %857 : f32 to vector<2x5x5xf32>
    %859 = arith.mulf %858, %856 : vector<2x5x5xf32>
    %860 = arith.addf %843, %859 : vector<2x5x5xf32>
    %c45_222 = arith.constant 45 : index
    %861 = memref.load %arg3[%c45_222] : memref<144xf32, #tpu.memory_space<smem>>
    %862 = vector.broadcast %861 : f32 to vector<2x5x5xf32>
    %863 = arith.mulf %862, %856 : vector<2x5x5xf32>
    %864 = arith.addf %847, %863 : vector<2x5x5xf32>
    %c81_223 = arith.constant 81 : index
    %865 = memref.load %arg3[%c81_223] : memref<144xf32, #tpu.memory_space<smem>>
    %866 = vector.broadcast %865 : f32 to vector<2x5x5xf32>
    %867 = arith.mulf %866, %856 : vector<2x5x5xf32>
    %868 = arith.addf %851, %867 : vector<2x5x5xf32>
    %c117_224 = arith.constant 117 : index
    %869 = memref.load %arg3[%c117_224] : memref<144xf32, #tpu.memory_space<smem>>
    %870 = vector.broadcast %869 : f32 to vector<2x5x5xf32>
    %871 = arith.mulf %870, %856 : vector<2x5x5xf32>
    %872 = arith.addf %855, %871 : vector<2x5x5xf32>
    %873 = vector.extract_strided_slice %698 {offsets = [0, 8, 1], sizes = [2, 5, 5], strides = [1, 1, 1]} : vector<2x32x7xf32> to vector<2x5x5xf32>
    %c10_225 = arith.constant 10 : index
    %874 = memref.load %arg3[%c10_225] : memref<144xf32, #tpu.memory_space<smem>>
    %875 = vector.broadcast %874 : f32 to vector<2x5x5xf32>
    %876 = arith.mulf %875, %873 : vector<2x5x5xf32>
    %877 = arith.addf %860, %876 : vector<2x5x5xf32>
    %c46_226 = arith.constant 46 : index
    %878 = memref.load %arg3[%c46_226] : memref<144xf32, #tpu.memory_space<smem>>
    %879 = vector.broadcast %878 : f32 to vector<2x5x5xf32>
    %880 = arith.mulf %879, %873 : vector<2x5x5xf32>
    %881 = arith.addf %864, %880 : vector<2x5x5xf32>
    %c82_227 = arith.constant 82 : index
    %882 = memref.load %arg3[%c82_227] : memref<144xf32, #tpu.memory_space<smem>>
    %883 = vector.broadcast %882 : f32 to vector<2x5x5xf32>
    %884 = arith.mulf %883, %873 : vector<2x5x5xf32>
    %885 = arith.addf %868, %884 : vector<2x5x5xf32>
    %c118_228 = arith.constant 118 : index
    %886 = memref.load %arg3[%c118_228] : memref<144xf32, #tpu.memory_space<smem>>
    %887 = vector.broadcast %886 : f32 to vector<2x5x5xf32>
    %888 = arith.mulf %887, %873 : vector<2x5x5xf32>
    %889 = arith.addf %872, %888 : vector<2x5x5xf32>
    %890 = vector.extract_strided_slice %698 {offsets = [0, 8, 2], sizes = [2, 5, 5], strides = [1, 1, 1]} : vector<2x32x7xf32> to vector<2x5x5xf32>
    %c11_229 = arith.constant 11 : index
    %891 = memref.load %arg3[%c11_229] : memref<144xf32, #tpu.memory_space<smem>>
    %892 = vector.broadcast %891 : f32 to vector<2x5x5xf32>
    %893 = arith.mulf %892, %890 : vector<2x5x5xf32>
    %894 = arith.addf %877, %893 : vector<2x5x5xf32>
    %c47_230 = arith.constant 47 : index
    %895 = memref.load %arg3[%c47_230] : memref<144xf32, #tpu.memory_space<smem>>
    %896 = vector.broadcast %895 : f32 to vector<2x5x5xf32>
    %897 = arith.mulf %896, %890 : vector<2x5x5xf32>
    %898 = arith.addf %881, %897 : vector<2x5x5xf32>
    %c83_231 = arith.constant 83 : index
    %899 = memref.load %arg3[%c83_231] : memref<144xf32, #tpu.memory_space<smem>>
    %900 = vector.broadcast %899 : f32 to vector<2x5x5xf32>
    %901 = arith.mulf %900, %890 : vector<2x5x5xf32>
    %902 = arith.addf %885, %901 : vector<2x5x5xf32>
    %c119_232 = arith.constant 119 : index
    %903 = memref.load %arg3[%c119_232] : memref<144xf32, #tpu.memory_space<smem>>
    %904 = vector.broadcast %903 : f32 to vector<2x5x5xf32>
    %905 = arith.mulf %904, %890 : vector<2x5x5xf32>
    %906 = arith.addf %889, %905 : vector<2x5x5xf32>
    %907 = vector.extract_strided_slice %698 {offsets = [0, 9, 0], sizes = [2, 5, 5], strides = [1, 1, 1]} : vector<2x32x7xf32> to vector<2x5x5xf32>
    %c12_233 = arith.constant 12 : index
    %908 = memref.load %arg3[%c12_233] : memref<144xf32, #tpu.memory_space<smem>>
    %909 = vector.broadcast %908 : f32 to vector<2x5x5xf32>
    %910 = arith.mulf %909, %907 : vector<2x5x5xf32>
    %911 = arith.addf %894, %910 : vector<2x5x5xf32>
    %c48_234 = arith.constant 48 : index
    %912 = memref.load %arg3[%c48_234] : memref<144xf32, #tpu.memory_space<smem>>
    %913 = vector.broadcast %912 : f32 to vector<2x5x5xf32>
    %914 = arith.mulf %913, %907 : vector<2x5x5xf32>
    %915 = arith.addf %898, %914 : vector<2x5x5xf32>
    %c84_235 = arith.constant 84 : index
    %916 = memref.load %arg3[%c84_235] : memref<144xf32, #tpu.memory_space<smem>>
    %917 = vector.broadcast %916 : f32 to vector<2x5x5xf32>
    %918 = arith.mulf %917, %907 : vector<2x5x5xf32>
    %919 = arith.addf %902, %918 : vector<2x5x5xf32>
    %c120_236 = arith.constant 120 : index
    %920 = memref.load %arg3[%c120_236] : memref<144xf32, #tpu.memory_space<smem>>
    %921 = vector.broadcast %920 : f32 to vector<2x5x5xf32>
    %922 = arith.mulf %921, %907 : vector<2x5x5xf32>
    %923 = arith.addf %906, %922 : vector<2x5x5xf32>
    %924 = vector.extract_strided_slice %698 {offsets = [0, 9, 1], sizes = [2, 5, 5], strides = [1, 1, 1]} : vector<2x32x7xf32> to vector<2x5x5xf32>
    %c13_237 = arith.constant 13 : index
    %925 = memref.load %arg3[%c13_237] : memref<144xf32, #tpu.memory_space<smem>>
    %926 = vector.broadcast %925 : f32 to vector<2x5x5xf32>
    %927 = arith.mulf %926, %924 : vector<2x5x5xf32>
    %928 = arith.addf %911, %927 : vector<2x5x5xf32>
    %c49_238 = arith.constant 49 : index
    %929 = memref.load %arg3[%c49_238] : memref<144xf32, #tpu.memory_space<smem>>
    %930 = vector.broadcast %929 : f32 to vector<2x5x5xf32>
    %931 = arith.mulf %930, %924 : vector<2x5x5xf32>
    %932 = arith.addf %915, %931 : vector<2x5x5xf32>
    %c85_239 = arith.constant 85 : index
    %933 = memref.load %arg3[%c85_239] : memref<144xf32, #tpu.memory_space<smem>>
    %934 = vector.broadcast %933 : f32 to vector<2x5x5xf32>
    %935 = arith.mulf %934, %924 : vector<2x5x5xf32>
    %936 = arith.addf %919, %935 : vector<2x5x5xf32>
    %c121_240 = arith.constant 121 : index
    %937 = memref.load %arg3[%c121_240] : memref<144xf32, #tpu.memory_space<smem>>
    %938 = vector.broadcast %937 : f32 to vector<2x5x5xf32>
    %939 = arith.mulf %938, %924 : vector<2x5x5xf32>
    %940 = arith.addf %923, %939 : vector<2x5x5xf32>
    %941 = vector.extract_strided_slice %698 {offsets = [0, 9, 2], sizes = [2, 5, 5], strides = [1, 1, 1]} : vector<2x32x7xf32> to vector<2x5x5xf32>
    %c14_241 = arith.constant 14 : index
    %942 = memref.load %arg3[%c14_241] : memref<144xf32, #tpu.memory_space<smem>>
    %943 = vector.broadcast %942 : f32 to vector<2x5x5xf32>
    %944 = arith.mulf %943, %941 : vector<2x5x5xf32>
    %945 = arith.addf %928, %944 : vector<2x5x5xf32>
    %c50_242 = arith.constant 50 : index
    %946 = memref.load %arg3[%c50_242] : memref<144xf32, #tpu.memory_space<smem>>
    %947 = vector.broadcast %946 : f32 to vector<2x5x5xf32>
    %948 = arith.mulf %947, %941 : vector<2x5x5xf32>
    %949 = arith.addf %932, %948 : vector<2x5x5xf32>
    %c86_243 = arith.constant 86 : index
    %950 = memref.load %arg3[%c86_243] : memref<144xf32, #tpu.memory_space<smem>>
    %951 = vector.broadcast %950 : f32 to vector<2x5x5xf32>
    %952 = arith.mulf %951, %941 : vector<2x5x5xf32>
    %953 = arith.addf %936, %952 : vector<2x5x5xf32>
    %c122_244 = arith.constant 122 : index
    %954 = memref.load %arg3[%c122_244] : memref<144xf32, #tpu.memory_space<smem>>
    %955 = vector.broadcast %954 : f32 to vector<2x5x5xf32>
    %956 = arith.mulf %955, %941 : vector<2x5x5xf32>
    %957 = arith.addf %940, %956 : vector<2x5x5xf32>
    %958 = vector.extract_strided_slice %698 {offsets = [0, 10, 0], sizes = [2, 5, 5], strides = [1, 1, 1]} : vector<2x32x7xf32> to vector<2x5x5xf32>
    %c15_245 = arith.constant 15 : index
    %959 = memref.load %arg3[%c15_245] : memref<144xf32, #tpu.memory_space<smem>>
    %960 = vector.broadcast %959 : f32 to vector<2x5x5xf32>
    %961 = arith.mulf %960, %958 : vector<2x5x5xf32>
    %962 = arith.addf %945, %961 : vector<2x5x5xf32>
    %c51_246 = arith.constant 51 : index
    %963 = memref.load %arg3[%c51_246] : memref<144xf32, #tpu.memory_space<smem>>
    %964 = vector.broadcast %963 : f32 to vector<2x5x5xf32>
    %965 = arith.mulf %964, %958 : vector<2x5x5xf32>
    %966 = arith.addf %949, %965 : vector<2x5x5xf32>
    %c87_247 = arith.constant 87 : index
    %967 = memref.load %arg3[%c87_247] : memref<144xf32, #tpu.memory_space<smem>>
    %968 = vector.broadcast %967 : f32 to vector<2x5x5xf32>
    %969 = arith.mulf %968, %958 : vector<2x5x5xf32>
    %970 = arith.addf %953, %969 : vector<2x5x5xf32>
    %c123_248 = arith.constant 123 : index
    %971 = memref.load %arg3[%c123_248] : memref<144xf32, #tpu.memory_space<smem>>
    %972 = vector.broadcast %971 : f32 to vector<2x5x5xf32>
    %973 = arith.mulf %972, %958 : vector<2x5x5xf32>
    %974 = arith.addf %957, %973 : vector<2x5x5xf32>
    %975 = vector.extract_strided_slice %698 {offsets = [0, 10, 1], sizes = [2, 5, 5], strides = [1, 1, 1]} : vector<2x32x7xf32> to vector<2x5x5xf32>
    %c16_249 = arith.constant 16 : index
    %976 = memref.load %arg3[%c16_249] : memref<144xf32, #tpu.memory_space<smem>>
    %977 = vector.broadcast %976 : f32 to vector<2x5x5xf32>
    %978 = arith.mulf %977, %975 : vector<2x5x5xf32>
    %979 = arith.addf %962, %978 : vector<2x5x5xf32>
    %c52_250 = arith.constant 52 : index
    %980 = memref.load %arg3[%c52_250] : memref<144xf32, #tpu.memory_space<smem>>
    %981 = vector.broadcast %980 : f32 to vector<2x5x5xf32>
    %982 = arith.mulf %981, %975 : vector<2x5x5xf32>
    %983 = arith.addf %966, %982 : vector<2x5x5xf32>
    %c88_251 = arith.constant 88 : index
    %984 = memref.load %arg3[%c88_251] : memref<144xf32, #tpu.memory_space<smem>>
    %985 = vector.broadcast %984 : f32 to vector<2x5x5xf32>
    %986 = arith.mulf %985, %975 : vector<2x5x5xf32>
    %987 = arith.addf %970, %986 : vector<2x5x5xf32>
    %c124_252 = arith.constant 124 : index
    %988 = memref.load %arg3[%c124_252] : memref<144xf32, #tpu.memory_space<smem>>
    %989 = vector.broadcast %988 : f32 to vector<2x5x5xf32>
    %990 = arith.mulf %989, %975 : vector<2x5x5xf32>
    %991 = arith.addf %974, %990 : vector<2x5x5xf32>
    %992 = vector.extract_strided_slice %698 {offsets = [0, 10, 2], sizes = [2, 5, 5], strides = [1, 1, 1]} : vector<2x32x7xf32> to vector<2x5x5xf32>
    %c17_253 = arith.constant 17 : index
    %993 = memref.load %arg3[%c17_253] : memref<144xf32, #tpu.memory_space<smem>>
    %994 = vector.broadcast %993 : f32 to vector<2x5x5xf32>
    %995 = arith.mulf %994, %992 : vector<2x5x5xf32>
    %996 = arith.addf %979, %995 : vector<2x5x5xf32>
    %c53_254 = arith.constant 53 : index
    %997 = memref.load %arg3[%c53_254] : memref<144xf32, #tpu.memory_space<smem>>
    %998 = vector.broadcast %997 : f32 to vector<2x5x5xf32>
    %999 = arith.mulf %998, %992 : vector<2x5x5xf32>
    %1000 = arith.addf %983, %999 : vector<2x5x5xf32>
    %c89_255 = arith.constant 89 : index
    %1001 = memref.load %arg3[%c89_255] : memref<144xf32, #tpu.memory_space<smem>>
    %1002 = vector.broadcast %1001 : f32 to vector<2x5x5xf32>
    %1003 = arith.mulf %1002, %992 : vector<2x5x5xf32>
    %1004 = arith.addf %987, %1003 : vector<2x5x5xf32>
    %c125_256 = arith.constant 125 : index
    %1005 = memref.load %arg3[%c125_256] : memref<144xf32, #tpu.memory_space<smem>>
    %1006 = vector.broadcast %1005 : f32 to vector<2x5x5xf32>
    %1007 = arith.mulf %1006, %992 : vector<2x5x5xf32>
    %1008 = arith.addf %991, %1007 : vector<2x5x5xf32>
    %1009 = vector.extract_strided_slice %698 {offsets = [0, 16, 0], sizes = [2, 5, 5], strides = [1, 1, 1]} : vector<2x32x7xf32> to vector<2x5x5xf32>
    %c18_257 = arith.constant 18 : index
    %1010 = memref.load %arg3[%c18_257] : memref<144xf32, #tpu.memory_space<smem>>
    %1011 = vector.broadcast %1010 : f32 to vector<2x5x5xf32>
    %1012 = arith.mulf %1011, %1009 : vector<2x5x5xf32>
    %1013 = arith.addf %996, %1012 : vector<2x5x5xf32>
    %c54_258 = arith.constant 54 : index
    %1014 = memref.load %arg3[%c54_258] : memref<144xf32, #tpu.memory_space<smem>>
    %1015 = vector.broadcast %1014 : f32 to vector<2x5x5xf32>
    %1016 = arith.mulf %1015, %1009 : vector<2x5x5xf32>
    %1017 = arith.addf %1000, %1016 : vector<2x5x5xf32>
    %c90_259 = arith.constant 90 : index
    %1018 = memref.load %arg3[%c90_259] : memref<144xf32, #tpu.memory_space<smem>>
    %1019 = vector.broadcast %1018 : f32 to vector<2x5x5xf32>
    %1020 = arith.mulf %1019, %1009 : vector<2x5x5xf32>
    %1021 = arith.addf %1004, %1020 : vector<2x5x5xf32>
    %c126_260 = arith.constant 126 : index
    %1022 = memref.load %arg3[%c126_260] : memref<144xf32, #tpu.memory_space<smem>>
    %1023 = vector.broadcast %1022 : f32 to vector<2x5x5xf32>
    %1024 = arith.mulf %1023, %1009 : vector<2x5x5xf32>
    %1025 = arith.addf %1008, %1024 : vector<2x5x5xf32>
    %1026 = vector.extract_strided_slice %698 {offsets = [0, 16, 1], sizes = [2, 5, 5], strides = [1, 1, 1]} : vector<2x32x7xf32> to vector<2x5x5xf32>
    %c19_261 = arith.constant 19 : index
    %1027 = memref.load %arg3[%c19_261] : memref<144xf32, #tpu.memory_space<smem>>
    %1028 = vector.broadcast %1027 : f32 to vector<2x5x5xf32>
    %1029 = arith.mulf %1028, %1026 : vector<2x5x5xf32>
    %1030 = arith.addf %1013, %1029 : vector<2x5x5xf32>
    %c55_262 = arith.constant 55 : index
    %1031 = memref.load %arg3[%c55_262] : memref<144xf32, #tpu.memory_space<smem>>
    %1032 = vector.broadcast %1031 : f32 to vector<2x5x5xf32>
    %1033 = arith.mulf %1032, %1026 : vector<2x5x5xf32>
    %1034 = arith.addf %1017, %1033 : vector<2x5x5xf32>
    %c91_263 = arith.constant 91 : index
    %1035 = memref.load %arg3[%c91_263] : memref<144xf32, #tpu.memory_space<smem>>
    %1036 = vector.broadcast %1035 : f32 to vector<2x5x5xf32>
    %1037 = arith.mulf %1036, %1026 : vector<2x5x5xf32>
    %1038 = arith.addf %1021, %1037 : vector<2x5x5xf32>
    %c127_264 = arith.constant 127 : index
    %1039 = memref.load %arg3[%c127_264] : memref<144xf32, #tpu.memory_space<smem>>
    %1040 = vector.broadcast %1039 : f32 to vector<2x5x5xf32>
    %1041 = arith.mulf %1040, %1026 : vector<2x5x5xf32>
    %1042 = arith.addf %1025, %1041 : vector<2x5x5xf32>
    %1043 = vector.extract_strided_slice %698 {offsets = [0, 16, 2], sizes = [2, 5, 5], strides = [1, 1, 1]} : vector<2x32x7xf32> to vector<2x5x5xf32>
    %c20_265 = arith.constant 20 : index
    %1044 = memref.load %arg3[%c20_265] : memref<144xf32, #tpu.memory_space<smem>>
    %1045 = vector.broadcast %1044 : f32 to vector<2x5x5xf32>
    %1046 = arith.mulf %1045, %1043 : vector<2x5x5xf32>
    %1047 = arith.addf %1030, %1046 : vector<2x5x5xf32>
    %c56_266 = arith.constant 56 : index
    %1048 = memref.load %arg3[%c56_266] : memref<144xf32, #tpu.memory_space<smem>>
    %1049 = vector.broadcast %1048 : f32 to vector<2x5x5xf32>
    %1050 = arith.mulf %1049, %1043 : vector<2x5x5xf32>
    %1051 = arith.addf %1034, %1050 : vector<2x5x5xf32>
    %c92_267 = arith.constant 92 : index
    %1052 = memref.load %arg3[%c92_267] : memref<144xf32, #tpu.memory_space<smem>>
    %1053 = vector.broadcast %1052 : f32 to vector<2x5x5xf32>
    %1054 = arith.mulf %1053, %1043 : vector<2x5x5xf32>
    %1055 = arith.addf %1038, %1054 : vector<2x5x5xf32>
    %c128_268 = arith.constant 128 : index
    %1056 = memref.load %arg3[%c128_268] : memref<144xf32, #tpu.memory_space<smem>>
    %1057 = vector.broadcast %1056 : f32 to vector<2x5x5xf32>
    %1058 = arith.mulf %1057, %1043 : vector<2x5x5xf32>
    %1059 = arith.addf %1042, %1058 : vector<2x5x5xf32>
    %1060 = vector.extract_strided_slice %698 {offsets = [0, 17, 0], sizes = [2, 5, 5], strides = [1, 1, 1]} : vector<2x32x7xf32> to vector<2x5x5xf32>
    %c21_269 = arith.constant 21 : index
    %1061 = memref.load %arg3[%c21_269] : memref<144xf32, #tpu.memory_space<smem>>
    %1062 = vector.broadcast %1061 : f32 to vector<2x5x5xf32>
    %1063 = arith.mulf %1062, %1060 : vector<2x5x5xf32>
    %1064 = arith.addf %1047, %1063 : vector<2x5x5xf32>
    %c57_270 = arith.constant 57 : index
    %1065 = memref.load %arg3[%c57_270] : memref<144xf32, #tpu.memory_space<smem>>
    %1066 = vector.broadcast %1065 : f32 to vector<2x5x5xf32>
    %1067 = arith.mulf %1066, %1060 : vector<2x5x5xf32>
    %1068 = arith.addf %1051, %1067 : vector<2x5x5xf32>
    %c93_271 = arith.constant 93 : index
    %1069 = memref.load %arg3[%c93_271] : memref<144xf32, #tpu.memory_space<smem>>
    %1070 = vector.broadcast %1069 : f32 to vector<2x5x5xf32>
    %1071 = arith.mulf %1070, %1060 : vector<2x5x5xf32>
    %1072 = arith.addf %1055, %1071 : vector<2x5x5xf32>
    %c129_272 = arith.constant 129 : index
    %1073 = memref.load %arg3[%c129_272] : memref<144xf32, #tpu.memory_space<smem>>
    %1074 = vector.broadcast %1073 : f32 to vector<2x5x5xf32>
    %1075 = arith.mulf %1074, %1060 : vector<2x5x5xf32>
    %1076 = arith.addf %1059, %1075 : vector<2x5x5xf32>
    %1077 = vector.extract_strided_slice %698 {offsets = [0, 17, 1], sizes = [2, 5, 5], strides = [1, 1, 1]} : vector<2x32x7xf32> to vector<2x5x5xf32>
    %c22_273 = arith.constant 22 : index
    %1078 = memref.load %arg3[%c22_273] : memref<144xf32, #tpu.memory_space<smem>>
    %1079 = vector.broadcast %1078 : f32 to vector<2x5x5xf32>
    %1080 = arith.mulf %1079, %1077 : vector<2x5x5xf32>
    %1081 = arith.addf %1064, %1080 : vector<2x5x5xf32>
    %c58_274 = arith.constant 58 : index
    %1082 = memref.load %arg3[%c58_274] : memref<144xf32, #tpu.memory_space<smem>>
    %1083 = vector.broadcast %1082 : f32 to vector<2x5x5xf32>
    %1084 = arith.mulf %1083, %1077 : vector<2x5x5xf32>
    %1085 = arith.addf %1068, %1084 : vector<2x5x5xf32>
    %c94_275 = arith.constant 94 : index
    %1086 = memref.load %arg3[%c94_275] : memref<144xf32, #tpu.memory_space<smem>>
    %1087 = vector.broadcast %1086 : f32 to vector<2x5x5xf32>
    %1088 = arith.mulf %1087, %1077 : vector<2x5x5xf32>
    %1089 = arith.addf %1072, %1088 : vector<2x5x5xf32>
    %c130_276 = arith.constant 130 : index
    %1090 = memref.load %arg3[%c130_276] : memref<144xf32, #tpu.memory_space<smem>>
    %1091 = vector.broadcast %1090 : f32 to vector<2x5x5xf32>
    %1092 = arith.mulf %1091, %1077 : vector<2x5x5xf32>
    %1093 = arith.addf %1076, %1092 : vector<2x5x5xf32>
    %1094 = vector.extract_strided_slice %698 {offsets = [0, 17, 2], sizes = [2, 5, 5], strides = [1, 1, 1]} : vector<2x32x7xf32> to vector<2x5x5xf32>
    %c23_277 = arith.constant 23 : index
    %1095 = memref.load %arg3[%c23_277] : memref<144xf32, #tpu.memory_space<smem>>
    %1096 = vector.broadcast %1095 : f32 to vector<2x5x5xf32>
    %1097 = arith.mulf %1096, %1094 : vector<2x5x5xf32>
    %1098 = arith.addf %1081, %1097 : vector<2x5x5xf32>
    %c59_278 = arith.constant 59 : index
    %1099 = memref.load %arg3[%c59_278] : memref<144xf32, #tpu.memory_space<smem>>
    %1100 = vector.broadcast %1099 : f32 to vector<2x5x5xf32>
    %1101 = arith.mulf %1100, %1094 : vector<2x5x5xf32>
    %1102 = arith.addf %1085, %1101 : vector<2x5x5xf32>
    %c95_279 = arith.constant 95 : index
    %1103 = memref.load %arg3[%c95_279] : memref<144xf32, #tpu.memory_space<smem>>
    %1104 = vector.broadcast %1103 : f32 to vector<2x5x5xf32>
    %1105 = arith.mulf %1104, %1094 : vector<2x5x5xf32>
    %1106 = arith.addf %1089, %1105 : vector<2x5x5xf32>
    %c131_280 = arith.constant 131 : index
    %1107 = memref.load %arg3[%c131_280] : memref<144xf32, #tpu.memory_space<smem>>
    %1108 = vector.broadcast %1107 : f32 to vector<2x5x5xf32>
    %1109 = arith.mulf %1108, %1094 : vector<2x5x5xf32>
    %1110 = arith.addf %1093, %1109 : vector<2x5x5xf32>
    %1111 = vector.extract_strided_slice %698 {offsets = [0, 18, 0], sizes = [2, 5, 5], strides = [1, 1, 1]} : vector<2x32x7xf32> to vector<2x5x5xf32>
    %c24_281 = arith.constant 24 : index
    %1112 = memref.load %arg3[%c24_281] : memref<144xf32, #tpu.memory_space<smem>>
    %1113 = vector.broadcast %1112 : f32 to vector<2x5x5xf32>
    %1114 = arith.mulf %1113, %1111 : vector<2x5x5xf32>
    %1115 = arith.addf %1098, %1114 : vector<2x5x5xf32>
    %c60_282 = arith.constant 60 : index
    %1116 = memref.load %arg3[%c60_282] : memref<144xf32, #tpu.memory_space<smem>>
    %1117 = vector.broadcast %1116 : f32 to vector<2x5x5xf32>
    %1118 = arith.mulf %1117, %1111 : vector<2x5x5xf32>
    %1119 = arith.addf %1102, %1118 : vector<2x5x5xf32>
    %c96_283 = arith.constant 96 : index
    %1120 = memref.load %arg3[%c96_283] : memref<144xf32, #tpu.memory_space<smem>>
    %1121 = vector.broadcast %1120 : f32 to vector<2x5x5xf32>
    %1122 = arith.mulf %1121, %1111 : vector<2x5x5xf32>
    %1123 = arith.addf %1106, %1122 : vector<2x5x5xf32>
    %c132_284 = arith.constant 132 : index
    %1124 = memref.load %arg3[%c132_284] : memref<144xf32, #tpu.memory_space<smem>>
    %1125 = vector.broadcast %1124 : f32 to vector<2x5x5xf32>
    %1126 = arith.mulf %1125, %1111 : vector<2x5x5xf32>
    %1127 = arith.addf %1110, %1126 : vector<2x5x5xf32>
    %1128 = vector.extract_strided_slice %698 {offsets = [0, 18, 1], sizes = [2, 5, 5], strides = [1, 1, 1]} : vector<2x32x7xf32> to vector<2x5x5xf32>
    %c25_285 = arith.constant 25 : index
    %1129 = memref.load %arg3[%c25_285] : memref<144xf32, #tpu.memory_space<smem>>
    %1130 = vector.broadcast %1129 : f32 to vector<2x5x5xf32>
    %1131 = arith.mulf %1130, %1128 : vector<2x5x5xf32>
    %1132 = arith.addf %1115, %1131 : vector<2x5x5xf32>
    %c61_286 = arith.constant 61 : index
    %1133 = memref.load %arg3[%c61_286] : memref<144xf32, #tpu.memory_space<smem>>
    %1134 = vector.broadcast %1133 : f32 to vector<2x5x5xf32>
    %1135 = arith.mulf %1134, %1128 : vector<2x5x5xf32>
    %1136 = arith.addf %1119, %1135 : vector<2x5x5xf32>
    %c97_287 = arith.constant 97 : index
    %1137 = memref.load %arg3[%c97_287] : memref<144xf32, #tpu.memory_space<smem>>
    %1138 = vector.broadcast %1137 : f32 to vector<2x5x5xf32>
    %1139 = arith.mulf %1138, %1128 : vector<2x5x5xf32>
    %1140 = arith.addf %1123, %1139 : vector<2x5x5xf32>
    %c133_288 = arith.constant 133 : index
    %1141 = memref.load %arg3[%c133_288] : memref<144xf32, #tpu.memory_space<smem>>
    %1142 = vector.broadcast %1141 : f32 to vector<2x5x5xf32>
    %1143 = arith.mulf %1142, %1128 : vector<2x5x5xf32>
    %1144 = arith.addf %1127, %1143 : vector<2x5x5xf32>
    %1145 = vector.extract_strided_slice %698 {offsets = [0, 18, 2], sizes = [2, 5, 5], strides = [1, 1, 1]} : vector<2x32x7xf32> to vector<2x5x5xf32>
    %c26_289 = arith.constant 26 : index
    %1146 = memref.load %arg3[%c26_289] : memref<144xf32, #tpu.memory_space<smem>>
    %1147 = vector.broadcast %1146 : f32 to vector<2x5x5xf32>
    %1148 = arith.mulf %1147, %1145 : vector<2x5x5xf32>
    %1149 = arith.addf %1132, %1148 : vector<2x5x5xf32>
    %c62_290 = arith.constant 62 : index
    %1150 = memref.load %arg3[%c62_290] : memref<144xf32, #tpu.memory_space<smem>>
    %1151 = vector.broadcast %1150 : f32 to vector<2x5x5xf32>
    %1152 = arith.mulf %1151, %1145 : vector<2x5x5xf32>
    %1153 = arith.addf %1136, %1152 : vector<2x5x5xf32>
    %c98_291 = arith.constant 98 : index
    %1154 = memref.load %arg3[%c98_291] : memref<144xf32, #tpu.memory_space<smem>>
    %1155 = vector.broadcast %1154 : f32 to vector<2x5x5xf32>
    %1156 = arith.mulf %1155, %1145 : vector<2x5x5xf32>
    %1157 = arith.addf %1140, %1156 : vector<2x5x5xf32>
    %c134_292 = arith.constant 134 : index
    %1158 = memref.load %arg3[%c134_292] : memref<144xf32, #tpu.memory_space<smem>>
    %1159 = vector.broadcast %1158 : f32 to vector<2x5x5xf32>
    %1160 = arith.mulf %1159, %1145 : vector<2x5x5xf32>
    %1161 = arith.addf %1144, %1160 : vector<2x5x5xf32>
    %1162 = vector.extract_strided_slice %698 {offsets = [0, 24, 0], sizes = [2, 5, 5], strides = [1, 1, 1]} : vector<2x32x7xf32> to vector<2x5x5xf32>
    %c27_293 = arith.constant 27 : index
    %1163 = memref.load %arg3[%c27_293] : memref<144xf32, #tpu.memory_space<smem>>
    %1164 = vector.broadcast %1163 : f32 to vector<2x5x5xf32>
    %1165 = arith.mulf %1164, %1162 : vector<2x5x5xf32>
    %1166 = arith.addf %1149, %1165 : vector<2x5x5xf32>
    %c63_294 = arith.constant 63 : index
    %1167 = memref.load %arg3[%c63_294] : memref<144xf32, #tpu.memory_space<smem>>
    %1168 = vector.broadcast %1167 : f32 to vector<2x5x5xf32>
    %1169 = arith.mulf %1168, %1162 : vector<2x5x5xf32>
    %1170 = arith.addf %1153, %1169 : vector<2x5x5xf32>
    %c99_295 = arith.constant 99 : index
    %1171 = memref.load %arg3[%c99_295] : memref<144xf32, #tpu.memory_space<smem>>
    %1172 = vector.broadcast %1171 : f32 to vector<2x5x5xf32>
    %1173 = arith.mulf %1172, %1162 : vector<2x5x5xf32>
    %1174 = arith.addf %1157, %1173 : vector<2x5x5xf32>
    %c135_296 = arith.constant 135 : index
    %1175 = memref.load %arg3[%c135_296] : memref<144xf32, #tpu.memory_space<smem>>
    %1176 = vector.broadcast %1175 : f32 to vector<2x5x5xf32>
    %1177 = arith.mulf %1176, %1162 : vector<2x5x5xf32>
    %1178 = arith.addf %1161, %1177 : vector<2x5x5xf32>
    %1179 = vector.extract_strided_slice %698 {offsets = [0, 24, 1], sizes = [2, 5, 5], strides = [1, 1, 1]} : vector<2x32x7xf32> to vector<2x5x5xf32>
    %c28_297 = arith.constant 28 : index
    %1180 = memref.load %arg3[%c28_297] : memref<144xf32, #tpu.memory_space<smem>>
    %1181 = vector.broadcast %1180 : f32 to vector<2x5x5xf32>
    %1182 = arith.mulf %1181, %1179 : vector<2x5x5xf32>
    %1183 = arith.addf %1166, %1182 : vector<2x5x5xf32>
    %c64_298 = arith.constant 64 : index
    %1184 = memref.load %arg3[%c64_298] : memref<144xf32, #tpu.memory_space<smem>>
    %1185 = vector.broadcast %1184 : f32 to vector<2x5x5xf32>
    %1186 = arith.mulf %1185, %1179 : vector<2x5x5xf32>
    %1187 = arith.addf %1170, %1186 : vector<2x5x5xf32>
    %c100_299 = arith.constant 100 : index
    %1188 = memref.load %arg3[%c100_299] : memref<144xf32, #tpu.memory_space<smem>>
    %1189 = vector.broadcast %1188 : f32 to vector<2x5x5xf32>
    %1190 = arith.mulf %1189, %1179 : vector<2x5x5xf32>
    %1191 = arith.addf %1174, %1190 : vector<2x5x5xf32>
    %c136_300 = arith.constant 136 : index
    %1192 = memref.load %arg3[%c136_300] : memref<144xf32, #tpu.memory_space<smem>>
    %1193 = vector.broadcast %1192 : f32 to vector<2x5x5xf32>
    %1194 = arith.mulf %1193, %1179 : vector<2x5x5xf32>
    %1195 = arith.addf %1178, %1194 : vector<2x5x5xf32>
    %1196 = vector.extract_strided_slice %698 {offsets = [0, 24, 2], sizes = [2, 5, 5], strides = [1, 1, 1]} : vector<2x32x7xf32> to vector<2x5x5xf32>
    %c29_301 = arith.constant 29 : index
    %1197 = memref.load %arg3[%c29_301] : memref<144xf32, #tpu.memory_space<smem>>
    %1198 = vector.broadcast %1197 : f32 to vector<2x5x5xf32>
    %1199 = arith.mulf %1198, %1196 : vector<2x5x5xf32>
    %1200 = arith.addf %1183, %1199 : vector<2x5x5xf32>
    %c65_302 = arith.constant 65 : index
    %1201 = memref.load %arg3[%c65_302] : memref<144xf32, #tpu.memory_space<smem>>
    %1202 = vector.broadcast %1201 : f32 to vector<2x5x5xf32>
    %1203 = arith.mulf %1202, %1196 : vector<2x5x5xf32>
    %1204 = arith.addf %1187, %1203 : vector<2x5x5xf32>
    %c101_303 = arith.constant 101 : index
    %1205 = memref.load %arg3[%c101_303] : memref<144xf32, #tpu.memory_space<smem>>
    %1206 = vector.broadcast %1205 : f32 to vector<2x5x5xf32>
    %1207 = arith.mulf %1206, %1196 : vector<2x5x5xf32>
    %1208 = arith.addf %1191, %1207 : vector<2x5x5xf32>
    %c137_304 = arith.constant 137 : index
    %1209 = memref.load %arg3[%c137_304] : memref<144xf32, #tpu.memory_space<smem>>
    %1210 = vector.broadcast %1209 : f32 to vector<2x5x5xf32>
    %1211 = arith.mulf %1210, %1196 : vector<2x5x5xf32>
    %1212 = arith.addf %1195, %1211 : vector<2x5x5xf32>
    %1213 = vector.extract_strided_slice %698 {offsets = [0, 25, 0], sizes = [2, 5, 5], strides = [1, 1, 1]} : vector<2x32x7xf32> to vector<2x5x5xf32>
    %c30_305 = arith.constant 30 : index
    %1214 = memref.load %arg3[%c30_305] : memref<144xf32, #tpu.memory_space<smem>>
    %1215 = vector.broadcast %1214 : f32 to vector<2x5x5xf32>
    %1216 = arith.mulf %1215, %1213 : vector<2x5x5xf32>
    %1217 = arith.addf %1200, %1216 : vector<2x5x5xf32>
    %c66_306 = arith.constant 66 : index
    %1218 = memref.load %arg3[%c66_306] : memref<144xf32, #tpu.memory_space<smem>>
    %1219 = vector.broadcast %1218 : f32 to vector<2x5x5xf32>
    %1220 = arith.mulf %1219, %1213 : vector<2x5x5xf32>
    %1221 = arith.addf %1204, %1220 : vector<2x5x5xf32>
    %c102_307 = arith.constant 102 : index
    %1222 = memref.load %arg3[%c102_307] : memref<144xf32, #tpu.memory_space<smem>>
    %1223 = vector.broadcast %1222 : f32 to vector<2x5x5xf32>
    %1224 = arith.mulf %1223, %1213 : vector<2x5x5xf32>
    %1225 = arith.addf %1208, %1224 : vector<2x5x5xf32>
    %c138_308 = arith.constant 138 : index
    %1226 = memref.load %arg3[%c138_308] : memref<144xf32, #tpu.memory_space<smem>>
    %1227 = vector.broadcast %1226 : f32 to vector<2x5x5xf32>
    %1228 = arith.mulf %1227, %1213 : vector<2x5x5xf32>
    %1229 = arith.addf %1212, %1228 : vector<2x5x5xf32>
    %1230 = vector.extract_strided_slice %698 {offsets = [0, 25, 1], sizes = [2, 5, 5], strides = [1, 1, 1]} : vector<2x32x7xf32> to vector<2x5x5xf32>
    %c31_309 = arith.constant 31 : index
    %1231 = memref.load %arg3[%c31_309] : memref<144xf32, #tpu.memory_space<smem>>
    %1232 = vector.broadcast %1231 : f32 to vector<2x5x5xf32>
    %1233 = arith.mulf %1232, %1230 : vector<2x5x5xf32>
    %1234 = arith.addf %1217, %1233 : vector<2x5x5xf32>
    %c67_310 = arith.constant 67 : index
    %1235 = memref.load %arg3[%c67_310] : memref<144xf32, #tpu.memory_space<smem>>
    %1236 = vector.broadcast %1235 : f32 to vector<2x5x5xf32>
    %1237 = arith.mulf %1236, %1230 : vector<2x5x5xf32>
    %1238 = arith.addf %1221, %1237 : vector<2x5x5xf32>
    %c103_311 = arith.constant 103 : index
    %1239 = memref.load %arg3[%c103_311] : memref<144xf32, #tpu.memory_space<smem>>
    %1240 = vector.broadcast %1239 : f32 to vector<2x5x5xf32>
    %1241 = arith.mulf %1240, %1230 : vector<2x5x5xf32>
    %1242 = arith.addf %1225, %1241 : vector<2x5x5xf32>
    %c139_312 = arith.constant 139 : index
    %1243 = memref.load %arg3[%c139_312] : memref<144xf32, #tpu.memory_space<smem>>
    %1244 = vector.broadcast %1243 : f32 to vector<2x5x5xf32>
    %1245 = arith.mulf %1244, %1230 : vector<2x5x5xf32>
    %1246 = arith.addf %1229, %1245 : vector<2x5x5xf32>
    %1247 = vector.extract_strided_slice %698 {offsets = [0, 25, 2], sizes = [2, 5, 5], strides = [1, 1, 1]} : vector<2x32x7xf32> to vector<2x5x5xf32>
    %c32_313 = arith.constant 32 : index
    %1248 = memref.load %arg3[%c32_313] : memref<144xf32, #tpu.memory_space<smem>>
    %1249 = vector.broadcast %1248 : f32 to vector<2x5x5xf32>
    %1250 = arith.mulf %1249, %1247 : vector<2x5x5xf32>
    %1251 = arith.addf %1234, %1250 : vector<2x5x5xf32>
    %c68_314 = arith.constant 68 : index
    %1252 = memref.load %arg3[%c68_314] : memref<144xf32, #tpu.memory_space<smem>>
    %1253 = vector.broadcast %1252 : f32 to vector<2x5x5xf32>
    %1254 = arith.mulf %1253, %1247 : vector<2x5x5xf32>
    %1255 = arith.addf %1238, %1254 : vector<2x5x5xf32>
    %c104_315 = arith.constant 104 : index
    %1256 = memref.load %arg3[%c104_315] : memref<144xf32, #tpu.memory_space<smem>>
    %1257 = vector.broadcast %1256 : f32 to vector<2x5x5xf32>
    %1258 = arith.mulf %1257, %1247 : vector<2x5x5xf32>
    %1259 = arith.addf %1242, %1258 : vector<2x5x5xf32>
    %c140_316 = arith.constant 140 : index
    %1260 = memref.load %arg3[%c140_316] : memref<144xf32, #tpu.memory_space<smem>>
    %1261 = vector.broadcast %1260 : f32 to vector<2x5x5xf32>
    %1262 = arith.mulf %1261, %1247 : vector<2x5x5xf32>
    %1263 = arith.addf %1246, %1262 : vector<2x5x5xf32>
    %1264 = vector.extract_strided_slice %698 {offsets = [0, 26, 0], sizes = [2, 5, 5], strides = [1, 1, 1]} : vector<2x32x7xf32> to vector<2x5x5xf32>
    %c33_317 = arith.constant 33 : index
    %1265 = memref.load %arg3[%c33_317] : memref<144xf32, #tpu.memory_space<smem>>
    %1266 = vector.broadcast %1265 : f32 to vector<2x5x5xf32>
    %1267 = arith.mulf %1266, %1264 : vector<2x5x5xf32>
    %1268 = arith.addf %1251, %1267 : vector<2x5x5xf32>
    %c69_318 = arith.constant 69 : index
    %1269 = memref.load %arg3[%c69_318] : memref<144xf32, #tpu.memory_space<smem>>
    %1270 = vector.broadcast %1269 : f32 to vector<2x5x5xf32>
    %1271 = arith.mulf %1270, %1264 : vector<2x5x5xf32>
    %1272 = arith.addf %1255, %1271 : vector<2x5x5xf32>
    %c105_319 = arith.constant 105 : index
    %1273 = memref.load %arg3[%c105_319] : memref<144xf32, #tpu.memory_space<smem>>
    %1274 = vector.broadcast %1273 : f32 to vector<2x5x5xf32>
    %1275 = arith.mulf %1274, %1264 : vector<2x5x5xf32>
    %1276 = arith.addf %1259, %1275 : vector<2x5x5xf32>
    %c141_320 = arith.constant 141 : index
    %1277 = memref.load %arg3[%c141_320] : memref<144xf32, #tpu.memory_space<smem>>
    %1278 = vector.broadcast %1277 : f32 to vector<2x5x5xf32>
    %1279 = arith.mulf %1278, %1264 : vector<2x5x5xf32>
    %1280 = arith.addf %1263, %1279 : vector<2x5x5xf32>
    %1281 = vector.extract_strided_slice %698 {offsets = [0, 26, 1], sizes = [2, 5, 5], strides = [1, 1, 1]} : vector<2x32x7xf32> to vector<2x5x5xf32>
    %c34_321 = arith.constant 34 : index
    %1282 = memref.load %arg3[%c34_321] : memref<144xf32, #tpu.memory_space<smem>>
    %1283 = vector.broadcast %1282 : f32 to vector<2x5x5xf32>
    %1284 = arith.mulf %1283, %1281 : vector<2x5x5xf32>
    %1285 = arith.addf %1268, %1284 : vector<2x5x5xf32>
    %c70_322 = arith.constant 70 : index
    %1286 = memref.load %arg3[%c70_322] : memref<144xf32, #tpu.memory_space<smem>>
    %1287 = vector.broadcast %1286 : f32 to vector<2x5x5xf32>
    %1288 = arith.mulf %1287, %1281 : vector<2x5x5xf32>
    %1289 = arith.addf %1272, %1288 : vector<2x5x5xf32>
    %c106_323 = arith.constant 106 : index
    %1290 = memref.load %arg3[%c106_323] : memref<144xf32, #tpu.memory_space<smem>>
    %1291 = vector.broadcast %1290 : f32 to vector<2x5x5xf32>
    %1292 = arith.mulf %1291, %1281 : vector<2x5x5xf32>
    %1293 = arith.addf %1276, %1292 : vector<2x5x5xf32>
    %c142_324 = arith.constant 142 : index
    %1294 = memref.load %arg3[%c142_324] : memref<144xf32, #tpu.memory_space<smem>>
    %1295 = vector.broadcast %1294 : f32 to vector<2x5x5xf32>
    %1296 = arith.mulf %1295, %1281 : vector<2x5x5xf32>
    %1297 = arith.addf %1280, %1296 : vector<2x5x5xf32>
    %1298 = vector.extract_strided_slice %698 {offsets = [0, 26, 2], sizes = [2, 5, 5], strides = [1, 1, 1]} : vector<2x32x7xf32> to vector<2x5x5xf32>
    %c35_325 = arith.constant 35 : index
    %1299 = memref.load %arg3[%c35_325] : memref<144xf32, #tpu.memory_space<smem>>
    %1300 = vector.broadcast %1299 : f32 to vector<2x5x5xf32>
    %1301 = arith.mulf %1300, %1298 : vector<2x5x5xf32>
    %1302 = arith.addf %1285, %1301 : vector<2x5x5xf32>
    %c71_326 = arith.constant 71 : index
    %1303 = memref.load %arg3[%c71_326] : memref<144xf32, #tpu.memory_space<smem>>
    %1304 = vector.broadcast %1303 : f32 to vector<2x5x5xf32>
    %1305 = arith.mulf %1304, %1298 : vector<2x5x5xf32>
    %1306 = arith.addf %1289, %1305 : vector<2x5x5xf32>
    %c107_327 = arith.constant 107 : index
    %1307 = memref.load %arg3[%c107_327] : memref<144xf32, #tpu.memory_space<smem>>
    %1308 = vector.broadcast %1307 : f32 to vector<2x5x5xf32>
    %1309 = arith.mulf %1308, %1298 : vector<2x5x5xf32>
    %1310 = arith.addf %1293, %1309 : vector<2x5x5xf32>
    %c143_328 = arith.constant 143 : index
    %1311 = memref.load %arg3[%c143_328] : memref<144xf32, #tpu.memory_space<smem>>
    %1312 = vector.broadcast %1311 : f32 to vector<2x5x5xf32>
    %1313 = arith.mulf %1312, %1298 : vector<2x5x5xf32>
    %1314 = arith.addf %1297, %1313 : vector<2x5x5xf32>
    %c0_329 = arith.constant 0 : index
    %1315 = memref.load %arg4[%c0_329] : memref<4xf32, #tpu.memory_space<smem>>
    %1316 = vector.broadcast %1315 : f32 to vector<2x5x5xf32>
    %1317 = arith.addf %1302, %1316 : vector<2x5x5xf32>
    %cst_330 = arith.constant 0.000000e+00 : f32
    %1318 = vector.broadcast %cst_330 : f32 to vector<2x5x5xf32>
    %1319 = arith.maximumf %1317, %1318 : vector<2x5x5xf32>
    %c1_331 = arith.constant 1 : index
    %1320 = memref.load %arg4[%c1_331] : memref<4xf32, #tpu.memory_space<smem>>
    %1321 = vector.broadcast %1320 : f32 to vector<2x5x5xf32>
    %1322 = arith.addf %1306, %1321 : vector<2x5x5xf32>
    %cst_332 = arith.constant 0.000000e+00 : f32
    %1323 = vector.broadcast %cst_332 : f32 to vector<2x5x5xf32>
    %1324 = arith.maximumf %1322, %1323 : vector<2x5x5xf32>
    %1325 = arith.maximumf %1319, %1324 : vector<2x5x5xf32>
    %c2_333 = arith.constant 2 : index
    %1326 = memref.load %arg4[%c2_333] : memref<4xf32, #tpu.memory_space<smem>>
    %1327 = vector.broadcast %1326 : f32 to vector<2x5x5xf32>
    %1328 = arith.addf %1310, %1327 : vector<2x5x5xf32>
    %cst_334 = arith.constant 0.000000e+00 : f32
    %1329 = vector.broadcast %cst_334 : f32 to vector<2x5x5xf32>
    %1330 = arith.maximumf %1328, %1329 : vector<2x5x5xf32>
    %1331 = arith.maximumf %1325, %1330 : vector<2x5x5xf32>
    %c3_335 = arith.constant 3 : index
    %1332 = memref.load %arg4[%c3_335] : memref<4xf32, #tpu.memory_space<smem>>
    %1333 = vector.broadcast %1332 : f32 to vector<2x5x5xf32>
    %1334 = arith.addf %1314, %1333 : vector<2x5x5xf32>
    %cst_336 = arith.constant 0.000000e+00 : f32
    %1335 = vector.broadcast %cst_336 : f32 to vector<2x5x5xf32>
    %1336 = arith.maximumf %1334, %1335 : vector<2x5x5xf32>
    %1337 = arith.maximumf %1331, %1336 : vector<2x5x5xf32>
    %cst_337 = arith.constant dense<0xFF800000> : vector<2x5xf32>
    %1338 = vector.multi_reduction <maximumf>, %1337, %cst_337 [1] : vector<2x5x5xf32> to vector<2x5xf32>
    %c0_338 = arith.constant 0 : index
    %c0_339 = arith.constant 0 : index
    %1339 = vector.load %arg8[%c0_338, %c0_339] : memref<5x16xf32, #tpu.memory_space<vmem>>, vector<5x16xf32>
    %cst_340 = arith.constant dense<0.000000e+00> : vector<2x16xf32>
    %1340 = tpu.matmul %1338, %1339, %cst_340 {dimension_numbers = #tpu.dot_dimension_numbers<[1], [0], [0], [1], [0, 0, 1, 1], [], []>} : vector<2x5xf32>, vector<5x16xf32>, vector<2x16xf32> -> vector<2x16xf32>
    %1341 = vector.extract_strided_slice %1340 {offsets = [0, 0], sizes = [2, 8], strides = [1, 1]} : vector<2x16xf32> to vector<2x8xf32>
    %1342 = vector.extract_strided_slice %1340 {offsets = [0, 8], sizes = [2, 8], strides = [1, 1]} : vector<2x16xf32> to vector<2x8xf32>
    %1343 = arith.maximumf %1341, %1342 : vector<2x8xf32>
    %c0_341 = arith.constant 0 : index
    %c0_342 = arith.constant 0 : index
    %1344 = vector.load %arg9[%c0_341, %c0_342] : memref<2x8xf32, #tpu.memory_space<vmem>>, vector<2x8xf32>
    tpu.vector_store %arg9[%c0_341, %c0_342], %1343 {strides = array<i32>} : memref<2x8xf32, #tpu.memory_space<vmem>>, vector<2x8xf32>,
    return
  }
  func.func @transform_0(%arg0: i32, %arg1: memref<144xf32, #tpu.memory_space<smem>>, %arg2: memref<4xf32, #tpu.memory_space<smem>>, %arg3: memref<144xf32, #tpu.memory_space<smem>>, %arg4: memref<4xf32, #tpu.memory_space<smem>>) -> (i32, i32, i32, i32) {
    %c0_i32 = arith.constant 0 : i32
    %c0_i32_0 = arith.constant 0 : i32
    %c0_i32_1 = arith.constant 0 : i32
    %c0_i32_2 = arith.constant 0 : i32
    return %arg0, %c0_i32, %c0_i32_0, %c0_i32_1 : i32, i32, i32, i32
  }
  func.func @transform_1(%arg0: i32, %arg1: memref<144xf32, #tpu.memory_space<smem>>, %arg2: memref<4xf32, #tpu.memory_space<smem>>, %arg3: memref<144xf32, #tpu.memory_space<smem>>, %arg4: memref<4xf32, #tpu.memory_space<smem>>) -> (i32, i32) {
    %c0_i32 = arith.constant 0 : i32
    %c0_i32_0 = arith.constant 0 : i32
    %c0_i32_1 = arith.constant 0 : i32
    return %c0_i32, %c0_i32_0 : i32, i32
  }
  func.func @transform_2(%arg0: i32, %arg1: memref<144xf32, #tpu.memory_space<smem>>, %arg2: memref<4xf32, #tpu.memory_space<smem>>, %arg3: memref<144xf32, #tpu.memory_space<smem>>, %arg4: memref<4xf32, #tpu.memory_space<smem>>) -> (i32, i32) {
    %c0_i32 = arith.constant 0 : i32
    %c0_i32_0 = arith.constant 0 : i32
    %c0_i32_1 = arith.constant 0 : i32
    return %c0_i32, %c0_i32_0 : i32, i32
  }
  func.func @transform_3(%arg0: i32, %arg1: memref<144xf32, #tpu.memory_space<smem>>, %arg2: memref<4xf32, #tpu.memory_space<smem>>, %arg3: memref<144xf32, #tpu.memory_space<smem>>, %arg4: memref<4xf32, #tpu.memory_space<smem>>) -> (i32, i32) {
    %c0_i32 = arith.constant 0 : i32
    %c0_i32_0 = arith.constant 0 : i32
    %c0_i32_1 = arith.constant 0 : i32
    return %c0_i32, %c0_i32_0 : i32, i32
  }
  func.func @transform_4(%arg0: i32, %arg1: memref<144xf32, #tpu.memory_space<smem>>, %arg2: memref<4xf32, #tpu.memory_space<smem>>, %arg3: memref<144xf32, #tpu.memory_space<smem>>, %arg4: memref<4xf32, #tpu.memory_space<smem>>) -> (i32, i32) {
    %c0_i32 = arith.constant 0 : i32
    %c0_i32_0 = arith.constant 0 : i32
    return %arg0, %c0_i32 : i32, i32
  }
}

</mosaic_0001>

<llo_original>
// kernel: _lambda_.1
$region0: #{_lambda_.1}
  #allocation0 [shape = 'u32[]', space=smem, size = 0x4, offset = 0x4, fixed_abs, tag = 'smem constant byte address 0x4 - core index']
  #allocation1 [shape = 'u32[144,128]{1,0:T(1,128)}', space=vmem, size = 0x12000, scoped, tag = 'internal scratch']
  #allocation2 [shape = 'f32[2,64,14]{2,1,0:T(8,128)}', space=vmem, size = 0x10000, scoped, tag = 'scratch operand']
  #allocation3 [shape = 's32[1]{0}', space=sflag, size = 0x4, scoped, tag = 'scoped memory for _lambda_.1']
  #allocation4 [shape = 'u8[1024]{0}', space=smem, size = 0x400, scoped, tag = 'prefetched SMEM operand 0']
  #allocation5 [shape = 'u8[512]{0}', space=smem, size = 0x200, scoped, tag = 'prefetched SMEM operand 1']
  #allocation6 [shape = 'u8[1024]{0}', space=smem, size = 0x400, scoped, tag = 'prefetched SMEM operand 2']
  #allocation7 [shape = 'u8[512]{0}', space=smem, size = 0x200, scoped, tag = 'prefetched SMEM operand 3']
  %s0 = inlined_call_operand.vmem [shape: f32[144], index: 0, kind: input, shape index: {}]
  %s1 = inlined_call_operand.vmem [shape: f32[4], index: 1, kind: input, shape index: {}]
  %s2 = inlined_call_operand.vmem [shape: f32[144], index: 2, kind: input, shape index: {}]
  %s3 = inlined_call_operand.vmem [shape: f32[4], index: 3, kind: input, shape index: {}]
  %s4 = inlined_call_operand.vmem [shape: f32[2,4,16,16], index: 4, kind: input, shape index: {}]
  %s5 = inlined_call_operand.vmem [shape: f32[14,14], index: 5, kind: input, shape index: {}]
  %s6 = inlined_call_operand.vmem [shape: f32[64,64], index: 6, kind: input, shape index: {}]
  %s7 = inlined_call_operand.vmem [shape: f32[5,16], index: 7, kind: input, shape index: {}]
  %s8 = inlined_call_operand.hbm [shape: f32[2,8], index: 8, kind: output, shape index: {}]
  %s9 = sld [smem:[#allocation0]]
  $region26: #{_lambda_.1} parent=0
    _
  %s11 = ssub.s32 1, %s9
  %s12 = scalar_select 0, %s11, %s9
  %s13 = sshll.u32 %s0, 4
  %s14 = int_to_ptr.vmem [resolvable:$true] %s13
  %16 = dma.vmem_to_smem %s14, 32, [#allocation4], [#allocation3]
  %s17 = sshll.u32 %s1, 4
  %s18 = int_to_ptr.vmem [resolvable:$true] %s17
  %20 = dma.vmem_to_smem %s18, 16, [#allocation5], [#allocation3]
  %s21 = sshll.u32 %s2, 4
  %s22 = int_to_ptr.vmem [resolvable:$true] %s21
  %24 = dma.vmem_to_smem %s22, 32, [#allocation6], [#allocation3]
  %s25 = sshll.u32 %s3, 4
  %s26 = int_to_ptr.vmem [resolvable:$true] %s25
  %28 = dma.vmem_to_smem %s26, 16, [#allocation7], [#allocation3]
  %29 = dma.done [#allocation3], 96
  %30 = sfence
  $region1: #{_lambda_.1} parent=0
    #allocation8 [shape = 'u8[1024]{0}', space=vmem, size = 0x400, scoped, tag = 'output window, operand 0, single buffered']
    #allocation9 [shape = 's32[1]{0}', space=sflag, size = 0x4, scoped, tag = 'scoped memory for _lambda_.1']
    %31 = vsyncpa [#allocation9], 0
    // Predicated region
    $region2: #{_lambda_.1} parent=1 // pred_check
      _
    $region3: #{_lambda_.1} parent=1 // pred_check_branch
      %33 = sbr.rel (0) target = $region5
    $region4: #{_lambda_.1} parent=1 // pred_region
      _
    $region5: #{_lambda_.1} parent=1 // pred_fallthru
      _
    // Predicated region
    $region6: #{_lambda_.1} parent=1 // pred_check
      _
    $region7: #{_lambda_.1} parent=1 // pred_check_branch
      %35 = sbr.rel (0) target = $region9
    $region8: #{_lambda_.1} parent=1 // pred_region
      _
    $region9: #{_lambda_.1} parent=1 // pred_fallthru
      _
    // Predicated region
    $region10: #{_lambda_.1} parent=1 // pred_check
      _
    $region11: #{_lambda_.1} parent=1 // pred_check_branch
      %37 = sbr.rel (0) target = $region13
    $region12: #{_lambda_.1} parent=1 // pred_region
      _
    $region13: #{_lambda_.1} parent=1 // pred_fallthru
      _
    // Predicated region
    $region14: #{_lambda_.1} parent=1 // pred_check
      _
    $region15: #{_lambda_.1} parent=1 // pred_check_branch
      %39 = sbr.rel (0) target = $region17
    $region16: #{_lambda_.1} parent=1 // pred_region
      _
    $region17: #{_lambda_.1} parent=1 // pred_fallthru
      _
    %v40 = vld [vmem:[%s4] sm:$0xff]
    %v41 = vld [vmem:[%s4 + $0x8] sm:$0x3f]
    %v42 = vld [vmem:[%s4 + $0x40] sm:$0xff]
    %v43 = vld [vmem:[%s4 + $0x48] sm:$0x3f]
    %s44 = sld [smem:[#allocation4]]
    %v45 = vstv %s44
    %v46 = vmul.f32 %v45, %v40
    %v47 = vmul.f32 %v45, %v41
    %v48 = vmul.f32 %v45, %v42
    %v49 = vmul.f32 %v45, %v43
    %v50 = vadd.f32 %v46, 0.0
    %v51 = vadd.f32 %v47, 0.0
    %v52 = vadd.f32 %v48, 0.0
    %v53 = vadd.f32 %v49, 0.0
    %s54 = sld [smem:[#allocation4 + $0x24]]
    %v55 = vstv %s54
    %v56 = vmul.f32 %v55, %v40
    %v57 = vmul.f32 %v55, %v41
    %v58 = vmul.f32 %v55, %v42
    %v59 = vmul.f32 %v55, %v43
    %v60 = vadd.f32 %v56, 0.0
    %v61 = vadd.f32 %v57, 0.0
    %v62 = vadd.f32 %v58, 0.0
    %v63 = vadd.f32 %v59, 0.0
    %s64 = sld [smem:[#allocation4 + $0x48]]
    %v65 = vstv %s64
    %v66 = vmul.f32 %v65, %v40
    %v67 = vmul.f32 %v65, %v41
    %v68 = vmul.f32 %v65, %v42
    %v69 = vmul.f32 %v65, %v43
    %v70 = vadd.f32 %v66, 0.0
    %v71 = vadd.f32 %v67, 0.0
    %v72 = vadd.f32 %v68, 0.0
    %v73 = vadd.f32 %v69, 0.0
    %s74 = sld [smem:[#allocation4 + $0x6c]]
    %v75 = vstv %s74
    %v76 = vmul.f32 %v75, %v40
    %v77 = vmul.f32 %v75, %v41
    %v78 = vmul.f32 %v75, %v42
    %v79 = vmul.f32 %v75, %v43
    %v80 = vadd.f32 %v76, 0.0
    %v81 = vadd.f32 %v77, 0.0
    %v82 = vadd.f32 %v78, 0.0
    %v83 = vadd.f32 %v79, 0.0
    %s84 = sld [smem:[#allocation4 + $0x1]]
    %v85 = vstv %s84
    %v86 = vmul.f32 %v85, %v40
    %v87 = vmul.f32 %v85, %v41
    %v88 = vmul.f32 %v85, %v42
    %v89 = vmul.f32 %v85, %v43
    %94 = vrot.lane.b32.xlu0 %v86, 127
    %v95 = vpop.permute.xlu0 %94
    %96 = vrot.lane.b32.xlu0 %v87, 127
    %v97 = vpop.permute.xlu0 %96
    %98 = vrot.lane.b32.xlu0 %v88, 127
    %v99 = vpop.permute.xlu0 %98
    %100 = vrot.lane.b32.xlu0 %v89, 127
    %v101 = vpop.permute.xlu0 %100
    %v106 = vadd.f32 %v50, %v95
    %v107 = vadd.f32 %v51, %v97
    %v108 = vadd.f32 %v52, %v99
    %v109 = vadd.f32 %v53, %v101
    %s110 = sld [smem:[#allocation4 + $0x25]]
    %v111 = vstv %s110
    %v112 = vmul.f32 %v111, %v40
    %v113 = vmul.f32 %v111, %v41
    %v114 = vmul.f32 %v111, %v42
    %v115 = vmul.f32 %v111, %v43
    %120 = vrot.lane.b32.xlu0 %v112, 127
    %v121 = vpop.permute.xlu0 %120
    %122 = vrot.lane.b32.xlu0 %v113, 127
    %v123 = vpop.permute.xlu0 %122
    %124 = vrot.lane.b32.xlu0 %v114, 127
    %v125 = vpop.permute.xlu0 %124
    %126 = vrot.lane.b32.xlu0 %v115, 127
    %v127 = vpop.permute.xlu0 %126
    %v132 = vadd.f32 %v60, %v121
    %v133 = vadd.f32 %v61, %v123
    %v134 = vadd.f32 %v62, %v125
    %v135 = vadd.f32 %v63, %v127
    %s136 = sld [smem:[#allocation4 + $0x49]]
    %v137 = vstv %s136
    %v138 = vmul.f32 %v137, %v40
    %v139 = vmul.f32 %v137, %v41
    %v140 = vmul.f32 %v137, %v42
    %v141 = vmul.f32 %v137, %v43
    %146 = vrot.lane.b32.xlu0 %v138, 127
    %v147 = vpop.permute.xlu0 %146
    %148 = vrot.lane.b32.xlu0 %v139, 127
    %v149 = vpop.permute.xlu0 %148
    %150 = vrot.lane.b32.xlu0 %v140, 127
    %v151 = vpop.permute.xlu0 %150
    %152 = vrot.lane.b32.xlu0 %v141, 127
    %v153 = vpop.permute.xlu0 %152
    %v158 = vadd.f32 %v70, %v147
    %v159 = vadd.f32 %v71, %v149
    %v160 = vadd.f32 %v72, %v151
    %v161 = vadd.f32 %v73, %v153
    %s162 = sld [smem:[#allocation4 + $0x6d]]
    %v163 = vstv %s162
    %v164 = vmul.f32 %v163, %v40
    %v165 = vmul.f32 %v163, %v41
    %v166 = vmul.f32 %v163, %v42
    %v167 = vmul.f32 %v163, %v43
    %172 = vrot.lane.b32.xlu0 %v164, 127
    %v173 = vpop.permute.xlu0 %172
    %174 = vrot.lane.b32.xlu0 %v165, 127
    %v175 = vpop.permute.xlu0 %174
    %176 = vrot.lane.b32.xlu0 %v166, 127
    %v177 = vpop.permute.xlu0 %176
    %178 = vrot.lane.b32.xlu0 %v167, 127
    %v179 = vpop.permute.xlu0 %178
    %v184 = vadd.f32 %v80, %v173
    %v185 = vadd.f32 %v81, %v175
    %v186 = vadd.f32 %v82, %v177
    %v187 = vadd.f32 %v83, %v179
    %s188 = sld [smem:[#allocation4 + $0x2]]
    %v189 = vstv %s188
    %v190 = vmul.f32 %v189, %v40
    %v191 = vmul.f32 %v189, %v41
    %v192 = vmul.f32 %v189, %v42
    %v193 = vmul.f32 %v189, %v43
    %198 = vrot.lane.b32.xlu0 %v190, 126
    %v199 = vpop.permute.xlu0 %198
    %200 = vrot.lane.b32.xlu0 %v191, 126
    %v201 = vpop.permute.xlu0 %200
    %202 = vrot.lane.b32.xlu0 %v192, 126
    %v203 = vpop.permute.xlu0 %202
    %204 = vrot.lane.b32.xlu0 %v193, 126
    %v205 = vpop.permute.xlu0 %204
    %v210 = vadd.f32 %v106, %v199
    %v211 = vadd.f32 %v107, %v201
    %v212 = vadd.f32 %v108, %v203
    %v213 = vadd.f32 %v109, %v205
    %s214 = sld [smem:[#allocation4 + $0x26]]
    %v215 = vstv %s214
    %v216 = vmul.f32 %v215, %v40
    %v217 = vmul.f32 %v215, %v41
    %v218 = vmul.f32 %v215, %v42
    %v219 = vmul.f32 %v215, %v43
    %224 = vrot.lane.b32.xlu0 %v216, 126
    %v225 = vpop.permute.xlu0 %224
    %226 = vrot.lane.b32.xlu0 %v217, 126
    %v227 = vpop.permute.xlu0 %226
    %228 = vrot.lane.b32.xlu0 %v218, 126
    %v229 = vpop.permute.xlu0 %228
    %230 = vrot.lane.b32.xlu0 %v219, 126
    %v231 = vpop.permute.xlu0 %230
    %v236 = vadd.f32 %v132, %v225
    %v237 = vadd.f32 %v133, %v227
    %v238 = vadd.f32 %v134, %v229
    %v239 = vadd.f32 %v135, %v231
    %s240 = sld [smem:[#allocation4 + $0x4a]]
    %v241 = vstv %s240
    %v242 = vmul.f32 %v241, %v40
    %v243 = vmul.f32 %v241, %v41
    %v244 = vmul.f32 %v241, %v42
    %v245 = vmul.f32 %v241, %v43
    %250 = vrot.lane.b32.xlu0 %v242, 126
    %v251 = vpop.permute.xlu0 %250
    %252 = vrot.lane.b32.xlu0 %v243, 126
    %v253 = vpop.permute.xlu0 %252
    %254 = vrot.lane.b32.xlu0 %v244, 126
    %v255 = vpop.permute.xlu0 %254
    %256 = vrot.lane.b32.xlu0 %v245, 126
    %v257 = vpop.permute.xlu0 %256
    %v262 = vadd.f32 %v158, %v251
    %v263 = vadd.f32 %v159, %v253
    %v264 = vadd.f32 %v160, %v255
    %v265 = vadd.f32 %v161, %v257
    %s266 = sld [smem:[#allocation4 + $0x6e]]
    %v267 = vstv %s266
    %v268 = vmul.f32 %v267, %v40
    %v269 = vmul.f32 %v267, %v41
    %v270 = vmul.f32 %v267, %v42
    %v271 = vmul.f32 %v267, %v43
    %276 = vrot.lane.b32.xlu0 %v268, 126
    %v277 = vpop.permute.xlu0 %276
    %278 = vrot.lane.b32.xlu0 %v269, 126
    %v279 = vpop.permute.xlu0 %278
    %280 = vrot.lane.b32.xlu0 %v270, 126
    %v281 = vpop.permute.xlu0 %280
    %282 = vrot.lane.b32.xlu0 %v271, 126
    %v283 = vpop.permute.xlu0 %282
    %v288 = vadd.f32 %v184, %v277
    %v289 = vadd.f32 %v185, %v279
    %v290 = vadd.f32 %v186, %v281
    %v291 = vadd.f32 %v187, %v283
    %v292 = vld [vmem:[%s4 + $0x1] sm:$0xff]
    %v293 = vld [vmem:[%s4 + $0x9] sm:$0x3f]
    %v294 = vld [vmem:[%s4 + $0x41] sm:$0xff]
    %v295 = vld [vmem:[%s4 + $0x49] sm:$0x3f]
    %s296 = sld [smem:[#allocation4 + $0x3]]
    %v297 = vstv %s296
    %v298 = vmul.f32 %v297, %v292
    %v299 = vmul.f32 %v297, %v293
    %v300 = vmul.f32 %v297, %v294
    %v301 = vmul.f32 %v297, %v295
    %v302 = vadd.f32 %v210, %v298
    %v303 = vadd.f32 %v211, %v299
    %v304 = vadd.f32 %v212, %v300
    %v305 = vadd.f32 %v213, %v301
    %s306 = sld [smem:[#allocation4 + $0x27]]
    %v307 = vstv %s306
    %v308 = vmul.f32 %v307, %v292
    %v309 = vmul.f32 %v307, %v293
    %v310 = vmul.f32 %v307, %v294
    %v311 = vmul.f32 %v307, %v295
    %v312 = vadd.f32 %v236, %v308
    %v313 = vadd.f32 %v237, %v309
    %v314 = vadd.f32 %v238, %v310
    %v315 = vadd.f32 %v239, %v311
    %s316 = sld [smem:[#allocation4 + $0x4b]]
    %v317 = vstv %s316
    %v318 = vmul.f32 %v317, %v292
    %v319 = vmul.f32 %v317, %v293
    %v320 = vmul.f32 %v317, %v294
    %v321 = vmul.f32 %v317, %v295
    %v322 = vadd.f32 %v262, %v318
    %v323 = vadd.f32 %v263, %v319
    %v324 = vadd.f32 %v264, %v320
    %v325 = vadd.f32 %v265, %v321
    %s326 = sld [smem:[#allocation4 + $0x6f]]
    %v327 = vstv %s326
    %v328 = vmul.f32 %v327, %v292
    %v329 = vmul.f32 %v327, %v293
    %v330 = vmul.f32 %v327, %v294
    %v331 = vmul.f32 %v327, %v295
    %v332 = vadd.f32 %v288, %v328
    %v333 = vadd.f32 %v289, %v329
    %v334 = vadd.f32 %v290, %v330
    %v335 = vadd.f32 %v291, %v331
    %s336 = sld [smem:[#allocation4 + $0x4]]
    %v337 = vstv %s336
    %v338 = vmul.f32 %v337, %v292
    %v339 = vmul.f32 %v337, %v293
    %v340 = vmul.f32 %v337, %v294
    %v341 = vmul.f32 %v337, %v295
    %346 = vrot.lane.b32.xlu0 %v338, 127
    %v347 = vpop.permute.xlu0 %346
    %348 = vrot.lane.b32.xlu0 %v339, 127
    %v349 = vpop.permute.xlu0 %348
    %350 = vrot.lane.b32.xlu0 %v340, 127
    %v351 = vpop.permute.xlu0 %350
    %352 = vrot.lane.b32.xlu0 %v341, 127
    %v353 = vpop.permute.xlu0 %352
    %v358 = vadd.f32 %v302, %v347
    %v359 = vadd.f32 %v303, %v349
    %v360 = vadd.f32 %v304, %v351
    %v361 = vadd.f32 %v305, %v353
    %s362 = sld [smem:[#allocation4 + $0x28]]
    %v363 = vstv %s362
    %v364 = vmul.f32 %v363, %v292
    %v365 = vmul.f32 %v363, %v293
    %v366 = vmul.f32 %v363, %v294
    %v367 = vmul.f32 %v363, %v295
    %372 = vrot.lane.b32.xlu0 %v364, 127
    %v373 = vpop.permute.xlu0 %372
    %374 = vrot.lane.b32.xlu0 %v365, 127
    %v375 = vpop.permute.xlu0 %374
    %376 = vrot.lane.b32.xlu0 %v366, 127
    %v377 = vpop.permute.xlu0 %376
    %378 = vrot.lane.b32.xlu0 %v367, 127
    %v379 = vpop.permute.xlu0 %378
    %v384 = vadd.f32 %v312, %v373
    %v385 = vadd.f32 %v313, %v375
    %v386 = vadd.f32 %v314, %v377
    %v387 = vadd.f32 %v315, %v379
    %s388 = sld [smem:[#allocation4 + $0x4c]]
    %v389 = vstv %s388
    %v390 = vmul.f32 %v389, %v292
    %v391 = vmul.f32 %v389, %v293
    %v392 = vmul.f32 %v389, %v294
    %v393 = vmul.f32 %v389, %v295
    %398 = vrot.lane.b32.xlu0 %v390, 127
    %v399 = vpop.permute.xlu0 %398
    %400 = vrot.lane.b32.xlu0 %v391, 127
    %v401 = vpop.permute.xlu0 %400
    %402 = vrot.lane.b32.xlu0 %v392, 127
    %v403 = vpop.permute.xlu0 %402
    %404 = vrot.lane.b32.xlu0 %v393, 127
    %v405 = vpop.permute.xlu0 %404
    %v410 = vadd.f32 %v322, %v399
    %v411 = vadd.f32 %v323, %v401
    %v412 = vadd.f32 %v324, %v403
    %v413 = vadd.f32 %v325, %v405
    %s414 = sld [smem:[#allocation4 + $0x70]]
    %v415 = vstv %s414
    %v416 = vmul.f32 %v415, %v292
    %v417 = vmul.f32 %v415, %v293
    %v418 = vmul.f32 %v415, %v294
    %v419 = vmul.f32 %v415, %v295
    %424 = vrot.lane.b32.xlu0 %v416, 127
    %v425 = vpop.permute.xlu0 %424
    %426 = vrot.lane.b32.xlu0 %v417, 127
    %v427 = vpop.permute.xlu0 %426
    %428 = vrot.lane.b32.xlu0 %v418, 127
    %v429 = vpop.permute.xlu0 %428
    %430 = vrot.lane.b32.xlu0 %v419, 127
    %v431 = vpop.permute.xlu0 %430
    %v436 = vadd.f32 %v332, %v425
    %v437 = vadd.f32 %v333, %v427
    %v438 = vadd.f32 %v334, %v429
    %v439 = vadd.f32 %v335, %v431
    %s440 = sld [smem:[#allocation4 + $0x5]]
    %v441 = vstv %s440
    %v442 = vmul.f32 %v441, %v292
    %v443 = vmul.f32 %v441, %v293
    %v444 = vmul.f32 %v441, %v294
    %v445 = vmul.f32 %v441, %v295
    %450 = vrot.lane.b32.xlu0 %v442, 126
    %v451 = vpop.permute.xlu0 %450
    %452 = vrot.lane.b32.xlu0 %v443, 126
    %v453 = vpop.permute.xlu0 %452
    %454 = vrot.lane.b32.xlu0 %v444, 126
    %v455 = vpop.permute.xlu0 %454
    %456 = vrot.lane.b32.xlu0 %v445, 126
    %v457 = vpop.permute.xlu0 %456
    %v462 = vadd.f32 %v358, %v451
    %v463 = vadd.f32 %v359, %v453
    %v464 = vadd.f32 %v360, %v455
    %v465 = vadd.f32 %v361, %v457
    %s466 = sld [smem:[#allocation4 + $0x29]]
    %v467 = vstv %s466
    %v468 = vmul.f32 %v467, %v292
    %v469 = vmul.f32 %v467, %v293
    %v470 = vmul.f32 %v467, %v294
    %v471 = vmul.f32 %v467, %v295
    %476 = vrot.lane.b32.xlu0 %v468, 126
    %v477 = vpop.permute.xlu0 %476
    %478 = vrot.lane.b32.xlu0 %v469, 126
    %v479 = vpop.permute.xlu0 %478
    %480 = vrot.lane.b32.xlu0 %v470, 126
    %v481 = vpop.permute.xlu0 %480
    %482 = vrot.lane.b32.xlu0 %v471, 126
    %v483 = vpop.permute.xlu0 %482
    %v488 = vadd.f32 %v384, %v477
    %v489 = vadd.f32 %v385, %v479
    %v490 = vadd.f32 %v386, %v481
    %v491 = vadd.f32 %v387, %v483
    %s492 = sld [smem:[#allocation4 + $0x4d]]
    %v493 = vstv %s492
    %v494 = vmul.f32 %v493, %v292
    %v495 = vmul.f32 %v493, %v293
    %v496 = vmul.f32 %v493, %v294
    %v497 = vmul.f32 %v493, %v295
    %502 = vrot.lane.b32.xlu0 %v494, 126
    %v503 = vpop.permute.xlu0 %502
    %504 = vrot.lane.b32.xlu0 %v495, 126
    %v505 = vpop.permute.xlu0 %504
    %506 = vrot.lane.b32.xlu0 %v496, 126
    %v507 = vpop.permute.xlu0 %506
    %508 = vrot.lane.b32.xlu0 %v497, 126
    %v509 = vpop.permute.xlu0 %508
    %v514 = vadd.f32 %v410, %v503
    %v515 = vadd.f32 %v411, %v505
    %v516 = vadd.f32 %v412, %v507
    %v517 = vadd.f32 %v413, %v509
    %s518 = sld [smem:[#allocation4 + $0x71]]
    %v519 = vstv %s518
    %v520 = vmul.f32 %v519, %v292
    %v521 = vmul.f32 %v519, %v293
    %v522 = vmul.f32 %v519, %v294
    %v523 = vmul.f32 %v519, %v295
    %528 = vrot.lane.b32.xlu0 %v520, 126
    %v529 = vpop.permute.xlu0 %528
    %530 = vrot.lane.b32.xlu0 %v521, 126
    %v531 = vpop.permute.xlu0 %530
    %532 = vrot.lane.b32.xlu0 %v522, 126
    %v533 = vpop.permute.xlu0 %532
    %534 = vrot.lane.b32.xlu0 %v523, 126
    %v535 = vpop.permute.xlu0 %534
    %v540 = vadd.f32 %v436, %v529
    %v541 = vadd.f32 %v437, %v531
    %v542 = vadd.f32 %v438, %v533
    %v543 = vadd.f32 %v439, %v535
    %v544 = vld [vmem:[%s4 + $0x2] sm:$0xff]
    %v545 = vld [vmem:[%s4 + $0xa] sm:$0x3f]
    %v546 = vld [vmem:[%s4 + $0x42] sm:$0xff]
    %v547 = vld [vmem:[%s4 + $0x4a] sm:$0x3f]
    %s548 = sld [smem:[#allocation4 + $0x6]]
    %v549 = vstv %s548
    %v550 = vmul.f32 %v549, %v544
    %v551 = vmul.f32 %v549, %v545
    %v552 = vmul.f32 %v549, %v546
    %v553 = vmul.f32 %v549, %v547
    %v554 = vadd.f32 %v462, %v550
    %v555 = vadd.f32 %v463, %v551
    %v556 = vadd.f32 %v464, %v552
    %v557 = vadd.f32 %v465, %v553
    %s558 = sld [smem:[#allocation4 + $0x2a]]
    %v559 = vstv %s558
    %v560 = vmul.f32 %v559, %v544
    %v561 = vmul.f32 %v559, %v545
    %v562 = vmul.f32 %v559, %v546
    %v563 = vmul.f32 %v559, %v547
    %v564 = vadd.f32 %v488, %v560
    %v565 = vadd.f32 %v489, %v561
    %v566 = vadd.f32 %v490, %v562
    %v567 = vadd.f32 %v491, %v563
    %s568 = sld [smem:[#allocation4 + $0x4e]]
    %v569 = vstv %s568
    %v570 = vmul.f32 %v569, %v544
    %v571 = vmul.f32 %v569, %v545
    %v572 = vmul.f32 %v569, %v546
    %v573 = vmul.f32 %v569, %v547
    %v574 = vadd.f32 %v514, %v570
    %v575 = vadd.f32 %v515, %v571
    %v576 = vadd.f32 %v516, %v572
    %v577 = vadd.f32 %v517, %v573
    %s578 = sld [smem:[#allocation4 + $0x72]]
    %v579 = vstv %s578
    %v580 = vmul.f32 %v579, %v544
    %v581 = vmul.f32 %v579, %v545
    %v582 = vmul.f32 %v579, %v546
    %v583 = vmul.f32 %v579, %v547
    %v584 = vadd.f32 %v540, %v580
    %v585 = vadd.f32 %v541, %v581
    %v586 = vadd.f32 %v542, %v582
    %v587 = vadd.f32 %v543, %v583
    %s588 = sld [smem:[#allocation4 + $0x7]]
    %v589 = vstv %s588
    %v590 = vmul.f32 %v589, %v544
    %v591 = vmul.f32 %v589, %v545
    %v592 = vmul.f32 %v589, %v546
    %v593 = vmul.f32 %v589, %v547
    %598 = vrot.lane.b32.xlu0 %v590, 127
    %v599 = vpop.permute.xlu0 %598
    %600 = vrot.lane.b32.xlu0 %v591, 127
    %v601 = vpop.permute.xlu0 %600
    %602 = vrot.lane.b32.xlu0 %v592, 127
    %v603 = vpop.permute.xlu0 %602
    %604 = vrot.lane.b32.xlu0 %v593, 127
    %v605 = vpop.permute.xlu0 %604
    %v610 = vadd.f32 %v554, %v599
    %v611 = vadd.f32 %v555, %v601
    %v612 = vadd.f32 %v556, %v603
    %v613 = vadd.f32 %v557, %v605
    %s614 = sld [smem:[#allocation4 + $0x2b]]
    %v615 = vstv %s614
    %v616 = vmul.f32 %v615, %v544
    %v617 = vmul.f32 %v615, %v545
    %v618 = vmul.f32 %v615, %v546
    %v619 = vmul.f32 %v615, %v547
    %624 = vrot.lane.b32.xlu0 %v616, 127
    %v625 = vpop.permute.xlu0 %624
    %626 = vrot.lane.b32.xlu0 %v617, 127
    %v627 = vpop.permute.xlu0 %626
    %628 = vrot.lane.b32.xlu0 %v618, 127
    %v629 = vpop.permute.xlu0 %628
    %630 = vrot.lane.b32.xlu0 %v619, 127
    %v631 = vpop.permute.xlu0 %630
    %v636 = vadd.f32 %v564, %v625
    %v637 = vadd.f32 %v565, %v627
    %v638 = vadd.f32 %v566, %v629
    %v639 = vadd.f32 %v567, %v631
    %s640 = sld [smem:[#allocation4 + $0x4f]]
    %v641 = vstv %s640
    %v642 = vmul.f32 %v641, %v544
    %v643 = vmul.f32 %v641, %v545
    %v644 = vmul.f32 %v641, %v546
    %v645 = vmul.f32 %v641, %v547
    %650 = vrot.lane.b32.xlu0 %v642, 127
    %v651 = vpop.permute.xlu0 %650
    %652 = vrot.lane.b32.xlu0 %v643, 127
    %v653 = vpop.permute.xlu0 %652
    %654 = vrot.lane.b32.xlu0 %v644, 127
    %v655 = vpop.permute.xlu0 %654
    %656 = vrot.lane.b32.xlu0 %v645, 127
    %v657 = vpop.permute.xlu0 %656
    %v662 = vadd.f32 %v574, %v651
    %v663 = vadd.f32 %v575, %v653
    %v664 = vadd.f32 %v576, %v655
    %v665 = vadd.f32 %v577, %v657
    %s666 = sld [smem:[#allocation4 + $0x73]]
    %v667 = vstv %s666
    %v668 = vmul.f32 %v667, %v544
    %v669 = vmul.f32 %v667, %v545
    %v670 = vmul.f32 %v667, %v546
    %v671 = vmul.f32 %v667, %v547
    %676 = vrot.lane.b32.xlu0 %v668, 127
    %v677 = vpop.permute.xlu0 %676
    %678 = vrot.lane.b32.xlu0 %v669, 127
    %v679 = vpop.permute.xlu0 %678
    %680 = vrot.lane.b32.xlu0 %v670, 127
    %v681 = vpop.permute.xlu0 %680
    %682 = vrot.lane.b32.xlu0 %v671, 127
    %v683 = vpop.permute.xlu0 %682
    %v688 = vadd.f32 %v584, %v677
    %v689 = vadd.f32 %v585, %v679
    %v690 = vadd.f32 %v586, %v681
    %v691 = vadd.f32 %v587, %v683
    %s692 = sld [smem:[#allocation4 + $0x8]]
    %v693 = vstv %s692
    %v694 = vmul.f32 %v693, %v544
    %v695 = vmul.f32 %v693, %v545
    %v696 = vmul.f32 %v693, %v546
    %v697 = vmul.f32 %v693, %v547
    %702 = vrot.lane.b32.xlu0 %v694, 126
    %v703 = vpop.permute.xlu0 %702
    %704 = vrot.lane.b32.xlu0 %v695, 126
    %v705 = vpop.permute.xlu0 %704
    %706 = vrot.lane.b32.xlu0 %v696, 126
    %v707 = vpop.permute.xlu0 %706
    %708 = vrot.lane.b32.xlu0 %v697, 126
    %v709 = vpop.permute.xlu0 %708
    %v714 = vadd.f32 %v610, %v703
    %v715 = vadd.f32 %v611, %v705
    %v716 = vadd.f32 %v612, %v707
    %v717 = vadd.f32 %v613, %v709
    %s718 = sld [smem:[#allocation4 + $0x2c]]
    %v719 = vstv %s718
    %v720 = vmul.f32 %v719, %v544
    %v721 = vmul.f32 %v719, %v545
    %v722 = vmul.f32 %v719, %v546
    %v723 = vmul.f32 %v719, %v547
    %728 = vrot.lane.b32.xlu0 %v720, 126
    %v729 = vpop.permute.xlu0 %728
    %730 = vrot.lane.b32.xlu0 %v721, 126
    %v731 = vpop.permute.xlu0 %730
    %732 = vrot.lane.b32.xlu0 %v722, 126
    %v733 = vpop.permute.xlu0 %732
    %734 = vrot.lane.b32.xlu0 %v723, 126
    %v735 = vpop.permute.xlu0 %734
    %v740 = vadd.f32 %v636, %v729
    %v741 = vadd.f32 %v637, %v731
    %v742 = vadd.f32 %v638, %v733
    %v743 = vadd.f32 %v639, %v735
    %s744 = sld [smem:[#allocation4 + $0x50]]
    %v745 = vstv %s744
    %v746 = vmul.f32 %v745, %v544
    %v747 = vmul.f32 %v745, %v545
    %v748 = vmul.f32 %v745, %v546
    %v749 = vmul.f32 %v745, %v547
    %754 = vrot.lane.b32.xlu0 %v746, 126
    %v755 = vpop.permute.xlu0 %754
    %756 = vrot.lane.b32.xlu0 %v747, 126
    %v757 = vpop.permute.xlu0 %756
    %758 = vrot.lane.b32.xlu0 %v748, 126
    %v759 = vpop.permute.xlu0 %758
    %760 = vrot.lane.b32.xlu0 %v749, 126
    %v761 = vpop.permute.xlu0 %760
    %v766 = vadd.f32 %v662, %v755
    %v767 = vadd.f32 %v663, %v757
    %v768 = vadd.f32 %v664, %v759
    %v769 = vadd.f32 %v665, %v761
    %s770 = sld [smem:[#allocation4 + $0x74]]
    %v771 = vstv %s770
    %v772 = vmul.f32 %v771, %v544
    %v773 = vmul.f32 %v771, %v545
    %v774 = vmul.f32 %v771, %v546
    %v775 = vmul.f32 %v771, %v547
    %780 = vrot.lane.b32.xlu0 %v772, 126
    %v781 = vpop.permute.xlu0 %780
    %782 = vrot.lane.b32.xlu0 %v773, 126
    %v783 = vpop.permute.xlu0 %782
    %784 = vrot.lane.b32.xlu0 %v774, 126
    %v785 = vpop.permute.xlu0 %784
    %786 = vrot.lane.b32.xlu0 %v775, 126
    %v787 = vpop.permute.xlu0 %786
    %v792 = vadd.f32 %v688, %v781
    %v793 = vadd.f32 %v689, %v783
    %v794 = vadd.f32 %v690, %v785
    %v795 = vadd.f32 %v691, %v787
    %s796 = scalar_lea.vmem %s4, 16
    %v797 = vld [vmem:[%s796] sm:$0xff]
    %v798 = vld [vmem:[%s796 + $0x8] sm:$0x3f]
    %v799 = vld [vmem:[%s796 + $0x40] sm:$0xff]
    %v800 = vld [vmem:[%s796 + $0x48] sm:$0x3f]
    %s801 = sld [smem:[#allocation4 + $0x9]]
    %v802 = vstv %s801
    %v803 = vmul.f32 %v802, %v797
    %v804 = vmul.f32 %v802, %v798
    %v805 = vmul.f32 %v802, %v799
    %v806 = vmul.f32 %v802, %v800
    %v807 = vadd.f32 %v714, %v803
    %v808 = vadd.f32 %v715, %v804
    %v809 = vadd.f32 %v716, %v805
    %v810 = vadd.f32 %v717, %v806
    %s811 = sld [smem:[#allocation4 + $0x2d]]
    %v812 = vstv %s811
    %v813 = vmul.f32 %v812, %v797
    %v814 = vmul.f32 %v812, %v798
    %v815 = vmul.f32 %v812, %v799
    %v816 = vmul.f32 %v812, %v800
    %v817 = vadd.f32 %v740, %v813
    %v818 = vadd.f32 %v741, %v814
    %v819 = vadd.f32 %v742, %v815
    %v820 = vadd.f32 %v743, %v816
    %s821 = sld [smem:[#allocation4 + $0x51]]
    %v822 = vstv %s821
    %v823 = vmul.f32 %v822, %v797
    %v824 = vmul.f32 %v822, %v798
    %v825 = vmul.f32 %v822, %v799
    %v826 = vmul.f32 %v822, %v800
    %v827 = vadd.f32 %v766, %v823
    %v828 = vadd.f32 %v767, %v824
    %v829 = vadd.f32 %v768, %v825
    %v830 = vadd.f32 %v769, %v826
    %s831 = sld [smem:[#allocation4 + $0x75]]
    %v832 = vstv %s831
    %v833 = vmul.f32 %v832, %v797
    %v834 = vmul.f32 %v832, %v798
    %v835 = vmul.f32 %v832, %v799
    %v836 = vmul.f32 %v832, %v800
    %v837 = vadd.f32 %v792, %v833
    %v838 = vadd.f32 %v793, %v834
    %v839 = vadd.f32 %v794, %v835
    %v840 = vadd.f32 %v795, %v836
    %s841 = sld [smem:[#allocation4 + $0xa]]
    %v842 = vstv %s841
    %v843 = vmul.f32 %v842, %v797
    %v844 = vmul.f32 %v842, %v798
    %v845 = vmul.f32 %v842, %v799
    %v846 = vmul.f32 %v842, %v800
    %851 = vrot.lane.b32.xlu0 %v843, 127
    %v852 = vpop.permute.xlu0 %851
    %853 = vrot.lane.b32.xlu0 %v844, 127
    %v854 = vpop.permute.xlu0 %853
    %855 = vrot.lane.b32.xlu0 %v845, 127
    %v856 = vpop.permute.xlu0 %855
    %857 = vrot.lane.b32.xlu0 %v846, 127
    %v858 = vpop.permute.xlu0 %857
    %v863 = vadd.f32 %v807, %v852
    %v864 = vadd.f32 %v808, %v854
    %v865 = vadd.f32 %v809, %v856
    %v866 = vadd.f32 %v810, %v858
    %s867 = sld [smem:[#allocation4 + $0x2e]]
    %v868 = vstv %s867
    %v869 = vmul.f32 %v868, %v797
    %v870 = vmul.f32 %v868, %v798
    %v871 = vmul.f32 %v868, %v799
    %v872 = vmul.f32 %v868, %v800
    %877 = vrot.lane.b32.xlu0 %v869, 127
    %v878 = vpop.permute.xlu0 %877
    %879 = vrot.lane.b32.xlu0 %v870, 127
    %v880 = vpop.permute.xlu0 %879
    %881 = vrot.lane.b32.xlu0 %v871, 127
    %v882 = vpop.permute.xlu0 %881
    %883 = vrot.lane.b32.xlu0 %v872, 127
    %v884 = vpop.permute.xlu0 %883
    %v889 = vadd.f32 %v817, %v878
    %v890 = vadd.f32 %v818, %v880
    %v891 = vadd.f32 %v819, %v882
    %v892 = vadd.f32 %v820, %v884
    %s893 = sld [smem:[#allocation4 + $0x52]]
    %v894 = vstv %s893
    %v895 = vmul.f32 %v894, %v797
    %v896 = vmul.f32 %v894, %v798
    %v897 = vmul.f32 %v894, %v799
    %v898 = vmul.f32 %v894, %v800
    %903 = vrot.lane.b32.xlu0 %v895, 127
    %v904 = vpop.permute.xlu0 %903
    %905 = vrot.lane.b32.xlu0 %v896, 127
    %v906 = vpop.permute.xlu0 %905
    %907 = vrot.lane.b32.xlu0 %v897, 127
    %v908 = vpop.permute.xlu0 %907
    %909 = vrot.lane.b32.xlu0 %v898, 127
    %v910 = vpop.permute.xlu0 %909
    %v915 = vadd.f32 %v827, %v904
    %v916 = vadd.f32 %v828, %v906
    %v917 = vadd.f32 %v829, %v908
    %v918 = vadd.f32 %v830, %v910
    %s919 = sld [smem:[#allocation4 + $0x76]]
    %v920 = vstv %s919
    %v921 = vmul.f32 %v920, %v797
    %v922 = vmul.f32 %v920, %v798
    %v923 = vmul.f32 %v920, %v799
    %v924 = vmul.f32 %v920, %v800
    %929 = vrot.lane.b32.xlu0 %v921, 127
    %v930 = vpop.permute.xlu0 %929
    %931 = vrot.lane.b32.xlu0 %v922, 127
    %v932 = vpop.permute.xlu0 %931
    %933 = vrot.lane.b32.xlu0 %v923, 127
    %v934 = vpop.permute.xlu0 %933
    %935 = vrot.lane.b32.xlu0 %v924, 127
    %v936 = vpop.permute.xlu0 %935
    %v941 = vadd.f32 %v837, %v930
    %v942 = vadd.f32 %v838, %v932
    %v943 = vadd.f32 %v839, %v934
    %v944 = vadd.f32 %v840, %v936
    %s945 = sld [smem:[#allocation4 + $0xb]]
    %v946 = vstv %s945
    %v947 = vmul.f32 %v946, %v797
    %v948 = vmul.f32 %v946, %v798
    %v949 = vmul.f32 %v946, %v799
    %v950 = vmul.f32 %v946, %v800
    %955 = vrot.lane.b32.xlu0 %v947, 126
    %v956 = vpop.permute.xlu0 %955
    %957 = vrot.lane.b32.xlu0 %v948, 126
    %v958 = vpop.permute.xlu0 %957
    %959 = vrot.lane.b32.xlu0 %v949, 126
    %v960 = vpop.permute.xlu0 %959
    %961 = vrot.lane.b32.xlu0 %v950, 126
    %v962 = vpop.permute.xlu0 %961
    %v967 = vadd.f32 %v863, %v956
    %v968 = vadd.f32 %v864, %v958
    %v969 = vadd.f32 %v865, %v960
    %v970 = vadd.f32 %v866, %v962
    %s971 = sld [smem:[#allocation4 + $0x2f]]
    %v972 = vstv %s971
    %v973 = vmul.f32 %v972, %v797
    %v974 = vmul.f32 %v972, %v798
    %v975 = vmul.f32 %v972, %v799
    %v976 = vmul.f32 %v972, %v800
    %981 = vrot.lane.b32.xlu0 %v973, 126
    %v982 = vpop.permute.xlu0 %981
    %983 = vrot.lane.b32.xlu0 %v974, 126
    %v984 = vpop.permute.xlu0 %983
    %985 = vrot.lane.b32.xlu0 %v975, 126
    %v986 = vpop.permute.xlu0 %985
    %987 = vrot.lane.b32.xlu0 %v976, 126
    %v988 = vpop.permute.xlu0 %987
    %v993 = vadd.f32 %v889, %v982
    %v994 = vadd.f32 %v890, %v984
    %v995 = vadd.f32 %v891, %v986
    %v996 = vadd.f32 %v892, %v988
    %s997 = sld [smem:[#allocation4 + $0x53]]
    %v998 = vstv %s997
    %v999 = vmul.f32 %v998, %v797
    %v1000 = vmul.f32 %v998, %v798
    %v1001 = vmul.f32 %v998, %v799
    %v1002 = vmul.f32 %v998, %v800
    %1007 = vrot.lane.b32.xlu0 %v999, 126
    %v1008 = vpop.permute.xlu0 %1007
    %1009 = vrot.lane.b32.xlu0 %v1000, 126
    %v1010 = vpop.permute.xlu0 %1009
    %1011 = vrot.lane.b32.xlu0 %v1001, 126
    %v1012 = vpop.permute.xlu0 %1011
    %1013 = vrot.lane.b32.xlu0 %v1002, 126
    %v1014 = vpop.permute.xlu0 %1013
    %v1019 = vadd.f32 %v915, %v1008
    %v1020 = vadd.f32 %v916, %v1010
    %v1021 = vadd.f32 %v917, %v1012
    %v1022 = vadd.f32 %v918, %v1014
    %s1023 = sld [smem:[#allocation4 + $0x77]]
    %v1024 = vstv %s1023
    %v1025 = vmul.f32 %v1024, %v797
    %v1026 = vmul.f32 %v1024, %v798
    %v1027 = vmul.f32 %v1024, %v799
    %v1028 = vmul.f32 %v1024, %v800
    %1033 = vrot.lane.b32.xlu0 %v1025, 126
    %v1034 = vpop.permute.xlu0 %1033
    %1035 = vrot.lane.b32.xlu0 %v1026, 126
    %v1036 = vpop.permute.xlu0 %1035
    %1037 = vrot.lane.b32.xlu0 %v1027, 126
    %v1038 = vpop.permute.xlu0 %1037
    %1039 = vrot.lane.b32.xlu0 %v1028, 126
    %v1040 = vpop.permute.xlu0 %1039
    %v1045 = vadd.f32 %v941, %v1034
    %v1046 = vadd.f32 %v942, %v1036
    %v1047 = vadd.f32 %v943, %v1038
    %v1048 = vadd.f32 %v944, %v1040
    %v1049 = vld [vmem:[%s796 + $0x1] sm:$0xff]
    %v1050 = vld [vmem:[%s796 + $0x9] sm:$0x3f]
    %v1051 = vld [vmem:[%s796 + $0x41] sm:$0xff]
    %v1052 = vld [vmem:[%s796 + $0x49] sm:$0x3f]
    %s1053 = sld [smem:[#allocation4 + $0xc]]
    %v1054 = vstv %s1053
    %v1055 = vmul.f32 %v1054, %v1049
    %v1056 = vmul.f32 %v1054, %v1050
    %v1057 = vmul.f32 %v1054, %v1051
    %v1058 = vmul.f32 %v1054, %v1052
    %v1059 = vadd.f32 %v967, %v1055
    %v1060 = vadd.f32 %v968, %v1056
    %v1061 = vadd.f32 %v969, %v1057
    %v1062 = vadd.f32 %v970, %v1058
    %s1063 = sld [smem:[#allocation4 + $0x30]]
    %v1064 = vstv %s1063
    %v1065 = vmul.f32 %v1064, %v1049
    %v1066 = vmul.f32 %v1064, %v1050
    %v1067 = vmul.f32 %v1064, %v1051
    %v1068 = vmul.f32 %v1064, %v1052
    %v1069 = vadd.f32 %v993, %v1065
    %v1070 = vadd.f32 %v994, %v1066
    %v1071 = vadd.f32 %v995, %v1067
    %v1072 = vadd.f32 %v996, %v1068
    %s1073 = sld [smem:[#allocation4 + $0x54]]
    %v1074 = vstv %s1073
    %v1075 = vmul.f32 %v1074, %v1049
    %v1076 = vmul.f32 %v1074, %v1050
    %v1077 = vmul.f32 %v1074, %v1051
    %v1078 = vmul.f32 %v1074, %v1052
    %v1079 = vadd.f32 %v1019, %v1075
    %v1080 = vadd.f32 %v1020, %v1076
    %v1081 = vadd.f32 %v1021, %v1077
    %v1082 = vadd.f32 %v1022, %v1078
    %s1083 = sld [smem:[#allocation4 + $0x78]]
    %v1084 = vstv %s1083
    %v1085 = vmul.f32 %v1084, %v1049
    %v1086 = vmul.f32 %v1084, %v1050
    %v1087 = vmul.f32 %v1084, %v1051
    %v1088 = vmul.f32 %v1084, %v1052
    %v1089 = vadd.f32 %v1045, %v1085
    %v1090 = vadd.f32 %v1046, %v1086
    %v1091 = vadd.f32 %v1047, %v1087
    %v1092 = vadd.f32 %v1048, %v1088
    %s1093 = sld [smem:[#allocation4 + $0xd]]
    %v1094 = vstv %s1093
    %v1095 = vmul.f32 %v1094, %v1049
    %v1096 = vmul.f32 %v1094, %v1050
    %v1097 = vmul.f32 %v1094, %v1051
    %v1098 = vmul.f32 %v1094, %v1052
    %1103 = vrot.lane.b32.xlu0 %v1095, 127
    %v1104 = vpop.permute.xlu0 %1103
    %1105 = vrot.lane.b32.xlu0 %v1096, 127
    %v1106 = vpop.permute.xlu0 %1105
    %1107 = vrot.lane.b32.xlu0 %v1097, 127
    %v1108 = vpop.permute.xlu0 %1107
    %1109 = vrot.lane.b32.xlu0 %v1098, 127
    %v1110 = vpop.permute.xlu0 %1109
    %v1115 = vadd.f32 %v1059, %v1104
    %v1116 = vadd.f32 %v1060, %v1106
    %v1117 = vadd.f32 %v1061, %v1108
    %v1118 = vadd.f32 %v1062, %v1110
    %s1119 = sld [smem:[#allocation4 + $0x31]]
    %v1120 = vstv %s1119
    %v1121 = vmul.f32 %v1120, %v1049
    %v1122 = vmul.f32 %v1120, %v1050
    %v1123 = vmul.f32 %v1120, %v1051
    %v1124 = vmul.f32 %v1120, %v1052
    %1129 = vrot.lane.b32.xlu0 %v1121, 127
    %v1130 = vpop.permute.xlu0 %1129
    %1131 = vrot.lane.b32.xlu0 %v1122, 127
    %v1132 = vpop.permute.xlu0 %1131
    %1133 = vrot.lane.b32.xlu0 %v1123, 127
    %v1134 = vpop.permute.xlu0 %1133
    %1135 = vrot.lane.b32.xlu0 %v1124, 127
    %v1136 = vpop.permute.xlu0 %1135
    %v1141 = vadd.f32 %v1069, %v1130
    %v1142 = vadd.f32 %v1070, %v1132
    %v1143 = vadd.f32 %v1071, %v1134
    %v1144 = vadd.f32 %v1072, %v1136
    %s1145 = sld [smem:[#allocation4 + $0x55]]
    %v1146 = vstv %s1145
    %v1147 = vmul.f32 %v1146, %v1049
    %v1148 = vmul.f32 %v1146, %v1050
    %v1149 = vmul.f32 %v1146, %v1051
    %v1150 = vmul.f32 %v1146, %v1052
    %1155 = vrot.lane.b32.xlu0 %v1147, 127
    %v1156 = vpop.permute.xlu0 %1155
    %1157 = vrot.lane.b32.xlu0 %v1148, 127
    %v1158 = vpop.permute.xlu0 %1157
    %1159 = vrot.lane.b32.xlu0 %v1149, 127
    %v1160 = vpop.permute.xlu0 %1159
    %1161 = vrot.lane.b32.xlu0 %v1150, 127
    %v1162 = vpop.permute.xlu0 %1161
    %v1167 = vadd.f32 %v1079, %v1156
    %v1168 = vadd.f32 %v1080, %v1158
    %v1169 = vadd.f32 %v1081, %v1160
    %v1170 = vadd.f32 %v1082, %v1162
    %s1171 = sld [smem:[#allocation4 + $0x79]]
    %v1172 = vstv %s1171
    %v1173 = vmul.f32 %v1172, %v1049
    %v1174 = vmul.f32 %v1172, %v1050
    %v1175 = vmul.f32 %v1172, %v1051
    %v1176 = vmul.f32 %v1172, %v1052
    %1181 = vrot.lane.b32.xlu0 %v1173, 127
    %v1182 = vpop.permute.xlu0 %1181
    %1183 = vrot.lane.b32.xlu0 %v1174, 127
    %v1184 = vpop.permute.xlu0 %1183
    %1185 = vrot.lane.b32.xlu0 %v1175, 127
    %v1186 = vpop.permute.xlu0 %1185
    %1187 = vrot.lane.b32.xlu0 %v1176, 127
    %v1188 = vpop.permute.xlu0 %1187
    %v1193 = vadd.f32 %v1089, %v1182
    %v1194 = vadd.f32 %v1090, %v1184
    %v1195 = vadd.f32 %v1091, %v1186
    %v1196 = vadd.f32 %v1092, %v1188
    %s1197 = sld [smem:[#allocation4 + $0xe]]
    %v1198 = vstv %s1197
    %v1199 = vmul.f32 %v1198, %v1049
    %v1200 = vmul.f32 %v1198, %v1050
    %v1201 = vmul.f32 %v1198, %v1051
    %v1202 = vmul.f32 %v1198, %v1052
    %1207 = vrot.lane.b32.xlu0 %v1199, 126
    %v1208 = vpop.permute.xlu0 %1207
    %1209 = vrot.lane.b32.xlu0 %v1200, 126
    %v1210 = vpop.permute.xlu0 %1209
    %1211 = vrot.lane.b32.xlu0 %v1201, 126
    %v1212 = vpop.permute.xlu0 %1211
    %1213 = vrot.lane.b32.xlu0 %v1202, 126
    %v1214 = vpop.permute.xlu0 %1213
    %v1219 = vadd.f32 %v1115, %v1208
    %v1220 = vadd.f32 %v1116, %v1210
    %v1221 = vadd.f32 %v1117, %v1212
    %v1222 = vadd.f32 %v1118, %v1214
    %s1223 = sld [smem:[#allocation4 + $0x32]]
    %v1224 = vstv %s1223
    %v1225 = vmul.f32 %v1224, %v1049
    %v1226 = vmul.f32 %v1224, %v1050
    %v1227 = vmul.f32 %v1224, %v1051
    %v1228 = vmul.f32 %v1224, %v1052
    %1233 = vrot.lane.b32.xlu0 %v1225, 126
    %v1234 = vpop.permute.xlu0 %1233
    %1235 = vrot.lane.b32.xlu0 %v1226, 126
    %v1236 = vpop.permute.xlu0 %1235
    %1237 = vrot.lane.b32.xlu0 %v1227, 126
    %v1238 = vpop.permute.xlu0 %1237
    %1239 = vrot.lane.b32.xlu0 %v1228, 126
    %v1240 = vpop.permute.xlu0 %1239
    %v1245 = vadd.f32 %v1141, %v1234
    %v1246 = vadd.f32 %v1142, %v1236
    %v1247 = vadd.f32 %v1143, %v1238
    %v1248 = vadd.f32 %v1144, %v1240
    %s1249 = sld [smem:[#allocation4 + $0x56]]
    %v1250 = vstv %s1249
    %v1251 = vmul.f32 %v1250, %v1049
    %v1252 = vmul.f32 %v1250, %v1050
    %v1253 = vmul.f32 %v1250, %v1051
    %v1254 = vmul.f32 %v1250, %v1052
    %1259 = vrot.lane.b32.xlu0 %v1251, 126
    %v1260 = vpop.permute.xlu0 %1259
    %1261 = vrot.lane.b32.xlu0 %v1252, 126
    %v1262 = vpop.permute.xlu0 %1261
    %1263 = vrot.lane.b32.xlu0 %v1253, 126
    %v1264 = vpop.permute.xlu0 %1263
    %1265 = vrot.lane.b32.xlu0 %v1254, 126
    %v1266 = vpop.permute.xlu0 %1265
    %v1271 = vadd.f32 %v1167, %v1260
    %v1272 = vadd.f32 %v1168, %v1262
    %v1273 = vadd.f32 %v1169, %v1264
    %v1274 = vadd.f32 %v1170, %v1266
    %s1275 = sld [smem:[#allocation4 + $0x7a]]
    %v1276 = vstv %s1275
    %v1277 = vmul.f32 %v1276, %v1049
    %v1278 = vmul.f32 %v1276, %v1050
    %v1279 = vmul.f32 %v1276, %v1051
    %v1280 = vmul.f32 %v1276, %v1052
    %1285 = vrot.lane.b32.xlu0 %v1277, 126
    %v1286 = vpop.permute.xlu0 %1285
    %1287 = vrot.lane.b32.xlu0 %v1278, 126
    %v1288 = vpop.permute.xlu0 %1287
    %1289 = vrot.lane.b32.xlu0 %v1279, 126
    %v1290 = vpop.permute.xlu0 %1289
    %1291 = vrot.lane.b32.xlu0 %v1280, 126
    %v1292 = vpop.permute.xlu0 %1291
    %v1297 = vadd.f32 %v1193, %v1286
    %v1298 = vadd.f32 %v1194, %v1288
    %v1299 = vadd.f32 %v1195, %v1290
    %v1300 = vadd.f32 %v1196, %v1292
    %v1301 = vld [vmem:[%s796 + $0x2] sm:$0xff]
    %v1302 = vld [vmem:[%s796 + $0xa] sm:$0x3f]
    %v1303 = vld [vmem:[%s796 + $0x42] sm:$0xff]
    %v1304 = vld [vmem:[%s796 + $0x4a] sm:$0x3f]
    %s1305 = sld [smem:[#allocation4 + $0xf]]
    %v1306 = vstv %s1305
    %v1307 = vmul.f32 %v1306, %v1301
    %v1308 = vmul.f32 %v1306, %v1302
    %v1309 = vmul.f32 %v1306, %v1303
    %v1310 = vmul.f32 %v1306, %v1304
    %v1311 = vadd.f32 %v1219, %v1307
    %v1312 = vadd.f32 %v1220, %v1308
    %v1313 = vadd.f32 %v1221, %v1309
    %v1314 = vadd.f32 %v1222, %v1310
    %s1315 = sld [smem:[#allocation4 + $0x33]]
    %v1316 = vstv %s1315
    %v1317 = vmul.f32 %v1316, %v1301
    %v1318 = vmul.f32 %v1316, %v1302
    %v1319 = vmul.f32 %v1316, %v1303
    %v1320 = vmul.f32 %v1316, %v1304
    %v1321 = vadd.f32 %v1245, %v1317
    %v1322 = vadd.f32 %v1246, %v1318
    %v1323 = vadd.f32 %v1247, %v1319
    %v1324 = vadd.f32 %v1248, %v1320
    %s1325 = sld [smem:[#allocation4 + $0x57]]
    %v1326 = vstv %s1325
    %v1327 = vmul.f32 %v1326, %v1301
    %v1328 = vmul.f32 %v1326, %v1302
    %v1329 = vmul.f32 %v1326, %v1303
    %v1330 = vmul.f32 %v1326, %v1304
    %v1331 = vadd.f32 %v1271, %v1327
    %v1332 = vadd.f32 %v1272, %v1328
    %v1333 = vadd.f32 %v1273, %v1329
    %v1334 = vadd.f32 %v1274, %v1330
    %s1335 = sld [smem:[#allocation4 + $0x7b]]
    %v1336 = vstv %s1335
    %v1337 = vmul.f32 %v1336, %v1301
    %v1338 = vmul.f32 %v1336, %v1302
    %v1339 = vmul.f32 %v1336, %v1303
    %v1340 = vmul.f32 %v1336, %v1304
    %v1341 = vadd.f32 %v1297, %v1337
    %v1342 = vadd.f32 %v1298, %v1338
    %v1343 = vadd.f32 %v1299, %v1339
    %v1344 = vadd.f32 %v1300, %v1340
    %s1345 = sld [smem:[#allocation4 + $0x10]]
    %v1346 = vstv %s1345
    %v1347 = vmul.f32 %v1346, %v1301
    %v1348 = vmul.f32 %v1346, %v1302
    %v1349 = vmul.f32 %v1346, %v1303
    %v1350 = vmul.f32 %v1346, %v1304
    %1355 = vrot.lane.b32.xlu0 %v1347, 127
    %v1356 = vpop.permute.xlu0 %1355
    %1357 = vrot.lane.b32.xlu0 %v1348, 127
    %v1358 = vpop.permute.xlu0 %1357
    %1359 = vrot.lane.b32.xlu0 %v1349, 127
    %v1360 = vpop.permute.xlu0 %1359
    %1361 = vrot.lane.b32.xlu0 %v1350, 127
    %v1362 = vpop.permute.xlu0 %1361
    %v1367 = vadd.f32 %v1311, %v1356
    %v1368 = vadd.f32 %v1312, %v1358
    %v1369 = vadd.f32 %v1313, %v1360
    %v1370 = vadd.f32 %v1314, %v1362
    %s1371 = sld [smem:[#allocation4 + $0x34]]
    %v1372 = vstv %s1371
    %v1373 = vmul.f32 %v1372, %v1301
    %v1374 = vmul.f32 %v1372, %v1302
    %v1375 = vmul.f32 %v1372, %v1303
    %v1376 = vmul.f32 %v1372, %v1304
    %1381 = vrot.lane.b32.xlu0 %v1373, 127
    %v1382 = vpop.permute.xlu0 %1381
    %1383 = vrot.lane.b32.xlu0 %v1374, 127
    %v1384 = vpop.permute.xlu0 %1383
    %1385 = vrot.lane.b32.xlu0 %v1375, 127
    %v1386 = vpop.permute.xlu0 %1385
    %1387 = vrot.lane.b32.xlu0 %v1376, 127
    %v1388 = vpop.permute.xlu0 %1387
    %v1393 = vadd.f32 %v1321, %v1382
    %v1394 = vadd.f32 %v1322, %v1384
    %v1395 = vadd.f32 %v1323, %v1386
    %v1396 = vadd.f32 %v1324, %v1388
    %s1397 = sld [smem:[#allocation4 + $0x58]]
    %v1398 = vstv %s1397
    %v1399 = vmul.f32 %v1398, %v1301
    %v1400 = vmul.f32 %v1398, %v1302
    %v1401 = vmul.f32 %v1398, %v1303
    %v1402 = vmul.f32 %v1398, %v1304
    %1407 = vrot.lane.b32.xlu0 %v1399, 127
    %v1408 = vpop.permute.xlu0 %1407
    %1409 = vrot.lane.b32.xlu0 %v1400, 127
    %v1410 = vpop.permute.xlu0 %1409
    %1411 = vrot.lane.b32.xlu0 %v1401, 127
    %v1412 = vpop.permute.xlu0 %1411
    %1413 = vrot.lane.b32.xlu0 %v1402, 127
    %v1414 = vpop.permute.xlu0 %1413
    %v1419 = vadd.f32 %v1331, %v1408
    %v1420 = vadd.f32 %v1332, %v1410
    %v1421 = vadd.f32 %v1333, %v1412
    %v1422 = vadd.f32 %v1334, %v1414
    %s1423 = sld [smem:[#allocation4 + $0x7c]]
    %v1424 = vstv %s1423
    %v1425 = vmul.f32 %v1424, %v1301
    %v1426 = vmul.f32 %v1424, %v1302
    %v1427 = vmul.f32 %v1424, %v1303
    %v1428 = vmul.f32 %v1424, %v1304
    %1433 = vrot.lane.b32.xlu0 %v1425, 127
    %v1434 = vpop.permute.xlu0 %1433
    %1435 = vrot.lane.b32.xlu0 %v1426, 127
    %v1436 = vpop.permute.xlu0 %1435
    %1437 = vrot.lane.b32.xlu0 %v1427, 127
    %v1438 = vpop.permute.xlu0 %1437
    %1439 = vrot.lane.b32.xlu0 %v1428, 127
    %v1440 = vpop.permute.xlu0 %1439
    %v1445 = vadd.f32 %v1341, %v1434
    %v1446 = vadd.f32 %v1342, %v1436
    %v1447 = vadd.f32 %v1343, %v1438
    %v1448 = vadd.f32 %v1344, %v1440
    %s1449 = sld [smem:[#allocation4 + $0x11]]
    %v1450 = vstv %s1449
    %v1451 = vmul.f32 %v1450, %v1301
    %v1452 = vmul.f32 %v1450, %v1302
    %v1453 = vmul.f32 %v1450, %v1303
    %v1454 = vmul.f32 %v1450, %v1304
    %1459 = vrot.lane.b32.xlu0 %v1451, 126
    %v1460 = vpop.permute.xlu0 %1459
    %1461 = vrot.lane.b32.xlu0 %v1452, 126
    %v1462 = vpop.permute.xlu0 %1461
    %1463 = vrot.lane.b32.xlu0 %v1453, 126
    %v1464 = vpop.permute.xlu0 %1463
    %1465 = vrot.lane.b32.xlu0 %v1454, 126
    %v1466 = vpop.permute.xlu0 %1465
    %v1471 = vadd.f32 %v1367, %v1460
    %v1472 = vadd.f32 %v1368, %v1462
    %v1473 = vadd.f32 %v1369, %v1464
    %v1474 = vadd.f32 %v1370, %v1466
    %s1475 = sld [smem:[#allocation4 + $0x35]]
    %v1476 = vstv %s1475
    %v1477 = vmul.f32 %v1476, %v1301
    %v1478 = vmul.f32 %v1476, %v1302
    %v1479 = vmul.f32 %v1476, %v1303
    %v1480 = vmul.f32 %v1476, %v1304
    %1485 = vrot.lane.b32.xlu0 %v1477, 126
    %v1486 = vpop.permute.xlu0 %1485
    %1487 = vrot.lane.b32.xlu0 %v1478, 126
    %v1488 = vpop.permute.xlu0 %1487
    %1489 = vrot.lane.b32.xlu0 %v1479, 126
    %v1490 = vpop.permute.xlu0 %1489
    %1491 = vrot.lane.b32.xlu0 %v1480, 126
    %v1492 = vpop.permute.xlu0 %1491
    %v1497 = vadd.f32 %v1393, %v1486
    %v1498 = vadd.f32 %v1394, %v1488
    %v1499 = vadd.f32 %v1395, %v1490
    %v1500 = vadd.f32 %v1396, %v1492
    %s1501 = sld [smem:[#allocation4 + $0x59]]
    %v1502 = vstv %s1501
    %v1503 = vmul.f32 %v1502, %v1301
    %v1504 = vmul.f32 %v1502, %v1302
    %v1505 = vmul.f32 %v1502, %v1303
    %v1506 = vmul.f32 %v1502, %v1304
    %1511 = vrot.lane.b32.xlu0 %v1503, 126
    %v1512 = vpop.permute.xlu0 %1511
    %1513 = vrot.lane.b32.xlu0 %v1504, 126
    %v1514 = vpop.permute.xlu0 %1513
    %1515 = vrot.lane.b32.xlu0 %v1505, 126
    %v1516 = vpop.permute.xlu0 %1515
    %1517 = vrot.lane.b32.xlu0 %v1506, 126
    %v1518 = vpop.permute.xlu0 %1517
    %v1523 = vadd.f32 %v1419, %v1512
    %v1524 = vadd.f32 %v1420, %v1514
    %v1525 = vadd.f32 %v1421, %v1516
    %v1526 = vadd.f32 %v1422, %v1518
    %s1527 = sld [smem:[#allocation4 + $0x7d]]
    %v1528 = vstv %s1527
    %v1529 = vmul.f32 %v1528, %v1301
    %v1530 = vmul.f32 %v1528, %v1302
    %v1531 = vmul.f32 %v1528, %v1303
    %v1532 = vmul.f32 %v1528, %v1304
    %1537 = vrot.lane.b32.xlu0 %v1529, 126
    %v1538 = vpop.permute.xlu0 %1537
    %1539 = vrot.lane.b32.xlu0 %v1530, 126
    %v1540 = vpop.permute.xlu0 %1539
    %1541 = vrot.lane.b32.xlu0 %v1531, 126
    %v1542 = vpop.permute.xlu0 %1541
    %1543 = vrot.lane.b32.xlu0 %v1532, 126
    %v1544 = vpop.permute.xlu0 %1543
    %v1549 = vadd.f32 %v1445, %v1538
    %v1550 = vadd.f32 %v1446, %v1540
    %v1551 = vadd.f32 %v1447, %v1542
    %v1552 = vadd.f32 %v1448, %v1544
    %s1553 = scalar_lea.vmem %s4, 32
    %v1554 = vld [vmem:[%s1553] sm:$0xff]
    %v1555 = vld [vmem:[%s1553 + $0x8] sm:$0x3f]
    %v1556 = vld [vmem:[%s1553 + $0x40] sm:$0xff]
    %v1557 = vld [vmem:[%s1553 + $0x48] sm:$0x3f]
    %s1558 = sld [smem:[#allocation4 + $0x12]]
    %v1559 = vstv %s1558
    %v1560 = vmul.f32 %v1559, %v1554
    %v1561 = vmul.f32 %v1559, %v1555
    %v1562 = vmul.f32 %v1559, %v1556
    %v1563 = vmul.f32 %v1559, %v1557
    %v1564 = vadd.f32 %v1471, %v1560
    %v1565 = vadd.f32 %v1472, %v1561
    %v1566 = vadd.f32 %v1473, %v1562
    %v1567 = vadd.f32 %v1474, %v1563
    %s1568 = sld [smem:[#allocation4 + $0x36]]
    %v1569 = vstv %s1568
    %v1570 = vmul.f32 %v1569, %v1554
    %v1571 = vmul.f32 %v1569, %v1555
    %v1572 = vmul.f32 %v1569, %v1556
    %v1573 = vmul.f32 %v1569, %v1557
    %v1574 = vadd.f32 %v1497, %v1570
    %v1575 = vadd.f32 %v1498, %v1571
    %v1576 = vadd.f32 %v1499, %v1572
    %v1577 = vadd.f32 %v1500, %v1573
    %s1578 = sld [smem:[#allocation4 + $0x5a]]
    %v1579 = vstv %s1578
    %v1580 = vmul.f32 %v1579, %v1554
    %v1581 = vmul.f32 %v1579, %v1555
    %v1582 = vmul.f32 %v1579, %v1556
    %v1583 = vmul.f32 %v1579, %v1557
    %v1584 = vadd.f32 %v1523, %v1580
    %v1585 = vadd.f32 %v1524, %v1581
    %v1586 = vadd.f32 %v1525, %v1582
    %v1587 = vadd.f32 %v1526, %v1583
    %s1588 = sld [smem:[#allocation4 + $0x7e]]
    %v1589 = vstv %s1588
    %v1590 = vmul.f32 %v1589, %v1554
    %v1591 = vmul.f32 %v1589, %v1555
    %v1592 = vmul.f32 %v1589, %v1556
    %v1593 = vmul.f32 %v1589, %v1557
    %v1594 = vadd.f32 %v1549, %v1590
    %v1595 = vadd.f32 %v1550, %v1591
    %v1596 = vadd.f32 %v1551, %v1592
    %v1597 = vadd.f32 %v1552, %v1593
    %s1598 = sld [smem:[#allocation4 + $0x13]]
    %v1599 = vstv %s1598
    %v1600 = vmul.f32 %v1599, %v1554
    %v1601 = vmul.f32 %v1599, %v1555
    %v1602 = vmul.f32 %v1599, %v1556
    %v1603 = vmul.f32 %v1599, %v1557
    %1608 = vrot.lane.b32.xlu0 %v1600, 127
    %v1609 = vpop.permute.xlu0 %1608
    %1610 = vrot.lane.b32.xlu0 %v1601, 127
    %v1611 = vpop.permute.xlu0 %1610
    %1612 = vrot.lane.b32.xlu0 %v1602, 127
    %v1613 = vpop.permute.xlu0 %1612
    %1614 = vrot.lane.b32.xlu0 %v1603, 127
    %v1615 = vpop.permute.xlu0 %1614
    %v1620 = vadd.f32 %v1564, %v1609
    %v1621 = vadd.f32 %v1565, %v1611
    %v1622 = vadd.f32 %v1566, %v1613
    %v1623 = vadd.f32 %v1567, %v1615
    %s1624 = sld [smem:[#allocation4 + $0x37]]
    %v1625 = vstv %s1624
    %v1626 = vmul.f32 %v1625, %v1554
    %v1627 = vmul.f32 %v1625, %v1555
    %v1628 = vmul.f32 %v1625, %v1556
    %v1629 = vmul.f32 %v1625, %v1557
    %1634 = vrot.lane.b32.xlu0 %v1626, 127
    %v1635 = vpop.permute.xlu0 %1634
    %1636 = vrot.lane.b32.xlu0 %v1627, 127
    %v1637 = vpop.permute.xlu0 %1636
    %1638 = vrot.lane.b32.xlu0 %v1628, 127
    %v1639 = vpop.permute.xlu0 %1638
    %1640 = vrot.lane.b32.xlu0 %v1629, 127
    %v1641 = vpop.permute.xlu0 %1640
    %v1646 = vadd.f32 %v1574, %v1635
    %v1647 = vadd.f32 %v1575, %v1637
    %v1648 = vadd.f32 %v1576, %v1639
    %v1649 = vadd.f32 %v1577, %v1641
    %s1650 = sld [smem:[#allocation4 + $0x5b]]
    %v1651 = vstv %s1650
    %v1652 = vmul.f32 %v1651, %v1554
    %v1653 = vmul.f32 %v1651, %v1555
    %v1654 = vmul.f32 %v1651, %v1556
    %v1655 = vmul.f32 %v1651, %v1557
    %1660 = vrot.lane.b32.xlu0 %v1652, 127
    %v1661 = vpop.permute.xlu0 %1660
    %1662 = vrot.lane.b32.xlu0 %v1653, 127
    %v1663 = vpop.permute.xlu0 %1662
    %1664 = vrot.lane.b32.xlu0 %v1654, 127
    %v1665 = vpop.permute.xlu0 %1664
    %1666 = vrot.lane.b32.xlu0 %v1655, 127
    %v1667 = vpop.permute.xlu0 %1666
    %v1672 = vadd.f32 %v1584, %v1661
    %v1673 = vadd.f32 %v1585, %v1663
    %v1674 = vadd.f32 %v1586, %v1665
    %v1675 = vadd.f32 %v1587, %v1667
    %s1676 = sld [smem:[#allocation4 + $0x7f]]
    %v1677 = vstv %s1676
    %v1678 = vmul.f32 %v1677, %v1554
    %v1679 = vmul.f32 %v1677, %v1555
    %v1680 = vmul.f32 %v1677, %v1556
    %v1681 = vmul.f32 %v1677, %v1557
    %1686 = vrot.lane.b32.xlu0 %v1678, 127
    %v1687 = vpop.permute.xlu0 %1686
    %1688 = vrot.lane.b32.xlu0 %v1679, 127
    %v1689 = vpop.permute.xlu0 %1688
    %1690 = vrot.lane.b32.xlu0 %v1680, 127
    %v1691 = vpop.permute.xlu0 %1690
    %1692 = vrot.lane.b32.xlu0 %v1681, 127
    %v1693 = vpop.permute.xlu0 %1692
    %v1698 = vadd.f32 %v1594, %v1687
    %v1699 = vadd.f32 %v1595, %v1689
    %v1700 = vadd.f32 %v1596, %v1691
    %v1701 = vadd.f32 %v1597, %v1693
    %s1702 = sld [smem:[#allocation4 + $0x14]]
    %v1703 = vstv %s1702
    %v1704 = vmul.f32 %v1703, %v1554
    %v1705 = vmul.f32 %v1703, %v1555
    %v1706 = vmul.f32 %v1703, %v1556
    %v1707 = vmul.f32 %v1703, %v1557
    %1712 = vrot.lane.b32.xlu0 %v1704, 126
    %v1713 = vpop.permute.xlu0 %1712
    %1714 = vrot.lane.b32.xlu0 %v1705, 126
    %v1715 = vpop.permute.xlu0 %1714
    %1716 = vrot.lane.b32.xlu0 %v1706, 126
    %v1717 = vpop.permute.xlu0 %1716
    %1718 = vrot.lane.b32.xlu0 %v1707, 126
    %v1719 = vpop.permute.xlu0 %1718
    %v1724 = vadd.f32 %v1620, %v1713
    %v1725 = vadd.f32 %v1621, %v1715
    %v1726 = vadd.f32 %v1622, %v1717
    %v1727 = vadd.f32 %v1623, %v1719
    %s1728 = sld [smem:[#allocation4 + $0x38]]
    %v1729 = vstv %s1728
    %v1730 = vmul.f32 %v1729, %v1554
    %v1731 = vmul.f32 %v1729, %v1555
    %v1732 = vmul.f32 %v1729, %v1556
    %v1733 = vmul.f32 %v1729, %v1557
    %1738 = vrot.lane.b32.xlu0 %v1730, 126
    %v1739 = vpop.permute.xlu0 %1738
    %1740 = vrot.lane.b32.xlu0 %v1731, 126
    %v1741 = vpop.permute.xlu0 %1740
    %1742 = vrot.lane.b32.xlu0 %v1732, 126
    %v1743 = vpop.permute.xlu0 %1742
    %1744 = vrot.lane.b32.xlu0 %v1733, 126
    %v1745 = vpop.permute.xlu0 %1744
    %v1750 = vadd.f32 %v1646, %v1739
    %v1751 = vadd.f32 %v1647, %v1741
    %v1752 = vadd.f32 %v1648, %v1743
    %v1753 = vadd.f32 %v1649, %v1745
    %s1754 = sld [smem:[#allocation4 + $0x5c]]
    %v1755 = vstv %s1754
    %v1756 = vmul.f32 %v1755, %v1554
    %v1757 = vmul.f32 %v1755, %v1555
    %v1758 = vmul.f32 %v1755, %v1556
    %v1759 = vmul.f32 %v1755, %v1557
    %1764 = vrot.lane.b32.xlu0 %v1756, 126
    %v1765 = vpop.permute.xlu0 %1764
    %1766 = vrot.lane.b32.xlu0 %v1757, 126
    %v1767 = vpop.permute.xlu0 %1766
    %1768 = vrot.lane.b32.xlu0 %v1758, 126
    %v1769 = vpop.permute.xlu0 %1768
    %1770 = vrot.lane.b32.xlu0 %v1759, 126
    %v1771 = vpop.permute.xlu0 %1770
    %v1776 = vadd.f32 %v1672, %v1765
    %v1777 = vadd.f32 %v1673, %v1767
    %v1778 = vadd.f32 %v1674, %v1769
    %v1779 = vadd.f32 %v1675, %v1771
    %s1780 = sld [smem:[#allocation4 + $0x80]]
    %v1781 = vstv %s1780
    %v1782 = vmul.f32 %v1781, %v1554
    %v1783 = vmul.f32 %v1781, %v1555
    %v1784 = vmul.f32 %v1781, %v1556
    %v1785 = vmul.f32 %v1781, %v1557
    %1790 = vrot.lane.b32.xlu0 %v1782, 126
    %v1791 = vpop.permute.xlu0 %1790
    %1792 = vrot.lane.b32.xlu0 %v1783, 126
    %v1793 = vpop.permute.xlu0 %1792
    %1794 = vrot.lane.b32.xlu0 %v1784, 126
    %v1795 = vpop.permute.xlu0 %1794
    %1796 = vrot.lane.b32.xlu0 %v1785, 126
    %v1797 = vpop.permute.xlu0 %1796
    %v1802 = vadd.f32 %v1698, %v1791
    %v1803 = vadd.f32 %v1699, %v1793
    %v1804 = vadd.f32 %v1700, %v1795
    %v1805 = vadd.f32 %v1701, %v1797
    %v1806 = vld [vmem:[%s1553 + $0x1] sm:$0xff]
    %v1807 = vld [vmem:[%s1553 + $0x9] sm:$0x3f]
    %v1808 = vld [vmem:[%s1553 + $0x41] sm:$0xff]
    %v1809 = vld [vmem:[%s1553 + $0x49] sm:$0x3f]
    %s1810 = sld [smem:[#allocation4 + $0x15]]
    %v1811 = vstv %s1810
    %v1812 = vmul.f32 %v1811, %v1806
    %v1813 = vmul.f32 %v1811, %v1807
    %v1814 = vmul.f32 %v1811, %v1808
    %v1815 = vmul.f32 %v1811, %v1809
    %v1816 = vadd.f32 %v1724, %v1812
    %v1817 = vadd.f32 %v1725, %v1813
    %v1818 = vadd.f32 %v1726, %v1814
    %v1819 = vadd.f32 %v1727, %v1815
    %s1820 = sld [smem:[#allocation4 + $0x39]]
    %v1821 = vstv %s1820
    %v1822 = vmul.f32 %v1821, %v1806
    %v1823 = vmul.f32 %v1821, %v1807
    %v1824 = vmul.f32 %v1821, %v1808
    %v1825 = vmul.f32 %v1821, %v1809
    %v1826 = vadd.f32 %v1750, %v1822
    %v1827 = vadd.f32 %v1751, %v1823
    %v1828 = vadd.f32 %v1752, %v1824
    %v1829 = vadd.f32 %v1753, %v1825
    %s1830 = sld [smem:[#allocation4 + $0x5d]]
    %v1831 = vstv %s1830
    %v1832 = vmul.f32 %v1831, %v1806
    %v1833 = vmul.f32 %v1831, %v1807
    %v1834 = vmul.f32 %v1831, %v1808
    %v1835 = vmul.f32 %v1831, %v1809
    %v1836 = vadd.f32 %v1776, %v1832
    %v1837 = vadd.f32 %v1777, %v1833
    %v1838 = vadd.f32 %v1778, %v1834
    %v1839 = vadd.f32 %v1779, %v1835
    %s1840 = sld [smem:[#allocation4 + $0x81]]
    %v1841 = vstv %s1840
    %v1842 = vmul.f32 %v1841, %v1806
    %v1843 = vmul.f32 %v1841, %v1807
    %v1844 = vmul.f32 %v1841, %v1808
    %v1845 = vmul.f32 %v1841, %v1809
    %v1846 = vadd.f32 %v1802, %v1842
    %v1847 = vadd.f32 %v1803, %v1843
    %v1848 = vadd.f32 %v1804, %v1844
    %v1849 = vadd.f32 %v1805, %v1845
    %s1850 = sld [smem:[#allocation4 + $0x16]]
    %v1851 = vstv %s1850
    %v1852 = vmul.f32 %v1851, %v1806
    %v1853 = vmul.f32 %v1851, %v1807
    %v1854 = vmul.f32 %v1851, %v1808
    %v1855 = vmul.f32 %v1851, %v1809
    %1860 = vrot.lane.b32.xlu0 %v1852, 127
    %v1861 = vpop.permute.xlu0 %1860
    %1862 = vrot.lane.b32.xlu0 %v1853, 127
    %v1863 = vpop.permute.xlu0 %1862
    %1864 = vrot.lane.b32.xlu0 %v1854, 127
    %v1865 = vpop.permute.xlu0 %1864
    %1866 = vrot.lane.b32.xlu0 %v1855, 127
    %v1867 = vpop.permute.xlu0 %1866
    %v1872 = vadd.f32 %v1816, %v1861
    %v1873 = vadd.f32 %v1817, %v1863
    %v1874 = vadd.f32 %v1818, %v1865
    %v1875 = vadd.f32 %v1819, %v1867
    %s1876 = sld [smem:[#allocation4 + $0x3a]]
    %v1877 = vstv %s1876
    %v1878 = vmul.f32 %v1877, %v1806
    %v1879 = vmul.f32 %v1877, %v1807
    %v1880 = vmul.f32 %v1877, %v1808
    %v1881 = vmul.f32 %v1877, %v1809
    %1886 = vrot.lane.b32.xlu0 %v1878, 127
    %v1887 = vpop.permute.xlu0 %1886
    %1888 = vrot.lane.b32.xlu0 %v1879, 127
    %v1889 = vpop.permute.xlu0 %1888
    %1890 = vrot.lane.b32.xlu0 %v1880, 127
    %v1891 = vpop.permute.xlu0 %1890
    %1892 = vrot.lane.b32.xlu0 %v1881, 127
    %v1893 = vpop.permute.xlu0 %1892
    %v1898 = vadd.f32 %v1826, %v1887
    %v1899 = vadd.f32 %v1827, %v1889
    %v1900 = vadd.f32 %v1828, %v1891
    %v1901 = vadd.f32 %v1829, %v1893
    %s1902 = sld [smem:[#allocation4 + $0x5e]]
    %v1903 = vstv %s1902
    %v1904 = vmul.f32 %v1903, %v1806
    %v1905 = vmul.f32 %v1903, %v1807
    %v1906 = vmul.f32 %v1903, %v1808
    %v1907 = vmul.f32 %v1903, %v1809
    %1912 = vrot.lane.b32.xlu0 %v1904, 127
    %v1913 = vpop.permute.xlu0 %1912
    %1914 = vrot.lane.b32.xlu0 %v1905, 127
    %v1915 = vpop.permute.xlu0 %1914
    %1916 = vrot.lane.b32.xlu0 %v1906, 127
    %v1917 = vpop.permute.xlu0 %1916
    %1918 = vrot.lane.b32.xlu0 %v1907, 127
    %v1919 = vpop.permute.xlu0 %1918
    %v1924 = vadd.f32 %v1836, %v1913
    %v1925 = vadd.f32 %v1837, %v1915
    %v1926 = vadd.f32 %v1838, %v1917
    %v1927 = vadd.f32 %v1839, %v1919
    %s1928 = sld [smem:[#allocation4 + $0x82]]
    %v1929 = vstv %s1928
    %v1930 = vmul.f32 %v1929, %v1806
    %v1931 = vmul.f32 %v1929, %v1807
    %v1932 = vmul.f32 %v1929, %v1808
    %v1933 = vmul.f32 %v1929, %v1809
    %1938 = vrot.lane.b32.xlu0 %v1930, 127
    %v1939 = vpop.permute.xlu0 %1938
    %1940 = vrot.lane.b32.xlu0 %v1931, 127
    %v1941 = vpop.permute.xlu0 %1940
    %1942 = vrot.lane.b32.xlu0 %v1932, 127
    %v1943 = vpop.permute.xlu0 %1942
    %1944 = vrot.lane.b32.xlu0 %v1933, 127
    %v1945 = vpop.permute.xlu0 %1944
    %v1950 = vadd.f32 %v1846, %v1939
    %v1951 = vadd.f32 %v1847, %v1941
    %v1952 = vadd.f32 %v1848, %v1943
    %v1953 = vadd.f32 %v1849, %v1945
    %s1954 = sld [smem:[#allocation4 + $0x17]]
    %v1955 = vstv %s1954
    %v1956 = vmul.f32 %v1955, %v1806
    %v1957 = vmul.f32 %v1955, %v1807
    %v1958 = vmul.f32 %v1955, %v1808
    %v1959 = vmul.f32 %v1955, %v1809
    %1964 = vrot.lane.b32.xlu0 %v1956, 126
    %v1965 = vpop.permute.xlu0 %1964
    %1966 = vrot.lane.b32.xlu0 %v1957, 126
    %v1967 = vpop.permute.xlu0 %1966
    %1968 = vrot.lane.b32.xlu0 %v1958, 126
    %v1969 = vpop.permute.xlu0 %1968
    %1970 = vrot.lane.b32.xlu0 %v1959, 126
    %v1971 = vpop.permute.xlu0 %1970
    %v1976 = vadd.f32 %v1872, %v1965
    %v1977 = vadd.f32 %v1873, %v1967
    %v1978 = vadd.f32 %v1874, %v1969
    %v1979 = vadd.f32 %v1875, %v1971
    %s1980 = sld [smem:[#allocation4 + $0x3b]]
    %v1981 = vstv %s1980
    %v1982 = vmul.f32 %v1981, %v1806
    %v1983 = vmul.f32 %v1981, %v1807
    %v1984 = vmul.f32 %v1981, %v1808
    %v1985 = vmul.f32 %v1981, %v1809
    %1990 = vrot.lane.b32.xlu0 %v1982, 126
    %v1991 = vpop.permute.xlu0 %1990
    %1992 = vrot.lane.b32.xlu0 %v1983, 126
    %v1993 = vpop.permute.xlu0 %1992
    %1994 = vrot.lane.b32.xlu0 %v1984, 126
    %v1995 = vpop.permute.xlu0 %1994
    %1996 = vrot.lane.b32.xlu0 %v1985, 126
    %v1997 = vpop.permute.xlu0 %1996
    %v2002 = vadd.f32 %v1898, %v1991
    %v2003 = vadd.f32 %v1899, %v1993
    %v2004 = vadd.f32 %v1900, %v1995
    %v2005 = vadd.f32 %v1901, %v1997
    %s2006 = sld [smem:[#allocation4 + $0x5f]]
    %v2007 = vstv %s2006
    %v2008 = vmul.f32 %v2007, %v1806
    %v2009 = vmul.f32 %v2007, %v1807
    %v2010 = vmul.f32 %v2007, %v1808
    %v2011 = vmul.f32 %v2007, %v1809
    %2016 = vrot.lane.b32.xlu0 %v2008, 126
    %v2017 = vpop.permute.xlu0 %2016
    %2018 = vrot.lane.b32.xlu0 %v2009, 126
    %v2019 = vpop.permute.xlu0 %2018
    %2020 = vrot.lane.b32.xlu0 %v2010, 126
    %v2021 = vpop.permute.xlu0 %2020
    %2022 = vrot.lane.b32.xlu0 %v2011, 126
    %v2023 = vpop.permute.xlu0 %2022
    %v2028 = vadd.f32 %v1924, %v2017
    %v2029 = vadd.f32 %v1925, %v2019
    %v2030 = vadd.f32 %v1926, %v2021
    %v2031 = vadd.f32 %v1927, %v2023
    %s2032 = sld [smem:[#allocation4 + $0x83]]
    %v2033 = vstv %s2032
    %v2034 = vmul.f32 %v2033, %v1806
    %v2035 = vmul.f32 %v2033, %v1807
    %v2036 = vmul.f32 %v2033, %v1808
    %v2037 = vmul.f32 %v2033, %v1809
    %2042 = vrot.lane.b32.xlu0 %v2034, 126
    %v2043 = vpop.permute.xlu0 %2042
    %2044 = vrot.lane.b32.xlu0 %v2035, 126
    %v2045 = vpop.permute.xlu0 %2044
    %2046 = vrot.lane.b32.xlu0 %v2036, 126
    %v2047 = vpop.permute.xlu0 %2046
    %2048 = vrot.lane.b32.xlu0 %v2037, 126
    %v2049 = vpop.permute.xlu0 %2048
    %v2054 = vadd.f32 %v1950, %v2043
    %v2055 = vadd.f32 %v1951, %v2045
    %v2056 = vadd.f32 %v1952, %v2047
    %v2057 = vadd.f32 %v1953, %v2049
    %v2058 = vld [vmem:[%s1553 + $0x2] sm:$0xff]
    %v2059 = vld [vmem:[%s1553 + $0xa] sm:$0x3f]
    %v2060 = vld [vmem:[%s1553 + $0x42] sm:$0xff]
    %v2061 = vld [vmem:[%s1553 + $0x4a] sm:$0x3f]
    %s2062 = sld [smem:[#allocation4 + $0x18]]
    %v2063 = vstv %s2062
    %v2064 = vmul.f32 %v2063, %v2058
    %v2065 = vmul.f32 %v2063, %v2059
    %v2066 = vmul.f32 %v2063, %v2060
    %v2067 = vmul.f32 %v2063, %v2061
    %v2068 = vadd.f32 %v1976, %v2064
    %v2069 = vadd.f32 %v1977, %v2065
    %v2070 = vadd.f32 %v1978, %v2066
    %v2071 = vadd.f32 %v1979, %v2067
    %s2072 = sld [smem:[#allocation4 + $0x3c]]
    %v2073 = vstv %s2072
    %v2074 = vmul.f32 %v2073, %v2058
    %v2075 = vmul.f32 %v2073, %v2059
    %v2076 = vmul.f32 %v2073, %v2060
    %v2077 = vmul.f32 %v2073, %v2061
    %v2078 = vadd.f32 %v2002, %v2074
    %v2079 = vadd.f32 %v2003, %v2075
    %v2080 = vadd.f32 %v2004, %v2076
    %v2081 = vadd.f32 %v2005, %v2077
    %s2082 = sld [smem:[#allocation4 + $0x60]]
    %v2083 = vstv %s2082
    %v2084 = vmul.f32 %v2083, %v2058
    %v2085 = vmul.f32 %v2083, %v2059
    %v2086 = vmul.f32 %v2083, %v2060
    %v2087 = vmul.f32 %v2083, %v2061
    %v2088 = vadd.f32 %v2028, %v2084
    %v2089 = vadd.f32 %v2029, %v2085
    %v2090 = vadd.f32 %v2030, %v2086
    %v2091 = vadd.f32 %v2031, %v2087
    %s2092 = sld [smem:[#allocation4 + $0x84]]
    %v2093 = vstv %s2092
    %v2094 = vmul.f32 %v2093, %v2058
    %v2095 = vmul.f32 %v2093, %v2059
    %v2096 = vmul.f32 %v2093, %v2060
    %v2097 = vmul.f32 %v2093, %v2061
    %v2098 = vadd.f32 %v2054, %v2094
    %v2099 = vadd.f32 %v2055, %v2095
    %v2100 = vadd.f32 %v2056, %v2096
    %v2101 = vadd.f32 %v2057, %v2097
    %s2102 = sld [smem:[#allocation4 + $0x19]]
    %v2103 = vstv %s2102
    %v2104 = vmul.f32 %v2103, %v2058
    %v2105 = vmul.f32 %v2103, %v2059
    %v2106 = vmul.f32 %v2103, %v2060
    %v2107 = vmul.f32 %v2103, %v2061
    %2112 = vrot.lane.b32.xlu0 %v2104, 127
    %v2113 = vpop.permute.xlu0 %2112
    %2114 = vrot.lane.b32.xlu0 %v2105, 127
    %v2115 = vpop.permute.xlu0 %2114
    %2116 = vrot.lane.b32.xlu0 %v2106, 127
    %v2117 = vpop.permute.xlu0 %2116
    %2118 = vrot.lane.b32.xlu0 %v2107, 127
    %v2119 = vpop.permute.xlu0 %2118
    %v2124 = vadd.f32 %v2068, %v2113
    %v2125 = vadd.f32 %v2069, %v2115
    %v2126 = vadd.f32 %v2070, %v2117
    %v2127 = vadd.f32 %v2071, %v2119
    %s2128 = sld [smem:[#allocation4 + $0x3d]]
    %v2129 = vstv %s2128
    %v2130 = vmul.f32 %v2129, %v2058
    %v2131 = vmul.f32 %v2129, %v2059
    %v2132 = vmul.f32 %v2129, %v2060
    %v2133 = vmul.f32 %v2129, %v2061
    %2138 = vrot.lane.b32.xlu0 %v2130, 127
    %v2139 = vpop.permute.xlu0 %2138
    %2140 = vrot.lane.b32.xlu0 %v2131, 127
    %v2141 = vpop.permute.xlu0 %2140
    %2142 = vrot.lane.b32.xlu0 %v2132, 127
    %v2143 = vpop.permute.xlu0 %2142
    %2144 = vrot.lane.b32.xlu0 %v2133, 127
    %v2145 = vpop.permute.xlu0 %2144
    %v2150 = vadd.f32 %v2078, %v2139
    %v2151 = vadd.f32 %v2079, %v2141
    %v2152 = vadd.f32 %v2080, %v2143
    %v2153 = vadd.f32 %v2081, %v2145
    %s2154 = sld [smem:[#allocation4 + $0x61]]
    %v2155 = vstv %s2154
    %v2156 = vmul.f32 %v2155, %v2058
    %v2157 = vmul.f32 %v2155, %v2059
    %v2158 = vmul.f32 %v2155, %v2060
    %v2159 = vmul.f32 %v2155, %v2061
    %2164 = vrot.lane.b32.xlu0 %v2156, 127
    %v2165 = vpop.permute.xlu0 %2164
    %2166 = vrot.lane.b32.xlu0 %v2157, 127
    %v2167 = vpop.permute.xlu0 %2166
    %2168 = vrot.lane.b32.xlu0 %v2158, 127
    %v2169 = vpop.permute.xlu0 %2168
    %2170 = vrot.lane.b32.xlu0 %v2159, 127
    %v2171 = vpop.permute.xlu0 %2170
    %v2176 = vadd.f32 %v2088, %v2165
    %v2177 = vadd.f32 %v2089, %v2167
    %v2178 = vadd.f32 %v2090, %v2169
    %v2179 = vadd.f32 %v2091, %v2171
    %s2180 = sld [smem:[#allocation4 + $0x85]]
    %v2181 = vstv %s2180
    %v2182 = vmul.f32 %v2181, %v2058
    %v2183 = vmul.f32 %v2181, %v2059
    %v2184 = vmul.f32 %v2181, %v2060
    %v2185 = vmul.f32 %v2181, %v2061
    %2190 = vrot.lane.b32.xlu0 %v2182, 127
    %v2191 = vpop.permute.xlu0 %2190
    %2192 = vrot.lane.b32.xlu0 %v2183, 127
    %v2193 = vpop.permute.xlu0 %2192
    %2194 = vrot.lane.b32.xlu0 %v2184, 127
    %v2195 = vpop.permute.xlu0 %2194
    %2196 = vrot.lane.b32.xlu0 %v2185, 127
    %v2197 = vpop.permute.xlu0 %2196
    %v2202 = vadd.f32 %v2098, %v2191
    %v2203 = vadd.f32 %v2099, %v2193
    %v2204 = vadd.f32 %v2100, %v2195
    %v2205 = vadd.f32 %v2101, %v2197
    %s2206 = sld [smem:[#allocation4 + $0x1a]]
    %v2207 = vstv %s2206
    %v2208 = vmul.f32 %v2207, %v2058
    %v2209 = vmul.f32 %v2207, %v2059
    %v2210 = vmul.f32 %v2207, %v2060
    %v2211 = vmul.f32 %v2207, %v2061
    %2216 = vrot.lane.b32.xlu0 %v2208, 126
    %v2217 = vpop.permute.xlu0 %2216
    %2218 = vrot.lane.b32.xlu0 %v2209, 126
    %v2219 = vpop.permute.xlu0 %2218
    %2220 = vrot.lane.b32.xlu0 %v2210, 126
    %v2221 = vpop.permute.xlu0 %2220
    %2222 = vrot.lane.b32.xlu0 %v2211, 126
    %v2223 = vpop.permute.xlu0 %2222
    %v2228 = vadd.f32 %v2124, %v2217
    %v2229 = vadd.f32 %v2125, %v2219
    %v2230 = vadd.f32 %v2126, %v2221
    %v2231 = vadd.f32 %v2127, %v2223
    %s2232 = sld [smem:[#allocation4 + $0x3e]]
    %v2233 = vstv %s2232
    %v2234 = vmul.f32 %v2233, %v2058
    %v2235 = vmul.f32 %v2233, %v2059
    %v2236 = vmul.f32 %v2233, %v2060
    %v2237 = vmul.f32 %v2233, %v2061
    %2242 = vrot.lane.b32.xlu0 %v2234, 126
    %v2243 = vpop.permute.xlu0 %2242
    %2244 = vrot.lane.b32.xlu0 %v2235, 126
    %v2245 = vpop.permute.xlu0 %2244
    %2246 = vrot.lane.b32.xlu0 %v2236, 126
    %v2247 = vpop.permute.xlu0 %2246
    %2248 = vrot.lane.b32.xlu0 %v2237, 126
    %v2249 = vpop.permute.xlu0 %2248
    %v2254 = vadd.f32 %v2150, %v2243
    %v2255 = vadd.f32 %v2151, %v2245
    %v2256 = vadd.f32 %v2152, %v2247
    %v2257 = vadd.f32 %v2153, %v2249
    %s2258 = sld [smem:[#allocation4 + $0x62]]
    %v2259 = vstv %s2258
    %v2260 = vmul.f32 %v2259, %v2058
    %v2261 = vmul.f32 %v2259, %v2059
    %v2262 = vmul.f32 %v2259, %v2060
    %v2263 = vmul.f32 %v2259, %v2061
    %2268 = vrot.lane.b32.xlu0 %v2260, 126
    %v2269 = vpop.permute.xlu0 %2268
    %2270 = vrot.lane.b32.xlu0 %v2261, 126
    %v2271 = vpop.permute.xlu0 %2270
    %2272 = vrot.lane.b32.xlu0 %v2262, 126
    %v2273 = vpop.permute.xlu0 %2272
    %2274 = vrot.lane.b32.xlu0 %v2263, 126
    %v2275 = vpop.permute.xlu0 %2274
    %v2280 = vadd.f32 %v2176, %v2269
    %v2281 = vadd.f32 %v2177, %v2271
    %v2282 = vadd.f32 %v2178, %v2273
    %v2283 = vadd.f32 %v2179, %v2275
    %s2284 = sld [smem:[#allocation4 + $0x86]]
    %v2285 = vstv %s2284
    %v2286 = vmul.f32 %v2285, %v2058
    %v2287 = vmul.f32 %v2285, %v2059
    %v2288 = vmul.f32 %v2285, %v2060
    %v2289 = vmul.f32 %v2285, %v2061
    %2294 = vrot.lane.b32.xlu0 %v2286, 126
    %v2295 = vpop.permute.xlu0 %2294
    %2296 = vrot.lane.b32.xlu0 %v2287, 126
    %v2297 = vpop.permute.xlu0 %2296
    %2298 = vrot.lane.b32.xlu0 %v2288, 126
    %v2299 = vpop.permute.xlu0 %2298
    %2300 = vrot.lane.b32.xlu0 %v2289, 126
    %v2301 = vpop.permute.xlu0 %2300
    %v2306 = vadd.f32 %v2202, %v2295
    %v2307 = vadd.f32 %v2203, %v2297
    %v2308 = vadd.f32 %v2204, %v2299
    %v2309 = vadd.f32 %v2205, %v2301
    %s2310 = scalar_lea.vmem %s4, 48
    %v2311 = vld [vmem:[%s2310] sm:$0xff]
    %v2312 = vld [vmem:[%s2310 + $0x8] sm:$0x3f]
    %v2313 = vld [vmem:[%s2310 + $0x40] sm:$0xff]
    %v2314 = vld [vmem:[%s2310 + $0x48] sm:$0x3f]
    %s2315 = sld [smem:[#allocation4 + $0x1b]]
    %v2316 = vstv %s2315
    %v2317 = vmul.f32 %v2316, %v2311
    %v2318 = vmul.f32 %v2316, %v2312
    %v2319 = vmul.f32 %v2316, %v2313
    %v2320 = vmul.f32 %v2316, %v2314
    %v2321 = vadd.f32 %v2228, %v2317
    %v2322 = vadd.f32 %v2229, %v2318
    %v2323 = vadd.f32 %v2230, %v2319
    %v2324 = vadd.f32 %v2231, %v2320
    %s2325 = sld [smem:[#allocation4 + $0x3f]]
    %v2326 = vstv %s2325
    %v2327 = vmul.f32 %v2326, %v2311
    %v2328 = vmul.f32 %v2326, %v2312
    %v2329 = vmul.f32 %v2326, %v2313
    %v2330 = vmul.f32 %v2326, %v2314
    %v2331 = vadd.f32 %v2254, %v2327
    %v2332 = vadd.f32 %v2255, %v2328
    %v2333 = vadd.f32 %v2256, %v2329
    %v2334 = vadd.f32 %v2257, %v2330
    %s2335 = sld [smem:[#allocation4 + $0x63]]
    %v2336 = vstv %s2335
    %v2337 = vmul.f32 %v2336, %v2311
    %v2338 = vmul.f32 %v2336, %v2312
    %v2339 = vmul.f32 %v2336, %v2313
    %v2340 = vmul.f32 %v2336, %v2314
    %v2341 = vadd.f32 %v2280, %v2337
    %v2342 = vadd.f32 %v2281, %v2338
    %v2343 = vadd.f32 %v2282, %v2339
    %v2344 = vadd.f32 %v2283, %v2340
    %s2345 = sld [smem:[#allocation4 + $0x87]]
    %v2346 = vstv %s2345
    %v2347 = vmul.f32 %v2346, %v2311
    %v2348 = vmul.f32 %v2346, %v2312
    %v2349 = vmul.f32 %v2346, %v2313
    %v2350 = vmul.f32 %v2346, %v2314
    %v2351 = vadd.f32 %v2306, %v2347
    %v2352 = vadd.f32 %v2307, %v2348
    %v2353 = vadd.f32 %v2308, %v2349
    %v2354 = vadd.f32 %v2309, %v2350
    %s2355 = sld [smem:[#allocation4 + $0x1c]]
    %v2356 = vstv %s2355
    %v2357 = vmul.f32 %v2356, %v2311
    %v2358 = vmul.f32 %v2356, %v2312
    %v2359 = vmul.f32 %v2356, %v2313
    %v2360 = vmul.f32 %v2356, %v2314
    %2365 = vrot.lane.b32.xlu0 %v2357, 127
    %v2366 = vpop.permute.xlu0 %2365
    %2367 = vrot.lane.b32.xlu0 %v2358, 127
    %v2368 = vpop.permute.xlu0 %2367
    %2369 = vrot.lane.b32.xlu0 %v2359, 127
    %v2370 = vpop.permute.xlu0 %2369
    %2371 = vrot.lane.b32.xlu0 %v2360, 127
    %v2372 = vpop.permute.xlu0 %2371
    %v2377 = vadd.f32 %v2321, %v2366
    %v2378 = vadd.f32 %v2322, %v2368
    %v2379 = vadd.f32 %v2323, %v2370
    %v2380 = vadd.f32 %v2324, %v2372
    %s2381 = sld [smem:[#allocation4 + $0x40]]
    %v2382 = vstv %s2381
    %v2383 = vmul.f32 %v2382, %v2311
    %v2384 = vmul.f32 %v2382, %v2312
    %v2385 = vmul.f32 %v2382, %v2313
    %v2386 = vmul.f32 %v2382, %v2314
    %2391 = vrot.lane.b32.xlu0 %v2383, 127
    %v2392 = vpop.permute.xlu0 %2391
    %2393 = vrot.lane.b32.xlu0 %v2384, 127
    %v2394 = vpop.permute.xlu0 %2393
    %2395 = vrot.lane.b32.xlu0 %v2385, 127
    %v2396 = vpop.permute.xlu0 %2395
    %2397 = vrot.lane.b32.xlu0 %v2386, 127
    %v2398 = vpop.permute.xlu0 %2397
    %v2403 = vadd.f32 %v2331, %v2392
    %v2404 = vadd.f32 %v2332, %v2394
    %v2405 = vadd.f32 %v2333, %v2396
    %v2406 = vadd.f32 %v2334, %v2398
    %s2407 = sld [smem:[#allocation4 + $0x64]]
    %v2408 = vstv %s2407
    %v2409 = vmul.f32 %v2408, %v2311
    %v2410 = vmul.f32 %v2408, %v2312
    %v2411 = vmul.f32 %v2408, %v2313
    %v2412 = vmul.f32 %v2408, %v2314
    %2417 = vrot.lane.b32.xlu0 %v2409, 127
    %v2418 = vpop.permute.xlu0 %2417
    %2419 = vrot.lane.b32.xlu0 %v2410, 127
    %v2420 = vpop.permute.xlu0 %2419
    %2421 = vrot.lane.b32.xlu0 %v2411, 127
    %v2422 = vpop.permute.xlu0 %2421
    %2423 = vrot.lane.b32.xlu0 %v2412, 127
    %v2424 = vpop.permute.xlu0 %2423
    %v2429 = vadd.f32 %v2341, %v2418
    %v2430 = vadd.f32 %v2342, %v2420
    %v2431 = vadd.f32 %v2343, %v2422
    %v2432 = vadd.f32 %v2344, %v2424
    %s2433 = sld [smem:[#allocation4 + $0x88]]
    %v2434 = vstv %s2433
    %v2435 = vmul.f32 %v2434, %v2311
    %v2436 = vmul.f32 %v2434, %v2312
    %v2437 = vmul.f32 %v2434, %v2313
    %v2438 = vmul.f32 %v2434, %v2314
    %2443 = vrot.lane.b32.xlu0 %v2435, 127
    %v2444 = vpop.permute.xlu0 %2443
    %2445 = vrot.lane.b32.xlu0 %v2436, 127
    %v2446 = vpop.permute.xlu0 %2445
    %2447 = vrot.lane.b32.xlu0 %v2437, 127
    %v2448 = vpop.permute.xlu0 %2447
    %2449 = vrot.lane.b32.xlu0 %v2438, 127
    %v2450 = vpop.permute.xlu0 %2449
    %v2455 = vadd.f32 %v2351, %v2444
    %v2456 = vadd.f32 %v2352, %v2446
    %v2457 = vadd.f32 %v2353, %v2448
    %v2458 = vadd.f32 %v2354, %v2450
    %s2459 = sld [smem:[#allocation4 + $0x1d]]
    %v2460 = vstv %s2459
    %v2461 = vmul.f32 %v2460, %v2311
    %v2462 = vmul.f32 %v2460, %v2312
    %v2463 = vmul.f32 %v2460, %v2313
    %v2464 = vmul.f32 %v2460, %v2314
    %2469 = vrot.lane.b32.xlu0 %v2461, 126
    %v2470 = vpop.permute.xlu0 %2469
    %2471 = vrot.lane.b32.xlu0 %v2462, 126
    %v2472 = vpop.permute.xlu0 %2471
    %2473 = vrot.lane.b32.xlu0 %v2463, 126
    %v2474 = vpop.permute.xlu0 %2473
    %2475 = vrot.lane.b32.xlu0 %v2464, 126
    %v2476 = vpop.permute.xlu0 %2475
    %v2481 = vadd.f32 %v2377, %v2470
    %v2482 = vadd.f32 %v2378, %v2472
    %v2483 = vadd.f32 %v2379, %v2474
    %v2484 = vadd.f32 %v2380, %v2476
    %s2485 = sld [smem:[#allocation4 + $0x41]]
    %v2486 = vstv %s2485
    %v2487 = vmul.f32 %v2486, %v2311
    %v2488 = vmul.f32 %v2486, %v2312
    %v2489 = vmul.f32 %v2486, %v2313
    %v2490 = vmul.f32 %v2486, %v2314
    %2495 = vrot.lane.b32.xlu0 %v2487, 126
    %v2496 = vpop.permute.xlu0 %2495
    %2497 = vrot.lane.b32.xlu0 %v2488, 126
    %v2498 = vpop.permute.xlu0 %2497
    %2499 = vrot.lane.b32.xlu0 %v2489, 126
    %v2500 = vpop.permute.xlu0 %2499
    %2501 = vrot.lane.b32.xlu0 %v2490, 126
    %v2502 = vpop.permute.xlu0 %2501
    %v2507 = vadd.f32 %v2403, %v2496
    %v2508 = vadd.f32 %v2404, %v2498
    %v2509 = vadd.f32 %v2405, %v2500
    %v2510 = vadd.f32 %v2406, %v2502
    %s2511 = sld [smem:[#allocation4 + $0x65]]
    %v2512 = vstv %s2511
    %v2513 = vmul.f32 %v2512, %v2311
    %v2514 = vmul.f32 %v2512, %v2312
    %v2515 = vmul.f32 %v2512, %v2313
    %v2516 = vmul.f32 %v2512, %v2314
    %2521 = vrot.lane.b32.xlu0 %v2513, 126
    %v2522 = vpop.permute.xlu0 %2521
    %2523 = vrot.lane.b32.xlu0 %v2514, 126
    %v2524 = vpop.permute.xlu0 %2523
    %2525 = vrot.lane.b32.xlu0 %v2515, 126
    %v2526 = vpop.permute.xlu0 %2525
    %2527 = vrot.lane.b32.xlu0 %v2516, 126
    %v2528 = vpop.permute.xlu0 %2527
    %v2533 = vadd.f32 %v2429, %v2522
    %v2534 = vadd.f32 %v2430, %v2524
    %v2535 = vadd.f32 %v2431, %v2526
    %v2536 = vadd.f32 %v2432, %v2528
    %s2537 = sld [smem:[#allocation4 + $0x89]]
    %v2538 = vstv %s2537
    %v2539 = vmul.f32 %v2538, %v2311
    %v2540 = vmul.f32 %v2538, %v2312
    %v2541 = vmul.f32 %v2538, %v2313
    %v2542 = vmul.f32 %v2538, %v2314
    %2547 = vrot.lane.b32.xlu0 %v2539, 126
    %v2548 = vpop.permute.xlu0 %2547
    %2549 = vrot.lane.b32.xlu0 %v2540, 126
    %v2550 = vpop.permute.xlu0 %2549
    %2551 = vrot.lane.b32.xlu0 %v2541, 126
    %v2552 = vpop.permute.xlu0 %2551
    %2553 = vrot.lane.b32.xlu0 %v2542, 126
    %v2554 = vpop.permute.xlu0 %2553
    %v2559 = vadd.f32 %v2455, %v2548
    %v2560 = vadd.f32 %v2456, %v2550
    %v2561 = vadd.f32 %v2457, %v2552
    %v2562 = vadd.f32 %v2458, %v2554
    %v2563 = vld [vmem:[%s2310 + $0x1] sm:$0xff]
    %v2564 = vld [vmem:[%s2310 + $0x9] sm:$0x3f]
    %v2565 = vld [vmem:[%s2310 + $0x41] sm:$0xff]
    %v2566 = vld [vmem:[%s2310 + $0x49] sm:$0x3f]
    %s2567 = sld [smem:[#allocation4 + $0x1e]]
    %v2568 = vstv %s2567
    %v2569 = vmul.f32 %v2568, %v2563
    %v2570 = vmul.f32 %v2568, %v2564
    %v2571 = vmul.f32 %v2568, %v2565
    %v2572 = vmul.f32 %v2568, %v2566
    %v2573 = vadd.f32 %v2481, %v2569
    %v2574 = vadd.f32 %v2482, %v2570
    %v2575 = vadd.f32 %v2483, %v2571
    %v2576 = vadd.f32 %v2484, %v2572
    %s2577 = sld [smem:[#allocation4 + $0x42]]
    %v2578 = vstv %s2577
    %v2579 = vmul.f32 %v2578, %v2563
    %v2580 = vmul.f32 %v2578, %v2564
    %v2581 = vmul.f32 %v2578, %v2565
    %v2582 = vmul.f32 %v2578, %v2566
    %v2583 = vadd.f32 %v2507, %v2579
    %v2584 = vadd.f32 %v2508, %v2580
    %v2585 = vadd.f32 %v2509, %v2581
    %v2586 = vadd.f32 %v2510, %v2582
    %s2587 = sld [smem:[#allocation4 + $0x66]]
    %v2588 = vstv %s2587
    %v2589 = vmul.f32 %v2588, %v2563
    %v2590 = vmul.f32 %v2588, %v2564
    %v2591 = vmul.f32 %v2588, %v2565
    %v2592 = vmul.f32 %v2588, %v2566
    %v2593 = vadd.f32 %v2533, %v2589
    %v2594 = vadd.f32 %v2534, %v2590
    %v2595 = vadd.f32 %v2535, %v2591
    %v2596 = vadd.f32 %v2536, %v2592
    %s2597 = sld [smem:[#allocation4 + $0x8a]]
    %v2598 = vstv %s2597
    %v2599 = vmul.f32 %v2598, %v2563
    %v2600 = vmul.f32 %v2598, %v2564
    %v2601 = vmul.f32 %v2598, %v2565
    %v2602 = vmul.f32 %v2598, %v2566
    %v2603 = vadd.f32 %v2559, %v2599
    %v2604 = vadd.f32 %v2560, %v2600
    %v2605 = vadd.f32 %v2561, %v2601
    %v2606 = vadd.f32 %v2562, %v2602
    %s2607 = sld [smem:[#allocation4 + $0x1f]]
    %v2608 = vstv %s2607
    %v2609 = vmul.f32 %v2608, %v2563
    %v2610 = vmul.f32 %v2608, %v2564
    %v2611 = vmul.f32 %v2608, %v2565
    %v2612 = vmul.f32 %v2608, %v2566
    %2617 = vrot.lane.b32.xlu0 %v2609, 127
    %v2618 = vpop.permute.xlu0 %2617
    %2619 = vrot.lane.b32.xlu0 %v2610, 127
    %v2620 = vpop.permute.xlu0 %2619
    %2621 = vrot.lane.b32.xlu0 %v2611, 127
    %v2622 = vpop.permute.xlu0 %2621
    %2623 = vrot.lane.b32.xlu0 %v2612, 127
    %v2624 = vpop.permute.xlu0 %2623
    %v2629 = vadd.f32 %v2573, %v2618
    %v2630 = vadd.f32 %v2574, %v2620
    %v2631 = vadd.f32 %v2575, %v2622
    %v2632 = vadd.f32 %v2576, %v2624
    %s2633 = sld [smem:[#allocation4 + $0x43]]
    %v2634 = vstv %s2633
    %v2635 = vmul.f32 %v2634, %v2563
    %v2636 = vmul.f32 %v2634, %v2564
    %v2637 = vmul.f32 %v2634, %v2565
    %v2638 = vmul.f32 %v2634, %v2566
    %2643 = vrot.lane.b32.xlu0 %v2635, 127
    %v2644 = vpop.permute.xlu0 %2643
    %2645 = vrot.lane.b32.xlu0 %v2636, 127
    %v2646 = vpop.permute.xlu0 %2645
    %2647 = vrot.lane.b32.xlu0 %v2637, 127
    %v2648 = vpop.permute.xlu0 %2647
    %2649 = vrot.lane.b32.xlu0 %v2638, 127
    %v2650 = vpop.permute.xlu0 %2649
    %v2655 = vadd.f32 %v2583, %v2644
    %v2656 = vadd.f32 %v2584, %v2646
    %v2657 = vadd.f32 %v2585, %v2648
    %v2658 = vadd.f32 %v2586, %v2650
    %s2659 = sld [smem:[#allocation4 + $0x67]]
    %v2660 = vstv %s2659
    %v2661 = vmul.f32 %v2660, %v2563
    %v2662 = vmul.f32 %v2660, %v2564
    %v2663 = vmul.f32 %v2660, %v2565
    %v2664 = vmul.f32 %v2660, %v2566
    %2669 = vrot.lane.b32.xlu0 %v2661, 127
    %v2670 = vpop.permute.xlu0 %2669
    %2671 = vrot.lane.b32.xlu0 %v2662, 127
    %v2672 = vpop.permute.xlu0 %2671
    %2673 = vrot.lane.b32.xlu0 %v2663, 127
    %v2674 = vpop.permute.xlu0 %2673
    %2675 = vrot.lane.b32.xlu0 %v2664, 127
    %v2676 = vpop.permute.xlu0 %2675
    %v2681 = vadd.f32 %v2593, %v2670
    %v2682 = vadd.f32 %v2594, %v2672
    %v2683 = vadd.f32 %v2595, %v2674
    %v2684 = vadd.f32 %v2596, %v2676
    %s2685 = sld [smem:[#allocation4 + $0x8b]]
    %v2686 = vstv %s2685
    %v2687 = vmul.f32 %v2686, %v2563
    %v2688 = vmul.f32 %v2686, %v2564
    %v2689 = vmul.f32 %v2686, %v2565
    %v2690 = vmul.f32 %v2686, %v2566
    %2695 = vrot.lane.b32.xlu0 %v2687, 127
    %v2696 = vpop.permute.xlu0 %2695
    %2697 = vrot.lane.b32.xlu0 %v2688, 127
    %v2698 = vpop.permute.xlu0 %2697
    %2699 = vrot.lane.b32.xlu0 %v2689, 127
    %v2700 = vpop.permute.xlu0 %2699
    %2701 = vrot.lane.b32.xlu0 %v2690, 127
    %v2702 = vpop.permute.xlu0 %2701
    %v2707 = vadd.f32 %v2603, %v2696
    %v2708 = vadd.f32 %v2604, %v2698
    %v2709 = vadd.f32 %v2605, %v2700
    %v2710 = vadd.f32 %v2606, %v2702
    %s2711 = sld [smem:[#allocation4 + $0x20]]
    %v2712 = vstv %s2711
    %v2713 = vmul.f32 %v2712, %v2563
    %v2714 = vmul.f32 %v2712, %v2564
    %v2715 = vmul.f32 %v2712, %v2565
    %v2716 = vmul.f32 %v2712, %v2566
    %2721 = vrot.lane.b32.xlu0 %v2713, 126
    %v2722 = vpop.permute.xlu0 %2721
    %2723 = vrot.lane.b32.xlu0 %v2714, 126
    %v2724 = vpop.permute.xlu0 %2723
    %2725 = vrot.lane.b32.xlu0 %v2715, 126
    %v2726 = vpop.permute.xlu0 %2725
    %2727 = vrot.lane.b32.xlu0 %v2716, 126
    %v2728 = vpop.permute.xlu0 %2727
    %v2733 = vadd.f32 %v2629, %v2722
    %v2734 = vadd.f32 %v2630, %v2724
    %v2735 = vadd.f32 %v2631, %v2726
    %v2736 = vadd.f32 %v2632, %v2728
    %s2737 = sld [smem:[#allocation4 + $0x44]]
    %v2738 = vstv %s2737
    %v2739 = vmul.f32 %v2738, %v2563
    %v2740 = vmul.f32 %v2738, %v2564
    %v2741 = vmul.f32 %v2738, %v2565
    %v2742 = vmul.f32 %v2738, %v2566
    %2747 = vrot.lane.b32.xlu0 %v2739, 126
    %v2748 = vpop.permute.xlu0 %2747
    %2749 = vrot.lane.b32.xlu0 %v2740, 126
    %v2750 = vpop.permute.xlu0 %2749
    %2751 = vrot.lane.b32.xlu0 %v2741, 126
    %v2752 = vpop.permute.xlu0 %2751
    %2753 = vrot.lane.b32.xlu0 %v2742, 126
    %v2754 = vpop.permute.xlu0 %2753
    %v2759 = vadd.f32 %v2655, %v2748
    %v2760 = vadd.f32 %v2656, %v2750
    %v2761 = vadd.f32 %v2657, %v2752
    %v2762 = vadd.f32 %v2658, %v2754
    %s2763 = sld [smem:[#allocation4 + $0x68]]
    %v2764 = vstv %s2763
    %v2765 = vmul.f32 %v2764, %v2563
    %v2766 = vmul.f32 %v2764, %v2564
    %v2767 = vmul.f32 %v2764, %v2565
    %v2768 = vmul.f32 %v2764, %v2566
    %2773 = vrot.lane.b32.xlu0 %v2765, 126
    %v2774 = vpop.permute.xlu0 %2773
    %2775 = vrot.lane.b32.xlu0 %v2766, 126
    %v2776 = vpop.permute.xlu0 %2775
    %2777 = vrot.lane.b32.xlu0 %v2767, 126
    %v2778 = vpop.permute.xlu0 %2777
    %2779 = vrot.lane.b32.xlu0 %v2768, 126
    %v2780 = vpop.permute.xlu0 %2779
    %v2785 = vadd.f32 %v2681, %v2774
    %v2786 = vadd.f32 %v2682, %v2776
    %v2787 = vadd.f32 %v2683, %v2778
    %v2788 = vadd.f32 %v2684, %v2780
    %s2789 = sld [smem:[#allocation4 + $0x8c]]
    %v2790 = vstv %s2789
    %v2791 = vmul.f32 %v2790, %v2563
    %v2792 = vmul.f32 %v2790, %v2564
    %v2793 = vmul.f32 %v2790, %v2565
    %v2794 = vmul.f32 %v2790, %v2566
    %2799 = vrot.lane.b32.xlu0 %v2791, 126
    %v2800 = vpop.permute.xlu0 %2799
    %2801 = vrot.lane.b32.xlu0 %v2792, 126
    %v2802 = vpop.permute.xlu0 %2801
    %2803 = vrot.lane.b32.xlu0 %v2793, 126
    %v2804 = vpop.permute.xlu0 %2803
    %2805 = vrot.lane.b32.xlu0 %v2794, 126
    %v2806 = vpop.permute.xlu0 %2805
    %v2811 = vadd.f32 %v2707, %v2800
    %v2812 = vadd.f32 %v2708, %v2802
    %v2813 = vadd.f32 %v2709, %v2804
    %v2814 = vadd.f32 %v2710, %v2806
    %v2815 = vld [vmem:[%s2310 + $0x2] sm:$0xff]
    %v2816 = vld [vmem:[%s2310 + $0xa] sm:$0x3f]
    %v2817 = vld [vmem:[%s2310 + $0x42] sm:$0xff]
    %v2818 = vld [vmem:[%s2310 + $0x4a] sm:$0x3f]
    %s2819 = sld [smem:[#allocation4 + $0x21]]
    %v2820 = vstv %s2819
    %v2821 = vmul.f32 %v2820, %v2815
    %v2822 = vmul.f32 %v2820, %v2816
    %v2823 = vmul.f32 %v2820, %v2817
    %v2824 = vmul.f32 %v2820, %v2818
    %v2825 = vadd.f32 %v2733, %v2821
    %v2826 = vadd.f32 %v2734, %v2822
    %v2827 = vadd.f32 %v2735, %v2823
    %v2828 = vadd.f32 %v2736, %v2824
    %s2829 = sld [smem:[#allocation4 + $0x45]]
    %v2830 = vstv %s2829
    %v2831 = vmul.f32 %v2830, %v2815
    %v2832 = vmul.f32 %v2830, %v2816
    %v2833 = vmul.f32 %v2830, %v2817
    %v2834 = vmul.f32 %v2830, %v2818
    %v2835 = vadd.f32 %v2759, %v2831
    %v2836 = vadd.f32 %v2760, %v2832
    %v2837 = vadd.f32 %v2761, %v2833
    %v2838 = vadd.f32 %v2762, %v2834
    %s2839 = sld [smem:[#allocation4 + $0x69]]
    %v2840 = vstv %s2839
    %v2841 = vmul.f32 %v2840, %v2815
    %v2842 = vmul.f32 %v2840, %v2816
    %v2843 = vmul.f32 %v2840, %v2817
    %v2844 = vmul.f32 %v2840, %v2818
    %v2845 = vadd.f32 %v2785, %v2841
    %v2846 = vadd.f32 %v2786, %v2842
    %v2847 = vadd.f32 %v2787, %v2843
    %v2848 = vadd.f32 %v2788, %v2844
    %s2849 = sld [smem:[#allocation4 + $0x8d]]
    %v2850 = vstv %s2849
    %v2851 = vmul.f32 %v2850, %v2815
    %v2852 = vmul.f32 %v2850, %v2816
    %v2853 = vmul.f32 %v2850, %v2817
    %v2854 = vmul.f32 %v2850, %v2818
    %v2855 = vadd.f32 %v2811, %v2851
    %v2856 = vadd.f32 %v2812, %v2852
    %v2857 = vadd.f32 %v2813, %v2853
    %v2858 = vadd.f32 %v2814, %v2854
    %s2859 = sld [smem:[#allocation4 + $0x22]]
    %v2860 = vstv %s2859
    %v2861 = vmul.f32 %v2860, %v2815
    %v2862 = vmul.f32 %v2860, %v2816
    %v2863 = vmul.f32 %v2860, %v2817
    %v2864 = vmul.f32 %v2860, %v2818
    %2869 = vrot.lane.b32.xlu0 %v2861, 127
    %v2870 = vpop.permute.xlu0 %2869
    %2871 = vrot.lane.b32.xlu0 %v2862, 127
    %v2872 = vpop.permute.xlu0 %2871
    %2873 = vrot.lane.b32.xlu0 %v2863, 127
    %v2874 = vpop.permute.xlu0 %2873
    %2875 = vrot.lane.b32.xlu0 %v2864, 127
    %v2876 = vpop.permute.xlu0 %2875
    %v2881 = vadd.f32 %v2825, %v2870
    %v2882 = vadd.f32 %v2826, %v2872
    %v2883 = vadd.f32 %v2827, %v2874
    %v2884 = vadd.f32 %v2828, %v2876
    %s2885 = sld [smem:[#allocation4 + $0x46]]
    %v2886 = vstv %s2885
    %v2887 = vmul.f32 %v2886, %v2815
    %v2888 = vmul.f32 %v2886, %v2816
    %v2889 = vmul.f32 %v2886, %v2817
    %v2890 = vmul.f32 %v2886, %v2818
    %2895 = vrot.lane.b32.xlu0 %v2887, 127
    %v2896 = vpop.permute.xlu0 %2895
    %2897 = vrot.lane.b32.xlu0 %v2888, 127
    %v2898 = vpop.permute.xlu0 %2897
    %2899 = vrot.lane.b32.xlu0 %v2889, 127
    %v2900 = vpop.permute.xlu0 %2899
    %2901 = vrot.lane.b32.xlu0 %v2890, 127
    %v2902 = vpop.permute.xlu0 %2901
    %v2907 = vadd.f32 %v2835, %v2896
    %v2908 = vadd.f32 %v2836, %v2898
    %v2909 = vadd.f32 %v2837, %v2900
    %v2910 = vadd.f32 %v2838, %v2902
    %s2911 = sld [smem:[#allocation4 + $0x6a]]
    %v2912 = vstv %s2911
    %v2913 = vmul.f32 %v2912, %v2815
    %v2914 = vmul.f32 %v2912, %v2816
    %v2915 = vmul.f32 %v2912, %v2817
    %v2916 = vmul.f32 %v2912, %v2818
    %2921 = vrot.lane.b32.xlu0 %v2913, 127
    %v2922 = vpop.permute.xlu0 %2921
    %2923 = vrot.lane.b32.xlu0 %v2914, 127
    %v2924 = vpop.permute.xlu0 %2923
    %2925 = vrot.lane.b32.xlu0 %v2915, 127
    %v2926 = vpop.permute.xlu0 %2925
    %2927 = vrot.lane.b32.xlu0 %v2916, 127
    %v2928 = vpop.permute.xlu0 %2927
    %v2933 = vadd.f32 %v2845, %v2922
    %v2934 = vadd.f32 %v2846, %v2924
    %v2935 = vadd.f32 %v2847, %v2926
    %v2936 = vadd.f32 %v2848, %v2928
    %s2937 = sld [smem:[#allocation4 + $0x8e]]
    %v2938 = vstv %s2937
    %v2939 = vmul.f32 %v2938, %v2815
    %v2940 = vmul.f32 %v2938, %v2816
    %v2941 = vmul.f32 %v2938, %v2817
    %v2942 = vmul.f32 %v2938, %v2818
    %2947 = vrot.lane.b32.xlu0 %v2939, 127
    %v2948 = vpop.permute.xlu0 %2947
    %2949 = vrot.lane.b32.xlu0 %v2940, 127
    %v2950 = vpop.permute.xlu0 %2949
    %2951 = vrot.lane.b32.xlu0 %v2941, 127
    %v2952 = vpop.permute.xlu0 %2951
    %2953 = vrot.lane.b32.xlu0 %v2942, 127
    %v2954 = vpop.permute.xlu0 %2953
    %v2959 = vadd.f32 %v2855, %v2948
    %v2960 = vadd.f32 %v2856, %v2950
    %v2961 = vadd.f32 %v2857, %v2952
    %v2962 = vadd.f32 %v2858, %v2954
    %s2963 = sld [smem:[#allocation4 + $0x23]]
    %v2964 = vstv %s2963
    %v2965 = vmul.f32 %v2964, %v2815
    %v2966 = vmul.f32 %v2964, %v2816
    %v2967 = vmul.f32 %v2964, %v2817
    %v2968 = vmul.f32 %v2964, %v2818
    %2973 = vrot.lane.b32.xlu0 %v2965, 126
    %v2974 = vpop.permute.xlu0 %2973
    %2975 = vrot.lane.b32.xlu0 %v2966, 126
    %v2976 = vpop.permute.xlu0 %2975
    %2977 = vrot.lane.b32.xlu0 %v2967, 126
    %v2978 = vpop.permute.xlu0 %2977
    %2979 = vrot.lane.b32.xlu0 %v2968, 126
    %v2980 = vpop.permute.xlu0 %2979
    %v2985 = vadd.f32 %v2881, %v2974
    %v2986 = vadd.f32 %v2882, %v2976
    %v2987 = vadd.f32 %v2883, %v2978
    %v2988 = vadd.f32 %v2884, %v2980
    %s2989 = sld [smem:[#allocation4 + $0x47]]
    %v2990 = vstv %s2989
    %v2991 = vmul.f32 %v2990, %v2815
    %v2992 = vmul.f32 %v2990, %v2816
    %v2993 = vmul.f32 %v2990, %v2817
    %v2994 = vmul.f32 %v2990, %v2818
    %2999 = vrot.lane.b32.xlu0 %v2991, 126
    %v3000 = vpop.permute.xlu0 %2999
    %3001 = vrot.lane.b32.xlu0 %v2992, 126
    %v3002 = vpop.permute.xlu0 %3001
    %3003 = vrot.lane.b32.xlu0 %v2993, 126
    %v3004 = vpop.permute.xlu0 %3003
    %3005 = vrot.lane.b32.xlu0 %v2994, 126
    %v3006 = vpop.permute.xlu0 %3005
    %v3011 = vadd.f32 %v2907, %v3000
    %v3012 = vadd.f32 %v2908, %v3002
    %v3013 = vadd.f32 %v2909, %v3004
    %v3014 = vadd.f32 %v2910, %v3006
    %s3015 = sld [smem:[#allocation4 + $0x6b]]
    %v3016 = vstv %s3015
    %v3017 = vmul.f32 %v3016, %v2815
    %v3018 = vmul.f32 %v3016, %v2816
    %v3019 = vmul.f32 %v3016, %v2817
    %v3020 = vmul.f32 %v3016, %v2818
    %3025 = vrot.lane.b32.xlu0 %v3017, 126
    %v3026 = vpop.permute.xlu0 %3025
    %3027 = vrot.lane.b32.xlu0 %v3018, 126
    %v3028 = vpop.permute.xlu0 %3027
    %3029 = vrot.lane.b32.xlu0 %v3019, 126
    %v3030 = vpop.permute.xlu0 %3029
    %3031 = vrot.lane.b32.xlu0 %v3020, 126
    %v3032 = vpop.permute.xlu0 %3031
    %v3037 = vadd.f32 %v2933, %v3026
    %v3038 = vadd.f32 %v2934, %v3028
    %v3039 = vadd.f32 %v2935, %v3030
    %v3040 = vadd.f32 %v2936, %v3032
    %s3041 = sld [smem:[#allocation4 + $0x8f]]
    %v3042 = vstv %s3041
    %v3043 = vmul.f32 %v3042, %v2815
    %v3044 = vmul.f32 %v3042, %v2816
    %v3045 = vmul.f32 %v3042, %v2817
    %v3046 = vmul.f32 %v3042, %v2818
    %3051 = vrot.lane.b32.xlu0 %v3043, 126
    %v3052 = vpop.permute.xlu0 %3051
    %3053 = vrot.lane.b32.xlu0 %v3044, 126
    %v3054 = vpop.permute.xlu0 %3053
    %3055 = vrot.lane.b32.xlu0 %v3045, 126
    %v3056 = vpop.permute.xlu0 %3055
    %3057 = vrot.lane.b32.xlu0 %v3046, 126
    %v3058 = vpop.permute.xlu0 %3057
    %v3063 = vadd.f32 %v2959, %v3052
    %v3064 = vadd.f32 %v2960, %v3054
    %v3065 = vadd.f32 %v2961, %v3056
    %v3066 = vadd.f32 %v2962, %v3058
    %vm3067 = vcmask 113664
    %3068 = vst.msk [vmem:[#allocation2] sm:$0xff] %vm3067, 0.0
    %3069 = vst.msk [vmem:[#allocation2 + $0x8] sm:$0xff] %vm3067, 0.0
    %3070 = vst.msk [vmem:[#allocation2 + $0x10] sm:$0xff] %vm3067, 0.0
    %3071 = vst.msk [vmem:[#allocation2 + $0x18] sm:$0xff] %vm3067, 0.0
    %3072 = vst.msk [vmem:[#allocation2 + $0x20] sm:$0xff] %vm3067, 0.0
    %3073 = vst.msk [vmem:[#allocation2 + $0x28] sm:$0xff] %vm3067, 0.0
    %3074 = vst.msk [vmem:[#allocation2 + $0x30] sm:$0xff] %vm3067, 0.0
    %3075 = vst.msk [vmem:[#allocation2 + $0x38] sm:$0xff] %vm3067, 0.0
    %3076 = vst.msk [vmem:[#allocation2 + $0x40] sm:$0xff] %vm3067, 0.0
    %3077 = vst.msk [vmem:[#allocation2 + $0x48] sm:$0xff] %vm3067, 0.0
    %3078 = vst.msk [vmem:[#allocation2 + $0x50] sm:$0xff] %vm3067, 0.0
    %3079 = vst.msk [vmem:[#allocation2 + $0x58] sm:$0xff] %vm3067, 0.0
    %3080 = vst.msk [vmem:[#allocation2 + $0x60] sm:$0xff] %vm3067, 0.0
    %3081 = vst.msk [vmem:[#allocation2 + $0x68] sm:$0xff] %vm3067, 0.0
    %3082 = vst.msk [vmem:[#allocation2 + $0x70] sm:$0xff] %vm3067, 0.0
    %3083 = vst.msk [vmem:[#allocation2 + $0x78] sm:$0xff] %vm3067, 0.0
    %s3084 = sld [smem:[#allocation5]]
    %v3085 = vstv %s3084
    %v3086 = vadd.f32 %v2985, %v3085
    %v3087 = vadd.f32 %v2986, %v3085
    %v3088 = vadd.f32 %v2987, %v3085
    %v3089 = vadd.f32 %v2988, %v3085
    %v3090 = vmax.f32 %v3086, 0.0
    %v3091 = vmax.f32 %v3087, 0.0
    %v3092 = vmax.f32 %v3088, 0.0
    %v3093 = vmax.f32 %v3089, 0.0
    %3094 = vst.msk [vmem:[#allocation2] sm:$0xff] %vm3067, %v3090
    %vm3095 = vcmask 111616
    %3096 = vst.msk [vmem:[#allocation2 + $0x8] sm:$0x3f] %vm3095, %v3091
    %3097 = vst.msk [vmem:[#allocation2 + $0x40] sm:$0xff] %vm3067, %v3092
    %3098 = vst.msk [vmem:[#allocation2 + $0x48] sm:$0x3f] %vm3095, %v3093
    %s3099 = sld [smem:[#allocation5 + $0x1]]
    %v3100 = vstv %s3099
    %v3101 = vadd.f32 %v3011, %v3100
    %v3102 = vadd.f32 %v3012, %v3100
    %v3103 = vadd.f32 %v3013, %v3100
    %v3104 = vadd.f32 %v3014, %v3100
    %v3105 = vmax.f32 %v3101, 0.0
    %v3106 = vmax.f32 %v3102, 0.0
    %v3107 = vmax.f32 %v3103, 0.0
    %v3108 = vmax.f32 %v3104, 0.0
    %3109 = vst.msk [vmem:[#allocation2 + $0x10] sm:$0xff] %vm3067, %v3105
    %3110 = vst.msk [vmem:[#allocation2 + $0x18] sm:$0x3f] %vm3095, %v3106
    %3111 = vst.msk [vmem:[#allocation2 + $0x50] sm:$0xff] %vm3067, %v3107
    %3112 = vst.msk [vmem:[#allocation2 + $0x58] sm:$0x3f] %vm3095, %v3108
    %s3113 = sld [smem:[#allocation5 + $0x2]]
    %v3114 = vstv %s3113
    %v3115 = vadd.f32 %v3037, %v3114
    %v3116 = vadd.f32 %v3038, %v3114
    %v3117 = vadd.f32 %v3039, %v3114
    %v3118 = vadd.f32 %v3040, %v3114
    %v3119 = vmax.f32 %v3115, 0.0
    %v3120 = vmax.f32 %v3116, 0.0
    %v3121 = vmax.f32 %v3117, 0.0
    %v3122 = vmax.f32 %v3118, 0.0
    %3123 = vst.msk [vmem:[#allocation2 + $0x20] sm:$0xff] %vm3067, %v3119
    %3124 = vst.msk [vmem:[#allocation2 + $0x28] sm:$0x3f] %vm3095, %v3120
    %3125 = vst.msk [vmem:[#allocation2 + $0x60] sm:$0xff] %vm3067, %v3121
    %3126 = vst.msk [vmem:[#allocation2 + $0x68] sm:$0x3f] %vm3095, %v3122
    %s3127 = sld [smem:[#allocation5 + $0x3]]
    %v3128 = vstv %s3127
    %v3129 = vadd.f32 %v3063, %v3128
    %v3130 = vadd.f32 %v3064, %v3128
    %v3131 = vadd.f32 %v3065, %v3128
    %v3132 = vadd.f32 %v3066, %v3128
    %v3133 = vmax.f32 %v3129, 0.0
    %v3134 = vmax.f32 %v3130, 0.0
    %v3135 = vmax.f32 %v3131, 0.0
    %v3136 = vmax.f32 %v3132, 0.0
    %3137 = vst.msk [vmem:[#allocation2 + $0x30] sm:$0xff] %vm3067, %v3133
    %3138 = vst.msk [vmem:[#allocation2 + $0x38] sm:$0x3f] %vm3095, %v3134
    %3139 = vst.msk [vmem:[#allocation2 + $0x70] sm:$0xff] %vm3067, %v3135
    %3140 = vst.msk [vmem:[#allocation2 + $0x78] sm:$0x3f] %vm3095, %v3136
    %v3141 = vld [vmem:[#allocation2] sm:$0xff]
    %v3142 = vld [vmem:[#allocation2 + $0x8] sm:$0xff]
    %v3143 = vld [vmem:[#allocation2 + $0x10] sm:$0xff]
    %v3144 = vld [vmem:[#allocation2 + $0x18] sm:$0xff]
    %v3145 = vld [vmem:[#allocation2 + $0x20] sm:$0xff]
    %v3146 = vld [vmem:[#allocation2 + $0x28] sm:$0xff]
    %v3147 = vld [vmem:[#allocation2 + $0x30] sm:$0xff]
    %v3148 = vld [vmem:[#allocation2 + $0x38] sm:$0xff]
    %v3149 = vld [vmem:[#allocation2 + $0x40] sm:$0xff]
    %v3150 = vld [vmem:[#allocation2 + $0x48] sm:$0xff]
    %v3151 = vld [vmem:[#allocation2 + $0x50] sm:$0xff]
    %v3152 = vld [vmem:[#allocation2 + $0x58] sm:$0xff]
    %v3153 = vld [vmem:[#allocation2 + $0x60] sm:$0xff]
    %v3154 = vld [vmem:[#allocation2 + $0x68] sm:$0xff]
    %v3155 = vld [vmem:[#allocation2 + $0x70] sm:$0xff]
    %v3156 = vld [vmem:[#allocation2 + $0x78] sm:$0xff]
    %v3157 = vld [vmem:[%s5] sm:$0xff]
    %v3158 = vld [vmem:[%s5 + $0x8] sm:$0x3f]
    %v3160 = vsel %vm3067, %v3141, 0
    %v3163 = vsel %vm3067, %v3142, 0
    %v3166 = vsel %vm3067, %v3143, 0
    %v3169 = vsel %vm3067, %v3144, 0
    %v3172 = vsel %vm3067, %v3145, 0
    %v3175 = vsel %vm3067, %v3146, 0
    %v3178 = vsel %vm3067, %v3147, 0
    %v3181 = vsel %vm3067, %v3148, 0
    %v3184 = vsel %vm3067, %v3149, 0
    %v3187 = vsel %vm3067, %v3150, 0
    %v3190 = vsel %vm3067, %v3151, 0
    %v3193 = vsel %vm3067, %v3152, 0
    %v3196 = vsel %vm3067, %v3153, 0
    %v3199 = vsel %vm3067, %v3154, 0
    %v3202 = vsel %vm3067, %v3155, 0
    %v3205 = vsel %vm3067, %v3156, 0
    %vm3207 = vcmask 1045504
    %v3209 = vsel %vm3207, %v3158, 0
    %3211 = vmatprep.subr.mxu0 0.0
    %3212 = vmatpush1.msra.mxu0 %v3157
    %3213 = vmatprep.subr.mxu0 0.0
    %3214 = vmatpush1.msra.mxu0 %v3209
    %3215 = vmatprep.subr.mxu0 0.0
    %3216 = vmatpush1.msra.mxu0 0.0
    %3217 = vmatprep.subr.mxu0 0.0
    %3218 = vmatpush1.msra.mxu0 0.0
    %3219 = vmatprep.subr.mxu0 0.0
    %3220 = vmatpush1.msra.mxu0 0.0
    %3221 = vmatprep.subr.mxu0 0.0
    %3222 = vmatpush1.msra.mxu0 0.0
    %3223 = vmatprep.subr.mxu0 0.0
    %3224 = vmatpush1.msra.mxu0 0.0
    %3225 = vmatprep.subr.mxu0 0.0
    %3226 = vmatpush1.msra.mxu0 0.0
    %3227 = vmatprep.subr.mxu0 0.0
    %3228 = vmatpush1.msra.mxu0 0.0
    %3229 = vmatprep.subr.mxu0 0.0
    %3230 = vmatpush1.msra.mxu0 0.0
    %3231 = vmatprep.subr.mxu0 0.0
    %3232 = vmatpush1.msra.mxu0 0.0
    %3233 = vmatprep.subr.mxu0 0.0
    %3234 = vmatpush1.msra.mxu0 0.0
    %3235 = vmatprep.subr.mxu0 0.0
    %3236 = vmatpush1.msra.mxu0 0.0
    %3237 = vmatprep.subr.mxu0 0.0
    %3238 = vmatpush1.msra.mxu0 0.0
    %3239 = vmatprep.subr.mxu0 0.0
    %3240 = vmatpush1.msra.mxu0 0.0
    %3241 = vmatprep.subr.mxu0 0.0
    %3242 = vmatpush1.msra.mxu0 0.0
    %3243 = vmatprep.subr.mxu0 0.0
    %3244 = vmatpush1.msra.mxu0 0.0
    %3245 = vmatprep.subr.mxu0 0.0
    %3246 = vmatpush1.msra.mxu0 0.0
    %3247 = vmatprep.subr.mxu0 0.0
    %3248 = vmatpush1.msra.mxu0 0.0
    %3249 = vmatprep.subr.mxu0 0.0
    %3250 = vmatpush1.msra.mxu0 0.0
    %3251 = vmatprep.subr.mxu0 0.0
    %3252 = vmatpush1.msra.mxu0 0.0
    %3253 = vmatprep.subr.mxu0 0.0
    %3254 = vmatpush1.msra.mxu0 0.0
    %3255 = vmatprep.subr.mxu0 0.0
    %3256 = vmatpush1.msra.mxu0 0.0
    %3257 = vmatprep.subr.mxu0 0.0
    %3258 = vmatpush1.msra.mxu0 0.0
    %3259 = vmatprep.subr.mxu0 0.0
    %3260 = vmatpush1.msra.mxu0 0.0
    %3261 = vmatprep.subr.mxu0 0.0
    %3262 = vmatpush1.msra.mxu0 0.0
    %3263 = vmatprep.subr.mxu0 0.0
    %3264 = vmatpush1.msra.mxu0 0.0
    %3265 = vmatprep.subr.mxu0 0.0
    %3266 = vmatpush1.msra.mxu0 0.0
    %3267 = vmatprep.subr.mxu0 0.0
    %3268 = vmatpush1.msra.mxu0 0.0
    %3269 = vmatprep.subr.mxu0 0.0
    %3270 = vmatpush1.msra.mxu0 0.0
    %3271 = vmatprep.subr.mxu0 0.0
    %3272 = vmatpush1.msra.mxu0 0.0
    %3273 = vmatprep.subr.mxu0 0.0
    %3274 = vmatpush1.msra.mxu0 0.0
    %3275 = vmatprep.mubr.f32.mxu0 0.0
    %3276 = vmatmul.mubr.f32.gmra.mrb[0].mxu0 %v3160
    %v3277 = vpop.f32.mrb[0].mxu0
    %v3278 = vadd.f32 0.0, %v3277
    %v3279 = vpop.f32.mrb[0].mxu0
    %3280 = vmatprep.mubr.f32.mxu0 0.0
    %3281 = vmatmul.mubr.f32.gmra.mrb[0].mxu0 %v3163
    %v3282 = vpop.f32.mrb[0].mxu0
    %v3283 = vadd.f32 0.0, %v3282
    %v3284 = vpop.f32.mrb[0].mxu0
    %3285 = vmatprep.mubr.f32.mxu0 0.0
    %3286 = vmatmul.mubr.f32.gmra.mrb[0].mxu0 %v3166
    %v3287 = vpop.f32.mrb[0].mxu0
    %v3288 = vadd.f32 0.0, %v3287
    %v3289 = vpop.f32.mrb[0].mxu0
    %3290 = vmatprep.mubr.f32.mxu0 0.0
    %3291 = vmatmul.mubr.f32.gmra.mrb[0].mxu0 %v3169
    %v3292 = vpop.f32.mrb[0].mxu0
    %v3293 = vadd.f32 0.0, %v3292
    %v3294 = vpop.f32.mrb[0].mxu0
    %3295 = vmatprep.mubr.f32.mxu0 0.0
    %3296 = vmatmul.mubr.f32.gmra.mrb[0].mxu0 %v3172
    %v3297 = vpop.f32.mrb[0].mxu0
    %v3298 = vadd.f32 0.0, %v3297
    %v3299 = vpop.f32.mrb[0].mxu0
    %3300 = vmatprep.mubr.f32.mxu0 0.0
    %3301 = vmatmul.mubr.f32.gmra.mrb[0].mxu0 %v3175
    %v3302 = vpop.f32.mrb[0].mxu0
    %v3303 = vadd.f32 0.0, %v3302
    %v3304 = vpop.f32.mrb[0].mxu0
    %3305 = vmatprep.mubr.f32.mxu0 0.0
    %3306 = vmatmul.mubr.f32.gmra.mrb[0].mxu0 %v3178
    %v3307 = vpop.f32.mrb[0].mxu0
    %v3308 = vadd.f32 0.0, %v3307
    %v3309 = vpop.f32.mrb[0].mxu0
    %3310 = vmatprep.mubr.f32.mxu0 0.0
    %3311 = vmatmul.mubr.f32.gmra.mrb[0].mxu0 %v3181
    %v3312 = vpop.f32.mrb[0].mxu0
    %v3313 = vadd.f32 0.0, %v3312
    %v3314 = vpop.f32.mrb[0].mxu0
    %3315 = vmatprep.mubr.f32.mxu0 0.0
    %3316 = vmatmul.mubr.f32.gmra.mrb[0].mxu0 %v3184
    %v3317 = vpop.f32.mrb[0].mxu0
    %v3318 = vadd.f32 0.0, %v3317
    %v3319 = vpop.f32.mrb[0].mxu0
    %3320 = vmatprep.mubr.f32.mxu0 0.0
    %3321 = vmatmul.mubr.f32.gmra.mrb[0].mxu0 %v3187
    %v3322 = vpop.f32.mrb[0].mxu0
    %v3323 = vadd.f32 0.0, %v3322
    %v3324 = vpop.f32.mrb[0].mxu0
    %3325 = vmatprep.mubr.f32.mxu0 0.0
    %3326 = vmatmul.mubr.f32.gmra.mrb[0].mxu0 %v3190
    %v3327 = vpop.f32.mrb[0].mxu0
    %v3328 = vadd.f32 0.0, %v3327
    %v3329 = vpop.f32.mrb[0].mxu0
    %3330 = vmatprep.mubr.f32.mxu0 0.0
    %3331 = vmatmul.mubr.f32.gmra.mrb[0].mxu0 %v3193
    %v3332 = vpop.f32.mrb[0].mxu0
    %v3333 = vadd.f32 0.0, %v3332
    %v3334 = vpop.f32.mrb[0].mxu0
    %3335 = vmatprep.mubr.f32.mxu0 0.0
    %3336 = vmatmul.mubr.f32.gmra.mrb[0].mxu0 %v3196
    %v3337 = vpop.f32.mrb[0].mxu0
    %v3338 = vadd.f32 0.0, %v3337
    %v3339 = vpop.f32.mrb[0].mxu0
    %3340 = vmatprep.mubr.f32.mxu0 0.0
    %3341 = vmatmul.mubr.f32.gmra.mrb[0].mxu0 %v3199
    %v3342 = vpop.f32.mrb[0].mxu0
    %v3343 = vadd.f32 0.0, %v3342
    %v3344 = vpop.f32.mrb[0].mxu0
    %3345 = vmatprep.mubr.f32.mxu0 0.0
    %3346 = vmatmul.mubr.f32.gmra.mrb[0].mxu0 %v3202
    %v3347 = vpop.f32.mrb[0].mxu0
    %v3348 = vadd.f32 0.0, %v3347
    %v3349 = vpop.f32.mrb[0].mxu0
    %3350 = vmatprep.mubr.f32.mxu0 0.0
    %3351 = vmatmul.mubr.f32.gmra.mrb[0].mxu0 %v3205
    %v3352 = vpop.f32.mrb[0].mxu0
    %v3353 = vadd.f32 0.0, %v3352
    %v3354 = vpop.f32.mrb[0].mxu0
    %3355 = vdwg.mxu0
    %3372 = vrot.lane.b32.xlu0 %v3278, 121
    %v3373 = vpop.permute.xlu0 %3372
    %3374 = vrot.lane.b32.xlu0 %v3283, 121
    %v3375 = vpop.permute.xlu0 %3374
    %3376 = vrot.lane.b32.xlu0 %v3288, 121
    %v3377 = vpop.permute.xlu0 %3376
    %3378 = vrot.lane.b32.xlu0 %v3293, 121
    %v3379 = vpop.permute.xlu0 %3378
    %3380 = vrot.lane.b32.xlu0 %v3298, 121
    %v3381 = vpop.permute.xlu0 %3380
    %3382 = vrot.lane.b32.xlu0 %v3303, 121
    %v3383 = vpop.permute.xlu0 %3382
    %3384 = vrot.lane.b32.xlu0 %v3308, 121
    %v3385 = vpop.permute.xlu0 %3384
    %3386 = vrot.lane.b32.xlu0 %v3313, 121
    %v3387 = vpop.permute.xlu0 %3386
    %3388 = vrot.lane.b32.xlu0 %v3318, 121
    %v3389 = vpop.permute.xlu0 %3388
    %3390 = vrot.lane.b32.xlu0 %v3323, 121
    %v3391 = vpop.permute.xlu0 %3390
    %3392 = vrot.lane.b32.xlu0 %v3328, 121
    %v3393 = vpop.permute.xlu0 %3392
    %3394 = vrot.lane.b32.xlu0 %v3333, 121
    %v3395 = vpop.permute.xlu0 %3394
    %3396 = vrot.lane.b32.xlu0 %v3338, 121
    %v3397 = vpop.permute.xlu0 %3396
    %3398 = vrot.lane.b32.xlu0 %v3343, 121
    %v3399 = vpop.permute.xlu0 %3398
    %3400 = vrot.lane.b32.xlu0 %v3348, 121
    %v3401 = vpop.permute.xlu0 %3400
    %3402 = vrot.lane.b32.xlu0 %v3353, 121
    %v3403 = vpop.permute.xlu0 %3402
    %v3420 = vmax.f32 %v3278, %v3373
    %v3421 = vmax.f32 %v3283, %v3375
    %v3422 = vmax.f32 %v3288, %v3377
    %v3423 = vmax.f32 %v3293, %v3379
    %v3424 = vmax.f32 %v3298, %v3381
    %v3425 = vmax.f32 %v3303, %v3383
    %v3426 = vmax.f32 %v3308, %v3385
    %v3427 = vmax.f32 %v3313, %v3387
    %v3428 = vmax.f32 %v3318, %v3389
    %v3429 = vmax.f32 %v3323, %v3391
    %v3430 = vmax.f32 %v3328, %v3393
    %v3431 = vmax.f32 %v3333, %v3395
    %v3432 = vmax.f32 %v3338, %v3397
    %v3433 = vmax.f32 %v3343, %v3399
    %v3434 = vmax.f32 %v3348, %v3401
    %v3435 = vmax.f32 %v3353, %v3403
    %v3436 = vld [vmem:[%s6] sm:$0xff]
    %v3437 = vld [vmem:[%s6 + $0x8] sm:$0xff]
    %v3438 = vld [vmem:[%s6 + $0x10] sm:$0xff]
    %v3439 = vld [vmem:[%s6 + $0x18] sm:$0xff]
    %v3440 = vld [vmem:[%s6 + $0x20] sm:$0xff]
    %v3441 = vld [vmem:[%s6 + $0x28] sm:$0xff]
    %v3442 = vld [vmem:[%s6 + $0x30] sm:$0xff]
    %v3443 = vld [vmem:[%s6 + $0x38] sm:$0xff]
    %vm3444 = vcmask 523264
    %v3446 = vsel %vm3444, %v3436, 0
    %v3449 = vsel %vm3444, %v3437, 0
    %v3452 = vsel %vm3444, %v3438, 0
    %v3455 = vsel %vm3444, %v3439, 0
    %v3458 = vsel %vm3444, %v3440, 0
    %v3461 = vsel %vm3444, %v3441, 0
    %v3464 = vsel %vm3444, %v3442, 0
    %v3467 = vsel %vm3444, %v3443, 0
    %3469 = vmatprep.subr.mxu0 0.0
    %3470 = vmatpush1.msra.mxu0 %v3420
    %3471 = vmatprep.subr.mxu0 0.0
    %3472 = vmatpush1.msra.mxu0 %v3421
    %3473 = vmatprep.subr.mxu0 0.0
    %3474 = vmatpush1.msra.mxu0 %v3422
    %3475 = vmatprep.subr.mxu0 0.0
    %3476 = vmatpush1.msra.mxu0 %v3423
    %3477 = vmatprep.subr.mxu0 0.0
    %3478 = vmatpush1.msra.mxu0 %v3424
    %3479 = vmatprep.subr.mxu0 0.0
    %3480 = vmatpush1.msra.mxu0 %v3425
    %3481 = vmatprep.subr.mxu0 0.0
    %3482 = vmatpush1.msra.mxu0 %v3426
    %3483 = vmatprep.subr.mxu0 0.0
    %3484 = vmatpush1.msra.mxu0 %v3427
    %3485 = vmatprep.subr.mxu0 0.0
    %3486 = vmatpush1.msra.mxu0 0.0
    %3487 = vmatprep.subr.mxu0 0.0
    %3488 = vmatpush1.msra.mxu0 0.0
    %3489 = vmatprep.subr.mxu0 0.0
    %3490 = vmatpush1.msra.mxu0 0.0
    %3491 = vmatprep.subr.mxu0 0.0
    %3492 = vmatpush1.msra.mxu0 0.0
    %3493 = vmatprep.subr.mxu0 0.0
    %3494 = vmatpush1.msra.mxu0 0.0
    %3495 = vmatprep.subr.mxu0 0.0
    %3496 = vmatpush1.msra.mxu0 0.0
    %3497 = vmatprep.subr.mxu0 0.0
    %3498 = vmatpush1.msra.mxu0 0.0
    %3499 = vmatprep.subr.mxu0 0.0
    %3500 = vmatpush1.msra.mxu0 0.0
    %3501 = vmatprep.subr.mxu0 0.0
    %3502 = vmatpush1.msra.mxu0 0.0
    %3503 = vmatprep.subr.mxu0 0.0
    %3504 = vmatpush1.msra.mxu0 0.0
    %3505 = vmatprep.subr.mxu0 0.0
    %3506 = vmatpush1.msra.mxu0 0.0
    %3507 = vmatprep.subr.mxu0 0.0
    %3508 = vmatpush1.msra.mxu0 0.0
    %3509 = vmatprep.subr.mxu0 0.0
    %3510 = vmatpush1.msra.mxu0 0.0
    %3511 = vmatprep.subr.mxu0 0.0
    %3512 = vmatpush1.msra.mxu0 0.0
    %3513 = vmatprep.subr.mxu0 0.0
    %3514 = vmatpush1.msra.mxu0 0.0
    %3515 = vmatprep.subr.mxu0 0.0
    %3516 = vmatpush1.msra.mxu0 0.0
    %3517 = vmatprep.subr.mxu0 0.0
    %3518 = vmatpush1.msra.mxu0 0.0
    %3519 = vmatprep.subr.mxu0 0.0
    %3520 = vmatpush1.msra.mxu0 0.0
    %3521 = vmatprep.subr.mxu0 0.0
    %3522 = vmatpush1.msra.mxu0 0.0
    %3523 = vmatprep.subr.mxu0 0.0
    %3524 = vmatpush1.msra.mxu0 0.0
    %3525 = vmatprep.subr.mxu0 0.0
    %3526 = vmatpush1.msra.mxu0 0.0
    %3527 = vmatprep.subr.mxu0 0.0
    %3528 = vmatpush1.msra.mxu0 0.0
    %3529 = vmatprep.subr.mxu0 0.0
    %3530 = vmatpush1.msra.mxu0 0.0
    %3531 = vmatprep.subr.mxu0 0.0
    %3532 = vmatpush1.msra.mxu0 0.0
    %3533 = vmatprep.mubr.f32.mxu0 0.0
    %3534 = vmatmul.mubr.f32.gmra.mrb[0].mxu0 %v3446
    %v3535 = vpop.f32.mrb[0].mxu0
    %v3536 = vadd.f32 0.0, %v3535
    %v3537 = vpop.f32.mrb[0].mxu0
    %3538 = vmatprep.mubr.f32.mxu0 0.0
    %3539 = vmatmul.mubr.f32.gmra.mrb[0].mxu0 %v3449
    %v3540 = vpop.f32.mrb[0].mxu0
    %v3541 = vadd.f32 0.0, %v3540
    %v3542 = vpop.f32.mrb[0].mxu0
    %3543 = vmatprep.mubr.f32.mxu0 0.0
    %3544 = vmatmul.mubr.f32.gmra.mrb[0].mxu0 %v3452
    %v3545 = vpop.f32.mrb[0].mxu0
    %v3546 = vadd.f32 0.0, %v3545
    %v3547 = vpop.f32.mrb[0].mxu0
    %3548 = vmatprep.mubr.f32.mxu0 0.0
    %3549 = vmatmul.mubr.f32.gmra.mrb[0].mxu0 %v3455
    %v3550 = vpop.f32.mrb[0].mxu0
    %v3551 = vadd.f32 0.0, %v3550
    %v3552 = vpop.f32.mrb[0].mxu0
    %3553 = vmatprep.mubr.f32.mxu0 0.0
    %3554 = vmatmul.mubr.f32.gmra.mrb[0].mxu0 %v3458
    %v3555 = vpop.f32.mrb[0].mxu0
    %v3556 = vadd.f32 0.0, %v3555
    %v3557 = vpop.f32.mrb[0].mxu0
    %3558 = vmatprep.mubr.f32.mxu0 0.0
    %3559 = vmatmul.mubr.f32.gmra.mrb[0].mxu0 %v3461
    %v3560 = vpop.f32.mrb[0].mxu0
    %v3561 = vadd.f32 0.0, %v3560
    %v3562 = vpop.f32.mrb[0].mxu0
    %3563 = vmatprep.mubr.f32.mxu0 0.0
    %3564 = vmatmul.mubr.f32.gmra.mrb[0].mxu0 %v3464
    %v3565 = vpop.f32.mrb[0].mxu0
    %v3566 = vadd.f32 0.0, %v3565
    %v3567 = vpop.f32.mrb[0].mxu0
    %3568 = vmatprep.mubr.f32.mxu0 0.0
    %3569 = vmatmul.mubr.f32.gmra.mrb[0].mxu0 %v3467
    %v3570 = vpop.f32.mrb[0].mxu0
    %v3571 = vadd.f32 0.0, %v3570
    %v3572 = vpop.f32.mrb[0].mxu0
    %3573 = vdwg.mxu0
    %v3574 = vmax.f32 %v3536, %v3556
    %v3575 = vmax.f32 %v3541, %v3561
    %v3576 = vmax.f32 %v3546, %v3566
    %v3577 = vmax.f32 %v3551, %v3571
    %3578 = vmatprep.subr.mxu0 0.0
    %3579 = vmatpush1.msra.mxu0 %v3428
    %3580 = vmatprep.subr.mxu0 0.0
    %3581 = vmatpush1.msra.mxu0 %v3429
    %3582 = vmatprep.subr.mxu0 0.0
    %3583 = vmatpush1.msra.mxu0 %v3430
    %3584 = vmatprep.subr.mxu0 0.0
    %3585 = vmatpush1.msra.mxu0 %v3431
    %3586 = vmatprep.subr.mxu0 0.0
    %3587 = vmatpush1.msra.mxu0 %v3432
    %3588 = vmatprep.subr.mxu0 0.0
    %3589 = vmatpush1.msra.mxu0 %v3433
    %3590 = vmatprep.subr.mxu0 0.0
    %3591 = vmatpush1.msra.mxu0 %v3434
    %3592 = vmatprep.subr.mxu0 0.0
    %3593 = vmatpush1.msra.mxu0 %v3435
    %3594 = vmatprep.subr.mxu0 0.0
    %3595 = vmatpush1.msra.mxu0 0.0
    %3596 = vmatprep.subr.mxu0 0.0
    %3597 = vmatpush1.msra.mxu0 0.0
    %3598 = vmatprep.subr.mxu0 0.0
    %3599 = vmatpush1.msra.mxu0 0.0
    %3600 = vmatprep.subr.mxu0 0.0
    %3601 = vmatpush1.msra.mxu0 0.0
    %3602 = vmatprep.subr.mxu0 0.0
    %3603 = vmatpush1.msra.mxu0 0.0
    %3604 = vmatprep.subr.mxu0 0.0
    %3605 = vmatpush1.msra.mxu0 0.0
    %3606 = vmatprep.subr.mxu0 0.0
    %3607 = vmatpush1.msra.mxu0 0.0
    %3608 = vmatprep.subr.mxu0 0.0
    %3609 = vmatpush1.msra.mxu0 0.0
    %3610 = vmatprep.subr.mxu0 0.0
    %3611 = vmatpush1.msra.mxu0 0.0
    %3612 = vmatprep.subr.mxu0 0.0
    %3613 = vmatpush1.msra.mxu0 0.0
    %3614 = vmatprep.subr.mxu0 0.0
    %3615 = vmatpush1.msra.mxu0 0.0
    %3616 = vmatprep.subr.mxu0 0.0
    %3617 = vmatpush1.msra.mxu0 0.0
    %3618 = vmatprep.subr.mxu0 0.0
    %3619 = vmatpush1.msra.mxu0 0.0
    %3620 = vmatprep.subr.mxu0 0.0
    %3621 = vmatpush1.msra.mxu0 0.0
    %3622 = vmatprep.subr.mxu0 0.0
    %3623 = vmatpush1.msra.mxu0 0.0
    %3624 = vmatprep.subr.mxu0 0.0
    %3625 = vmatpush1.msra.mxu0 0.0
    %3626 = vmatprep.subr.mxu0 0.0
    %3627 = vmatpush1.msra.mxu0 0.0
    %3628 = vmatprep.subr.mxu0 0.0
    %3629 = vmatpush1.msra.mxu0 0.0
    %3630 = vmatprep.subr.mxu0 0.0
    %3631 = vmatpush1.msra.mxu0 0.0
    %3632 = vmatprep.subr.mxu0 0.0
    %3633 = vmatpush1.msra.mxu0 0.0
    %3634 = vmatprep.subr.mxu0 0.0
    %3635 = vmatpush1.msra.mxu0 0.0
    %3636 = vmatprep.subr.mxu0 0.0
    %3637 = vmatpush1.msra.mxu0 0.0
    %3638 = vmatprep.subr.mxu0 0.0
    %3639 = vmatpush1.msra.mxu0 0.0
    %3640 = vmatprep.subr.mxu0 0.0
    %3641 = vmatpush1.msra.mxu0 0.0
    %3642 = vmatprep.mubr.f32.mxu0 0.0
    %3643 = vmatmul.mubr.f32.gmra.mrb[0].mxu0 %v3446
    %v3644 = vpop.f32.mrb[0].mxu0
    %v3645 = vadd.f32 0.0, %v3644
    %v3646 = vpop.f32.mrb[0].mxu0
    %3647 = vmatprep.mubr.f32.mxu0 0.0
    %3648 = vmatmul.mubr.f32.gmra.mrb[0].mxu0 %v3449
    %v3649 = vpop.f32.mrb[0].mxu0
    %v3650 = vadd.f32 0.0, %v3649
    %v3651 = vpop.f32.mrb[0].mxu0
    %3652 = vmatprep.mubr.f32.mxu0 0.0
    %3653 = vmatmul.mubr.f32.gmra.mrb[0].mxu0 %v3452
    %v3654 = vpop.f32.mrb[0].mxu0
    %v3655 = vadd.f32 0.0, %v3654
    %v3656 = vpop.f32.mrb[0].mxu0
    %3657 = vmatprep.mubr.f32.mxu0 0.0
    %3658 = vmatmul.mubr.f32.gmra.mrb[0].mxu0 %v3455
    %v3659 = vpop.f32.mrb[0].mxu0
    %v3660 = vadd.f32 0.0, %v3659
    %v3661 = vpop.f32.mrb[0].mxu0
    %3662 = vmatprep.mubr.f32.mxu0 0.0
    %3663 = vmatmul.mubr.f32.gmra.mrb[0].mxu0 %v3458
    %v3664 = vpop.f32.mrb[0].mxu0
    %v3665 = vadd.f32 0.0, %v3664
    %v3666 = vpop.f32.mrb[0].mxu0
    %3667 = vmatprep.mubr.f32.mxu0 0.0
    %3668 = vmatmul.mubr.f32.gmra.mrb[0].mxu0 %v3461
    %v3669 = vpop.f32.mrb[0].mxu0
    %v3670 = vadd.f32 0.0, %v3669
    %v3671 = vpop.f32.mrb[0].mxu0
    %3672 = vmatprep.mubr.f32.mxu0 0.0
    %3673 = vmatmul.mubr.f32.gmra.mrb[0].mxu0 %v3464
    %v3674 = vpop.f32.mrb[0].mxu0
    %v3675 = vadd.f32 0.0, %v3674
    %v3676 = vpop.f32.mrb[0].mxu0
    %3677 = vmatprep.mubr.f32.mxu0 0.0
    %3678 = vmatmul.mubr.f32.gmra.mrb[0].mxu0 %v3467
    %v3679 = vpop.f32.mrb[0].mxu0
    %v3680 = vadd.f32 0.0, %v3679
    %v3681 = vpop.f32.mrb[0].mxu0
    %3682 = vdwg.mxu0
    %v3683 = vmax.f32 %v3645, %v3665
    %v3684 = vmax.f32 %v3650, %v3670
    %v3685 = vmax.f32 %v3655, %v3675
    %v3686 = vmax.f32 %v3660, %v3680
    %s3687 = sld [smem:[#allocation6]]
    %v3688 = vstv %s3687
    %v3689 = vmul.f32 %v3688, %v3574
    %v3690 = vmul.f32 %v3688, %v3683
    %v3691 = vadd.f32 %v3689, 0.0
    %v3692 = vadd.f32 %v3690, 0.0
    %s3693 = sld [smem:[#allocation6 + $0x24]]
    %v3694 = vstv %s3693
    %v3695 = vmul.f32 %v3694, %v3574
    %v3696 = vmul.f32 %v3694, %v3683
    %v3697 = vadd.f32 %v3695, 0.0
    %v3698 = vadd.f32 %v3696, 0.0
    %s3699 = sld [smem:[#allocation6 + $0x48]]
    %v3700 = vstv %s3699
    %v3701 = vmul.f32 %v3700, %v3574
    %v3702 = vmul.f32 %v3700, %v3683
    %v3703 = vadd.f32 %v3701, 0.0
    %v3704 = vadd.f32 %v3702, 0.0
    %s3705 = sld [smem:[#allocation6 + $0x6c]]
    %v3706 = vstv %s3705
    %v3707 = vmul.f32 %v3706, %v3574
    %v3708 = vmul.f32 %v3706, %v3683
    %v3709 = vadd.f32 %v3707, 0.0
    %v3710 = vadd.f32 %v3708, 0.0
    %s3711 = sld [smem:[#allocation6 + $0x1]]
    %v3712 = vstv %s3711
    %v3713 = vmul.f32 %v3712, %v3574
    %v3714 = vmul.f32 %v3712, %v3683
    %3717 = vrot.lane.b32.xlu0 %v3713, 127
    %v3718 = vpop.permute.xlu0 %3717
    %3719 = vrot.lane.b32.xlu0 %v3714, 127
    %v3720 = vpop.permute.xlu0 %3719
    %v3723 = vadd.f32 %v3691, %v3718
    %v3724 = vadd.f32 %v3692, %v3720
    %s3725 = sld [smem:[#allocation6 + $0x25]]
    %v3726 = vstv %s3725
    %v3727 = vmul.f32 %v3726, %v3574
    %v3728 = vmul.f32 %v3726, %v3683
    %3731 = vrot.lane.b32.xlu0 %v3727, 127
    %v3732 = vpop.permute.xlu0 %3731
    %3733 = vrot.lane.b32.xlu0 %v3728, 127
    %v3734 = vpop.permute.xlu0 %3733
    %v3737 = vadd.f32 %v3697, %v3732
    %v3738 = vadd.f32 %v3698, %v3734
    %s3739 = sld [smem:[#allocation6 + $0x49]]
    %v3740 = vstv %s3739
    %v3741 = vmul.f32 %v3740, %v3574
    %v3742 = vmul.f32 %v3740, %v3683
    %3745 = vrot.lane.b32.xlu0 %v3741, 127
    %v3746 = vpop.permute.xlu0 %3745
    %3747 = vrot.lane.b32.xlu0 %v3742, 127
    %v3748 = vpop.permute.xlu0 %3747
    %v3751 = vadd.f32 %v3703, %v3746
    %v3752 = vadd.f32 %v3704, %v3748
    %s3753 = sld [smem:[#allocation6 + $0x6d]]
    %v3754 = vstv %s3753
    %v3755 = vmul.f32 %v3754, %v3574
    %v3756 = vmul.f32 %v3754, %v3683
    %3759 = vrot.lane.b32.xlu0 %v3755, 127
    %v3760 = vpop.permute.xlu0 %3759
    %3761 = vrot.lane.b32.xlu0 %v3756, 127
    %v3762 = vpop.permute.xlu0 %3761
    %v3765 = vadd.f32 %v3709, %v3760
    %v3766 = vadd.f32 %v3710, %v3762
    %s3767 = sld [smem:[#allocation6 + $0x2]]
    %v3768 = vstv %s3767
    %v3769 = vmul.f32 %v3768, %v3574
    %v3770 = vmul.f32 %v3768, %v3683
    %3773 = vrot.lane.b32.xlu0 %v3769, 126
    %v3774 = vpop.permute.xlu0 %3773
    %3775 = vrot.lane.b32.xlu0 %v3770, 126
    %v3776 = vpop.permute.xlu0 %3775
    %v3779 = vadd.f32 %v3723, %v3774
    %v3780 = vadd.f32 %v3724, %v3776
    %s3781 = sld [smem:[#allocation6 + $0x26]]
    %v3782 = vstv %s3781
    %v3783 = vmul.f32 %v3782, %v3574
    %v3784 = vmul.f32 %v3782, %v3683
    %3787 = vrot.lane.b32.xlu0 %v3783, 126
    %v3788 = vpop.permute.xlu0 %3787
    %3789 = vrot.lane.b32.xlu0 %v3784, 126
    %v3790 = vpop.permute.xlu0 %3789
    %v3793 = vadd.f32 %v3737, %v3788
    %v3794 = vadd.f32 %v3738, %v3790
    %s3795 = sld [smem:[#allocation6 + $0x4a]]
    %v3796 = vstv %s3795
    %v3797 = vmul.f32 %v3796, %v3574
    %v3798 = vmul.f32 %v3796, %v3683
    %3801 = vrot.lane.b32.xlu0 %v3797, 126
    %v3802 = vpop.permute.xlu0 %3801
    %3803 = vrot.lane.b32.xlu0 %v3798, 126
    %v3804 = vpop.permute.xlu0 %3803
    %v3807 = vadd.f32 %v3751, %v3802
    %v3808 = vadd.f32 %v3752, %v3804
    %s3809 = sld [smem:[#allocation6 + $0x6e]]
    %v3810 = vstv %s3809
    %v3811 = vmul.f32 %v3810, %v3574
    %v3812 = vmul.f32 %v3810, %v3683
    %3815 = vrot.lane.b32.xlu0 %v3811, 126
    %v3816 = vpop.permute.xlu0 %3815
    %3817 = vrot.lane.b32.xlu0 %v3812, 126
    %v3818 = vpop.permute.xlu0 %3817
    %v3821 = vadd.f32 %v3765, %v3816
    %v3822 = vadd.f32 %v3766, %v3818
    %s3823 = sld [smem:[#allocation6 + $0x3]]
    %v3824 = vstv %s3823
    %v3825 = vmul.f32 %v3824, %v3574
    %v3826 = vmul.f32 %v3824, %v3683
    %v3829 = vrot.slane %v3825, 1
    %v3830 = vrot.slane %v3826, 1
    %v3833 = vadd.f32 %v3779, %v3829
    %v3834 = vadd.f32 %v3780, %v3830
    %s3835 = sld [smem:[#allocation6 + $0x27]]
    %v3836 = vstv %s3835
    %v3837 = vmul.f32 %v3836, %v3574
    %v3838 = vmul.f32 %v3836, %v3683
    %v3841 = vrot.slane %v3837, 1
    %v3842 = vrot.slane %v3838, 1
    %v3845 = vadd.f32 %v3793, %v3841
    %v3846 = vadd.f32 %v3794, %v3842
    %s3847 = sld [smem:[#allocation6 + $0x4b]]
    %v3848 = vstv %s3847
    %v3849 = vmul.f32 %v3848, %v3574
    %v3850 = vmul.f32 %v3848, %v3683
    %v3853 = vrot.slane %v3849, 1
    %v3854 = vrot.slane %v3850, 1
    %v3857 = vadd.f32 %v3807, %v3853
    %v3858 = vadd.f32 %v3808, %v3854
    %s3859 = sld [smem:[#allocation6 + $0x6f]]
    %v3860 = vstv %s3859
    %v3861 = vmul.f32 %v3860, %v3574
    %v3862 = vmul.f32 %v3860, %v3683
    %v3865 = vrot.slane %v3861, 1
    %v3866 = vrot.slane %v3862, 1
    %v3869 = vadd.f32 %v3821, %v3865
    %v3870 = vadd.f32 %v3822, %v3866
    %s3871 = sld [smem:[#allocation6 + $0x4]]
    %v3872 = vstv %s3871
    %v3873 = vmul.f32 %v3872, %v3574
    %v3874 = vmul.f32 %v3872, %v3683
    %v3877 = vrot.slane %v3873, 1
    %v3878 = vrot.slane %v3874, 1
    %3879 = vrot.lane.b32.xlu0 %v3877, 127
    %v3880 = vpop.permute.xlu0 %3879
    %3881 = vrot.lane.b32.xlu0 %v3878, 127
    %v3882 = vpop.permute.xlu0 %3881
    %v3885 = vadd.f32 %v3833, %v3880
    %v3886 = vadd.f32 %v3834, %v3882
    %s3887 = sld [smem:[#allocation6 + $0x28]]
    %v3888 = vstv %s3887
    %v3889 = vmul.f32 %v3888, %v3574
    %v3890 = vmul.f32 %v3888, %v3683
    %v3893 = vrot.slane %v3889, 1
    %v3894 = vrot.slane %v3890, 1
    %3895 = vrot.lane.b32.xlu0 %v3893, 127
    %v3896 = vpop.permute.xlu0 %3895
    %3897 = vrot.lane.b32.xlu0 %v3894, 127
    %v3898 = vpop.permute.xlu0 %3897
    %v3901 = vadd.f32 %v3845, %v3896
    %v3902 = vadd.f32 %v3846, %v3898
    %s3903 = sld [smem:[#allocation6 + $0x4c]]
    %v3904 = vstv %s3903
    %v3905 = vmul.f32 %v3904, %v3574
    %v3906 = vmul.f32 %v3904, %v3683
    %v3909 = vrot.slane %v3905, 1
    %v3910 = vrot.slane %v3906, 1
    %3911 = vrot.lane.b32.xlu0 %v3909, 127
    %v3912 = vpop.permute.xlu0 %3911
    %3913 = vrot.lane.b32.xlu0 %v3910, 127
    %v3914 = vpop.permute.xlu0 %3913
    %v3917 = vadd.f32 %v3857, %v3912
    %v3918 = vadd.f32 %v3858, %v3914
    %s3919 = sld [smem:[#allocation6 + $0x70]]
    %v3920 = vstv %s3919
    %v3921 = vmul.f32 %v3920, %v3574
    %v3922 = vmul.f32 %v3920, %v3683
    %v3925 = vrot.slane %v3921, 1
    %v3926 = vrot.slane %v3922, 1
    %3927 = vrot.lane.b32.xlu0 %v3925, 127
    %v3928 = vpop.permute.xlu0 %3927
    %3929 = vrot.lane.b32.xlu0 %v3926, 127
    %v3930 = vpop.permute.xlu0 %3929
    %v3933 = vadd.f32 %v3869, %v3928
    %v3934 = vadd.f32 %v3870, %v3930
    %s3935 = sld [smem:[#allocation6 + $0x5]]
    %v3936 = vstv %s3935
    %v3937 = vmul.f32 %v3936, %v3574
    %v3938 = vmul.f32 %v3936, %v3683
    %v3941 = vrot.slane %v3937, 1
    %v3942 = vrot.slane %v3938, 1
    %3943 = vrot.lane.b32.xlu0 %v3941, 126
    %v3944 = vpop.permute.xlu0 %3943
    %3945 = vrot.lane.b32.xlu0 %v3942, 126
    %v3946 = vpop.permute.xlu0 %3945
    %v3949 = vadd.f32 %v3885, %v3944
    %v3950 = vadd.f32 %v3886, %v3946
    %s3951 = sld [smem:[#allocation6 + $0x29]]
    %v3952 = vstv %s3951
    %v3953 = vmul.f32 %v3952, %v3574
    %v3954 = vmul.f32 %v3952, %v3683
    %v3957 = vrot.slane %v3953, 1
    %v3958 = vrot.slane %v3954, 1
    %3959 = vrot.lane.b32.xlu0 %v3957, 126
    %v3960 = vpop.permute.xlu0 %3959
    %3961 = vrot.lane.b32.xlu0 %v3958, 126
    %v3962 = vpop.permute.xlu0 %3961
    %v3965 = vadd.f32 %v3901, %v3960
    %v3966 = vadd.f32 %v3902, %v3962
    %s3967 = sld [smem:[#allocation6 + $0x4d]]
    %v3968 = vstv %s3967
    %v3969 = vmul.f32 %v3968, %v3574
    %v3970 = vmul.f32 %v3968, %v3683
    %v3973 = vrot.slane %v3969, 1
    %v3974 = vrot.slane %v3970, 1
    %3975 = vrot.lane.b32.xlu0 %v3973, 126
    %v3976 = vpop.permute.xlu0 %3975
    %3977 = vrot.lane.b32.xlu0 %v3974, 126
    %v3978 = vpop.permute.xlu0 %3977
    %v3981 = vadd.f32 %v3917, %v3976
    %v3982 = vadd.f32 %v3918, %v3978
    %s3983 = sld [smem:[#allocation6 + $0x71]]
    %v3984 = vstv %s3983
    %v3985 = vmul.f32 %v3984, %v3574
    %v3986 = vmul.f32 %v3984, %v3683
    %v3989 = vrot.slane %v3985, 1
    %v3990 = vrot.slane %v3986, 1
    %3991 = vrot.lane.b32.xlu0 %v3989, 126
    %v3992 = vpop.permute.xlu0 %3991
    %3993 = vrot.lane.b32.xlu0 %v3990, 126
    %v3994 = vpop.permute.xlu0 %3993
    %v3997 = vadd.f32 %v3933, %v3992
    %v3998 = vadd.f32 %v3934, %v3994
    %s3999 = sld [smem:[#allocation6 + $0x6]]
    %v4000 = vstv %s3999
    %v4001 = vmul.f32 %v4000, %v3574
    %v4002 = vmul.f32 %v4000, %v3683
    %v4005 = vrot.slane %v4001, 2
    %v4006 = vrot.slane %v4002, 2
    %v4009 = vadd.f32 %v3949, %v4005
    %v4010 = vadd.f32 %v3950, %v4006
    %s4011 = sld [smem:[#allocation6 + $0x2a]]
    %v4012 = vstv %s4011
    %v4013 = vmul.f32 %v4012, %v3574
    %v4014 = vmul.f32 %v4012, %v3683
    %v4017 = vrot.slane %v4013, 2
    %v4018 = vrot.slane %v4014, 2
    %v4021 = vadd.f32 %v3965, %v4017
    %v4022 = vadd.f32 %v3966, %v4018
    %s4023 = sld [smem:[#allocation6 + $0x4e]]
    %v4024 = vstv %s4023
    %v4025 = vmul.f32 %v4024, %v3574
    %v4026 = vmul.f32 %v4024, %v3683
    %v4029 = vrot.slane %v4025, 2
    %v4030 = vrot.slane %v4026, 2
    %v4033 = vadd.f32 %v3981, %v4029
    %v4034 = vadd.f32 %v3982, %v4030
    %s4035 = sld [smem:[#allocation6 + $0x72]]
    %v4036 = vstv %s4035
    %v4037 = vmul.f32 %v4036, %v3574
    %v4038 = vmul.f32 %v4036, %v3683
    %v4041 = vrot.slane %v4037, 2
    %v4042 = vrot.slane %v4038, 2
    %v4045 = vadd.f32 %v3997, %v4041
    %v4046 = vadd.f32 %v3998, %v4042
    %s4047 = sld [smem:[#allocation6 + $0x7]]
    %v4048 = vstv %s4047
    %v4049 = vmul.f32 %v4048, %v3574
    %v4050 = vmul.f32 %v4048, %v3683
    %v4053 = vrot.slane %v4049, 2
    %v4054 = vrot.slane %v4050, 2
    %4055 = vrot.lane.b32.xlu0 %v4053, 127
    %v4056 = vpop.permute.xlu0 %4055
    %4057 = vrot.lane.b32.xlu0 %v4054, 127
    %v4058 = vpop.permute.xlu0 %4057
    %v4061 = vadd.f32 %v4009, %v4056
    %v4062 = vadd.f32 %v4010, %v4058
    %s4063 = sld [smem:[#allocation6 + $0x2b]]
    %v4064 = vstv %s4063
    %v4065 = vmul.f32 %v4064, %v3574
    %v4066 = vmul.f32 %v4064, %v3683
    %v4069 = vrot.slane %v4065, 2
    %v4070 = vrot.slane %v4066, 2
    %4071 = vrot.lane.b32.xlu0 %v4069, 127
    %v4072 = vpop.permute.xlu0 %4071
    %4073 = vrot.lane.b32.xlu0 %v4070, 127
    %v4074 = vpop.permute.xlu0 %4073
    %v4077 = vadd.f32 %v4021, %v4072
    %v4078 = vadd.f32 %v4022, %v4074
    %s4079 = sld [smem:[#allocation6 + $0x4f]]
    %v4080 = vstv %s4079
    %v4081 = vmul.f32 %v4080, %v3574
    %v4082 = vmul.f32 %v4080, %v3683
    %v4085 = vrot.slane %v4081, 2
    %v4086 = vrot.slane %v4082, 2
    %4087 = vrot.lane.b32.xlu0 %v4085, 127
    %v4088 = vpop.permute.xlu0 %4087
    %4089 = vrot.lane.b32.xlu0 %v4086, 127
    %v4090 = vpop.permute.xlu0 %4089
    %v4093 = vadd.f32 %v4033, %v4088
    %v4094 = vadd.f32 %v4034, %v4090
    %s4095 = sld [smem:[#allocation6 + $0x73]]
    %v4096 = vstv %s4095
    %v4097 = vmul.f32 %v4096, %v3574
    %v4098 = vmul.f32 %v4096, %v3683
    %v4101 = vrot.slane %v4097, 2
    %v4102 = vrot.slane %v4098, 2
    %4103 = vrot.lane.b32.xlu0 %v4101, 127
    %v4104 = vpop.permute.xlu0 %4103
    %4105 = vrot.lane.b32.xlu0 %v4102, 127
    %v4106 = vpop.permute.xlu0 %4105
    %v4109 = vadd.f32 %v4045, %v4104
    %v4110 = vadd.f32 %v4046, %v4106
    %s4111 = sld [smem:[#allocation6 + $0x8]]
    %v4112 = vstv %s4111
    %v4113 = vmul.f32 %v4112, %v3574
    %v4114 = vmul.f32 %v4112, %v3683
    %v4117 = vrot.slane %v4113, 2
    %v4118 = vrot.slane %v4114, 2
    %4119 = vrot.lane.b32.xlu0 %v4117, 126
    %v4120 = vpop.permute.xlu0 %4119
    %4121 = vrot.lane.b32.xlu0 %v4118, 126
    %v4122 = vpop.permute.xlu0 %4121
    %v4125 = vadd.f32 %v4061, %v4120
    %v4126 = vadd.f32 %v4062, %v4122
    %s4127 = sld [smem:[#allocation6 + $0x2c]]
    %v4128 = vstv %s4127
    %v4129 = vmul.f32 %v4128, %v3574
    %v4130 = vmul.f32 %v4128, %v3683
    %v4133 = vrot.slane %v4129, 2
    %v4134 = vrot.slane %v4130, 2
    %4135 = vrot.lane.b32.xlu0 %v4133, 126
    %v4136 = vpop.permute.xlu0 %4135
    %4137 = vrot.lane.b32.xlu0 %v4134, 126
    %v4138 = vpop.permute.xlu0 %4137
    %v4141 = vadd.f32 %v4077, %v4136
    %v4142 = vadd.f32 %v4078, %v4138
    %s4143 = sld [smem:[#allocation6 + $0x50]]
    %v4144 = vstv %s4143
    %v4145 = vmul.f32 %v4144, %v3574
    %v4146 = vmul.f32 %v4144, %v3683
    %v4149 = vrot.slane %v4145, 2
    %v4150 = vrot.slane %v4146, 2
    %4151 = vrot.lane.b32.xlu0 %v4149, 126
    %v4152 = vpop.permute.xlu0 %4151
    %4153 = vrot.lane.b32.xlu0 %v4150, 126
    %v4154 = vpop.permute.xlu0 %4153
    %v4157 = vadd.f32 %v4093, %v4152
    %v4158 = vadd.f32 %v4094, %v4154
    %s4159 = sld [smem:[#allocation6 + $0x74]]
    %v4160 = vstv %s4159
    %v4161 = vmul.f32 %v4160, %v3574
    %v4162 = vmul.f32 %v4160, %v3683
    %v4165 = vrot.slane %v4161, 2
    %v4166 = vrot.slane %v4162, 2
    %4167 = vrot.lane.b32.xlu0 %v4165, 126
    %v4168 = vpop.permute.xlu0 %4167
    %4169 = vrot.lane.b32.xlu0 %v4166, 126
    %v4170 = vpop.permute.xlu0 %4169
    %v4173 = vadd.f32 %v4109, %v4168
    %v4174 = vadd.f32 %v4110, %v4170
    %s4175 = sld [smem:[#allocation6 + $0x9]]
    %v4176 = vstv %s4175
    %v4177 = vmul.f32 %v4176, %v3575
    %v4178 = vmul.f32 %v4176, %v3684
    %v4179 = vadd.f32 %v4125, %v4177
    %v4180 = vadd.f32 %v4126, %v4178
    %s4181 = sld [smem:[#allocation6 + $0x2d]]
    %v4182 = vstv %s4181
    %v4183 = vmul.f32 %v4182, %v3575
    %v4184 = vmul.f32 %v4182, %v3684
    %v4185 = vadd.f32 %v4141, %v4183
    %v4186 = vadd.f32 %v4142, %v4184
    %s4187 = sld [smem:[#allocation6 + $0x51]]
    %v4188 = vstv %s4187
    %v4189 = vmul.f32 %v4188, %v3575
    %v4190 = vmul.f32 %v4188, %v3684
    %v4191 = vadd.f32 %v4157, %v4189
    %v4192 = vadd.f32 %v4158, %v4190
    %s4193 = sld [smem:[#allocation6 + $0x75]]
    %v4194 = vstv %s4193
    %v4195 = vmul.f32 %v4194, %v3575
    %v4196 = vmul.f32 %v4194, %v3684
    %v4197 = vadd.f32 %v4173, %v4195
    %v4198 = vadd.f32 %v4174, %v4196
    %s4199 = sld [smem:[#allocation6 + $0xa]]
    %v4200 = vstv %s4199
    %v4201 = vmul.f32 %v4200, %v3575
    %v4202 = vmul.f32 %v4200, %v3684
    %4205 = vrot.lane.b32.xlu0 %v4201, 127
    %v4206 = vpop.permute.xlu0 %4205
    %4207 = vrot.lane.b32.xlu0 %v4202, 127
    %v4208 = vpop.permute.xlu0 %4207
    %v4211 = vadd.f32 %v4179, %v4206
    %v4212 = vadd.f32 %v4180, %v4208
    %s4213 = sld [smem:[#allocation6 + $0x2e]]
    %v4214 = vstv %s4213
    %v4215 = vmul.f32 %v4214, %v3575
    %v4216 = vmul.f32 %v4214, %v3684
    %4219 = vrot.lane.b32.xlu0 %v4215, 127
    %v4220 = vpop.permute.xlu0 %4219
    %4221 = vrot.lane.b32.xlu0 %v4216, 127
    %v4222 = vpop.permute.xlu0 %4221
    %v4225 = vadd.f32 %v4185, %v4220
    %v4226 = vadd.f32 %v4186, %v4222
    %s4227 = sld [smem:[#allocation6 + $0x52]]
    %v4228 = vstv %s4227
    %v4229 = vmul.f32 %v4228, %v3575
    %v4230 = vmul.f32 %v4228, %v3684
    %4233 = vrot.lane.b32.xlu0 %v4229, 127
    %v4234 = vpop.permute.xlu0 %4233
    %4235 = vrot.lane.b32.xlu0 %v4230, 127
    %v4236 = vpop.permute.xlu0 %4235
    %v4239 = vadd.f32 %v4191, %v4234
    %v4240 = vadd.f32 %v4192, %v4236
    %s4241 = sld [smem:[#allocation6 + $0x76]]
    %v4242 = vstv %s4241
    %v4243 = vmul.f32 %v4242, %v3575
    %v4244 = vmul.f32 %v4242, %v3684
    %4247 = vrot.lane.b32.xlu0 %v4243, 127
    %v4248 = vpop.permute.xlu0 %4247
    %4249 = vrot.lane.b32.xlu0 %v4244, 127
    %v4250 = vpop.permute.xlu0 %4249
    %v4253 = vadd.f32 %v4197, %v4248
    %v4254 = vadd.f32 %v4198, %v4250
    %s4255 = sld [smem:[#allocation6 + $0xb]]
    %v4256 = vstv %s4255
    %v4257 = vmul.f32 %v4256, %v3575
    %v4258 = vmul.f32 %v4256, %v3684
    %4261 = vrot.lane.b32.xlu0 %v4257, 126
    %v4262 = vpop.permute.xlu0 %4261
    %4263 = vrot.lane.b32.xlu0 %v4258, 126
    %v4264 = vpop.permute.xlu0 %4263
    %v4267 = vadd.f32 %v4211, %v4262
    %v4268 = vadd.f32 %v4212, %v4264
    %s4269 = sld [smem:[#allocation6 + $0x2f]]
    %v4270 = vstv %s4269
    %v4271 = vmul.f32 %v4270, %v3575
    %v4272 = vmul.f32 %v4270, %v3684
    %4275 = vrot.lane.b32.xlu0 %v4271, 126
    %v4276 = vpop.permute.xlu0 %4275
    %4277 = vrot.lane.b32.xlu0 %v4272, 126
    %v4278 = vpop.permute.xlu0 %4277
    %v4281 = vadd.f32 %v4225, %v4276
    %v4282 = vadd.f32 %v4226, %v4278
    %s4283 = sld [smem:[#allocation6 + $0x53]]
    %v4284 = vstv %s4283
    %v4285 = vmul.f32 %v4284, %v3575
    %v4286 = vmul.f32 %v4284, %v3684
    %4289 = vrot.lane.b32.xlu0 %v4285, 126
    %v4290 = vpop.permute.xlu0 %4289
    %4291 = vrot.lane.b32.xlu0 %v4286, 126
    %v4292 = vpop.permute.xlu0 %4291
    %v4295 = vadd.f32 %v4239, %v4290
    %v4296 = vadd.f32 %v4240, %v4292
    %s4297 = sld [smem:[#allocation6 + $0x77]]
    %v4298 = vstv %s4297
    %v4299 = vmul.f32 %v4298, %v3575
    %v4300 = vmul.f32 %v4298, %v3684
    %4303 = vrot.lane.b32.xlu0 %v4299, 126
    %v4304 = vpop.permute.xlu0 %4303
    %4305 = vrot.lane.b32.xlu0 %v4300, 126
    %v4306 = vpop.permute.xlu0 %4305
    %v4309 = vadd.f32 %v4253, %v4304
    %v4310 = vadd.f32 %v4254, %v4306
    %s4311 = sld [smem:[#allocation6 + $0xc]]
    %v4312 = vstv %s4311
    %v4313 = vmul.f32 %v4312, %v3575
    %v4314 = vmul.f32 %v4312, %v3684
    %v4317 = vrot.slane %v4313, 1
    %v4318 = vrot.slane %v4314, 1
    %v4321 = vadd.f32 %v4267, %v4317
    %v4322 = vadd.f32 %v4268, %v4318
    %s4323 = sld [smem:[#allocation6 + $0x30]]
    %v4324 = vstv %s4323
    %v4325 = vmul.f32 %v4324, %v3575
    %v4326 = vmul.f32 %v4324, %v3684
    %v4329 = vrot.slane %v4325, 1
    %v4330 = vrot.slane %v4326, 1
    %v4333 = vadd.f32 %v4281, %v4329
    %v4334 = vadd.f32 %v4282, %v4330
    %s4335 = sld [smem:[#allocation6 + $0x54]]
    %v4336 = vstv %s4335
    %v4337 = vmul.f32 %v4336, %v3575
    %v4338 = vmul.f32 %v4336, %v3684
    %v4341 = vrot.slane %v4337, 1
    %v4342 = vrot.slane %v4338, 1
    %v4345 = vadd.f32 %v4295, %v4341
    %v4346 = vadd.f32 %v4296, %v4342
    %s4347 = sld [smem:[#allocation6 + $0x78]]
    %v4348 = vstv %s4347
    %v4349 = vmul.f32 %v4348, %v3575
    %v4350 = vmul.f32 %v4348, %v3684
    %v4353 = vrot.slane %v4349, 1
    %v4354 = vrot.slane %v4350, 1
    %v4357 = vadd.f32 %v4309, %v4353
    %v4358 = vadd.f32 %v4310, %v4354
    %s4359 = sld [smem:[#allocation6 + $0xd]]
    %v4360 = vstv %s4359
    %v4361 = vmul.f32 %v4360, %v3575
    %v4362 = vmul.f32 %v4360, %v3684
    %v4365 = vrot.slane %v4361, 1
    %v4366 = vrot.slane %v4362, 1
    %4367 = vrot.lane.b32.xlu0 %v4365, 127
    %v4368 = vpop.permute.xlu0 %4367
    %4369 = vrot.lane.b32.xlu0 %v4366, 127
    %v4370 = vpop.permute.xlu0 %4369
    %v4373 = vadd.f32 %v4321, %v4368
    %v4374 = vadd.f32 %v4322, %v4370
    %s4375 = sld [smem:[#allocation6 + $0x31]]
    %v4376 = vstv %s4375
    %v4377 = vmul.f32 %v4376, %v3575
    %v4378 = vmul.f32 %v4376, %v3684
    %v4381 = vrot.slane %v4377, 1
    %v4382 = vrot.slane %v4378, 1
    %4383 = vrot.lane.b32.xlu0 %v4381, 127
    %v4384 = vpop.permute.xlu0 %4383
    %4385 = vrot.lane.b32.xlu0 %v4382, 127
    %v4386 = vpop.permute.xlu0 %4385
    %v4389 = vadd.f32 %v4333, %v4384
    %v4390 = vadd.f32 %v4334, %v4386
    %s4391 = sld [smem:[#allocation6 + $0x55]]
    %v4392 = vstv %s4391
    %v4393 = vmul.f32 %v4392, %v3575
    %v4394 = vmul.f32 %v4392, %v3684
    %v4397 = vrot.slane %v4393, 1
    %v4398 = vrot.slane %v4394, 1
    %4399 = vrot.lane.b32.xlu0 %v4397, 127
    %v4400 = vpop.permute.xlu0 %4399
    %4401 = vrot.lane.b32.xlu0 %v4398, 127
    %v4402 = vpop.permute.xlu0 %4401
    %v4405 = vadd.f32 %v4345, %v4400
    %v4406 = vadd.f32 %v4346, %v4402
    %s4407 = sld [smem:[#allocation6 + $0x79]]
    %v4408 = vstv %s4407
    %v4409 = vmul.f32 %v4408, %v3575
    %v4410 = vmul.f32 %v4408, %v3684
    %v4413 = vrot.slane %v4409, 1
    %v4414 = vrot.slane %v4410, 1
    %4415 = vrot.lane.b32.xlu0 %v4413, 127
    %v4416 = vpop.permute.xlu0 %4415
    %4417 = vrot.lane.b32.xlu0 %v4414, 127
    %v4418 = vpop.permute.xlu0 %4417
    %v4421 = vadd.f32 %v4357, %v4416
    %v4422 = vadd.f32 %v4358, %v4418
    %s4423 = sld [smem:[#allocation6 + $0xe]]
    %v4424 = vstv %s4423
    %v4425 = vmul.f32 %v4424, %v3575
    %v4426 = vmul.f32 %v4424, %v3684
    %v4429 = vrot.slane %v4425, 1
    %v4430 = vrot.slane %v4426, 1
    %4431 = vrot.lane.b32.xlu0 %v4429, 126
    %v4432 = vpop.permute.xlu0 %4431
    %4433 = vrot.lane.b32.xlu0 %v4430, 126
    %v4434 = vpop.permute.xlu0 %4433
    %v4437 = vadd.f32 %v4373, %v4432
    %v4438 = vadd.f32 %v4374, %v4434
    %s4439 = sld [smem:[#allocation6 + $0x32]]
    %v4440 = vstv %s4439
    %v4441 = vmul.f32 %v4440, %v3575
    %v4442 = vmul.f32 %v4440, %v3684
    %v4445 = vrot.slane %v4441, 1
    %v4446 = vrot.slane %v4442, 1
    %4447 = vrot.lane.b32.xlu0 %v4445, 126
    %v4448 = vpop.permute.xlu0 %4447
    %4449 = vrot.lane.b32.xlu0 %v4446, 126
    %v4450 = vpop.permute.xlu0 %4449
    %v4453 = vadd.f32 %v4389, %v4448
    %v4454 = vadd.f32 %v4390, %v4450
    %s4455 = sld [smem:[#allocation6 + $0x56]]
    %v4456 = vstv %s4455
    %v4457 = vmul.f32 %v4456, %v3575
    %v4458 = vmul.f32 %v4456, %v3684
    %v4461 = vrot.slane %v4457, 1
    %v4462 = vrot.slane %v4458, 1
    %4463 = vrot.lane.b32.xlu0 %v4461, 126
    %v4464 = vpop.permute.xlu0 %4463
    %4465 = vrot.lane.b32.xlu0 %v4462, 126
    %v4466 = vpop.permute.xlu0 %4465
    %v4469 = vadd.f32 %v4405, %v4464
    %v4470 = vadd.f32 %v4406, %v4466
    %s4471 = sld [smem:[#allocation6 + $0x7a]]
    %v4472 = vstv %s4471
    %v4473 = vmul.f32 %v4472, %v3575
    %v4474 = vmul.f32 %v4472, %v3684
    %v4477 = vrot.slane %v4473, 1
    %v4478 = vrot.slane %v4474, 1
    %4479 = vrot.lane.b32.xlu0 %v4477, 126
    %v4480 = vpop.permute.xlu0 %4479
    %4481 = vrot.lane.b32.xlu0 %v4478, 126
    %v4482 = vpop.permute.xlu0 %4481
    %v4485 = vadd.f32 %v4421, %v4480
    %v4486 = vadd.f32 %v4422, %v4482
    %s4487 = sld [smem:[#allocation6 + $0xf]]
    %v4488 = vstv %s4487
    %v4489 = vmul.f32 %v4488, %v3575
    %v4490 = vmul.f32 %v4488, %v3684
    %v4493 = vrot.slane %v4489, 2
    %v4494 = vrot.slane %v4490, 2
    %v4497 = vadd.f32 %v4437, %v4493
    %v4498 = vadd.f32 %v4438, %v4494
    %s4499 = sld [smem:[#allocation6 + $0x33]]
    %v4500 = vstv %s4499
    %v4501 = vmul.f32 %v4500, %v3575
    %v4502 = vmul.f32 %v4500, %v3684
    %v4505 = vrot.slane %v4501, 2
    %v4506 = vrot.slane %v4502, 2
    %v4509 = vadd.f32 %v4453, %v4505
    %v4510 = vadd.f32 %v4454, %v4506
    %s4511 = sld [smem:[#allocation6 + $0x57]]
    %v4512 = vstv %s4511
    %v4513 = vmul.f32 %v4512, %v3575
    %v4514 = vmul.f32 %v4512, %v3684
    %v4517 = vrot.slane %v4513, 2
    %v4518 = vrot.slane %v4514, 2
    %v4521 = vadd.f32 %v4469, %v4517
    %v4522 = vadd.f32 %v4470, %v4518
    %s4523 = sld [smem:[#allocation6 + $0x7b]]
    %v4524 = vstv %s4523
    %v4525 = vmul.f32 %v4524, %v3575
    %v4526 = vmul.f32 %v4524, %v3684
    %v4529 = vrot.slane %v4525, 2
    %v4530 = vrot.slane %v4526, 2
    %v4533 = vadd.f32 %v4485, %v4529
    %v4534 = vadd.f32 %v4486, %v4530
    %s4535 = sld [smem:[#allocation6 + $0x10]]
    %v4536 = vstv %s4535
    %v4537 = vmul.f32 %v4536, %v3575
    %v4538 = vmul.f32 %v4536, %v3684
    %v4541 = vrot.slane %v4537, 2
    %v4542 = vrot.slane %v4538, 2
    %4543 = vrot.lane.b32.xlu0 %v4541, 127
    %v4544 = vpop.permute.xlu0 %4543
    %4545 = vrot.lane.b32.xlu0 %v4542, 127
    %v4546 = vpop.permute.xlu0 %4545
    %v4549 = vadd.f32 %v4497, %v4544
    %v4550 = vadd.f32 %v4498, %v4546
    %s4551 = sld [smem:[#allocation6 + $0x34]]
    %v4552 = vstv %s4551
    %v4553 = vmul.f32 %v4552, %v3575
    %v4554 = vmul.f32 %v4552, %v3684
    %v4557 = vrot.slane %v4553, 2
    %v4558 = vrot.slane %v4554, 2
    %4559 = vrot.lane.b32.xlu0 %v4557, 127
    %v4560 = vpop.permute.xlu0 %4559
    %4561 = vrot.lane.b32.xlu0 %v4558, 127
    %v4562 = vpop.permute.xlu0 %4561
    %v4565 = vadd.f32 %v4509, %v4560
    %v4566 = vadd.f32 %v4510, %v4562
    %s4567 = sld [smem:[#allocation6 + $0x58]]
    %v4568 = vstv %s4567
    %v4569 = vmul.f32 %v4568, %v3575
    %v4570 = vmul.f32 %v4568, %v3684
    %v4573 = vrot.slane %v4569, 2
    %v4574 = vrot.slane %v4570, 2
    %4575 = vrot.lane.b32.xlu0 %v4573, 127
    %v4576 = vpop.permute.xlu0 %4575
    %4577 = vrot.lane.b32.xlu0 %v4574, 127
    %v4578 = vpop.permute.xlu0 %4577
    %v4581 = vadd.f32 %v4521, %v4576
    %v4582 = vadd.f32 %v4522, %v4578
    %s4583 = sld [smem:[#allocation6 + $0x7c]]
    %v4584 = vstv %s4583
    %v4585 = vmul.f32 %v4584, %v3575
    %v4586 = vmul.f32 %v4584, %v3684
    %v4589 = vrot.slane %v4585, 2
    %v4590 = vrot.slane %v4586, 2
    %4591 = vrot.lane.b32.xlu0 %v4589, 127
    %v4592 = vpop.permute.xlu0 %4591
    %4593 = vrot.lane.b32.xlu0 %v4590, 127
    %v4594 = vpop.permute.xlu0 %4593
    %v4597 = vadd.f32 %v4533, %v4592
    %v4598 = vadd.f32 %v4534, %v4594
    %s4599 = sld [smem:[#allocation6 + $0x11]]
    %v4600 = vstv %s4599
    %v4601 = vmul.f32 %v4600, %v3575
    %v4602 = vmul.f32 %v4600, %v3684
    %v4605 = vrot.slane %v4601, 2
    %v4606 = vrot.slane %v4602, 2
    %4607 = vrot.lane.b32.xlu0 %v4605, 126
    %v4608 = vpop.permute.xlu0 %4607
    %4609 = vrot.lane.b32.xlu0 %v4606, 126
    %v4610 = vpop.permute.xlu0 %4609
    %v4613 = vadd.f32 %v4549, %v4608
    %v4614 = vadd.f32 %v4550, %v4610
    %s4615 = sld [smem:[#allocation6 + $0x35]]
    %v4616 = vstv %s4615
    %v4617 = vmul.f32 %v4616, %v3575
    %v4618 = vmul.f32 %v4616, %v3684
    %v4621 = vrot.slane %v4617, 2
    %v4622 = vrot.slane %v4618, 2
    %4623 = vrot.lane.b32.xlu0 %v4621, 126
    %v4624 = vpop.permute.xlu0 %4623
    %4625 = vrot.lane.b32.xlu0 %v4622, 126
    %v4626 = vpop.permute.xlu0 %4625
    %v4629 = vadd.f32 %v4565, %v4624
    %v4630 = vadd.f32 %v4566, %v4626
    %s4631 = sld [smem:[#allocation6 + $0x59]]
    %v4632 = vstv %s4631
    %v4633 = vmul.f32 %v4632, %v3575
    %v4634 = vmul.f32 %v4632, %v3684
    %v4637 = vrot.slane %v4633, 2
    %v4638 = vrot.slane %v4634, 2
    %4639 = vrot.lane.b32.xlu0 %v4637, 126
    %v4640 = vpop.permute.xlu0 %4639
    %4641 = vrot.lane.b32.xlu0 %v4638, 126
    %v4642 = vpop.permute.xlu0 %4641
    %v4645 = vadd.f32 %v4581, %v4640
    %v4646 = vadd.f32 %v4582, %v4642
    %s4647 = sld [smem:[#allocation6 + $0x7d]]
    %v4648 = vstv %s4647
    %v4649 = vmul.f32 %v4648, %v3575
    %v4650 = vmul.f32 %v4648, %v3684
    %v4653 = vrot.slane %v4649, 2
    %v4654 = vrot.slane %v4650, 2
    %4655 = vrot.lane.b32.xlu0 %v4653, 126
    %v4656 = vpop.permute.xlu0 %4655
    %4657 = vrot.lane.b32.xlu0 %v4654, 126
    %v4658 = vpop.permute.xlu0 %4657
    %v4661 = vadd.f32 %v4597, %v4656
    %v4662 = vadd.f32 %v4598, %v4658
    %s4663 = sld [smem:[#allocation6 + $0x12]]
    %v4664 = vstv %s4663
    %v4665 = vmul.f32 %v4664, %v3576
    %v4666 = vmul.f32 %v4664, %v3685
    %v4667 = vadd.f32 %v4613, %v4665
    %v4668 = vadd.f32 %v4614, %v4666
    %s4669 = sld [smem:[#allocation6 + $0x36]]
    %v4670 = vstv %s4669
    %v4671 = vmul.f32 %v4670, %v3576
    %v4672 = vmul.f32 %v4670, %v3685
    %v4673 = vadd.f32 %v4629, %v4671
    %v4674 = vadd.f32 %v4630, %v4672
    %s4675 = sld [smem:[#allocation6 + $0x5a]]
    %v4676 = vstv %s4675
    %v4677 = vmul.f32 %v4676, %v3576
    %v4678 = vmul.f32 %v4676, %v3685
    %v4679 = vadd.f32 %v4645, %v4677
    %v4680 = vadd.f32 %v4646, %v4678
    %s4681 = sld [smem:[#allocation6 + $0x7e]]
    %v4682 = vstv %s4681
    %v4683 = vmul.f32 %v4682, %v3576
    %v4684 = vmul.f32 %v4682, %v3685
    %v4685 = vadd.f32 %v4661, %v4683
    %v4686 = vadd.f32 %v4662, %v4684
    %s4687 = sld [smem:[#allocation6 + $0x13]]
    %v4688 = vstv %s4687
    %v4689 = vmul.f32 %v4688, %v3576
    %v4690 = vmul.f32 %v4688, %v3685
    %4693 = vrot.lane.b32.xlu0 %v4689, 127
    %v4694 = vpop.permute.xlu0 %4693
    %4695 = vrot.lane.b32.xlu0 %v4690, 127
    %v4696 = vpop.permute.xlu0 %4695
    %v4699 = vadd.f32 %v4667, %v4694
    %v4700 = vadd.f32 %v4668, %v4696
    %s4701 = sld [smem:[#allocation6 + $0x37]]
    %v4702 = vstv %s4701
    %v4703 = vmul.f32 %v4702, %v3576
    %v4704 = vmul.f32 %v4702, %v3685
    %4707 = vrot.lane.b32.xlu0 %v4703, 127
    %v4708 = vpop.permute.xlu0 %4707
    %4709 = vrot.lane.b32.xlu0 %v4704, 127
    %v4710 = vpop.permute.xlu0 %4709
    %v4713 = vadd.f32 %v4673, %v4708
    %v4714 = vadd.f32 %v4674, %v4710
    %s4715 = sld [smem:[#allocation6 + $0x5b]]
    %v4716 = vstv %s4715
    %v4717 = vmul.f32 %v4716, %v3576
    %v4718 = vmul.f32 %v4716, %v3685
    %4721 = vrot.lane.b32.xlu0 %v4717, 127
    %v4722 = vpop.permute.xlu0 %4721
    %4723 = vrot.lane.b32.xlu0 %v4718, 127
    %v4724 = vpop.permute.xlu0 %4723
    %v4727 = vadd.f32 %v4679, %v4722
    %v4728 = vadd.f32 %v4680, %v4724
    %s4729 = sld [smem:[#allocation6 + $0x7f]]
    %v4730 = vstv %s4729
    %v4731 = vmul.f32 %v4730, %v3576
    %v4732 = vmul.f32 %v4730, %v3685
    %4735 = vrot.lane.b32.xlu0 %v4731, 127
    %v4736 = vpop.permute.xlu0 %4735
    %4737 = vrot.lane.b32.xlu0 %v4732, 127
    %v4738 = vpop.permute.xlu0 %4737
    %v4741 = vadd.f32 %v4685, %v4736
    %v4742 = vadd.f32 %v4686, %v4738
    %s4743 = sld [smem:[#allocation6 + $0x14]]
    %v4744 = vstv %s4743
    %v4745 = vmul.f32 %v4744, %v3576
    %v4746 = vmul.f32 %v4744, %v3685
    %4749 = vrot.lane.b32.xlu0 %v4745, 126
    %v4750 = vpop.permute.xlu0 %4749
    %4751 = vrot.lane.b32.xlu0 %v4746, 126
    %v4752 = vpop.permute.xlu0 %4751
    %v4755 = vadd.f32 %v4699, %v4750
    %v4756 = vadd.f32 %v4700, %v4752
    %s4757 = sld [smem:[#allocation6 + $0x38]]
    %v4758 = vstv %s4757
    %v4759 = vmul.f32 %v4758, %v3576
    %v4760 = vmul.f32 %v4758, %v3685
    %4763 = vrot.lane.b32.xlu0 %v4759, 126
    %v4764 = vpop.permute.xlu0 %4763
    %4765 = vrot.lane.b32.xlu0 %v4760, 126
    %v4766 = vpop.permute.xlu0 %4765
    %v4769 = vadd.f32 %v4713, %v4764
    %v4770 = vadd.f32 %v4714, %v4766
    %s4771 = sld [smem:[#allocation6 + $0x5c]]
    %v4772 = vstv %s4771
    %v4773 = vmul.f32 %v4772, %v3576
    %v4774 = vmul.f32 %v4772, %v3685
    %4777 = vrot.lane.b32.xlu0 %v4773, 126
    %v4778 = vpop.permute.xlu0 %4777
    %4779 = vrot.lane.b32.xlu0 %v4774, 126
    %v4780 = vpop.permute.xlu0 %4779
    %v4783 = vadd.f32 %v4727, %v4778
    %v4784 = vadd.f32 %v4728, %v4780
    %s4785 = sld [smem:[#allocation6 + $0x80]]
    %v4786 = vstv %s4785
    %v4787 = vmul.f32 %v4786, %v3576
    %v4788 = vmul.f32 %v4786, %v3685
    %4791 = vrot.lane.b32.xlu0 %v4787, 126
    %v4792 = vpop.permute.xlu0 %4791
    %4793 = vrot.lane.b32.xlu0 %v4788, 126
    %v4794 = vpop.permute.xlu0 %4793
    %v4797 = vadd.f32 %v4741, %v4792
    %v4798 = vadd.f32 %v4742, %v4794
    %s4799 = sld [smem:[#allocation6 + $0x15]]
    %v4800 = vstv %s4799
    %v4801 = vmul.f32 %v4800, %v3576
    %v4802 = vmul.f32 %v4800, %v3685
    %v4805 = vrot.slane %v4801, 1
    %v4806 = vrot.slane %v4802, 1
    %v4809 = vadd.f32 %v4755, %v4805
    %v4810 = vadd.f32 %v4756, %v4806
    %s4811 = sld [smem:[#allocation6 + $0x39]]
    %v4812 = vstv %s4811
    %v4813 = vmul.f32 %v4812, %v3576
    %v4814 = vmul.f32 %v4812, %v3685
    %v4817 = vrot.slane %v4813, 1
    %v4818 = vrot.slane %v4814, 1
    %v4821 = vadd.f32 %v4769, %v4817
    %v4822 = vadd.f32 %v4770, %v4818
    %s4823 = sld [smem:[#allocation6 + $0x5d]]
    %v4824 = vstv %s4823
    %v4825 = vmul.f32 %v4824, %v3576
    %v4826 = vmul.f32 %v4824, %v3685
    %v4829 = vrot.slane %v4825, 1
    %v4830 = vrot.slane %v4826, 1
    %v4833 = vadd.f32 %v4783, %v4829
    %v4834 = vadd.f32 %v4784, %v4830
    %s4835 = sld [smem:[#allocation6 + $0x81]]
    %v4836 = vstv %s4835
    %v4837 = vmul.f32 %v4836, %v3576
    %v4838 = vmul.f32 %v4836, %v3685
    %v4841 = vrot.slane %v4837, 1
    %v4842 = vrot.slane %v4838, 1
    %v4845 = vadd.f32 %v4797, %v4841
    %v4846 = vadd.f32 %v4798, %v4842
    %s4847 = sld [smem:[#allocation6 + $0x16]]
    %v4848 = vstv %s4847
    %v4849 = vmul.f32 %v4848, %v3576
    %v4850 = vmul.f32 %v4848, %v3685
    %v4853 = vrot.slane %v4849, 1
    %v4854 = vrot.slane %v4850, 1
    %4855 = vrot.lane.b32.xlu0 %v4853, 127
    %v4856 = vpop.permute.xlu0 %4855
    %4857 = vrot.lane.b32.xlu0 %v4854, 127
    %v4858 = vpop.permute.xlu0 %4857
    %v4861 = vadd.f32 %v4809, %v4856
    %v4862 = vadd.f32 %v4810, %v4858
    %s4863 = sld [smem:[#allocation6 + $0x3a]]
    %v4864 = vstv %s4863
    %v4865 = vmul.f32 %v4864, %v3576
    %v4866 = vmul.f32 %v4864, %v3685
    %v4869 = vrot.slane %v4865, 1
    %v4870 = vrot.slane %v4866, 1
    %4871 = vrot.lane.b32.xlu0 %v4869, 127
    %v4872 = vpop.permute.xlu0 %4871
    %4873 = vrot.lane.b32.xlu0 %v4870, 127
    %v4874 = vpop.permute.xlu0 %4873
    %v4877 = vadd.f32 %v4821, %v4872
    %v4878 = vadd.f32 %v4822, %v4874
    %s4879 = sld [smem:[#allocation6 + $0x5e]]
    %v4880 = vstv %s4879
    %v4881 = vmul.f32 %v4880, %v3576
    %v4882 = vmul.f32 %v4880, %v3685
    %v4885 = vrot.slane %v4881, 1
    %v4886 = vrot.slane %v4882, 1
    %4887 = vrot.lane.b32.xlu0 %v4885, 127
    %v4888 = vpop.permute.xlu0 %4887
    %4889 = vrot.lane.b32.xlu0 %v4886, 127
    %v4890 = vpop.permute.xlu0 %4889
    %v4893 = vadd.f32 %v4833, %v4888
    %v4894 = vadd.f32 %v4834, %v4890
    %s4895 = sld [smem:[#allocation6 + $0x82]]
    %v4896 = vstv %s4895
    %v4897 = vmul.f32 %v4896, %v3576
    %v4898 = vmul.f32 %v4896, %v3685
    %v4901 = vrot.slane %v4897, 1
    %v4902 = vrot.slane %v4898, 1
    %4903 = vrot.lane.b32.xlu0 %v4901, 127
    %v4904 = vpop.permute.xlu0 %4903
    %4905 = vrot.lane.b32.xlu0 %v4902, 127
    %v4906 = vpop.permute.xlu0 %4905
    %v4909 = vadd.f32 %v4845, %v4904
    %v4910 = vadd.f32 %v4846, %v4906
    %s4911 = sld [smem:[#allocation6 + $0x17]]
    %v4912 = vstv %s4911
    %v4913 = vmul.f32 %v4912, %v3576
    %v4914 = vmul.f32 %v4912, %v3685
    %v4917 = vrot.slane %v4913, 1
    %v4918 = vrot.slane %v4914, 1
    %4919 = vrot.lane.b32.xlu0 %v4917, 126
    %v4920 = vpop.permute.xlu0 %4919
    %4921 = vrot.lane.b32.xlu0 %v4918, 126
    %v4922 = vpop.permute.xlu0 %4921
    %v4925 = vadd.f32 %v4861, %v4920
    %v4926 = vadd.f32 %v4862, %v4922
    %s4927 = sld [smem:[#allocation6 + $0x3b]]
    %v4928 = vstv %s4927
    %v4929 = vmul.f32 %v4928, %v3576
    %v4930 = vmul.f32 %v4928, %v3685
    %v4933 = vrot.slane %v4929, 1
    %v4934 = vrot.slane %v4930, 1
    %4935 = vrot.lane.b32.xlu0 %v4933, 126
    %v4936 = vpop.permute.xlu0 %4935
    %4937 = vrot.lane.b32.xlu0 %v4934, 126
    %v4938 = vpop.permute.xlu0 %4937
    %v4941 = vadd.f32 %v4877, %v4936
    %v4942 = vadd.f32 %v4878, %v4938
    %s4943 = sld [smem:[#allocation6 + $0x5f]]
    %v4944 = vstv %s4943
    %v4945 = vmul.f32 %v4944, %v3576
    %v4946 = vmul.f32 %v4944, %v3685
    %v4949 = vrot.slane %v4945, 1
    %v4950 = vrot.slane %v4946, 1
    %4951 = vrot.lane.b32.xlu0 %v4949, 126
    %v4952 = vpop.permute.xlu0 %4951
    %4953 = vrot.lane.b32.xlu0 %v4950, 126
    %v4954 = vpop.permute.xlu0 %4953
    %v4957 = vadd.f32 %v4893, %v4952
    %v4958 = vadd.f32 %v4894, %v4954
    %s4959 = sld [smem:[#allocation6 + $0x83]]
    %v4960 = vstv %s4959
    %v4961 = vmul.f32 %v4960, %v3576
    %v4962 = vmul.f32 %v4960, %v3685
    %v4965 = vrot.slane %v4961, 1
    %v4966 = vrot.slane %v4962, 1
    %4967 = vrot.lane.b32.xlu0 %v4965, 126
    %v4968 = vpop.permute.xlu0 %4967
    %4969 = vrot.lane.b32.xlu0 %v4966, 126
    %v4970 = vpop.permute.xlu0 %4969
    %v4973 = vadd.f32 %v4909, %v4968
    %v4974 = vadd.f32 %v4910, %v4970
    %s4975 = sld [smem:[#allocation6 + $0x18]]
    %v4976 = vstv %s4975
    %v4977 = vmul.f32 %v4976, %v3576
    %v4978 = vmul.f32 %v4976, %v3685
    %v4981 = vrot.slane %v4977, 2
    %v4982 = vrot.slane %v4978, 2
    %v4985 = vadd.f32 %v4925, %v4981
    %v4986 = vadd.f32 %v4926, %v4982
    %s4987 = sld [smem:[#allocation6 + $0x3c]]
    %v4988 = vstv %s4987
    %v4989 = vmul.f32 %v4988, %v3576
    %v4990 = vmul.f32 %v4988, %v3685
    %v4993 = vrot.slane %v4989, 2
    %v4994 = vrot.slane %v4990, 2
    %v4997 = vadd.f32 %v4941, %v4993
    %v4998 = vadd.f32 %v4942, %v4994
    %s4999 = sld [smem:[#allocation6 + $0x60]]
    %v5000 = vstv %s4999
    %v5001 = vmul.f32 %v5000, %v3576
    %v5002 = vmul.f32 %v5000, %v3685
    %v5005 = vrot.slane %v5001, 2
    %v5006 = vrot.slane %v5002, 2
    %v5009 = vadd.f32 %v4957, %v5005
    %v5010 = vadd.f32 %v4958, %v5006
    %s5011 = sld [smem:[#allocation6 + $0x84]]
    %v5012 = vstv %s5011
    %v5013 = vmul.f32 %v5012, %v3576
    %v5014 = vmul.f32 %v5012, %v3685
    %v5017 = vrot.slane %v5013, 2
    %v5018 = vrot.slane %v5014, 2
    %v5021 = vadd.f32 %v4973, %v5017
    %v5022 = vadd.f32 %v4974, %v5018
    %s5023 = sld [smem:[#allocation6 + $0x19]]
    %v5024 = vstv %s5023
    %v5025 = vmul.f32 %v5024, %v3576
    %v5026 = vmul.f32 %v5024, %v3685
    %v5029 = vrot.slane %v5025, 2
    %v5030 = vrot.slane %v5026, 2
    %5031 = vrot.lane.b32.xlu0 %v5029, 127
    %v5032 = vpop.permute.xlu0 %5031
    %5033 = vrot.lane.b32.xlu0 %v5030, 127
    %v5034 = vpop.permute.xlu0 %5033
    %v5037 = vadd.f32 %v4985, %v5032
    %v5038 = vadd.f32 %v4986, %v5034
    %s5039 = sld [smem:[#allocation6 + $0x3d]]
    %v5040 = vstv %s5039
    %v5041 = vmul.f32 %v5040, %v3576
    %v5042 = vmul.f32 %v5040, %v3685
    %v5045 = vrot.slane %v5041, 2
    %v5046 = vrot.slane %v5042, 2
    %5047 = vrot.lane.b32.xlu0 %v5045, 127
    %v5048 = vpop.permute.xlu0 %5047
    %5049 = vrot.lane.b32.xlu0 %v5046, 127
    %v5050 = vpop.permute.xlu0 %5049
    %v5053 = vadd.f32 %v4997, %v5048
    %v5054 = vadd.f32 %v4998, %v5050
    %s5055 = sld [smem:[#allocation6 + $0x61]]
    %v5056 = vstv %s5055
    %v5057 = vmul.f32 %v5056, %v3576
    %v5058 = vmul.f32 %v5056, %v3685
    %v5061 = vrot.slane %v5057, 2
    %v5062 = vrot.slane %v5058, 2
    %5063 = vrot.lane.b32.xlu0 %v5061, 127
    %v5064 = vpop.permute.xlu0 %5063
    %5065 = vrot.lane.b32.xlu0 %v5062, 127
    %v5066 = vpop.permute.xlu0 %5065
    %v5069 = vadd.f32 %v5009, %v5064
    %v5070 = vadd.f32 %v5010, %v5066
    %s5071 = sld [smem:[#allocation6 + $0x85]]
    %v5072 = vstv %s5071
    %v5073 = vmul.f32 %v5072, %v3576
    %v5074 = vmul.f32 %v5072, %v3685
    %v5077 = vrot.slane %v5073, 2
    %v5078 = vrot.slane %v5074, 2
    %5079 = vrot.lane.b32.xlu0 %v5077, 127
    %v5080 = vpop.permute.xlu0 %5079
    %5081 = vrot.lane.b32.xlu0 %v5078, 127
    %v5082 = vpop.permute.xlu0 %5081
    %v5085 = vadd.f32 %v5021, %v5080
    %v5086 = vadd.f32 %v5022, %v5082
    %s5087 = sld [smem:[#allocation6 + $0x1a]]
    %v5088 = vstv %s5087
    %v5089 = vmul.f32 %v5088, %v3576
    %v5090 = vmul.f32 %v5088, %v3685
    %v5093 = vrot.slane %v5089, 2
    %v5094 = vrot.slane %v5090, 2
    %5095 = vrot.lane.b32.xlu0 %v5093, 126
    %v5096 = vpop.permute.xlu0 %5095
    %5097 = vrot.lane.b32.xlu0 %v5094, 126
    %v5098 = vpop.permute.xlu0 %5097
    %v5101 = vadd.f32 %v5037, %v5096
    %v5102 = vadd.f32 %v5038, %v5098
    %s5103 = sld [smem:[#allocation6 + $0x3e]]
    %v5104 = vstv %s5103
    %v5105 = vmul.f32 %v5104, %v3576
    %v5106 = vmul.f32 %v5104, %v3685
    %v5109 = vrot.slane %v5105, 2
    %v5110 = vrot.slane %v5106, 2
    %5111 = vrot.lane.b32.xlu0 %v5109, 126
    %v5112 = vpop.permute.xlu0 %5111
    %5113 = vrot.lane.b32.xlu0 %v5110, 126
    %v5114 = vpop.permute.xlu0 %5113
    %v5117 = vadd.f32 %v5053, %v5112
    %v5118 = vadd.f32 %v5054, %v5114
    %s5119 = sld [smem:[#allocation6 + $0x62]]
    %v5120 = vstv %s5119
    %v5121 = vmul.f32 %v5120, %v3576
    %v5122 = vmul.f32 %v5120, %v3685
    %v5125 = vrot.slane %v5121, 2
    %v5126 = vrot.slane %v5122, 2
    %5127 = vrot.lane.b32.xlu0 %v5125, 126
    %v5128 = vpop.permute.xlu0 %5127
    %5129 = vrot.lane.b32.xlu0 %v5126, 126
    %v5130 = vpop.permute.xlu0 %5129
    %v5133 = vadd.f32 %v5069, %v5128
    %v5134 = vadd.f32 %v5070, %v5130
    %s5135 = sld [smem:[#allocation6 + $0x86]]
    %v5136 = vstv %s5135
    %v5137 = vmul.f32 %v5136, %v3576
    %v5138 = vmul.f32 %v5136, %v3685
    %v5141 = vrot.slane %v5137, 2
    %v5142 = vrot.slane %v5138, 2
    %5143 = vrot.lane.b32.xlu0 %v5141, 126
    %v5144 = vpop.permute.xlu0 %5143
    %5145 = vrot.lane.b32.xlu0 %v5142, 126
    %v5146 = vpop.permute.xlu0 %5145
    %v5149 = vadd.f32 %v5085, %v5144
    %v5150 = vadd.f32 %v5086, %v5146
    %s5151 = sld [smem:[#allocation6 + $0x1b]]
    %v5152 = vstv %s5151
    %v5153 = vmul.f32 %v5152, %v3577
    %v5154 = vmul.f32 %v5152, %v3686
    %v5155 = vadd.f32 %v5101, %v5153
    %v5156 = vadd.f32 %v5102, %v5154
    %s5157 = sld [smem:[#allocation6 + $0x3f]]
    %v5158 = vstv %s5157
    %v5159 = vmul.f32 %v5158, %v3577
    %v5160 = vmul.f32 %v5158, %v3686
    %v5161 = vadd.f32 %v5117, %v5159
    %v5162 = vadd.f32 %v5118, %v5160
    %s5163 = sld [smem:[#allocation6 + $0x63]]
    %v5164 = vstv %s5163
    %v5165 = vmul.f32 %v5164, %v3577
    %v5166 = vmul.f32 %v5164, %v3686
    %v5167 = vadd.f32 %v5133, %v5165
    %v5168 = vadd.f32 %v5134, %v5166
    %s5169 = sld [smem:[#allocation6 + $0x87]]
    %v5170 = vstv %s5169
    %v5171 = vmul.f32 %v5170, %v3577
    %v5172 = vmul.f32 %v5170, %v3686
    %v5173 = vadd.f32 %v5149, %v5171
    %v5174 = vadd.f32 %v5150, %v5172
    %s5175 = sld [smem:[#allocation6 + $0x1c]]
    %v5176 = vstv %s5175
    %v5177 = vmul.f32 %v5176, %v3577
    %v5178 = vmul.f32 %v5176, %v3686
    %5181 = vrot.lane.b32.xlu0 %v5177, 127
    %v5182 = vpop.permute.xlu0 %5181
    %5183 = vrot.lane.b32.xlu0 %v5178, 127
    %v5184 = vpop.permute.xlu0 %5183
    %v5187 = vadd.f32 %v5155, %v5182
    %v5188 = vadd.f32 %v5156, %v5184
    %s5189 = sld [smem:[#allocation6 + $0x40]]
    %v5190 = vstv %s5189
    %v5191 = vmul.f32 %v5190, %v3577
    %v5192 = vmul.f32 %v5190, %v3686
    %5195 = vrot.lane.b32.xlu0 %v5191, 127
    %v5196 = vpop.permute.xlu0 %5195
    %5197 = vrot.lane.b32.xlu0 %v5192, 127
    %v5198 = vpop.permute.xlu0 %5197
    %v5201 = vadd.f32 %v5161, %v5196
    %v5202 = vadd.f32 %v5162, %v5198
    %s5203 = sld [smem:[#allocation6 + $0x64]]
    %v5204 = vstv %s5203
    %v5205 = vmul.f32 %v5204, %v3577
    %v5206 = vmul.f32 %v5204, %v3686
    %5209 = vrot.lane.b32.xlu0 %v5205, 127
    %v5210 = vpop.permute.xlu0 %5209
    %5211 = vrot.lane.b32.xlu0 %v5206, 127
    %v5212 = vpop.permute.xlu0 %5211
    %v5215 = vadd.f32 %v5167, %v5210
    %v5216 = vadd.f32 %v5168, %v5212
    %s5217 = sld [smem:[#allocation6 + $0x88]]
    %v5218 = vstv %s5217
    %v5219 = vmul.f32 %v5218, %v3577
    %v5220 = vmul.f32 %v5218, %v3686
    %5223 = vrot.lane.b32.xlu0 %v5219, 127
    %v5224 = vpop.permute.xlu0 %5223
    %5225 = vrot.lane.b32.xlu0 %v5220, 127
    %v5226 = vpop.permute.xlu0 %5225
    %v5229 = vadd.f32 %v5173, %v5224
    %v5230 = vadd.f32 %v5174, %v5226
    %s5231 = sld [smem:[#allocation6 + $0x1d]]
    %v5232 = vstv %s5231
    %v5233 = vmul.f32 %v5232, %v3577
    %v5234 = vmul.f32 %v5232, %v3686
    %5237 = vrot.lane.b32.xlu0 %v5233, 126
    %v5238 = vpop.permute.xlu0 %5237
    %5239 = vrot.lane.b32.xlu0 %v5234, 126
    %v5240 = vpop.permute.xlu0 %5239
    %v5243 = vadd.f32 %v5187, %v5238
    %v5244 = vadd.f32 %v5188, %v5240
    %s5245 = sld [smem:[#allocation6 + $0x41]]
    %v5246 = vstv %s5245
    %v5247 = vmul.f32 %v5246, %v3577
    %v5248 = vmul.f32 %v5246, %v3686
    %5251 = vrot.lane.b32.xlu0 %v5247, 126
    %v5252 = vpop.permute.xlu0 %5251
    %5253 = vrot.lane.b32.xlu0 %v5248, 126
    %v5254 = vpop.permute.xlu0 %5253
    %v5257 = vadd.f32 %v5201, %v5252
    %v5258 = vadd.f32 %v5202, %v5254
    %s5259 = sld [smem:[#allocation6 + $0x65]]
    %v5260 = vstv %s5259
    %v5261 = vmul.f32 %v5260, %v3577
    %v5262 = vmul.f32 %v5260, %v3686
    %5265 = vrot.lane.b32.xlu0 %v5261, 126
    %v5266 = vpop.permute.xlu0 %5265
    %5267 = vrot.lane.b32.xlu0 %v5262, 126
    %v5268 = vpop.permute.xlu0 %5267
    %v5271 = vadd.f32 %v5215, %v5266
    %v5272 = vadd.f32 %v5216, %v5268
    %s5273 = sld [smem:[#allocation6 + $0x89]]
    %v5274 = vstv %s5273
    %v5275 = vmul.f32 %v5274, %v3577
    %v5276 = vmul.f32 %v5274, %v3686
    %5279 = vrot.lane.b32.xlu0 %v5275, 126
    %v5280 = vpop.permute.xlu0 %5279
    %5281 = vrot.lane.b32.xlu0 %v5276, 126
    %v5282 = vpop.permute.xlu0 %5281
    %v5285 = vadd.f32 %v5229, %v5280
    %v5286 = vadd.f32 %v5230, %v5282
    %s5287 = sld [smem:[#allocation6 + $0x1e]]
    %v5288 = vstv %s5287
    %v5289 = vmul.f32 %v5288, %v3577
    %v5290 = vmul.f32 %v5288, %v3686
    %v5293 = vrot.slane %v5289, 1
    %v5294 = vrot.slane %v5290, 1
    %v5297 = vadd.f32 %v5243, %v5293
    %v5298 = vadd.f32 %v5244, %v5294
    %s5299 = sld [smem:[#allocation6 + $0x42]]
    %v5300 = vstv %s5299
    %v5301 = vmul.f32 %v5300, %v3577
    %v5302 = vmul.f32 %v5300, %v3686
    %v5305 = vrot.slane %v5301, 1
    %v5306 = vrot.slane %v5302, 1
    %v5309 = vadd.f32 %v5257, %v5305
    %v5310 = vadd.f32 %v5258, %v5306
    %s5311 = sld [smem:[#allocation6 + $0x66]]
    %v5312 = vstv %s5311
    %v5313 = vmul.f32 %v5312, %v3577
    %v5314 = vmul.f32 %v5312, %v3686
    %v5317 = vrot.slane %v5313, 1
    %v5318 = vrot.slane %v5314, 1
    %v5321 = vadd.f32 %v5271, %v5317
    %v5322 = vadd.f32 %v5272, %v5318
    %s5323 = sld [smem:[#allocation6 + $0x8a]]
    %v5324 = vstv %s5323
    %v5325 = vmul.f32 %v5324, %v3577
    %v5326 = vmul.f32 %v5324, %v3686
    %v5329 = vrot.slane %v5325, 1
    %v5330 = vrot.slane %v5326, 1
    %v5333 = vadd.f32 %v5285, %v5329
    %v5334 = vadd.f32 %v5286, %v5330
    %s5335 = sld [smem:[#allocation6 + $0x1f]]
    %v5336 = vstv %s5335
    %v5337 = vmul.f32 %v5336, %v3577
    %v5338 = vmul.f32 %v5336, %v3686
    %v5341 = vrot.slane %v5337, 1
    %v5342 = vrot.slane %v5338, 1
    %5343 = vrot.lane.b32.xlu0 %v5341, 127
    %v5344 = vpop.permute.xlu0 %5343
    %5345 = vrot.lane.b32.xlu0 %v5342, 127
    %v5346 = vpop.permute.xlu0 %5345
    %v5349 = vadd.f32 %v5297, %v5344
    %v5350 = vadd.f32 %v5298, %v5346
    %s5351 = sld [smem:[#allocation6 + $0x43]]
    %v5352 = vstv %s5351
    %v5353 = vmul.f32 %v5352, %v3577
    %v5354 = vmul.f32 %v5352, %v3686
    %v5357 = vrot.slane %v5353, 1
    %v5358 = vrot.slane %v5354, 1
    %5359 = vrot.lane.b32.xlu0 %v5357, 127
    %v5360 = vpop.permute.xlu0 %5359
    %5361 = vrot.lane.b32.xlu0 %v5358, 127
    %v5362 = vpop.permute.xlu0 %5361
    %v5365 = vadd.f32 %v5309, %v5360
    %v5366 = vadd.f32 %v5310, %v5362
    %s5367 = sld [smem:[#allocation6 + $0x67]]
    %v5368 = vstv %s5367
    %v5369 = vmul.f32 %v5368, %v3577
    %v5370 = vmul.f32 %v5368, %v3686
    %v5373 = vrot.slane %v5369, 1
    %v5374 = vrot.slane %v5370, 1
    %5375 = vrot.lane.b32.xlu0 %v5373, 127
    %v5376 = vpop.permute.xlu0 %5375
    %5377 = vrot.lane.b32.xlu0 %v5374, 127
    %v5378 = vpop.permute.xlu0 %5377
    %v5381 = vadd.f32 %v5321, %v5376
    %v5382 = vadd.f32 %v5322, %v5378
    %s5383 = sld [smem:[#allocation6 + $0x8b]]
    %v5384 = vstv %s5383
    %v5385 = vmul.f32 %v5384, %v3577
    %v5386 = vmul.f32 %v5384, %v3686
    %v5389 = vrot.slane %v5385, 1
    %v5390 = vrot.slane %v5386, 1
    %5391 = vrot.lane.b32.xlu0 %v5389, 127
    %v5392 = vpop.permute.xlu0 %5391
    %5393 = vrot.lane.b32.xlu0 %v5390, 127
    %v5394 = vpop.permute.xlu0 %5393
    %v5397 = vadd.f32 %v5333, %v5392
    %v5398 = vadd.f32 %v5334, %v5394
    %s5399 = sld [smem:[#allocation6 + $0x20]]
    %v5400 = vstv %s5399
    %v5401 = vmul.f32 %v5400, %v3577
    %v5402 = vmul.f32 %v5400, %v3686
    %v5405 = vrot.slane %v5401, 1
    %v5406 = vrot.slane %v5402, 1
    %5407 = vrot.lane.b32.xlu0 %v5405, 126
    %v5408 = vpop.permute.xlu0 %5407
    %5409 = vrot.lane.b32.xlu0 %v5406, 126
    %v5410 = vpop.permute.xlu0 %5409
    %v5413 = vadd.f32 %v5349, %v5408
    %v5414 = vadd.f32 %v5350, %v5410
    %s5415 = sld [smem:[#allocation6 + $0x44]]
    %v5416 = vstv %s5415
    %v5417 = vmul.f32 %v5416, %v3577
    %v5418 = vmul.f32 %v5416, %v3686
    %v5421 = vrot.slane %v5417, 1
    %v5422 = vrot.slane %v5418, 1
    %5423 = vrot.lane.b32.xlu0 %v5421, 126
    %v5424 = vpop.permute.xlu0 %5423
    %5425 = vrot.lane.b32.xlu0 %v5422, 126
    %v5426 = vpop.permute.xlu0 %5425
    %v5429 = vadd.f32 %v5365, %v5424
    %v5430 = vadd.f32 %v5366, %v5426
    %s5431 = sld [smem:[#allocation6 + $0x68]]
    %v5432 = vstv %s5431
    %v5433 = vmul.f32 %v5432, %v3577
    %v5434 = vmul.f32 %v5432, %v3686
    %v5437 = vrot.slane %v5433, 1
    %v5438 = vrot.slane %v5434, 1
    %5439 = vrot.lane.b32.xlu0 %v5437, 126
    %v5440 = vpop.permute.xlu0 %5439
    %5441 = vrot.lane.b32.xlu0 %v5438, 126
    %v5442 = vpop.permute.xlu0 %5441
    %v5445 = vadd.f32 %v5381, %v5440
    %v5446 = vadd.f32 %v5382, %v5442
    %s5447 = sld [smem:[#allocation6 + $0x8c]]
    %v5448 = vstv %s5447
    %v5449 = vmul.f32 %v5448, %v3577
    %v5450 = vmul.f32 %v5448, %v3686
    %v5453 = vrot.slane %v5449, 1
    %v5454 = vrot.slane %v5450, 1
    %5455 = vrot.lane.b32.xlu0 %v5453, 126
    %v5456 = vpop.permute.xlu0 %5455
    %5457 = vrot.lane.b32.xlu0 %v5454, 126
    %v5458 = vpop.permute.xlu0 %5457
    %v5461 = vadd.f32 %v5397, %v5456
    %v5462 = vadd.f32 %v5398, %v5458
    %s5463 = sld [smem:[#allocation6 + $0x21]]
    %v5464 = vstv %s5463
    %v5465 = vmul.f32 %v5464, %v3577
    %v5466 = vmul.f32 %v5464, %v3686
    %v5469 = vrot.slane %v5465, 2
    %v5470 = vrot.slane %v5466, 2
    %v5473 = vadd.f32 %v5413, %v5469
    %v5474 = vadd.f32 %v5414, %v5470
    %s5475 = sld [smem:[#allocation6 + $0x45]]
    %v5476 = vstv %s5475
    %v5477 = vmul.f32 %v5476, %v3577
    %v5478 = vmul.f32 %v5476, %v3686
    %v5481 = vrot.slane %v5477, 2
    %v5482 = vrot.slane %v5478, 2
    %v5485 = vadd.f32 %v5429, %v5481
    %v5486 = vadd.f32 %v5430, %v5482
    %s5487 = sld [smem:[#allocation6 + $0x69]]
    %v5488 = vstv %s5487
    %v5489 = vmul.f32 %v5488, %v3577
    %v5490 = vmul.f32 %v5488, %v3686
    %v5493 = vrot.slane %v5489, 2
    %v5494 = vrot.slane %v5490, 2
    %v5497 = vadd.f32 %v5445, %v5493
    %v5498 = vadd.f32 %v5446, %v5494
    %s5499 = sld [smem:[#allocation6 + $0x8d]]
    %v5500 = vstv %s5499
    %v5501 = vmul.f32 %v5500, %v3577
    %v5502 = vmul.f32 %v5500, %v3686
    %v5505 = vrot.slane %v5501, 2
    %v5506 = vrot.slane %v5502, 2
    %v5509 = vadd.f32 %v5461, %v5505
    %v5510 = vadd.f32 %v5462, %v5506
    %s5511 = sld [smem:[#allocation6 + $0x22]]
    %v5512 = vstv %s5511
    %v5513 = vmul.f32 %v5512, %v3577
    %v5514 = vmul.f32 %v5512, %v3686
    %v5517 = vrot.slane %v5513, 2
    %v5518 = vrot.slane %v5514, 2
    %5519 = vrot.lane.b32.xlu0 %v5517, 127
    %v5520 = vpop.permute.xlu0 %5519
    %5521 = vrot.lane.b32.xlu0 %v5518, 127
    %v5522 = vpop.permute.xlu0 %5521
    %v5525 = vadd.f32 %v5473, %v5520
    %v5526 = vadd.f32 %v5474, %v5522
    %s5527 = sld [smem:[#allocation6 + $0x46]]
    %v5528 = vstv %s5527
    %v5529 = vmul.f32 %v5528, %v3577
    %v5530 = vmul.f32 %v5528, %v3686
    %v5533 = vrot.slane %v5529, 2
    %v5534 = vrot.slane %v5530, 2
    %5535 = vrot.lane.b32.xlu0 %v5533, 127
    %v5536 = vpop.permute.xlu0 %5535
    %5537 = vrot.lane.b32.xlu0 %v5534, 127
    %v5538 = vpop.permute.xlu0 %5537
    %v5541 = vadd.f32 %v5485, %v5536
    %v5542 = vadd.f32 %v5486, %v5538
    %s5543 = sld [smem:[#allocation6 + $0x6a]]
    %v5544 = vstv %s5543
    %v5545 = vmul.f32 %v5544, %v3577
    %v5546 = vmul.f32 %v5544, %v3686
    %v5549 = vrot.slane %v5545, 2
    %v5550 = vrot.slane %v5546, 2
    %5551 = vrot.lane.b32.xlu0 %v5549, 127
    %v5552 = vpop.permute.xlu0 %5551
    %5553 = vrot.lane.b32.xlu0 %v5550, 127
    %v5554 = vpop.permute.xlu0 %5553
    %v5557 = vadd.f32 %v5497, %v5552
    %v5558 = vadd.f32 %v5498, %v5554
    %s5559 = sld [smem:[#allocation6 + $0x8e]]
    %v5560 = vstv %s5559
    %v5561 = vmul.f32 %v5560, %v3577
    %v5562 = vmul.f32 %v5560, %v3686
    %v5565 = vrot.slane %v5561, 2
    %v5566 = vrot.slane %v5562, 2
    %5567 = vrot.lane.b32.xlu0 %v5565, 127
    %v5568 = vpop.permute.xlu0 %5567
    %5569 = vrot.lane.b32.xlu0 %v5566, 127
    %v5570 = vpop.permute.xlu0 %5569
    %v5573 = vadd.f32 %v5509, %v5568
    %v5574 = vadd.f32 %v5510, %v5570
    %s5575 = sld [smem:[#allocation6 + $0x23]]
    %v5576 = vstv %s5575
    %v5577 = vmul.f32 %v5576, %v3577
    %v5578 = vmul.f32 %v5576, %v3686
    %v5581 = vrot.slane %v5577, 2
    %v5582 = vrot.slane %v5578, 2
    %5583 = vrot.lane.b32.xlu0 %v5581, 126
    %v5584 = vpop.permute.xlu0 %5583
    %5585 = vrot.lane.b32.xlu0 %v5582, 126
    %v5586 = vpop.permute.xlu0 %5585
    %v5589 = vadd.f32 %v5525, %v5584
    %v5590 = vadd.f32 %v5526, %v5586
    %s5591 = sld [smem:[#allocation6 + $0x47]]
    %v5592 = vstv %s5591
    %v5593 = vmul.f32 %v5592, %v3577
    %v5594 = vmul.f32 %v5592, %v3686
    %v5597 = vrot.slane %v5593, 2
    %v5598 = vrot.slane %v5594, 2
    %5599 = vrot.lane.b32.xlu0 %v5597, 126
    %v5600 = vpop.permute.xlu0 %5599
    %5601 = vrot.lane.b32.xlu0 %v5598, 126
    %v5602 = vpop.permute.xlu0 %5601
    %v5605 = vadd.f32 %v5541, %v5600
    %v5606 = vadd.f32 %v5542, %v5602
    %s5607 = sld [smem:[#allocation6 + $0x6b]]
    %v5608 = vstv %s5607
    %v5609 = vmul.f32 %v5608, %v3577
    %v5610 = vmul.f32 %v5608, %v3686
    %v5613 = vrot.slane %v5609, 2
    %v5614 = vrot.slane %v5610, 2
    %5615 = vrot.lane.b32.xlu0 %v5613, 126
    %v5616 = vpop.permute.xlu0 %5615
    %5617 = vrot.lane.b32.xlu0 %v5614, 126
    %v5618 = vpop.permute.xlu0 %5617
    %v5621 = vadd.f32 %v5557, %v5616
    %v5622 = vadd.f32 %v5558, %v5618
    %s5623 = sld [smem:[#allocation6 + $0x8f]]
    %v5624 = vstv %s5623
    %v5625 = vmul.f32 %v5624, %v3577
    %v5626 = vmul.f32 %v5624, %v3686
    %v5629 = vrot.slane %v5625, 2
    %v5630 = vrot.slane %v5626, 2
    %5631 = vrot.lane.b32.xlu0 %v5629, 126
    %v5632 = vpop.permute.xlu0 %5631
    %5633 = vrot.lane.b32.xlu0 %v5630, 126
    %v5634 = vpop.permute.xlu0 %5633
    %v5637 = vadd.f32 %v5573, %v5632
    %v5638 = vadd.f32 %v5574, %v5634
    %s5639 = sld [smem:[#allocation7]]
    %v5640 = vstv %s5639
    %v5641 = vadd.f32 %v5589, %v5640
    %v5642 = vadd.f32 %v5590, %v5640
    %v5643 = vmax.f32 %v5641, 0.0
    %v5644 = vmax.f32 %v5642, 0.0
    %s5645 = sld [smem:[#allocation7 + $0x1]]
    %v5646 = vstv %s5645
    %v5647 = vadd.f32 %v5605, %v5646
    %v5648 = vadd.f32 %v5606, %v5646
    %v5649 = vmax.f32 %v5647, 0.0
    %v5650 = vmax.f32 %v5648, 0.0
    %v5651 = vmax.f32 %v5643, %v5649
    %v5652 = vmax.f32 %v5644, %v5650
    %s5653 = sld [smem:[#allocation7 + $0x2]]
    %v5654 = vstv %s5653
    %v5655 = vadd.f32 %v5621, %v5654
    %v5656 = vadd.f32 %v5622, %v5654
    %v5657 = vmax.f32 %v5655, 0.0
    %v5658 = vmax.f32 %v5656, 0.0
    %v5659 = vmax.f32 %v5651, %v5657
    %v5660 = vmax.f32 %v5652, %v5658
    %s5661 = sld [smem:[#allocation7 + $0x3]]
    %v5662 = vstv %s5661
    %v5663 = vadd.f32 %v5637, %v5662
    %v5664 = vadd.f32 %v5638, %v5662
    %v5665 = vmax.f32 %v5663, 0.0
    %v5666 = vmax.f32 %v5664, 0.0
    %v5667 = vmax.f32 %v5659, %v5665
    %v5668 = vmax.f32 %v5660, %v5666
    %vm5669 = vcmask 36864
    %v5670 = vsel %vm5669, %v5667, -inf
    %v5671 = vrot.slane %v5670, 4
    %v5672 = vmax.f32 %v5670, %v5671
    %v5673 = vrot.slane %v5672, 2
    %v5674 = vmax.f32 %v5672, %v5673
    %v5675 = vrot.slane %v5674, 1
    %v5676 = vmax.f32 %v5674, %v5675
    %v5677 = vsel %vm5669, %v5668, -inf
    %v5678 = vrot.slane %v5677, 4
    %v5679 = vmax.f32 %v5677, %v5678
    %v5680 = vrot.slane %v5679, 2
    %v5681 = vmax.f32 %v5679, %v5680
    %v5682 = vrot.slane %v5681, 1
    %v5683 = vmax.f32 %v5681, %v5682
    %v5684 = vld [vmem:[%s7] sm:$0x1f]
    %vm5687 = vcmask 1041409
    %v5688 = vsel %vm5687, %v5683, %v5676
    %vm5689 = vcmask 39936
    %v5690 = vsel %vm5689, %v5688, 0
    %vm5692 = vcmask 1044480
    %v5694 = vsel %vm5692, %v5684, 0
    %5696 = vmatprep.subr.mxu0 0.0
    %5697 = vmatpush1.msra.mxu0 %v5694
    %5698 = vmatprep.subr.mxu0 0.0
    %5699 = vmatpush1.msra.mxu0 0.0
    %5700 = vmatprep.subr.mxu0 0.0
    %5701 = vmatpush1.msra.mxu0 0.0
    %5702 = vmatprep.subr.mxu0 0.0
    %5703 = vmatpush1.msra.mxu0 0.0
    %5704 = vmatprep.subr.mxu0 0.0
    %5705 = vmatpush1.msra.mxu0 0.0
    %5706 = vmatprep.subr.mxu0 0.0
    %5707 = vmatpush1.msra.mxu0 0.0
    %5708 = vmatprep.subr.mxu0 0.0
    %5709 = vmatpush1.msra.mxu0 0.0
    %5710 = vmatprep.subr.mxu0 0.0
    %5711 = vmatpush1.msra.mxu0 0.0
    %5712 = vmatprep.subr.mxu0 0.0
    %5713 = vmatpush1.msra.mxu0 0.0
    %5714 = vmatprep.subr.mxu0 0.0
    %5715 = vmatpush1.msra.mxu0 0.0
    %5716 = vmatprep.subr.mxu0 0.0
    %5717 = vmatpush1.msra.mxu0 0.0
    %5718 = vmatprep.subr.mxu0 0.0
    %5719 = vmatpush1.msra.mxu0 0.0
    %5720 = vmatprep.subr.mxu0 0.0
    %5721 = vmatpush1.msra.mxu0 0.0
    %5722 = vmatprep.subr.mxu0 0.0
    %5723 = vmatpush1.msra.mxu0 0.0
    %5724 = vmatprep.subr.mxu0 0.0
    %5725 = vmatpush1.msra.mxu0 0.0
    %5726 = vmatprep.subr.mxu0 0.0
    %5727 = vmatpush1.msra.mxu0 0.0
    %5728 = vmatprep.subr.mxu0 0.0
    %5729 = vmatpush1.msra.mxu0 0.0
    %5730 = vmatprep.subr.mxu0 0.0
    %5731 = vmatpush1.msra.mxu0 0.0
    %5732 = vmatprep.subr.mxu0 0.0
    %5733 = vmatpush1.msra.mxu0 0.0
    %5734 = vmatprep.subr.mxu0 0.0
    %5735 = vmatpush1.msra.mxu0 0.0
    %5736 = vmatprep.subr.mxu0 0.0
    %5737 = vmatpush1.msra.mxu0 0.0
    %5738 = vmatprep.subr.mxu0 0.0
    %5739 = vmatpush1.msra.mxu0 0.0
    %5740 = vmatprep.subr.mxu0 0.0
    %5741 = vmatpush1.msra.mxu0 0.0
    %5742 = vmatprep.subr.mxu0 0.0
    %5743 = vmatpush1.msra.mxu0 0.0
    %5744 = vmatprep.subr.mxu0 0.0
    %5745 = vmatpush1.msra.mxu0 0.0
    %5746 = vmatprep.subr.mxu0 0.0
    %5747 = vmatpush1.msra.mxu0 0.0
    %5748 = vmatprep.subr.mxu0 0.0
    %5749 = vmatpush1.msra.mxu0 0.0
    %5750 = vmatprep.subr.mxu0 0.0
    %5751 = vmatpush1.msra.mxu0 0.0
    %5752 = vmatprep.subr.mxu0 0.0
    %5753 = vmatpush1.msra.mxu0 0.0
    %5754 = vmatprep.subr.mxu0 0.0
    %5755 = vmatpush1.msra.mxu0 0.0
    %5756 = vmatprep.subr.mxu0 0.0
    %5757 = vmatpush1.msra.mxu0 0.0
    %5758 = vmatprep.subr.mxu0 0.0
    %5759 = vmatpush1.msra.mxu0 0.0
    %5760 = vmatprep.mubr.f32.mxu0 0.0
    %5761 = vmatmul.mubr.f32.gmra.mrb[0].mxu0 %v5690
    %v5762 = vpop.f32.mrb[0].mxu0
    %v5763 = vadd.f32 0.0, %v5762
    %v5764 = vpop.f32.mrb[0].mxu0
    %5765 = vdwg.mxu0
    %5767 = vrot.lane.b32.xlu0 %v5763, 120
    %v5768 = vpop.permute.xlu0 %5767
    %v5770 = vmax.f32 %v5763, %v5768
    %vm5771 = vcmask 58368
    %5772 = vst.msk [vmem:[#allocation8] sm:$0x3] %vm5771, %v5770
    // Predicated region
    $region18: #{_lambda_.1} parent=1 // pred_check
      _
    $region19: #{_lambda_.1} parent=1 // pred_check_branch
      %5774 = sbr.rel (0) target = $region21
    $region20: #{_lambda_.1} parent=1 // pred_region
      %s5776 = ssub.s32 32, 32
      %5777 = vsyncadd [#allocation9], %s5776
      %s5779 = sshll.u32 [#allocation8], 4
      %s5780 = int_to_ptr.vmem [resolvable:$true] %s5779
      %5782 = dma.vmem_to_hbm [thread:$0]  %s5780, 32, %s8, [#allocation9]
    $region21: #{_lambda_.1} parent=1 // pred_fallthru
      _
    // Predicated region
    $region22: #{_lambda_.1} parent=1 // pred_check
      _
    $region23: #{_lambda_.1} parent=1 // pred_check_branch
      %5784 = sbr.rel (0) target = $region25
    $region24: #{_lambda_.1} parent=1 // pred_region
      %5785 = dma.done [#allocation9], 32
    $region25: #{_lambda_.1} parent=1 // pred_fallthru
      _
    %5786 = vsyncpa [#allocation9], 1

</llo_original>
